<compile_context>
chip_gen: v7x
topology: tpu7x:2x2x1
jax: 0.10.0
libtpu: 0.0.40
codegen_flags: <defaults>
</compile_context>

<pallas_src>
import functools

import jax
import jax.numpy as jnp
from jax.experimental import pallas as pl
from jax.experimental.pallas import tpu as pltpu


# ----------------------------------------------------------------------------
# Pallas kernels
# ----------------------------------------------------------------------------
def matmul_leaky_kernel(p_ref, w_ref, o_ref):
    # p_ref: (TM, KDp) bf16   w_ref: (KDp, Cp) bf16   o_ref: (TM, Cp) bf16
    y = jnp.dot(p_ref[...], w_ref[...], preferred_element_type=jnp.float32)
    y = jnp.where(y > 0.0, y, 0.2 * y)                  # LeakyReLU(0.2) in f32
    o_ref[...] = y.astype(o_ref.dtype)


def matmul_stats_kernel(p_ref, w_ref, y_ref, s1_ref, s2_ref):
    # Pass 1 of a BN layer: tiled matmul + per-tile sum / sum-of-squares.
    y = jnp.dot(p_ref[...], w_ref[...], preferred_element_type=jnp.float32)
    y_ref[...] = y                                       # pre-BN activations (f32)
    s1_ref[...] = jnp.sum(y, axis=0, keepdims=True)[None]        # (1, 1, Cp)
    s2_ref[...] = jnp.sum(y * y, axis=0, keepdims=True)[None]    # (1, 1, Cp)


def bn_leaky_kernel(y_ref, sc_ref, sh_ref, o_ref):
    # Pass 2: y * scale + shift  ==  (y - mean) * gamma/sqrt(var+eps) + beta
    h = y_ref[...] * sc_ref[...] + sh_ref[...]
    h = jnp.where(h > 0.0, h, 0.2 * h)
    o_ref[...] = h.astype(o_ref.dtype)


def bn_leaky_head_kernel(y_ref, sc_ref, sh_ref, w5_ref, o_ref):
    # Pass 2 of layer 4 fused with the final 1x1 conv + Sigmoid head.
    h = y_ref[...] * sc_ref[...] + sh_ref[...]
    h = jnp.where(h > 0.0, h, 0.2 * h)
    z = jnp.dot(h.astype(jnp.bfloat16), w5_ref[...],
                preferred_element_type=jnp.float32)
    # Overflow-safe sigmoid (no inf intermediates).
    ez = jnp.exp(-jnp.abs(z))
    o_ref[...] = jnp.where(z >= 0.0, 1.0 / (1.0 + ez), ez / (1.0 + ez))


# ----------------------------------------------------------------------------
# Glue: im2col, padding, layer drivers
# ----------------------------------------------------------------------------
def _round_up(x, m):
    return (x + m - 1) // m * m


def _compiler_params(allow_fusion, n_inputs):
    kw = dict(dimension_semantics=("parallel",),
              vmem_limit_bytes=32 * 1024 * 1024)
    if allow_fusion:
        # Let XLA fuse the im2col producer of the patches operand into the call.
        kw["allow_input_fusion"] = [True] + [False] * (n_inputs - 1)
    return pltpu.CompilerParams(**kw)


def _im2col(x_nhwc, k, s, p):
    """(N,H,W,C) -> (N*Ho*Wo, k*k*C); flattening order (kh, kw, cin) matches the
    PyTorch weight (Cout, Cin, kH, kW) transposed to (kH, kW, Cin, Cout)."""
    N, H, W, C = x_nhwc.shape
    xp = jnp.pad(x_nhwc, ((0, 0), (p, p), (p, p), (0, 0)))
    Ho = (H + 2 * p - k) // s + 1
    Wo = (W + 2 * p - k) // s + 1
    cols = []
    for ki in range(k):
        for kj in range(k):
            cols.append(xp[:, ki:ki + s * Ho:s, kj:kj + s * Wo:s, :])
    pat = jnp.stack(cols, axis=3)                        # (N, Ho, Wo, k*k, C)
    return pat.reshape(N * Ho * Wo, k * k * C), Ho, Wo


def _prep_operands(x_nhwc, w_oihw, k, s, p):
    N = x_nhwc.shape[0]
    patches, Ho, Wo = _im2col(x_nhwc, k, s, p)
    Cout = w_oihw.shape[0]
    wmat = jnp.transpose(w_oihw, (2, 3, 1, 0)).reshape(-1, Cout)
    M, KD = patches.shape
    KDp = _round_up(KD, 128)                             # dense K lanes
    Cp = _round_up(Cout, 128)                            # unmasked output stores
    TM = 512 if M >= 512 else _round_up(M, 8)            # M tile (v5e/v6e/v7x safe)
    Mp = _round_up(M, TM)
    patches = jnp.pad(patches, ((0, Mp - M), (0, KDp - KD))).astype(jnp.bfloat16)
    wmat = jnp.pad(wmat, ((0, KDp - KD), (0, Cp - Cout))).astype(jnp.bfloat16)
    meta = dict(N=N, Ho=Ho, Wo=Wo, M=M, Mp=Mp, TM=TM, Cout=Cout, Cp=Cp, KDp=KDp)
    return patches, wmat, meta


def _conv_leaky(x_nhwc, w, *, k, s, p, allow_fusion):
    patches, wmat, m = _prep_operands(x_nhwc, w, k, s, p)
    grid_m = m["Mp"] // m["TM"]
    out = pl.pallas_call(
        matmul_leaky_kernel,
        out_shape=jax.ShapeDtypeStruct((m["Mp"], m["Cp"]), jnp.bfloat16),
        grid=(grid_m,),
        in_specs=[pl.BlockSpec((m["TM"], m["KDp"]), lambda i: (i, 0)),
                  pl.BlockSpec((m["KDp"], m["Cp"]), lambda i: (0, 0))],
        out_specs=pl.BlockSpec((m["TM"], m["Cp"]), lambda i: (i, 0)),
        compiler_params=_compiler_params(allow_fusion, 2),
    )(patches, wmat)
    return out[:m["M"], :m["Cout"]].reshape(m["N"], m["Ho"], m["Wo"], m["Cout"])


def _conv_bn_leaky(x_nhwc, w, gamma, beta, *, k, s, p, allow_fusion, head_w=None):
    patches, wmat, m = _prep_operands(x_nhwc, w, k, s, p)
    TM, Mp, Cp, Cout, KDp = m["TM"], m["Mp"], m["Cp"], m["Cout"], m["KDp"]
    grid_m = Mp // TM

    # Pass 1: tiled matmul + per-tile partial stats.
    y, ssum, ssq = pl.pallas_call(
        matmul_stats_kernel,
        out_shape=(jax.ShapeDtypeStruct((Mp, Cp), jnp.float32),
                   jax.ShapeDtypeStruct((grid_m, 1, Cp), jnp.float32),
                   jax.ShapeDtypeStruct((grid_m, 1, Cp), jnp.float32)),
        grid=(grid_m,),
        in_specs=[pl.BlockSpec((TM, KDp), lambda i: (i, 0)),
                  pl.BlockSpec((KDp, Cp), lambda i: (0, 0))],
        out_specs=(pl.BlockSpec((TM, Cp), lambda i: (i, 0)),
                   pl.BlockSpec((1, 1, Cp), lambda i: (i, 0, 0)),
                   pl.BlockSpec((1, 1, Cp), lambda i: (i, 0, 0))),
        compiler_params=_compiler_params(allow_fusion, 2),
    )(patches, wmat)

    # Tiny JAX reduction: whole-batch mean/var (biased, eps=1e-5), folded into
    # per-channel scale/shift.  Zero-padded rows/channels contribute nothing.
    m_real = jnp.float32(m["M"])
    mean = jnp.sum(ssum[:, 0, :], axis=0) / m_real
    var = jnp.maximum(jnp.sum(ssq[:, 0, :], axis=0) / m_real - mean * mean, 0.0)
    g = jnp.pad(gamma.astype(jnp.float32), (0, Cp - Cout))
    b = jnp.pad(beta.astype(jnp.float32), (0, Cp - Cout))
    scale_v = g * jax.lax.rsqrt(var + 1e-5)
    shift_v = b - mean * scale_v
    scale = scale_v.reshape(1, Cp)
    shift = shift_v.reshape(1, Cp)

    if head_w is None:
        # Pass 2: normalize + affine + LeakyReLU (tiled, parallel).
        out = pl.pallas_call(
            bn_leaky_kernel,
            out_shape=jax.ShapeDtypeStruct((Mp, Cp), jnp.bfloat16),
            grid=(grid_m,),
            in_specs=[pl.BlockSpec((TM, Cp), lambda i: (i, 0)),
                      pl.BlockSpec((1, Cp), lambda i: (0, 0)),
                      pl.BlockSpec((1, Cp), lambda i: (0, 0))],
            out_specs=pl.BlockSpec((TM, Cp), lambda i: (i, 0)),
            compiler_params=_compiler_params(False, 3),
        )(y, scale, shift)
        return out[:m["M"], :Cout].reshape(m["N"], m["Ho"], m["Wo"], Cout)

    # Pass 2 fused with the final 1x1 conv + Sigmoid head (layer 4 + layer 5).
    C5 = head_w.shape[0]                                 # = 1
    C5p = 128
    w5 = jnp.transpose(head_w, (2, 3, 1, 0)).reshape(Cout, C5)
    w5 = jnp.pad(w5, ((0, Cp - Cout), (0, C5p - C5))).astype(jnp.bfloat16)
    out = pl.pallas_call(
        bn_leaky_head_kernel,
        out_shape=jax.ShapeDtypeStruct((Mp, C5p), jnp.float32),
        grid=(grid_m,),
        in_specs=[pl.BlockSpec((TM, Cp), lambda i: (i, 0)),
                  pl.BlockSpec((1, Cp), lambda i: (0, 0)),
                  pl.BlockSpec((1, Cp), lambda i: (0, 0)),
                  pl.BlockSpec((Cp, C5p), lambda i: (0, 0))],
        out_specs=pl.BlockSpec((TM, C5p), lambda i: (i, 0)),
        compiler_params=_compiler_params(False, 4),
    )(y, scale, shift, w5)
    return out[:m["M"], :C5].reshape(m["N"], m["Ho"], m["Wo"], C5)


# ----------------------------------------------------------------------------
# Full Discriminator forward
# ----------------------------------------------------------------------------
def init_params(key, nc, ndf):
    ks = jax.random.split(key, 5)
    std = 0.02  # DCGAN-style init, deterministic via PRNGKey
    return {
        "w1": jax.random.normal(ks[0], (ndf, nc, 4, 4), jnp.float32) * std,
        "w2": jax.random.normal(ks[1], (ndf * 2, ndf, 4, 4), jnp.float32) * std,
        "w3": jax.random.normal(ks[2], (ndf * 4, ndf * 2, 4, 4), jnp.float32) * std,
        "w4": jax.random.normal(ks[3], (ndf * 8, ndf * 4, 4, 4), jnp.float32) * std,
        "w5": jax.random.normal(ks[4], (1, ndf * 8, 1, 1), jnp.float32) * std,
        "g2": jnp.ones((ndf * 2,), jnp.float32), "b2": jnp.zeros((ndf * 2,), jnp.float32),
        "g3": jnp.ones((ndf * 4,), jnp.float32), "b3": jnp.zeros((ndf * 4,), jnp.float32),
        "g4": jnp.ones((ndf * 8,), jnp.float32), "b4": jnp.zeros((ndf * 8,), jnp.float32),
    }


def discriminator_forward(x_nchw, params, *, allow_fusion=True):
    # NCHW -> NHWC for the internal pipeline.
    x = jnp.transpose(x_nchw, (0, 2, 3, 1)).astype(jnp.float32)
    x = _conv_leaky(x, params["w1"], k=4, s=2, p=1, allow_fusion=allow_fusion)
    x = _conv_bn_leaky(x, params["w2"], params["g2"], params["b2"],
                       k=4, s=2, p=1, allow_fusion=allow_fusion)
    x = _conv_bn_leaky(x, params["w3"], params["g3"], params["b3"],
                       k=4, s=2, p=1, allow_fusion=allow_fusion)
    # Layer 4 (conv + BN + LeakyReLU) with the 1x1-conv + Sigmoid head fused in.
    x = _conv_bn_leaky(x, params["w4"], params["g4"], params["b4"],
                       k=4, s=2, p=1, allow_fusion=allow_fusion,
                       head_w=params["w5"])
    return jnp.transpose(x, (0, 3, 1, 2))                # NHWC -> NCHW


# ----------------------------------------------------------------------------
# Pure-JAX reference (bf16 matmul inputs, f32 accumulation/BN — mirrors kernel)
# ----------------------------------------------------------------------------
def _ref_conv(x_nchw, w, s, p):
    return jax.lax.conv_general_dilated(
        x_nchw.astype(jnp.bfloat16), w.astype(jnp.bfloat16),
        window_strides=(s, s), padding=[(p, p), (p, p)],
        dimension_numbers=("NCHW", "OIHW", "NCHW"),
        preferred_element_type=jnp.float32)


def _ref_bn(x, g, b):
    mean = jnp.mean(x, axis=(0, 2, 3), keepdims=True)
    var = jnp.mean((x - mean) ** 2, axis=(0, 2, 3), keepdims=True)
    xh = (x - mean) * jax.lax.rsqrt(var + 1e-5)
    return xh * g.reshape(1, -1, 1, 1) + b.reshape(1, -1, 1, 1)


def _lrelu(x):
    return jnp.where(x > 0.0, x, 0.2 * x)


def reference_forward(x, p):
    y = _lrelu(_ref_conv(x, p["w1"], 2, 1))
    y = _lrelu(_ref_bn(_ref_conv(y, p["w2"], 2, 1), p["g2"], p["b2"]))
    y = _lrelu(_ref_bn(_ref_conv(y, p["w3"], 2, 1), p["g3"], p["b3"]))
    y = _lrelu(_ref_bn(_ref_conv(y, p["w4"], 2, 1), p["g4"], p["b4"]))
    y = jax.nn.sigmoid(_ref_conv(y, p["w5"], 1, 0))
    return y


# ----------------------------------------------------------------------------
if __name__ == "__main__":
    key = jax.random.PRNGKey(0)
    k_x, k_p = jax.random.split(key)

    N, nc, H, W = 2, 3, 32, 32
    ndf = 8

    x = jax.random.normal(k_x, (N, nc, H, W), jnp.float32)
    params = init_params(k_p, nc, ndf)

    fwd = jax.jit(functools.partial(discriminator_forward, allow_fusion=True))
    try:
        out = jax.block_until_ready(fwd(x, params))
    except Exception:
        # Safety net: identical kernels without the XLA input-fusion hint.
        fwd = jax.jit(functools.partial(discriminator_forward, allow_fusion=False))
        out = jax.block_until_ready(fwd(x, params))

    assert out.shape == (N, 1, H // 16, W // 16), out.shape

    ref = jax.block_until_ready(jax.jit(reference_forward)(x, params))
    err = float(jnp.max(jnp.abs(out - ref)))
    assert err < 5e-3, err

    print("KERNEL_OK")
</pallas_src>

<mosaic_0001>
module attributes {stable_mosaic.version = 11 : i64} {
  func.func @matmul_leaky_kernel(%arg0: i32, %arg1: memref<512x128xbf16, #tpu.memory_space<vmem>>, %arg2: memref<128x128xbf16, #tpu.memory_space<vmem>>, %arg3: memref<512x128xbf16, #tpu.memory_space<vmem>>) attributes {dimension_semantics = [#tpu.dimension_semantics<parallel>], iteration_bounds = array<i64: 1>, scalar_prefetch = 0 : i64, scratch_operands = 0 : i64, tpu.core_type = #tpu.core_type<tc>, window_params = [{transform_indices = @transform_0, window_bounds = array<i64: 512, 128>}, {pipeline_mode = #tpu.pipeline_mode<synchronous>, transform_indices = @transform_1, window_bounds = array<i64: 128, 128>}, {transform_indices = @transform_2, window_bounds = array<i64: 512, 128>}]} {
    %c0 = arith.constant 0 : index
    %c0_0 = arith.constant 0 : index
    %0 = vector.load %arg1[%c0, %c0_0] : memref<512x128xbf16, #tpu.memory_space<vmem>>, vector<512x128xbf16>
    %c0_1 = arith.constant 0 : index
    %c0_2 = arith.constant 0 : index
    %1 = vector.load %arg2[%c0_1, %c0_2] : memref<128x128xbf16, #tpu.memory_space<vmem>>, vector<128x128xbf16>
    %cst = arith.constant dense<0.000000e+00> : vector<512x128xf32>
    %2 = tpu.matmul %0, %1, %cst {dimension_numbers = #tpu.dot_dimension_numbers<[1], [0], [0], [1], [0, 0, 1, 1], [], []>} : vector<512x128xbf16>, vector<128x128xbf16>, vector<512x128xf32> -> vector<512x128xf32>
    %cst_3 = arith.constant 0.000000e+00 : f32
    %3 = vector.broadcast %cst_3 : f32 to vector<512x128xf32>
    %4 = arith.cmpf ogt, %2, %3 : vector<512x128xf32>
    %cst_4 = arith.constant 2.000000e-01 : f32
    %5 = vector.broadcast %cst_4 : f32 to vector<512x128xf32>
    %6 = arith.mulf %5, %2 : vector<512x128xf32>
    %7 = arith.select %4, %2, %6 : vector<512x128xi1>, vector<512x128xf32>
    %8 = arith.truncf %7 : vector<512x128xf32> to vector<512x128xbf16>
    %c0_5 = arith.constant 0 : index
    %c0_6 = arith.constant 0 : index
    %9 = vector.load %arg3[%c0_5, %c0_6] : memref<512x128xbf16, #tpu.memory_space<vmem>>, vector<512x128xbf16>
    tpu.vector_store %arg3[%c0_5, %c0_6], %8 {strides = array<i32>} : memref<512x128xbf16, #tpu.memory_space<vmem>>, vector<512x128xbf16>,
    return
  }
  func.func @transform_0(%arg0: i32) -> (i32, i32) {
    %c0_i32 = arith.constant 0 : i32
    %c0_i32_0 = arith.constant 0 : i32
    return %arg0, %c0_i32 : i32, i32
  }
  func.func @transform_1(%arg0: i32) -> (i32, i32) {
    %c0_i32 = arith.constant 0 : i32
    %c0_i32_0 = arith.constant 0 : i32
    %c0_i32_1 = arith.constant 0 : i32
    return %c0_i32, %c0_i32_0 : i32, i32
  }
  func.func @transform_2(%arg0: i32) -> (i32, i32) {
    %c0_i32 = arith.constant 0 : i32
    %c0_i32_0 = arith.constant 0 : i32
    return %arg0, %c0_i32 : i32, i32
  }
}

module attributes {stable_mosaic.version = 11 : i64} {
  func.func @matmul_stats_kernel(%arg0: i32, %arg1: memref<128x128xbf16, #tpu.memory_space<vmem>>, %arg2: memref<128x128xbf16, #tpu.memory_space<vmem>>, %arg3: memref<128x128xf32, #tpu.memory_space<vmem>>, %arg4: memref<1x1x128xf32, #tpu.memory_space<vmem>>, %arg5: memref<1x1x128xf32, #tpu.memory_space<vmem>>) attributes {dimension_semantics = [#tpu.dimension_semantics<parallel>], iteration_bounds = array<i64: 1>, scalar_prefetch = 0 : i64, scratch_operands = 0 : i64, tpu.core_type = #tpu.core_type<tc>, window_params = [{transform_indices = @transform_0, window_bounds = array<i64: 128, 128>}, {pipeline_mode = #tpu.pipeline_mode<synchronous>, transform_indices = @transform_1, window_bounds = array<i64: 128, 128>}, {transform_indices = @transform_2, window_bounds = array<i64: 128, 128>}, {transform_indices = @transform_3, window_bounds = array<i64: 1, 1, 128>}, {transform_indices = @transform_4, window_bounds = array<i64: 1, 1, 128>}]} {
    %c0 = arith.constant 0 : index
    %c0_0 = arith.constant 0 : index
    %0 = vector.load %arg1[%c0, %c0_0] : memref<128x128xbf16, #tpu.memory_space<vmem>>, vector<128x128xbf16>
    %c0_1 = arith.constant 0 : index
    %c0_2 = arith.constant 0 : index
    %1 = vector.load %arg2[%c0_1, %c0_2] : memref<128x128xbf16, #tpu.memory_space<vmem>>, vector<128x128xbf16>
    %cst = arith.constant dense<0.000000e+00> : vector<128x128xf32>
    %2 = tpu.matmul %0, %1, %cst {dimension_numbers = #tpu.dot_dimension_numbers<[1], [0], [0], [1], [0, 0, 1, 1], [], []>} : vector<128x128xbf16>, vector<128x128xbf16>, vector<128x128xf32> -> vector<128x128xf32>
    %c0_3 = arith.constant 0 : index
    %c0_4 = arith.constant 0 : index
    %3 = vector.load %arg3[%c0_3, %c0_4] : memref<128x128xf32, #tpu.memory_space<vmem>>, vector<128x128xf32>
    tpu.vector_store %arg3[%c0_3, %c0_4], %2 {strides = array<i32>} : memref<128x128xf32, #tpu.memory_space<vmem>>, vector<128x128xf32>,
    %cst_5 = arith.constant dense<0.000000e+00> : vector<128xf32>
    %4 = vector.multi_reduction <add>, %2, %cst_5 [0] : vector<128x128xf32> to vector<128xf32>
    %5 = vector.shape_cast %4 : vector<128xf32> to vector<1x128xf32>
    %6 = vector.shape_cast %5 : vector<1x128xf32> to vector<1x1x128xf32>
    %c0_6 = arith.constant 0 : index
    %c0_7 = arith.constant 0 : index
    %c0_8 = arith.constant 0 : index
    %7 = vector.load %arg4[%c0_6, %c0_7, %c0_8] : memref<1x1x128xf32, #tpu.memory_space<vmem>>, vector<1x1x128xf32>
    tpu.vector_store %arg4[%c0_6, %c0_7, %c0_8], %6 {strides = array<i32>} : memref<1x1x128xf32, #tpu.memory_space<vmem>>, vector<1x1x128xf32>,
    %8 = arith.mulf %2, %2 : vector<128x128xf32>
    %cst_9 = arith.constant dense<0.000000e+00> : vector<128xf32>
    %9 = vector.multi_reduction <add>, %8, %cst_9 [0] : vector<128x128xf32> to vector<128xf32>
    %10 = vector.shape_cast %9 : vector<128xf32> to vector<1x128xf32>
    %11 = vector.shape_cast %10 : vector<1x128xf32> to vector<1x1x128xf32>
    %c0_10 = arith.constant 0 : index
    %c0_11 = arith.constant 0 : index
    %c0_12 = arith.constant 0 : index
    %12 = vector.load %arg5[%c0_10, %c0_11, %c0_12] : memref<1x1x128xf32, #tpu.memory_space<vmem>>, vector<1x1x128xf32>
    tpu.vector_store %arg5[%c0_10, %c0_11, %c0_12], %11 {strides = array<i32>} : memref<1x1x128xf32, #tpu.memory_space<vmem>>, vector<1x1x128xf32>,
    return
  }
  func.func @transform_0(%arg0: i32) -> (i32, i32) {
    %c0_i32 = arith.constant 0 : i32
    %c0_i32_0 = arith.constant 0 : i32
    return %arg0, %c0_i32 : i32, i32
  }
  func.func @transform_1(%arg0: i32) -> (i32, i32) {
    %c0_i32 = arith.constant 0 : i32
    %c0_i32_0 = arith.constant 0 : i32
    %c0_i32_1 = arith.constant 0 : i32
    return %c0_i32, %c0_i32_0 : i32, i32
  }
  func.func @transform_2(%arg0: i32) -> (i32, i32) {
    %c0_i32 = arith.constant 0 : i32
    %c0_i32_0 = arith.constant 0 : i32
    return %arg0, %c0_i32 : i32, i32
  }
  func.func @transform_3(%arg0: i32) -> (i32, i32, i32) {
    %c0_i32 = arith.constant 0 : i32
    %c0_i32_0 = arith.constant 0 : i32
    %c0_i32_1 = arith.constant 0 : i32
    return %arg0, %c0_i32, %c0_i32_0 : i32, i32, i32
  }
  func.func @transform_4(%arg0: i32) -> (i32, i32, i32) {
    %c0_i32 = arith.constant 0 : i32
    %c0_i32_0 = arith.constant 0 : i32
    %c0_i32_1 = arith.constant 0 : i32
    return %arg0, %c0_i32, %c0_i32_0 : i32, i32, i32
  }
}

module attributes {stable_mosaic.version = 11 : i64} {
  func.func @bn_leaky_kernel(%arg0: i32, %arg1: memref<128x128xf32, #tpu.memory_space<vmem>>, %arg2: memref<1x128xf32, #tpu.memory_space<vmem>>, %arg3: memref<1x128xf32, #tpu.memory_space<vmem>>, %arg4: memref<128x128xbf16, #tpu.memory_space<vmem>>) attributes {dimension_semantics = [#tpu.dimension_semantics<parallel>], iteration_bounds = array<i64: 1>, scalar_prefetch = 0 : i64, scratch_operands = 0 : i64, tpu.core_type = #tpu.core_type<tc>, window_params = [{transform_indices = @transform_0, window_bounds = array<i64: 128, 128>}, {pipeline_mode = #tpu.pipeline_mode<synchronous>, transform_indices = @transform_1, window_bounds = array<i64: 1, 128>}, {pipeline_mode = #tpu.pipeline_mode<synchronous>, transform_indices = @transform_2, window_bounds = array<i64: 1, 128>}, {transform_indices = @transform_3, window_bounds = array<i64: 128, 128>}]} {
    %c0 = arith.constant 0 : index
    %c0_0 = arith.constant 0 : index
    %0 = vector.load %arg1[%c0, %c0_0] : memref<128x128xf32, #tpu.memory_space<vmem>>, vector<128x128xf32>
    %c0_1 = arith.constant 0 : index
    %c0_2 = arith.constant 0 : index
    %1 = vector.load %arg2[%c0_1, %c0_2] : memref<1x128xf32, #tpu.memory_space<vmem>>, vector<1x128xf32>
    %2 = vector.broadcast %1 : vector<1x128xf32> to vector<128x128xf32>
    %3 = arith.mulf %0, %2 : vector<128x128xf32>
    %c0_3 = arith.constant 0 : index
    %c0_4 = arith.constant 0 : index
    %4 = vector.load %arg3[%c0_3, %c0_4] : memref<1x128xf32, #tpu.memory_space<vmem>>, vector<1x128xf32>
    %5 = vector.broadcast %4 : vector<1x128xf32> to vector<128x128xf32>
    %6 = arith.addf %3, %5 : vector<128x128xf32>
    %cst = arith.constant 0.000000e+00 : f32
    %7 = vector.broadcast %cst : f32 to vector<128x128xf32>
    %8 = arith.cmpf ogt, %6, %7 : vector<128x128xf32>
    %cst_5 = arith.constant 2.000000e-01 : f32
    %9 = vector.broadcast %cst_5 : f32 to vector<128x128xf32>
    %10 = arith.mulf %9, %6 : vector<128x128xf32>
    %11 = arith.select %8, %6, %10 : vector<128x128xi1>, vector<128x128xf32>
    %12 = arith.truncf %11 : vector<128x128xf32> to vector<128x128xbf16>
    %c0_6 = arith.constant 0 : index
    %c0_7 = arith.constant 0 : index
    %13 = vector.load %arg4[%c0_6, %c0_7] : memref<128x128xbf16, #tpu.memory_space<vmem>>, vector<128x128xbf16>
    tpu.vector_store %arg4[%c0_6, %c0_7], %12 {strides = array<i32>} : memref<128x128xbf16, #tpu.memory_space<vmem>>, vector<128x128xbf16>,
    return
  }
  func.func @transform_0(%arg0: i32) -> (i32, i32) {
    %c0_i32 = arith.constant 0 : i32
    %c0_i32_0 = arith.constant 0 : i32
    return %arg0, %c0_i32 : i32, i32
  }
  func.func @transform_1(%arg0: i32) -> (i32, i32) {
    %c0_i32 = arith.constant 0 : i32
    %c0_i32_0 = arith.constant 0 : i32
    %c0_i32_1 = arith.constant 0 : i32
    return %c0_i32, %c0_i32_0 : i32, i32
  }
  func.func @transform_2(%arg0: i32) -> (i32, i32) {
    %c0_i32 = arith.constant 0 : i32
    %c0_i32_0 = arith.constant 0 : i32
    %c0_i32_1 = arith.constant 0 : i32
    return %c0_i32, %c0_i32_0 : i32, i32
  }
  func.func @transform_3(%arg0: i32) -> (i32, i32) {
    %c0_i32 = arith.constant 0 : i32
    %c0_i32_0 = arith.constant 0 : i32
    return %arg0, %c0_i32 : i32, i32
  }
}

module attributes {stable_mosaic.version = 11 : i64} {
  func.func @matmul_stats_kernel(%arg0: i32, %arg1: memref<32x256xbf16, #tpu.memory_space<vmem>>, %arg2: memref<256x128xbf16, #tpu.memory_space<vmem>>, %arg3: memref<32x128xf32, #tpu.memory_space<vmem>>, %arg4: memref<1x1x128xf32, #tpu.memory_space<vmem>>, %arg5: memref<1x1x128xf32, #tpu.memory_space<vmem>>) attributes {dimension_semantics = [#tpu.dimension_semantics<parallel>], iteration_bounds = array<i64: 1>, scalar_prefetch = 0 : i64, scratch_operands = 0 : i64, tpu.core_type = #tpu.core_type<tc>, window_params = [{transform_indices = @transform_0, window_bounds = array<i64: 32, 256>}, {pipeline_mode = #tpu.pipeline_mode<synchronous>, transform_indices = @transform_1, window_bounds = array<i64: 256, 128>}, {transform_indices = @transform_2, window_bounds = array<i64: 32, 128>}, {transform_indices = @transform_3, window_bounds = array<i64: 1, 1, 128>}, {transform_indices = @transform_4, window_bounds = array<i64: 1, 1, 128>}]} {
    %c0 = arith.constant 0 : index
    %c0_0 = arith.constant 0 : index
    %0 = vector.load %arg1[%c0, %c0_0] : memref<32x256xbf16, #tpu.memory_space<vmem>>, vector<32x256xbf16>
    %c0_1 = arith.constant 0 : index
    %c0_2 = arith.constant 0 : index
    %1 = vector.load %arg2[%c0_1, %c0_2] : memref<256x128xbf16, #tpu.memory_space<vmem>>, vector<256x128xbf16>
    %cst = arith.constant dense<0.000000e+00> : vector<32x128xf32>
    %2 = tpu.matmul %0, %1, %cst {dimension_numbers = #tpu.dot_dimension_numbers<[1], [0], [0], [1], [0, 0, 1, 1], [], []>} : vector<32x256xbf16>, vector<256x128xbf16>, vector<32x128xf32> -> vector<32x128xf32>
    %c0_3 = arith.constant 0 : index
    %c0_4 = arith.constant 0 : index
    %3 = vector.load %arg3[%c0_3, %c0_4] : memref<32x128xf32, #tpu.memory_space<vmem>>, vector<32x128xf32>
    tpu.vector_store %arg3[%c0_3, %c0_4], %2 {strides = array<i32>} : memref<32x128xf32, #tpu.memory_space<vmem>>, vector<32x128xf32>,
    %cst_5 = arith.constant dense<0.000000e+00> : vector<128xf32>
    %4 = vector.multi_reduction <add>, %2, %cst_5 [0] : vector<32x128xf32> to vector<128xf32>
    %5 = vector.shape_cast %4 : vector<128xf32> to vector<1x128xf32>
    %6 = vector.shape_cast %5 : vector<1x128xf32> to vector<1x1x128xf32>
    %c0_6 = arith.constant 0 : index
    %c0_7 = arith.constant 0 : index
    %c0_8 = arith.constant 0 : index
    %7 = vector.load %arg4[%c0_6, %c0_7, %c0_8] : memref<1x1x128xf32, #tpu.memory_space<vmem>>, vector<1x1x128xf32>
    tpu.vector_store %arg4[%c0_6, %c0_7, %c0_8], %6 {strides = array<i32>} : memref<1x1x128xf32, #tpu.memory_space<vmem>>, vector<1x1x128xf32>,
    %8 = arith.mulf %2, %2 : vector<32x128xf32>
    %cst_9 = arith.constant dense<0.000000e+00> : vector<128xf32>
    %9 = vector.multi_reduction <add>, %8, %cst_9 [0] : vector<32x128xf32> to vector<128xf32>
    %10 = vector.shape_cast %9 : vector<128xf32> to vector<1x128xf32>
    %11 = vector.shape_cast %10 : vector<1x128xf32> to vector<1x1x128xf32>
    %c0_10 = arith.constant 0 : index
    %c0_11 = arith.constant 0 : index
    %c0_12 = arith.constant 0 : index
    %12 = vector.load %arg5[%c0_10, %c0_11, %c0_12] : memref<1x1x128xf32, #tpu.memory_space<vmem>>, vector<1x1x128xf32>
    tpu.vector_store %arg5[%c0_10, %c0_11, %c0_12], %11 {strides = array<i32>} : memref<1x1x128xf32, #tpu.memory_space<vmem>>, vector<1x1x128xf32>,
    return
  }
  func.func @transform_0(%arg0: i32) -> (i32, i32) {
    %c0_i32 = arith.constant 0 : i32
    %c0_i32_0 = arith.constant 0 : i32
    return %arg0, %c0_i32 : i32, i32
  }
  func.func @transform_1(%arg0: i32) -> (i32, i32) {
    %c0_i32 = arith.constant 0 : i32
    %c0_i32_0 = arith.constant 0 : i32
    %c0_i32_1 = arith.constant 0 : i32
    return %c0_i32, %c0_i32_0 : i32, i32
  }
  func.func @transform_2(%arg0: i32) -> (i32, i32) {
    %c0_i32 = arith.constant 0 : i32
    %c0_i32_0 = arith.constant 0 : i32
    return %arg0, %c0_i32 : i32, i32
  }
  func.func @transform_3(%arg0: i32) -> (i32, i32, i32) {
    %c0_i32 = arith.constant 0 : i32
    %c0_i32_0 = arith.constant 0 : i32
    %c0_i32_1 = arith.constant 0 : i32
    return %arg0, %c0_i32, %c0_i32_0 : i32, i32, i32
  }
  func.func @transform_4(%arg0: i32) -> (i32, i32, i32) {
    %c0_i32 = arith.constant 0 : i32
    %c0_i32_0 = arith.constant 0 : i32
    %c0_i32_1 = arith.constant 0 : i32
    return %arg0, %c0_i32, %c0_i32_0 : i32, i32, i32
  }
}

module attributes {stable_mosaic.version = 11 : i64} {
  func.func @bn_leaky_kernel(%arg0: i32, %arg1: memref<32x128xf32, #tpu.memory_space<vmem>>, %arg2: memref<1x128xf32, #tpu.memory_space<vmem>>, %arg3: memref<1x128xf32, #tpu.memory_space<vmem>>, %arg4: memref<32x128xbf16, #tpu.memory_space<vmem>>) attributes {dimension_semantics = [#tpu.dimension_semantics<parallel>], iteration_bounds = array<i64: 1>, scalar_prefetch = 0 : i64, scratch_operands = 0 : i64, tpu.core_type = #tpu.core_type<tc>, window_params = [{transform_indices = @transform_0, window_bounds = array<i64: 32, 128>}, {pipeline_mode = #tpu.pipeline_mode<synchronous>, transform_indices = @transform_1, window_bounds = array<i64: 1, 128>}, {pipeline_mode = #tpu.pipeline_mode<synchronous>, transform_indices = @transform_2, window_bounds = array<i64: 1, 128>}, {transform_indices = @transform_3, window_bounds = array<i64: 32, 128>}]} {
    %c0 = arith.constant 0 : index
    %c0_0 = arith.constant 0 : index
    %0 = vector.load %arg1[%c0, %c0_0] : memref<32x128xf32, #tpu.memory_space<vmem>>, vector<32x128xf32>
    %c0_1 = arith.constant 0 : index
    %c0_2 = arith.constant 0 : index
    %1 = vector.load %arg2[%c0_1, %c0_2] : memref<1x128xf32, #tpu.memory_space<vmem>>, vector<1x128xf32>
    %2 = vector.broadcast %1 : vector<1x128xf32> to vector<32x128xf32>
    %3 = arith.mulf %0, %2 : vector<32x128xf32>
    %c0_3 = arith.constant 0 : index
    %c0_4 = arith.constant 0 : index
    %4 = vector.load %arg3[%c0_3, %c0_4] : memref<1x128xf32, #tpu.memory_space<vmem>>, vector<1x128xf32>
    %5 = vector.broadcast %4 : vector<1x128xf32> to vector<32x128xf32>
    %6 = arith.addf %3, %5 : vector<32x128xf32>
    %cst = arith.constant 0.000000e+00 : f32
    %7 = vector.broadcast %cst : f32 to vector<32x128xf32>
    %8 = arith.cmpf ogt, %6, %7 : vector<32x128xf32>
    %cst_5 = arith.constant 2.000000e-01 : f32
    %9 = vector.broadcast %cst_5 : f32 to vector<32x128xf32>
    %10 = arith.mulf %9, %6 : vector<32x128xf32>
    %11 = arith.select %8, %6, %10 : vector<32x128xi1>, vector<32x128xf32>
    %12 = arith.truncf %11 : vector<32x128xf32> to vector<32x128xbf16>
    %c0_6 = arith.constant 0 : index
    %c0_7 = arith.constant 0 : index
    %13 = vector.load %arg4[%c0_6, %c0_7] : memref<32x128xbf16, #tpu.memory_space<vmem>>, vector<32x128xbf16>
    tpu.vector_store %arg4[%c0_6, %c0_7], %12 {strides = array<i32>} : memref<32x128xbf16, #tpu.memory_space<vmem>>, vector<32x128xbf16>,
    return
  }
  func.func @transform_0(%arg0: i32) -> (i32, i32) {
    %c0_i32 = arith.constant 0 : i32
    %c0_i32_0 = arith.constant 0 : i32
    return %arg0, %c0_i32 : i32, i32
  }
  func.func @transform_1(%arg0: i32) -> (i32, i32) {
    %c0_i32 = arith.constant 0 : i32
    %c0_i32_0 = arith.constant 0 : i32
    %c0_i32_1 = arith.constant 0 : i32
    return %c0_i32, %c0_i32_0 : i32, i32
  }
  func.func @transform_2(%arg0: i32) -> (i32, i32) {
    %c0_i32 = arith.constant 0 : i32
    %c0_i32_0 = arith.constant 0 : i32
    %c0_i32_1 = arith.constant 0 : i32
    return %c0_i32, %c0_i32_0 : i32, i32
  }
  func.func @transform_3(%arg0: i32) -> (i32, i32) {
    %c0_i32 = arith.constant 0 : i32
    %c0_i32_0 = arith.constant 0 : i32
    return %arg0, %c0_i32 : i32, i32
  }
}

module attributes {stable_mosaic.version = 11 : i64} {
  func.func @matmul_stats_kernel(%arg0: i32, %arg1: memref<8x512xbf16, #tpu.memory_space<vmem>>, %arg2: memref<512x128xbf16, #tpu.memory_space<vmem>>, %arg3: memref<8x128xf32, #tpu.memory_space<vmem>>, %arg4: memref<1x1x128xf32, #tpu.memory_space<vmem>>, %arg5: memref<1x1x128xf32, #tpu.memory_space<vmem>>) attributes {dimension_semantics = [#tpu.dimension_semantics<parallel>], iteration_bounds = array<i64: 1>, scalar_prefetch = 0 : i64, scratch_operands = 0 : i64, tpu.core_type = #tpu.core_type<tc>, window_params = [{transform_indices = @transform_0, window_bounds = array<i64: 8, 512>}, {pipeline_mode = #tpu.pipeline_mode<synchronous>, transform_indices = @transform_1, window_bounds = array<i64: 512, 128>}, {transform_indices = @transform_2, window_bounds = array<i64: 8, 128>}, {transform_indices = @transform_3, window_bounds = array<i64: 1, 1, 128>}, {transform_indices = @transform_4, window_bounds = array<i64: 1, 1, 128>}]} {
    %c0 = arith.constant 0 : index
    %c0_0 = arith.constant 0 : index
    %0 = vector.load %arg1[%c0, %c0_0] : memref<8x512xbf16, #tpu.memory_space<vmem>>, vector<8x512xbf16>
    %c0_1 = arith.constant 0 : index
    %c0_2 = arith.constant 0 : index
    %1 = vector.load %arg2[%c0_1, %c0_2] : memref<512x128xbf16, #tpu.memory_space<vmem>>, vector<512x128xbf16>
    %cst = arith.constant dense<0.000000e+00> : vector<8x128xf32>
    %2 = tpu.matmul %0, %1, %cst {dimension_numbers = #tpu.dot_dimension_numbers<[1], [0], [0], [1], [0, 0, 1, 1], [], []>} : vector<8x512xbf16>, vector<512x128xbf16>, vector<8x128xf32> -> vector<8x128xf32>
    %c0_3 = arith.constant 0 : index
    %c0_4 = arith.constant 0 : index
    %3 = vector.load %arg3[%c0_3, %c0_4] : memref<8x128xf32, #tpu.memory_space<vmem>>, vector<8x128xf32>
    tpu.vector_store %arg3[%c0_3, %c0_4], %2 {strides = array<i32>} : memref<8x128xf32, #tpu.memory_space<vmem>>, vector<8x128xf32>,
    %cst_5 = arith.constant dense<0.000000e+00> : vector<128xf32>
    %4 = vector.multi_reduction <add>, %2, %cst_5 [0] : vector<8x128xf32> to vector<128xf32>
    %5 = vector.shape_cast %4 : vector<128xf32> to vector<1x128xf32>
    %6 = vector.shape_cast %5 : vector<1x128xf32> to vector<1x1x128xf32>
    %c0_6 = arith.constant 0 : index
    %c0_7 = arith.constant 0 : index
    %c0_8 = arith.constant 0 : index
    %7 = vector.load %arg4[%c0_6, %c0_7, %c0_8] : memref<1x1x128xf32, #tpu.memory_space<vmem>>, vector<1x1x128xf32>
    tpu.vector_store %arg4[%c0_6, %c0_7, %c0_8], %6 {strides = array<i32>} : memref<1x1x128xf32, #tpu.memory_space<vmem>>, vector<1x1x128xf32>,
    %8 = arith.mulf %2, %2 : vector<8x128xf32>
    %cst_9 = arith.constant dense<0.000000e+00> : vector<128xf32>
    %9 = vector.multi_reduction <add>, %8, %cst_9 [0] : vector<8x128xf32> to vector<128xf32>
    %10 = vector.shape_cast %9 : vector<128xf32> to vector<1x128xf32>
    %11 = vector.shape_cast %10 : vector<1x128xf32> to vector<1x1x128xf32>
    %c0_10 = arith.constant 0 : index
    %c0_11 = arith.constant 0 : index
    %c0_12 = arith.constant 0 : index
    %12 = vector.load %arg5[%c0_10, %c0_11, %c0_12] : memref<1x1x128xf32, #tpu.memory_space<vmem>>, vector<1x1x128xf32>
    tpu.vector_store %arg5[%c0_10, %c0_11, %c0_12], %11 {strides = array<i32>} : memref<1x1x128xf32, #tpu.memory_space<vmem>>, vector<1x1x128xf32>,
    return
  }
  func.func @transform_0(%arg0: i32) -> (i32, i32) {
    %c0_i32 = arith.constant 0 : i32
    %c0_i32_0 = arith.constant 0 : i32
    return %arg0, %c0_i32 : i32, i32
  }
  func.func @transform_1(%arg0: i32) -> (i32, i32) {
    %c0_i32 = arith.constant 0 : i32
    %c0_i32_0 = arith.constant 0 : i32
    %c0_i32_1 = arith.constant 0 : i32
    return %c0_i32, %c0_i32_0 : i32, i32
  }
  func.func @transform_2(%arg0: i32) -> (i32, i32) {
    %c0_i32 = arith.constant 0 : i32
    %c0_i32_0 = arith.constant 0 : i32
    return %arg0, %c0_i32 : i32, i32
  }
  func.func @transform_3(%arg0: i32) -> (i32, i32, i32) {
    %c0_i32 = arith.constant 0 : i32
    %c0_i32_0 = arith.constant 0 : i32
    %c0_i32_1 = arith.constant 0 : i32
    return %arg0, %c0_i32, %c0_i32_0 : i32, i32, i32
  }
  func.func @transform_4(%arg0: i32) -> (i32, i32, i32) {
    %c0_i32 = arith.constant 0 : i32
    %c0_i32_0 = arith.constant 0 : i32
    %c0_i32_1 = arith.constant 0 : i32
    return %arg0, %c0_i32, %c0_i32_0 : i32, i32, i32
  }
}

module attributes {stable_mosaic.version = 11 : i64} {
  func.func @bn_leaky_head_kernel(%arg0: i32, %arg1: memref<8x128xf32, #tpu.memory_space<vmem>>, %arg2: memref<1x128xf32, #tpu.memory_space<vmem>>, %arg3: memref<1x128xf32, #tpu.memory_space<vmem>>, %arg4: memref<128x128xbf16, #tpu.memory_space<vmem>>, %arg5: memref<8x128xf32, #tpu.memory_space<vmem>>) attributes {dimension_semantics = [#tpu.dimension_semantics<parallel>], iteration_bounds = array<i64: 1>, scalar_prefetch = 0 : i64, scratch_operands = 0 : i64, tpu.core_type = #tpu.core_type<tc>, window_params = [{transform_indices = @transform_0, window_bounds = array<i64: 8, 128>}, {pipeline_mode = #tpu.pipeline_mode<synchronous>, transform_indices = @transform_1, window_bounds = array<i64: 1, 128>}, {pipeline_mode = #tpu.pipeline_mode<synchronous>, transform_indices = @transform_2, window_bounds = array<i64: 1, 128>}, {pipeline_mode = #tpu.pipeline_mode<synchronous>, transform_indices = @transform_3, window_bounds = array<i64: 128, 128>}, {transform_indices = @transform_4, window_bounds = array<i64: 8, 128>}]} {
    %c0 = arith.constant 0 : index
    %c0_0 = arith.constant 0 : index
    %0 = vector.load %arg1[%c0, %c0_0] : memref<8x128xf32, #tpu.memory_space<vmem>>, vector<8x128xf32>
    %c0_1 = arith.constant 0 : index
    %c0_2 = arith.constant 0 : index
    %1 = vector.load %arg2[%c0_1, %c0_2] : memref<1x128xf32, #tpu.memory_space<vmem>>, vector<1x128xf32>
    %2 = vector.broadcast %1 : vector<1x128xf32> to vector<8x128xf32>
    %3 = arith.mulf %0, %2 : vector<8x128xf32>
    %c0_3 = arith.constant 0 : index
    %c0_4 = arith.constant 0 : index
    %4 = vector.load %arg3[%c0_3, %c0_4] : memref<1x128xf32, #tpu.memory_space<vmem>>, vector<1x128xf32>
    %5 = vector.broadcast %4 : vector<1x128xf32> to vector<8x128xf32>
    %6 = arith.addf %3, %5 : vector<8x128xf32>
    %cst = arith.constant 0.000000e+00 : f32
    %7 = vector.broadcast %cst : f32 to vector<8x128xf32>
    %8 = arith.cmpf ogt, %6, %7 : vector<8x128xf32>
    %cst_5 = arith.constant 2.000000e-01 : f32
    %9 = vector.broadcast %cst_5 : f32 to vector<8x128xf32>
    %10 = arith.mulf %9, %6 : vector<8x128xf32>
    %11 = arith.select %8, %6, %10 : vector<8x128xi1>, vector<8x128xf32>
    %12 = arith.truncf %11 : vector<8x128xf32> to vector<8x128xbf16>
    %c0_6 = arith.constant 0 : index
    %c0_7 = arith.constant 0 : index
    %13 = vector.load %arg4[%c0_6, %c0_7] : memref<128x128xbf16, #tpu.memory_space<vmem>>, vector<128x128xbf16>
    %cst_8 = arith.constant dense<0.000000e+00> : vector<8x128xf32>
    %14 = tpu.matmul %12, %13, %cst_8 {dimension_numbers = #tpu.dot_dimension_numbers<[1], [0], [0], [1], [0, 0, 1, 1], [], []>} : vector<8x128xbf16>, vector<128x128xbf16>, vector<8x128xf32> -> vector<8x128xf32>
    %15 = math.absf %14 : vector<8x128xf32>
    %cst_9 = arith.constant 0.000000e+00 : f32
    %16 = vector.broadcast %cst_9 : f32 to vector<8x128xf32>
    %17 = arith.subf %16, %15 : vector<8x128xf32>
    %18 = math.exp %17 : vector<8x128xf32>
    %cst_10 = arith.constant 0.000000e+00 : f32
    %19 = vector.broadcast %cst_10 : f32 to vector<8x128xf32>
    %20 = arith.cmpf oge, %14, %19 : vector<8x128xf32>
    %cst_11 = arith.constant 1.000000e+00 : f32
    %21 = vector.broadcast %cst_11 : f32 to vector<8x128xf32>
    %22 = arith.addf %21, %18 : vector<8x128xf32>
    %cst_12 = arith.constant 1.000000e+00 : f32
    %23 = vector.broadcast %cst_12 : f32 to vector<8x128xf32>
    %24 = arith.divf %23, %22 : vector<8x128xf32>
    %cst_13 = arith.constant 1.000000e+00 : f32
    %25 = vector.broadcast %cst_13 : f32 to vector<8x128xf32>
    %26 = arith.addf %25, %18 : vector<8x128xf32>
    %27 = arith.divf %18, %26 : vector<8x128xf32>
    %28 = arith.select %20, %24, %27 : vector<8x128xi1>, vector<8x128xf32>
    %c0_14 = arith.constant 0 : index
    %c0_15 = arith.constant 0 : index
    %29 = vector.load %arg5[%c0_14, %c0_15] : memref<8x128xf32, #tpu.memory_space<vmem>>, vector<8x128xf32>
    tpu.vector_store %arg5[%c0_14, %c0_15], %28 {strides = array<i32>} : memref<8x128xf32, #tpu.memory_space<vmem>>, vector<8x128xf32>,
    return
  }
  func.func @transform_0(%arg0: i32) -> (i32, i32) {
    %c0_i32 = arith.constant 0 : i32
    %c0_i32_0 = arith.constant 0 : i32
    return %arg0, %c0_i32 : i32, i32
  }
  func.func @transform_1(%arg0: i32) -> (i32, i32) {
    %c0_i32 = arith.constant 0 : i32
    %c0_i32_0 = arith.constant 0 : i32
    %c0_i32_1 = arith.constant 0 : i32
    return %c0_i32, %c0_i32_0 : i32, i32
  }
  func.func @transform_2(%arg0: i32) -> (i32, i32) {
    %c0_i32 = arith.constant 0 : i32
    %c0_i32_0 = arith.constant 0 : i32
    %c0_i32_1 = arith.constant 0 : i32
    return %c0_i32, %c0_i32_0 : i32, i32
  }
  func.func @transform_3(%arg0: i32) -> (i32, i32) {
    %c0_i32 = arith.constant 0 : i32
    %c0_i32_0 = arith.constant 0 : i32
    %c0_i32_1 = arith.constant 0 : i32
    return %c0_i32, %c0_i32_0 : i32, i32
  }
  func.func @transform_4(%arg0: i32) -> (i32, i32) {
    %c0_i32 = arith.constant 0 : i32
    %c0_i32_0 = arith.constant 0 : i32
    return %arg0, %c0_i32 : i32, i32
  }
}

module attributes {stable_mosaic.version = 11 : i64} {
  func.func @matmul_leaky_kernel(%arg0: i32, %arg1: memref<512x128xbf16, #tpu.memory_space<vmem>>, %arg2: memref<128x128xbf16, #tpu.memory_space<vmem>>, %arg3: memref<512x128xbf16, #tpu.memory_space<vmem>>) attributes {dimension_semantics = [#tpu.dimension_semantics<parallel>], iteration_bounds = array<i64: 1>, scalar_prefetch = 0 : i64, scratch_operands = 0 : i64, tpu.core_type = #tpu.core_type<tc>, window_params = [{transform_indices = @transform_0, window_bounds = array<i64: 512, 128>}, {pipeline_mode = #tpu.pipeline_mode<synchronous>, transform_indices = @transform_1, window_bounds = array<i64: 128, 128>}, {transform_indices = @transform_2, window_bounds = array<i64: 512, 128>}]} {
    %c0 = arith.constant 0 : index
    %c0_0 = arith.constant 0 : index
    %0 = vector.load %arg1[%c0, %c0_0] : memref<512x128xbf16, #tpu.memory_space<vmem>>, vector<512x128xbf16>
    %c0_1 = arith.constant 0 : index
    %c0_2 = arith.constant 0 : index
    %1 = vector.load %arg2[%c0_1, %c0_2] : memref<128x128xbf16, #tpu.memory_space<vmem>>, vector<128x128xbf16>
    %cst = arith.constant dense<0.000000e+00> : vector<512x128xf32>
    %2 = tpu.matmul %0, %1, %cst {dimension_numbers = #tpu.dot_dimension_numbers<[1], [0], [0], [1], [0, 0, 1, 1], [], []>} : vector<512x128xbf16>, vector<128x128xbf16>, vector<512x128xf32> -> vector<512x128xf32>
    %cst_3 = arith.constant 0.000000e+00 : f32
    %3 = vector.broadcast %cst_3 : f32 to vector<512x128xf32>
    %4 = arith.cmpf ogt, %2, %3 : vector<512x128xf32>
    %cst_4 = arith.constant 2.000000e-01 : f32
    %5 = vector.broadcast %cst_4 : f32 to vector<512x128xf32>
    %6 = arith.mulf %5, %2 : vector<512x128xf32>
    %7 = arith.select %4, %2, %6 : vector<512x128xi1>, vector<512x128xf32>
    %8 = arith.truncf %7 : vector<512x128xf32> to vector<512x128xbf16>
    %c0_5 = arith.constant 0 : index
    %c0_6 = arith.constant 0 : index
    %9 = vector.load %arg3[%c0_5, %c0_6] : memref<512x128xbf16, #tpu.memory_space<vmem>>, vector<512x128xbf16>
    tpu.vector_store %arg3[%c0_5, %c0_6], %8 {strides = array<i32>} : memref<512x128xbf16, #tpu.memory_space<vmem>>, vector<512x128xbf16>,
    return
  }
  func.func @transform_0(%arg0: i32) -> (i32, i32) {
    %c0_i32 = arith.constant 0 : i32
    %c0_i32_0 = arith.constant 0 : i32
    return %arg0, %c0_i32 : i32, i32
  }
  func.func @transform_1(%arg0: i32) -> (i32, i32) {
    %c0_i32 = arith.constant 0 : i32
    %c0_i32_0 = arith.constant 0 : i32
    %c0_i32_1 = arith.constant 0 : i32
    return %c0_i32, %c0_i32_0 : i32, i32
  }
  func.func @transform_2(%arg0: i32) -> (i32, i32) {
    %c0_i32 = arith.constant 0 : i32
    %c0_i32_0 = arith.constant 0 : i32
    return %arg0, %c0_i32 : i32, i32
  }
}

module attributes {stable_mosaic.version = 11 : i64} {
  func.func @matmul_stats_kernel(%arg0: i32, %arg1: memref<128x128xbf16, #tpu.memory_space<vmem>>, %arg2: memref<128x128xbf16, #tpu.memory_space<vmem>>, %arg3: memref<128x128xf32, #tpu.memory_space<vmem>>, %arg4: memref<1x1x128xf32, #tpu.memory_space<vmem>>, %arg5: memref<1x1x128xf32, #tpu.memory_space<vmem>>) attributes {dimension_semantics = [#tpu.dimension_semantics<parallel>], iteration_bounds = array<i64: 1>, scalar_prefetch = 0 : i64, scratch_operands = 0 : i64, tpu.core_type = #tpu.core_type<tc>, window_params = [{transform_indices = @transform_0, window_bounds = array<i64: 128, 128>}, {pipeline_mode = #tpu.pipeline_mode<synchronous>, transform_indices = @transform_1, window_bounds = array<i64: 128, 128>}, {transform_indices = @transform_2, window_bounds = array<i64: 128, 128>}, {transform_indices = @transform_3, window_bounds = array<i64: 1, 1, 128>}, {transform_indices = @transform_4, window_bounds = array<i64: 1, 1, 128>}]} {
    %c0 = arith.constant 0 : index
    %c0_0 = arith.constant 0 : index
    %0 = vector.load %arg1[%c0, %c0_0] : memref<128x128xbf16, #tpu.memory_space<vmem>>, vector<128x128xbf16>
    %c0_1 = arith.constant 0 : index
    %c0_2 = arith.constant 0 : index
    %1 = vector.load %arg2[%c0_1, %c0_2] : memref<128x128xbf16, #tpu.memory_space<vmem>>, vector<128x128xbf16>
    %cst = arith.constant dense<0.000000e+00> : vector<128x128xf32>
    %2 = tpu.matmul %0, %1, %cst {dimension_numbers = #tpu.dot_dimension_numbers<[1], [0], [0], [1], [0, 0, 1, 1], [], []>} : vector<128x128xbf16>, vector<128x128xbf16>, vector<128x128xf32> -> vector<128x128xf32>
    %c0_3 = arith.constant 0 : index
    %c0_4 = arith.constant 0 : index
    %3 = vector.load %arg3[%c0_3, %c0_4] : memref<128x128xf32, #tpu.memory_space<vmem>>, vector<128x128xf32>
    tpu.vector_store %arg3[%c0_3, %c0_4], %2 {strides = array<i32>} : memref<128x128xf32, #tpu.memory_space<vmem>>, vector<128x128xf32>,
    %cst_5 = arith.constant dense<0.000000e+00> : vector<128xf32>
    %4 = vector.multi_reduction <add>, %2, %cst_5 [0] : vector<128x128xf32> to vector<128xf32>
    %5 = vector.shape_cast %4 : vector<128xf32> to vector<1x128xf32>
    %6 = vector.shape_cast %5 : vector<1x128xf32> to vector<1x1x128xf32>
    %c0_6 = arith.constant 0 : index
    %c0_7 = arith.constant 0 : index
    %c0_8 = arith.constant 0 : index
    %7 = vector.load %arg4[%c0_6, %c0_7, %c0_8] : memref<1x1x128xf32, #tpu.memory_space<vmem>>, vector<1x1x128xf32>
    tpu.vector_store %arg4[%c0_6, %c0_7, %c0_8], %6 {strides = array<i32>} : memref<1x1x128xf32, #tpu.memory_space<vmem>>, vector<1x1x128xf32>,
    %8 = arith.mulf %2, %2 : vector<128x128xf32>
    %cst_9 = arith.constant dense<0.000000e+00> : vector<128xf32>
    %9 = vector.multi_reduction <add>, %8, %cst_9 [0] : vector<128x128xf32> to vector<128xf32>
    %10 = vector.shape_cast %9 : vector<128xf32> to vector<1x128xf32>
    %11 = vector.shape_cast %10 : vector<1x128xf32> to vector<1x1x128xf32>
    %c0_10 = arith.constant 0 : index
    %c0_11 = arith.constant 0 : index
    %c0_12 = arith.constant 0 : index
    %12 = vector.load %arg5[%c0_10, %c0_11, %c0_12] : memref<1x1x128xf32, #tpu.memory_space<vmem>>, vector<1x1x128xf32>
    tpu.vector_store %arg5[%c0_10, %c0_11, %c0_12], %11 {strides = array<i32>} : memref<1x1x128xf32, #tpu.memory_space<vmem>>, vector<1x1x128xf32>,
    return
  }
  func.func @transform_0(%arg0: i32) -> (i32, i32) {
    %c0_i32 = arith.constant 0 : i32
    %c0_i32_0 = arith.constant 0 : i32
    return %arg0, %c0_i32 : i32, i32
  }
  func.func @transform_1(%arg0: i32) -> (i32, i32) {
    %c0_i32 = arith.constant 0 : i32
    %c0_i32_0 = arith.constant 0 : i32
    %c0_i32_1 = arith.constant 0 : i32
    return %c0_i32, %c0_i32_0 : i32, i32
  }
  func.func @transform_2(%arg0: i32) -> (i32, i32) {
    %c0_i32 = arith.constant 0 : i32
    %c0_i32_0 = arith.constant 0 : i32
    return %arg0, %c0_i32 : i32, i32
  }
  func.func @transform_3(%arg0: i32) -> (i32, i32, i32) {
    %c0_i32 = arith.constant 0 : i32
    %c0_i32_0 = arith.constant 0 : i32
    %c0_i32_1 = arith.constant 0 : i32
    return %arg0, %c0_i32, %c0_i32_0 : i32, i32, i32
  }
  func.func @transform_4(%arg0: i32) -> (i32, i32, i32) {
    %c0_i32 = arith.constant 0 : i32
    %c0_i32_0 = arith.constant 0 : i32
    %c0_i32_1 = arith.constant 0 : i32
    return %arg0, %c0_i32, %c0_i32_0 : i32, i32, i32
  }
}

module attributes {stable_mosaic.version = 11 : i64} {
  func.func @bn_leaky_kernel(%arg0: i32, %arg1: memref<128x128xf32, #tpu.memory_space<vmem>>, %arg2: memref<1x128xf32, #tpu.memory_space<vmem>>, %arg3: memref<1x128xf32, #tpu.memory_space<vmem>>, %arg4: memref<128x128xbf16, #tpu.memory_space<vmem>>) attributes {dimension_semantics = [#tpu.dimension_semantics<parallel>], iteration_bounds = array<i64: 1>, scalar_prefetch = 0 : i64, scratch_operands = 0 : i64, tpu.core_type = #tpu.core_type<tc>, window_params = [{transform_indices = @transform_0, window_bounds = array<i64: 128, 128>}, {pipeline_mode = #tpu.pipeline_mode<synchronous>, transform_indices = @transform_1, window_bounds = array<i64: 1, 128>}, {pipeline_mode = #tpu.pipeline_mode<synchronous>, transform_indices = @transform_2, window_bounds = array<i64: 1, 128>}, {transform_indices = @transform_3, window_bounds = array<i64: 128, 128>}]} {
    %c0 = arith.constant 0 : index
    %c0_0 = arith.constant 0 : index
    %0 = vector.load %arg1[%c0, %c0_0] : memref<128x128xf32, #tpu.memory_space<vmem>>, vector<128x128xf32>
    %c0_1 = arith.constant 0 : index
    %c0_2 = arith.constant 0 : index
    %1 = vector.load %arg2[%c0_1, %c0_2] : memref<1x128xf32, #tpu.memory_space<vmem>>, vector<1x128xf32>
    %2 = vector.broadcast %1 : vector<1x128xf32> to vector<128x128xf32>
    %3 = arith.mulf %0, %2 : vector<128x128xf32>
    %c0_3 = arith.constant 0 : index
    %c0_4 = arith.constant 0 : index
    %4 = vector.load %arg3[%c0_3, %c0_4] : memref<1x128xf32, #tpu.memory_space<vmem>>, vector<1x128xf32>
    %5 = vector.broadcast %4 : vector<1x128xf32> to vector<128x128xf32>
    %6 = arith.addf %3, %5 : vector<128x128xf32>
    %cst = arith.constant 0.000000e+00 : f32
    %7 = vector.broadcast %cst : f32 to vector<128x128xf32>
    %8 = arith.cmpf ogt, %6, %7 : vector<128x128xf32>
    %cst_5 = arith.constant 2.000000e-01 : f32
    %9 = vector.broadcast %cst_5 : f32 to vector<128x128xf32>
    %10 = arith.mulf %9, %6 : vector<128x128xf32>
    %11 = arith.select %8, %6, %10 : vector<128x128xi1>, vector<128x128xf32>
    %12 = arith.truncf %11 : vector<128x128xf32> to vector<128x128xbf16>
    %c0_6 = arith.constant 0 : index
    %c0_7 = arith.constant 0 : index
    %13 = vector.load %arg4[%c0_6, %c0_7] : memref<128x128xbf16, #tpu.memory_space<vmem>>, vector<128x128xbf16>
    tpu.vector_store %arg4[%c0_6, %c0_7], %12 {strides = array<i32>} : memref<128x128xbf16, #tpu.memory_space<vmem>>, vector<128x128xbf16>,
    return
  }
  func.func @transform_0(%arg0: i32) -> (i32, i32) {
    %c0_i32 = arith.constant 0 : i32
    %c0_i32_0 = arith.constant 0 : i32
    return %arg0, %c0_i32 : i32, i32
  }
  func.func @transform_1(%arg0: i32) -> (i32, i32) {
    %c0_i32 = arith.constant 0 : i32
    %c0_i32_0 = arith.constant 0 : i32
    %c0_i32_1 = arith.constant 0 : i32
    return %c0_i32, %c0_i32_0 : i32, i32
  }
  func.func @transform_2(%arg0: i32) -> (i32, i32) {
    %c0_i32 = arith.constant 0 : i32
    %c0_i32_0 = arith.constant 0 : i32
    %c0_i32_1 = arith.constant 0 : i32
    return %c0_i32, %c0_i32_0 : i32, i32
  }
  func.func @transform_3(%arg0: i32) -> (i32, i32) {
    %c0_i32 = arith.constant 0 : i32
    %c0_i32_0 = arith.constant 0 : i32
    return %arg0, %c0_i32 : i32, i32
  }
}

module attributes {stable_mosaic.version = 11 : i64} {
  func.func @matmul_stats_kernel(%arg0: i32, %arg1: memref<32x256xbf16, #tpu.memory_space<vmem>>, %arg2: memref<256x128xbf16, #tpu.memory_space<vmem>>, %arg3: memref<32x128xf32, #tpu.memory_space<vmem>>, %arg4: memref<1x1x128xf32, #tpu.memory_space<vmem>>, %arg5: memref<1x1x128xf32, #tpu.memory_space<vmem>>) attributes {dimension_semantics = [#tpu.dimension_semantics<parallel>], iteration_bounds = array<i64: 1>, scalar_prefetch = 0 : i64, scratch_operands = 0 : i64, tpu.core_type = #tpu.core_type<tc>, window_params = [{transform_indices = @transform_0, window_bounds = array<i64: 32, 256>}, {pipeline_mode = #tpu.pipeline_mode<synchronous>, transform_indices = @transform_1, window_bounds = array<i64: 256, 128>}, {transform_indices = @transform_2, window_bounds = array<i64: 32, 128>}, {transform_indices = @transform_3, window_bounds = array<i64: 1, 1, 128>}, {transform_indices = @transform_4, window_bounds = array<i64: 1, 1, 128>}]} {
    %c0 = arith.constant 0 : index
    %c0_0 = arith.constant 0 : index
    %0 = vector.load %arg1[%c0, %c0_0] : memref<32x256xbf16, #tpu.memory_space<vmem>>, vector<32x256xbf16>
    %c0_1 = arith.constant 0 : index
    %c0_2 = arith.constant 0 : index
    %1 = vector.load %arg2[%c0_1, %c0_2] : memref<256x128xbf16, #tpu.memory_space<vmem>>, vector<256x128xbf16>
    %cst = arith.constant dense<0.000000e+00> : vector<32x128xf32>
    %2 = tpu.matmul %0, %1, %cst {dimension_numbers = #tpu.dot_dimension_numbers<[1], [0], [0], [1], [0, 0, 1, 1], [], []>} : vector<32x256xbf16>, vector<256x128xbf16>, vector<32x128xf32> -> vector<32x128xf32>
    %c0_3 = arith.constant 0 : index
    %c0_4 = arith.constant 0 : index
    %3 = vector.load %arg3[%c0_3, %c0_4] : memref<32x128xf32, #tpu.memory_space<vmem>>, vector<32x128xf32>
    tpu.vector_store %arg3[%c0_3, %c0_4], %2 {strides = array<i32>} : memref<32x128xf32, #tpu.memory_space<vmem>>, vector<32x128xf32>,
    %cst_5 = arith.constant dense<0.000000e+00> : vector<128xf32>
    %4 = vector.multi_reduction <add>, %2, %cst_5 [0] : vector<32x128xf32> to vector<128xf32>
    %5 = vector.shape_cast %4 : vector<128xf32> to vector<1x128xf32>
    %6 = vector.shape_cast %5 : vector<1x128xf32> to vector<1x1x128xf32>
    %c0_6 = arith.constant 0 : index
    %c0_7 = arith.constant 0 : index
    %c0_8 = arith.constant 0 : index
    %7 = vector.load %arg4[%c0_6, %c0_7, %c0_8] : memref<1x1x128xf32, #tpu.memory_space<vmem>>, vector<1x1x128xf32>
    tpu.vector_store %arg4[%c0_6, %c0_7, %c0_8], %6 {strides = array<i32>} : memref<1x1x128xf32, #tpu.memory_space<vmem>>, vector<1x1x128xf32>,
    %8 = arith.mulf %2, %2 : vector<32x128xf32>
    %cst_9 = arith.constant dense<0.000000e+00> : vector<128xf32>
    %9 = vector.multi_reduction <add>, %8, %cst_9 [0] : vector<32x128xf32> to vector<128xf32>
    %10 = vector.shape_cast %9 : vector<128xf32> to vector<1x128xf32>
    %11 = vector.shape_cast %10 : vector<1x128xf32> to vector<1x1x128xf32>
    %c0_10 = arith.constant 0 : index
    %c0_11 = arith.constant 0 : index
    %c0_12 = arith.constant 0 : index
    %12 = vector.load %arg5[%c0_10, %c0_11, %c0_12] : memref<1x1x128xf32, #tpu.memory_space<vmem>>, vector<1x1x128xf32>
    tpu.vector_store %arg5[%c0_10, %c0_11, %c0_12], %11 {strides = array<i32>} : memref<1x1x128xf32, #tpu.memory_space<vmem>>, vector<1x1x128xf32>,
    return
  }
  func.func @transform_0(%arg0: i32) -> (i32, i32) {
    %c0_i32 = arith.constant 0 : i32
    %c0_i32_0 = arith.constant 0 : i32
    return %arg0, %c0_i32 : i32, i32
  }
  func.func @transform_1(%arg0: i32) -> (i32, i32) {
    %c0_i32 = arith.constant 0 : i32
    %c0_i32_0 = arith.constant 0 : i32
    %c0_i32_1 = arith.constant 0 : i32
    return %c0_i32, %c0_i32_0 : i32, i32
  }
  func.func @transform_2(%arg0: i32) -> (i32, i32) {
    %c0_i32 = arith.constant 0 : i32
    %c0_i32_0 = arith.constant 0 : i32
    return %arg0, %c0_i32 : i32, i32
  }
  func.func @transform_3(%arg0: i32) -> (i32, i32, i32) {
    %c0_i32 = arith.constant 0 : i32
    %c0_i32_0 = arith.constant 0 : i32
    %c0_i32_1 = arith.constant 0 : i32
    return %arg0, %c0_i32, %c0_i32_0 : i32, i32, i32
  }
  func.func @transform_4(%arg0: i32) -> (i32, i32, i32) {
    %c0_i32 = arith.constant 0 : i32
    %c0_i32_0 = arith.constant 0 : i32
    %c0_i32_1 = arith.constant 0 : i32
    return %arg0, %c0_i32, %c0_i32_0 : i32, i32, i32
  }
}

module attributes {stable_mosaic.version = 11 : i64} {
  func.func @bn_leaky_kernel(%arg0: i32, %arg1: memref<32x128xf32, #tpu.memory_space<vmem>>, %arg2: memref<1x128xf32, #tpu.memory_space<vmem>>, %arg3: memref<1x128xf32, #tpu.memory_space<vmem>>, %arg4: memref<32x128xbf16, #tpu.memory_space<vmem>>) attributes {dimension_semantics = [#tpu.dimension_semantics<parallel>], iteration_bounds = array<i64: 1>, scalar_prefetch = 0 : i64, scratch_operands = 0 : i64, tpu.core_type = #tpu.core_type<tc>, window_params = [{transform_indices = @transform_0, window_bounds = array<i64: 32, 128>}, {pipeline_mode = #tpu.pipeline_mode<synchronous>, transform_indices = @transform_1, window_bounds = array<i64: 1, 128>}, {pipeline_mode = #tpu.pipeline_mode<synchronous>, transform_indices = @transform_2, window_bounds = array<i64: 1, 128>}, {transform_indices = @transform_3, window_bounds = array<i64: 32, 128>}]} {
    %c0 = arith.constant 0 : index
    %c0_0 = arith.constant 0 : index
    %0 = vector.load %arg1[%c0, %c0_0] : memref<32x128xf32, #tpu.memory_space<vmem>>, vector<32x128xf32>
    %c0_1 = arith.constant 0 : index
    %c0_2 = arith.constant 0 : index
    %1 = vector.load %arg2[%c0_1, %c0_2] : memref<1x128xf32, #tpu.memory_space<vmem>>, vector<1x128xf32>
    %2 = vector.broadcast %1 : vector<1x128xf32> to vector<32x128xf32>
    %3 = arith.mulf %0, %2 : vector<32x128xf32>
    %c0_3 = arith.constant 0 : index
    %c0_4 = arith.constant 0 : index
    %4 = vector.load %arg3[%c0_3, %c0_4] : memref<1x128xf32, #tpu.memory_space<vmem>>, vector<1x128xf32>
    %5 = vector.broadcast %4 : vector<1x128xf32> to vector<32x128xf32>
    %6 = arith.addf %3, %5 : vector<32x128xf32>
    %cst = arith.constant 0.000000e+00 : f32
    %7 = vector.broadcast %cst : f32 to vector<32x128xf32>
    %8 = arith.cmpf ogt, %6, %7 : vector<32x128xf32>
    %cst_5 = arith.constant 2.000000e-01 : f32
    %9 = vector.broadcast %cst_5 : f32 to vector<32x128xf32>
    %10 = arith.mulf %9, %6 : vector<32x128xf32>
    %11 = arith.select %8, %6, %10 : vector<32x128xi1>, vector<32x128xf32>
    %12 = arith.truncf %11 : vector<32x128xf32> to vector<32x128xbf16>
    %c0_6 = arith.constant 0 : index
    %c0_7 = arith.constant 0 : index
    %13 = vector.load %arg4[%c0_6, %c0_7] : memref<32x128xbf16, #tpu.memory_space<vmem>>, vector<32x128xbf16>
    tpu.vector_store %arg4[%c0_6, %c0_7], %12 {strides = array<i32>} : memref<32x128xbf16, #tpu.memory_space<vmem>>, vector<32x128xbf16>,
    return
  }
  func.func @transform_0(%arg0: i32) -> (i32, i32) {
    %c0_i32 = arith.constant 0 : i32
    %c0_i32_0 = arith.constant 0 : i32
    return %arg0, %c0_i32 : i32, i32
  }
  func.func @transform_1(%arg0: i32) -> (i32, i32) {
    %c0_i32 = arith.constant 0 : i32
    %c0_i32_0 = arith.constant 0 : i32
    %c0_i32_1 = arith.constant 0 : i32
    return %c0_i32, %c0_i32_0 : i32, i32
  }
  func.func @transform_2(%arg0: i32) -> (i32, i32) {
    %c0_i32 = arith.constant 0 : i32
    %c0_i32_0 = arith.constant 0 : i32
    %c0_i32_1 = arith.constant 0 : i32
    return %c0_i32, %c0_i32_0 : i32, i32
  }
  func.func @transform_3(%arg0: i32) -> (i32, i32) {
    %c0_i32 = arith.constant 0 : i32
    %c0_i32_0 = arith.constant 0 : i32
    return %arg0, %c0_i32 : i32, i32
  }
}

module attributes {stable_mosaic.version = 11 : i64} {
  func.func @matmul_stats_kernel(%arg0: i32, %arg1: memref<8x512xbf16, #tpu.memory_space<vmem>>, %arg2: memref<512x128xbf16, #tpu.memory_space<vmem>>, %arg3: memref<8x128xf32, #tpu.memory_space<vmem>>, %arg4: memref<1x1x128xf32, #tpu.memory_space<vmem>>, %arg5: memref<1x1x128xf32, #tpu.memory_space<vmem>>) attributes {dimension_semantics = [#tpu.dimension_semantics<parallel>], iteration_bounds = array<i64: 1>, scalar_prefetch = 0 : i64, scratch_operands = 0 : i64, tpu.core_type = #tpu.core_type<tc>, window_params = [{transform_indices = @transform_0, window_bounds = array<i64: 8, 512>}, {pipeline_mode = #tpu.pipeline_mode<synchronous>, transform_indices = @transform_1, window_bounds = array<i64: 512, 128>}, {transform_indices = @transform_2, window_bounds = array<i64: 8, 128>}, {transform_indices = @transform_3, window_bounds = array<i64: 1, 1, 128>}, {transform_indices = @transform_4, window_bounds = array<i64: 1, 1, 128>}]} {
    %c0 = arith.constant 0 : index
    %c0_0 = arith.constant 0 : index
    %0 = vector.load %arg1[%c0, %c0_0] : memref<8x512xbf16, #tpu.memory_space<vmem>>, vector<8x512xbf16>
    %c0_1 = arith.constant 0 : index
    %c0_2 = arith.constant 0 : index
    %1 = vector.load %arg2[%c0_1, %c0_2] : memref<512x128xbf16, #tpu.memory_space<vmem>>, vector<512x128xbf16>
    %cst = arith.constant dense<0.000000e+00> : vector<8x128xf32>
    %2 = tpu.matmul %0, %1, %cst {dimension_numbers = #tpu.dot_dimension_numbers<[1], [0], [0], [1], [0, 0, 1, 1], [], []>} : vector<8x512xbf16>, vector<512x128xbf16>, vector<8x128xf32> -> vector<8x128xf32>
    %c0_3 = arith.constant 0 : index
    %c0_4 = arith.constant 0 : index
    %3 = vector.load %arg3[%c0_3, %c0_4] : memref<8x128xf32, #tpu.memory_space<vmem>>, vector<8x128xf32>
    tpu.vector_store %arg3[%c0_3, %c0_4], %2 {strides = array<i32>} : memref<8x128xf32, #tpu.memory_space<vmem>>, vector<8x128xf32>,
    %cst_5 = arith.constant dense<0.000000e+00> : vector<128xf32>
    %4 = vector.multi_reduction <add>, %2, %cst_5 [0] : vector<8x128xf32> to vector<128xf32>
    %5 = vector.shape_cast %4 : vector<128xf32> to vector<1x128xf32>
    %6 = vector.shape_cast %5 : vector<1x128xf32> to vector<1x1x128xf32>
    %c0_6 = arith.constant 0 : index
    %c0_7 = arith.constant 0 : index
    %c0_8 = arith.constant 0 : index
    %7 = vector.load %arg4[%c0_6, %c0_7, %c0_8] : memref<1x1x128xf32, #tpu.memory_space<vmem>>, vector<1x1x128xf32>
    tpu.vector_store %arg4[%c0_6, %c0_7, %c0_8], %6 {strides = array<i32>} : memref<1x1x128xf32, #tpu.memory_space<vmem>>, vector<1x1x128xf32>,
    %8 = arith.mulf %2, %2 : vector<8x128xf32>
    %cst_9 = arith.constant dense<0.000000e+00> : vector<128xf32>
    %9 = vector.multi_reduction <add>, %8, %cst_9 [0] : vector<8x128xf32> to vector<128xf32>
    %10 = vector.shape_cast %9 : vector<128xf32> to vector<1x128xf32>
    %11 = vector.shape_cast %10 : vector<1x128xf32> to vector<1x1x128xf32>
    %c0_10 = arith.constant 0 : index
    %c0_11 = arith.constant 0 : index
    %c0_12 = arith.constant 0 : index
    %12 = vector.load %arg5[%c0_10, %c0_11, %c0_12] : memref<1x1x128xf32, #tpu.memory_space<vmem>>, vector<1x1x128xf32>
    tpu.vector_store %arg5[%c0_10, %c0_11, %c0_12], %11 {strides = array<i32>} : memref<1x1x128xf32, #tpu.memory_space<vmem>>, vector<1x1x128xf32>,
    return
  }
  func.func @transform_0(%arg0: i32) -> (i32, i32) {
    %c0_i32 = arith.constant 0 : i32
    %c0_i32_0 = arith.constant 0 : i32
    return %arg0, %c0_i32 : i32, i32
  }
  func.func @transform_1(%arg0: i32) -> (i32, i32) {
    %c0_i32 = arith.constant 0 : i32
    %c0_i32_0 = arith.constant 0 : i32
    %c0_i32_1 = arith.constant 0 : i32
    return %c0_i32, %c0_i32_0 : i32, i32
  }
  func.func @transform_2(%arg0: i32) -> (i32, i32) {
    %c0_i32 = arith.constant 0 : i32
    %c0_i32_0 = arith.constant 0 : i32
    return %arg0, %c0_i32 : i32, i32
  }
  func.func @transform_3(%arg0: i32) -> (i32, i32, i32) {
    %c0_i32 = arith.constant 0 : i32
    %c0_i32_0 = arith.constant 0 : i32
    %c0_i32_1 = arith.constant 0 : i32
    return %arg0, %c0_i32, %c0_i32_0 : i32, i32, i32
  }
  func.func @transform_4(%arg0: i32) -> (i32, i32, i32) {
    %c0_i32 = arith.constant 0 : i32
    %c0_i32_0 = arith.constant 0 : i32
    %c0_i32_1 = arith.constant 0 : i32
    return %arg0, %c0_i32, %c0_i32_0 : i32, i32, i32
  }
}

module attributes {stable_mosaic.version = 11 : i64} {
  func.func @bn_leaky_head_kernel(%arg0: i32, %arg1: memref<8x128xf32, #tpu.memory_space<vmem>>, %arg2: memref<1x128xf32, #tpu.memory_space<vmem>>, %arg3: memref<1x128xf32, #tpu.memory_space<vmem>>, %arg4: memref<128x128xbf16, #tpu.memory_space<vmem>>, %arg5: memref<8x128xf32, #tpu.memory_space<vmem>>) attributes {dimension_semantics = [#tpu.dimension_semantics<parallel>], iteration_bounds = array<i64: 1>, scalar_prefetch = 0 : i64, scratch_operands = 0 : i64, tpu.core_type = #tpu.core_type<tc>, window_params = [{transform_indices = @transform_0, window_bounds = array<i64: 8, 128>}, {pipeline_mode = #tpu.pipeline_mode<synchronous>, transform_indices = @transform_1, window_bounds = array<i64: 1, 128>}, {pipeline_mode = #tpu.pipeline_mode<synchronous>, transform_indices = @transform_2, window_bounds = array<i64: 1, 128>}, {pipeline_mode = #tpu.pipeline_mode<synchronous>, transform_indices = @transform_3, window_bounds = array<i64: 128, 128>}, {transform_indices = @transform_4, window_bounds = array<i64: 8, 128>}]} {
    %c0 = arith.constant 0 : index
    %c0_0 = arith.constant 0 : index
    %0 = vector.load %arg1[%c0, %c0_0] : memref<8x128xf32, #tpu.memory_space<vmem>>, vector<8x128xf32>
    %c0_1 = arith.constant 0 : index
    %c0_2 = arith.constant 0 : index
    %1 = vector.load %arg2[%c0_1, %c0_2] : memref<1x128xf32, #tpu.memory_space<vmem>>, vector<1x128xf32>
    %2 = vector.broadcast %1 : vector<1x128xf32> to vector<8x128xf32>
    %3 = arith.mulf %0, %2 : vector<8x128xf32>
    %c0_3 = arith.constant 0 : index
    %c0_4 = arith.constant 0 : index
    %4 = vector.load %arg3[%c0_3, %c0_4] : memref<1x128xf32, #tpu.memory_space<vmem>>, vector<1x128xf32>
    %5 = vector.broadcast %4 : vector<1x128xf32> to vector<8x128xf32>
    %6 = arith.addf %3, %5 : vector<8x128xf32>
    %cst = arith.constant 0.000000e+00 : f32
    %7 = vector.broadcast %cst : f32 to vector<8x128xf32>
    %8 = arith.cmpf ogt, %6, %7 : vector<8x128xf32>
    %cst_5 = arith.constant 2.000000e-01 : f32
    %9 = vector.broadcast %cst_5 : f32 to vector<8x128xf32>
    %10 = arith.mulf %9, %6 : vector<8x128xf32>
    %11 = arith.select %8, %6, %10 : vector<8x128xi1>, vector<8x128xf32>
    %12 = arith.truncf %11 : vector<8x128xf32> to vector<8x128xbf16>
    %c0_6 = arith.constant 0 : index
    %c0_7 = arith.constant 0 : index
    %13 = vector.load %arg4[%c0_6, %c0_7] : memref<128x128xbf16, #tpu.memory_space<vmem>>, vector<128x128xbf16>
    %cst_8 = arith.constant dense<0.000000e+00> : vector<8x128xf32>
    %14 = tpu.matmul %12, %13, %cst_8 {dimension_numbers = #tpu.dot_dimension_numbers<[1], [0], [0], [1], [0, 0, 1, 1], [], []>} : vector<8x128xbf16>, vector<128x128xbf16>, vector<8x128xf32> -> vector<8x128xf32>
    %15 = math.absf %14 : vector<8x128xf32>
    %cst_9 = arith.constant 0.000000e+00 : f32
    %16 = vector.broadcast %cst_9 : f32 to vector<8x128xf32>
    %17 = arith.subf %16, %15 : vector<8x128xf32>
    %18 = math.exp %17 : vector<8x128xf32>
    %cst_10 = arith.constant 0.000000e+00 : f32
    %19 = vector.broadcast %cst_10 : f32 to vector<8x128xf32>
    %20 = arith.cmpf oge, %14, %19 : vector<8x128xf32>
    %cst_11 = arith.constant 1.000000e+00 : f32
    %21 = vector.broadcast %cst_11 : f32 to vector<8x128xf32>
    %22 = arith.addf %21, %18 : vector<8x128xf32>
    %cst_12 = arith.constant 1.000000e+00 : f32
    %23 = vector.broadcast %cst_12 : f32 to vector<8x128xf32>
    %24 = arith.divf %23, %22 : vector<8x128xf32>
    %cst_13 = arith.constant 1.000000e+00 : f32
    %25 = vector.broadcast %cst_13 : f32 to vector<8x128xf32>
    %26 = arith.addf %25, %18 : vector<8x128xf32>
    %27 = arith.divf %18, %26 : vector<8x128xf32>
    %28 = arith.select %20, %24, %27 : vector<8x128xi1>, vector<8x128xf32>
    %c0_14 = arith.constant 0 : index
    %c0_15 = arith.constant 0 : index
    %29 = vector.load %arg5[%c0_14, %c0_15] : memref<8x128xf32, #tpu.memory_space<vmem>>, vector<8x128xf32>
    tpu.vector_store %arg5[%c0_14, %c0_15], %28 {strides = array<i32>} : memref<8x128xf32, #tpu.memory_space<vmem>>, vector<8x128xf32>,
    return
  }
  func.func @transform_0(%arg0: i32) -> (i32, i32) {
    %c0_i32 = arith.constant 0 : i32
    %c0_i32_0 = arith.constant 0 : i32
    return %arg0, %c0_i32 : i32, i32
  }
  func.func @transform_1(%arg0: i32) -> (i32, i32) {
    %c0_i32 = arith.constant 0 : i32
    %c0_i32_0 = arith.constant 0 : i32
    %c0_i32_1 = arith.constant 0 : i32
    return %c0_i32, %c0_i32_0 : i32, i32
  }
  func.func @transform_2(%arg0: i32) -> (i32, i32) {
    %c0_i32 = arith.constant 0 : i32
    %c0_i32_0 = arith.constant 0 : i32
    %c0_i32_1 = arith.constant 0 : i32
    return %c0_i32, %c0_i32_0 : i32, i32
  }
  func.func @transform_3(%arg0: i32) -> (i32, i32) {
    %c0_i32 = arith.constant 0 : i32
    %c0_i32_0 = arith.constant 0 : i32
    %c0_i32_1 = arith.constant 0 : i32
    return %c0_i32, %c0_i32_0 : i32, i32
  }
  func.func @transform_4(%arg0: i32) -> (i32, i32) {
    %c0_i32 = arith.constant 0 : i32
    %c0_i32_0 = arith.constant 0 : i32
    return %arg0, %c0_i32 : i32, i32
  }
}

</mosaic_0001>

<llo_original>
// kernel: discriminator_forward.14
$region0: #{discriminator_forward.14}
  #allocation0 [shape = 'u32[]', space=smem, size = 0x4, offset = 0x4, fixed_abs, tag = 'smem constant byte address 0x4 - core index']
  #allocation1 [shape = 'u32[144,128]{1,0:T(1,128)}', space=vmem, size = 0x12000, scoped, tag = 'internal scratch']
  #allocation2 [shape = 'u32[2048]{0}', space=vmem, size = 0x2000, scoped, tag = 'scoped memory for discriminator_forward.14']
  #allocation3 [shape = 'u32[2048]{0}', space=vmem, size = 0x2000, scoped, tag = 'scoped memory for discriminator_forward.14']
  #allocation4 [shape = 'u32[2048]{0}', space=vmem, size = 0x2000, scoped, tag = 'scoped memory for discriminator_forward.14']
  #allocation5 [shape = 'u32[2048]{0}', space=vmem, size = 0x2000, scoped, tag = 'scoped memory for discriminator_forward.14']
  #allocation6 [shape = 'u32[2048]{0}', space=vmem, size = 0x2000, scoped, tag = 'scoped memory for discriminator_forward.14']
  %s0 = inlined_call_operand.vmem [shape: bf16[128,128], index: 0, kind: input, shape index: {}]
  %s1 = inlined_call_operand.vmem [shape: bf16[512,48], index: 1, kind: input, shape index: {}]
  %s2 = inlined_call_operand.<no memory space> [shape: bf16[], index: 2, kind: input, shape index: {}]
  %s3 = inlined_call_operand.vmem [shape: bf16[512,128], index: 3, kind: output, shape index: {}]
  %s4 = sld [smem:[#allocation0]]
  $region18: #{discriminator_forward.14} parent=0
    _
  %s6 = ssub.s32 1, %s4
  %s7 = scalar_select 0, %s6, %s4
  %v8 = vstv %s2
  %v9 = vunpack.i.l.bf16 %v8
  %v11 = vunpack.i.h.bf16 %v8
  $region1: #{discriminator_forward.14} parent=0
    #allocation7 [shape = 'u8[131072]{0}', space=vmem, size = 0x20000, dematerialized = true, scoped, tag = 'FusionAdapter Buffer %fusion.1 = bf16[512,128]{1,0:T(8,128)(2,1)} fusion(%param_1.65, %param_2.124), kind=kLoop, calls=%fused_computation.65.clone, metadata={op_name="jit(discriminator_forward)/jit(_pad)/pad" stack_frame_id=28}']
    // Predicated region
    $region2: #{discriminator_forward.14} parent=1 // pred_check
      _
    $region3: #{discriminator_forward.14} parent=1 // pred_check_branch
      %14 = sbr.rel (0) target = $region5
    $region4: #{discriminator_forward.14} parent=1 // pred_region
      _
    $region5: #{discriminator_forward.14} parent=1 // pred_fallthru
      _
    // Predicated region
    $region6: #{discriminator_forward.14} parent=1 // pred_check
      _
    $region7: #{discriminator_forward.14} parent=1 // pred_check_branch
      %16 = sbr.rel (0) target = $region9
    $region8: #{discriminator_forward.14} parent=1 // pred_region
      _
    $region9: #{discriminator_forward.14} parent=1 // pred_fallthru
      _
    %s18 = sor.u32 255, 127
    %s19 = sand.u32 %s18, 85
    %s20 = sshrl.u32 %s19, 1
    %s21 = sor.u32 %s19, %s20
    %s22 = sand.u32 51, %s21
    %s23 = sshrl.u32 %s22, 2
    %s24 = sor.u32 %s22, %s23
    %s25 = sand.u32 15, %s24
    %v26 = vld [vmem:[%s1] sm:%s25]
    %v27 = vunpack.c.l.bf16 %v26
    %v28 = vunpack.c.h.bf16 %v26
    %v29 = vlaneseq
    %v30 = vand.u32 %v29, 127
    %vm32 = vcmp.lt.s32.totalorder %v30, 48
    %v33 = vsel %vm32, %v27, %v9
    %v34 = vpack.c.bf16 0.0, %v33
    %36 = vst [vmem:[#allocation7] sm:$0xf] %v34
    %s37 = scalar_lea.vmem %s1, 4
    %s39 = sor.u32 255, 127
    %s40 = sand.u32 %s39, 85
    %s41 = sshrl.u32 %s40, 1
    %s42 = sor.u32 %s40, %s41
    %s43 = sand.u32 51, %s42
    %s44 = sshrl.u32 %s43, 2
    %s45 = sor.u32 %s43, %s44
    %s46 = sand.u32 15, %s45
    %v47 = vld [vmem:[%s37] sm:%s46]
    %v48 = vunpack.c.l.bf16 %v47
    %v49 = vunpack.c.h.bf16 %v47
    %v50 = vlaneseq
    %v51 = vand.u32 %v50, 127
    %vm53 = vcmp.lt.s32.totalorder %v51, 48
    %v54 = vsel %vm53, %v48, %v9
    %s55 = scalar_lea.vmem [#allocation7], 4
    %v56 = vpack.c.bf16 0.0, %v54
    %58 = vst [vmem:[%s55] sm:$0xf] %v56
    %s59 = scalar_lea.vmem %s1, 8
    %s61 = sor.u32 255, 127
    %s62 = sand.u32 %s61, 85
    %s63 = sshrl.u32 %s62, 1
    %s64 = sor.u32 %s62, %s63
    %s65 = sand.u32 51, %s64
    %s66 = sshrl.u32 %s65, 2
    %s67 = sor.u32 %s65, %s66
    %s68 = sand.u32 15, %s67
    %v69 = vld [vmem:[%s59] sm:%s68]
    %v70 = vunpack.c.l.bf16 %v69
    %v71 = vunpack.c.h.bf16 %v69
    %v72 = vlaneseq
    %v73 = vand.u32 %v72, 127
    %vm75 = vcmp.lt.s32.totalorder %v73, 48
    %v76 = vsel %vm75, %v70, %v9
    %s77 = scalar_lea.vmem [#allocation7], 8
    %v78 = vpack.c.bf16 0.0, %v76
    %80 = vst [vmem:[%s77] sm:$0xf] %v78
    %s81 = scalar_lea.vmem %s1, 12
    %s83 = sor.u32 255, 127
    %s84 = sand.u32 %s83, 85
    %s85 = sshrl.u32 %s84, 1
    %s86 = sor.u32 %s84, %s85
    %s87 = sand.u32 51, %s86
    %s88 = sshrl.u32 %s87, 2
    %s89 = sor.u32 %s87, %s88
    %s90 = sand.u32 15, %s89
    %v91 = vld [vmem:[%s81] sm:%s90]
    %v92 = vunpack.c.l.bf16 %v91
    %v93 = vunpack.c.h.bf16 %v91
    %v94 = vlaneseq
    %v95 = vand.u32 %v94, 127
    %vm97 = vcmp.lt.s32.totalorder %v95, 48
    %v98 = vsel %vm97, %v92, %v9
    %s99 = scalar_lea.vmem [#allocation7], 12
    %v100 = vpack.c.bf16 0.0, %v98
    %102 = vst [vmem:[%s99] sm:$0xf] %v100
    %s103 = scalar_lea.vmem %s1, 16
    %s105 = sor.u32 255, 127
    %s106 = sand.u32 %s105, 85
    %s107 = sshrl.u32 %s106, 1
    %s108 = sor.u32 %s106, %s107
    %s109 = sand.u32 51, %s108
    %s110 = sshrl.u32 %s109, 2
    %s111 = sor.u32 %s109, %s110
    %s112 = sand.u32 15, %s111
    %v113 = vld [vmem:[%s103] sm:%s112]
    %v114 = vunpack.c.l.bf16 %v113
    %v115 = vunpack.c.h.bf16 %v113
    %v116 = vlaneseq
    %v117 = vand.u32 %v116, 127
    %vm119 = vcmp.lt.s32.totalorder %v117, 48
    %v120 = vsel %vm119, %v114, %v9
    %s121 = scalar_lea.vmem [#allocation7], 16
    %v122 = vpack.c.bf16 0.0, %v120
    %124 = vst [vmem:[%s121] sm:$0xf] %v122
    %s125 = scalar_lea.vmem %s1, 20
    %s127 = sor.u32 255, 127
    %s128 = sand.u32 %s127, 85
    %s129 = sshrl.u32 %s128, 1
    %s130 = sor.u32 %s128, %s129
    %s131 = sand.u32 51, %s130
    %s132 = sshrl.u32 %s131, 2
    %s133 = sor.u32 %s131, %s132
    %s134 = sand.u32 15, %s133
    %v135 = vld [vmem:[%s125] sm:%s134]
    %v136 = vunpack.c.l.bf16 %v135
    %v137 = vunpack.c.h.bf16 %v135
    %v138 = vlaneseq
    %v139 = vand.u32 %v138, 127
    %vm141 = vcmp.lt.s32.totalorder %v139, 48
    %v142 = vsel %vm141, %v136, %v9
    %s143 = scalar_lea.vmem [#allocation7], 20
    %v144 = vpack.c.bf16 0.0, %v142
    %146 = vst [vmem:[%s143] sm:$0xf] %v144
    %s147 = scalar_lea.vmem %s1, 24
    %s149 = sor.u32 255, 127
    %s150 = sand.u32 %s149, 85
    %s151 = sshrl.u32 %s150, 1
    %s152 = sor.u32 %s150, %s151
    %s153 = sand.u32 51, %s152
    %s154 = sshrl.u32 %s153, 2
    %s155 = sor.u32 %s153, %s154
    %s156 = sand.u32 15, %s155
    %v157 = vld [vmem:[%s147] sm:%s156]
    %v158 = vunpack.c.l.bf16 %v157
    %v159 = vunpack.c.h.bf16 %v157
    %v160 = vlaneseq
    %v161 = vand.u32 %v160, 127
    %vm163 = vcmp.lt.s32.totalorder %v161, 48
    %v164 = vsel %vm163, %v158, %v9
    %s165 = scalar_lea.vmem [#allocation7], 24
    %v166 = vpack.c.bf16 0.0, %v164
    %168 = vst [vmem:[%s165] sm:$0xf] %v166
    %s169 = scalar_lea.vmem %s1, 28
    %s171 = sor.u32 255, 127
    %s172 = sand.u32 %s171, 85
    %s173 = sshrl.u32 %s172, 1
    %s174 = sor.u32 %s172, %s173
    %s175 = sand.u32 51, %s174
    %s176 = sshrl.u32 %s175, 2
    %s177 = sor.u32 %s175, %s176
    %s178 = sand.u32 15, %s177
    %v179 = vld [vmem:[%s169] sm:%s178]
    %v180 = vunpack.c.l.bf16 %v179
    %v181 = vunpack.c.h.bf16 %v179
    %v182 = vlaneseq
    %v183 = vand.u32 %v182, 127
    %vm185 = vcmp.lt.s32.totalorder %v183, 48
    %v186 = vsel %vm185, %v180, %v9
    %s187 = scalar_lea.vmem [#allocation7], 28
    %v188 = vpack.c.bf16 0.0, %v186
    %190 = vst [vmem:[%s187] sm:$0xf] %v188
    %s191 = scalar_lea.vmem %s1, 32
    %s193 = sor.u32 255, 127
    %s194 = sand.u32 %s193, 85
    %s195 = sshrl.u32 %s194, 1
    %s196 = sor.u32 %s194, %s195
    %s197 = sand.u32 51, %s196
    %s198 = sshrl.u32 %s197, 2
    %s199 = sor.u32 %s197, %s198
    %s200 = sand.u32 15, %s199
    %v201 = vld [vmem:[%s191] sm:%s200]
    %v202 = vunpack.c.l.bf16 %v201
    %v203 = vunpack.c.h.bf16 %v201
    %v204 = vlaneseq
    %v205 = vand.u32 %v204, 127
    %vm207 = vcmp.lt.s32.totalorder %v205, 48
    %v208 = vsel %vm207, %v202, %v9
    %s209 = scalar_lea.vmem [#allocation7], 32
    %v210 = vpack.c.bf16 0.0, %v208
    %212 = vst [vmem:[%s209] sm:$0xf] %v210
    %s213 = scalar_lea.vmem %s1, 36
    %s215 = sor.u32 255, 127
    %s216 = sand.u32 %s215, 85
    %s217 = sshrl.u32 %s216, 1
    %s218 = sor.u32 %s216, %s217
    %s219 = sand.u32 51, %s218
    %s220 = sshrl.u32 %s219, 2
    %s221 = sor.u32 %s219, %s220
    %s222 = sand.u32 15, %s221
    %v223 = vld [vmem:[%s213] sm:%s222]
    %v224 = vunpack.c.l.bf16 %v223
    %v225 = vunpack.c.h.bf16 %v223
    %v226 = vlaneseq
    %v227 = vand.u32 %v226, 127
    %vm229 = vcmp.lt.s32.totalorder %v227, 48
    %v230 = vsel %vm229, %v224, %v9
    %s231 = scalar_lea.vmem [#allocation7], 36
    %v232 = vpack.c.bf16 0.0, %v230
    %234 = vst [vmem:[%s231] sm:$0xf] %v232
    %s235 = scalar_lea.vmem %s1, 40
    %s237 = sor.u32 255, 127
    %s238 = sand.u32 %s237, 85
    %s239 = sshrl.u32 %s238, 1
    %s240 = sor.u32 %s238, %s239
    %s241 = sand.u32 51, %s240
    %s242 = sshrl.u32 %s241, 2
    %s243 = sor.u32 %s241, %s242
    %s244 = sand.u32 15, %s243
    %v245 = vld [vmem:[%s235] sm:%s244]
    %v246 = vunpack.c.l.bf16 %v245
    %v247 = vunpack.c.h.bf16 %v245
    %v248 = vlaneseq
    %v249 = vand.u32 %v248, 127
    %vm251 = vcmp.lt.s32.totalorder %v249, 48
    %v252 = vsel %vm251, %v246, %v9
    %s253 = scalar_lea.vmem [#allocation7], 40
    %v254 = vpack.c.bf16 0.0, %v252
    %256 = vst [vmem:[%s253] sm:$0xf] %v254
    %s257 = scalar_lea.vmem %s1, 44
    %s259 = sor.u32 255, 127
    %s260 = sand.u32 %s259, 85
    %s261 = sshrl.u32 %s260, 1
    %s262 = sor.u32 %s260, %s261
    %s263 = sand.u32 51, %s262
    %s264 = sshrl.u32 %s263, 2
    %s265 = sor.u32 %s263, %s264
    %s266 = sand.u32 15, %s265
    %v267 = vld [vmem:[%s257] sm:%s266]
    %v268 = vunpack.c.l.bf16 %v267
    %v269 = vunpack.c.h.bf16 %v267
    %v270 = vlaneseq
    %v271 = vand.u32 %v270, 127
    %vm273 = vcmp.lt.s32.totalorder %v271, 48
    %v274 = vsel %vm273, %v268, %v9
    %s275 = scalar_lea.vmem [#allocation7], 44
    %v276 = vpack.c.bf16 0.0, %v274
    %278 = vst [vmem:[%s275] sm:$0xf] %v276
    %s279 = scalar_lea.vmem %s1, 48
    %s281 = sor.u32 255, 127
    %s282 = sand.u32 %s281, 85
    %s283 = sshrl.u32 %s282, 1
    %s284 = sor.u32 %s282, %s283
    %s285 = sand.u32 51, %s284
    %s286 = sshrl.u32 %s285, 2
    %s287 = sor.u32 %s285, %s286
    %s288 = sand.u32 15, %s287
    %v289 = vld [vmem:[%s279] sm:%s288]
    %v290 = vunpack.c.l.bf16 %v289
    %v291 = vunpack.c.h.bf16 %v289
    %v292 = vlaneseq
    %v293 = vand.u32 %v292, 127
    %vm295 = vcmp.lt.s32.totalorder %v293, 48
    %v296 = vsel %vm295, %v290, %v9
    %s297 = scalar_lea.vmem [#allocation7], 48
    %v298 = vpack.c.bf16 0.0, %v296
    %300 = vst [vmem:[%s297] sm:$0xf] %v298
    %s301 = scalar_lea.vmem %s1, 52
    %s303 = sor.u32 255, 127
    %s304 = sand.u32 %s303, 85
    %s305 = sshrl.u32 %s304, 1
    %s306 = sor.u32 %s304, %s305
    %s307 = sand.u32 51, %s306
    %s308 = sshrl.u32 %s307, 2
    %s309 = sor.u32 %s307, %s308
    %s310 = sand.u32 15, %s309
    %v311 = vld [vmem:[%s301] sm:%s310]
    %v312 = vunpack.c.l.bf16 %v311
    %v313 = vunpack.c.h.bf16 %v311
    %v314 = vlaneseq
    %v315 = vand.u32 %v314, 127
    %vm317 = vcmp.lt.s32.totalorder %v315, 48
    %v318 = vsel %vm317, %v312, %v9
    %s319 = scalar_lea.vmem [#allocation7], 52
    %v320 = vpack.c.bf16 0.0, %v318
    %322 = vst [vmem:[%s319] sm:$0xf] %v320
    %s323 = scalar_lea.vmem %s1, 56
    %s325 = sor.u32 255, 127
    %s326 = sand.u32 %s325, 85
    %s327 = sshrl.u32 %s326, 1
    %s328 = sor.u32 %s326, %s327
    %s329 = sand.u32 51, %s328
    %s330 = sshrl.u32 %s329, 2
    %s331 = sor.u32 %s329, %s330
    %s332 = sand.u32 15, %s331
    %v333 = vld [vmem:[%s323] sm:%s332]
    %v334 = vunpack.c.l.bf16 %v333
    %v335 = vunpack.c.h.bf16 %v333
    %v336 = vlaneseq
    %v337 = vand.u32 %v336, 127
    %vm339 = vcmp.lt.s32.totalorder %v337, 48
    %v340 = vsel %vm339, %v334, %v9
    %s341 = scalar_lea.vmem [#allocation7], 56
    %v342 = vpack.c.bf16 0.0, %v340
    %344 = vst [vmem:[%s341] sm:$0xf] %v342
    %s345 = scalar_lea.vmem %s1, 60
    %s347 = sor.u32 255, 127
    %s348 = sand.u32 %s347, 85
    %s349 = sshrl.u32 %s348, 1
    %s350 = sor.u32 %s348, %s349
    %s351 = sand.u32 51, %s350
    %s352 = sshrl.u32 %s351, 2
    %s353 = sor.u32 %s351, %s352
    %s354 = sand.u32 15, %s353
    %v355 = vld [vmem:[%s345] sm:%s354]
    %v356 = vunpack.c.l.bf16 %v355
    %v357 = vunpack.c.h.bf16 %v355
    %v358 = vlaneseq
    %v359 = vand.u32 %v358, 127
    %vm361 = vcmp.lt.s32.totalorder %v359, 48
    %v362 = vsel %vm361, %v356, %v9
    %s363 = scalar_lea.vmem [#allocation7], 60
    %v364 = vpack.c.bf16 0.0, %v362
    %366 = vst [vmem:[%s363] sm:$0xf] %v364
    %s367 = scalar_lea.vmem %s1, 64
    %s369 = sor.u32 255, 127
    %s370 = sand.u32 %s369, 85
    %s371 = sshrl.u32 %s370, 1
    %s372 = sor.u32 %s370, %s371
    %s373 = sand.u32 51, %s372
    %s374 = sshrl.u32 %s373, 2
    %s375 = sor.u32 %s373, %s374
    %s376 = sand.u32 15, %s375
    %v377 = vld [vmem:[%s367] sm:%s376]
    %v378 = vunpack.c.l.bf16 %v377
    %v379 = vunpack.c.h.bf16 %v377
    %v380 = vlaneseq
    %v381 = vand.u32 %v380, 127
    %vm383 = vcmp.lt.s32.totalorder %v381, 48
    %v384 = vsel %vm383, %v378, %v9
    %s385 = scalar_lea.vmem [#allocation7], 64
    %v386 = vpack.c.bf16 0.0, %v384
    %388 = vst [vmem:[%s385] sm:$0xf] %v386
    %s389 = scalar_lea.vmem %s1, 68
    %s391 = sor.u32 255, 127
    %s392 = sand.u32 %s391, 85
    %s393 = sshrl.u32 %s392, 1
    %s394 = sor.u32 %s392, %s393
    %s395 = sand.u32 51, %s394
    %s396 = sshrl.u32 %s395, 2
    %s397 = sor.u32 %s395, %s396
    %s398 = sand.u32 15, %s397
    %v399 = vld [vmem:[%s389] sm:%s398]
    %v400 = vunpack.c.l.bf16 %v399
    %v401 = vunpack.c.h.bf16 %v399
    %v402 = vlaneseq
    %v403 = vand.u32 %v402, 127
    %vm405 = vcmp.lt.s32.totalorder %v403, 48
    %v406 = vsel %vm405, %v400, %v9
    %s407 = scalar_lea.vmem [#allocation7], 68
    %v408 = vpack.c.bf16 0.0, %v406
    %410 = vst [vmem:[%s407] sm:$0xf] %v408
    %s411 = scalar_lea.vmem %s1, 72
    %s413 = sor.u32 255, 127
    %s414 = sand.u32 %s413, 85
    %s415 = sshrl.u32 %s414, 1
    %s416 = sor.u32 %s414, %s415
    %s417 = sand.u32 51, %s416
    %s418 = sshrl.u32 %s417, 2
    %s419 = sor.u32 %s417, %s418
    %s420 = sand.u32 15, %s419
    %v421 = vld [vmem:[%s411] sm:%s420]
    %v422 = vunpack.c.l.bf16 %v421
    %v423 = vunpack.c.h.bf16 %v421
    %v424 = vlaneseq
    %v425 = vand.u32 %v424, 127
    %vm427 = vcmp.lt.s32.totalorder %v425, 48
    %v428 = vsel %vm427, %v422, %v9
    %s429 = scalar_lea.vmem [#allocation7], 72
    %v430 = vpack.c.bf16 0.0, %v428
    %432 = vst [vmem:[%s429] sm:$0xf] %v430
    %s433 = scalar_lea.vmem %s1, 76
    %s435 = sor.u32 255, 127
    %s436 = sand.u32 %s435, 85
    %s437 = sshrl.u32 %s436, 1
    %s438 = sor.u32 %s436, %s437
    %s439 = sand.u32 51, %s438
    %s440 = sshrl.u32 %s439, 2
    %s441 = sor.u32 %s439, %s440
    %s442 = sand.u32 15, %s441
    %v443 = vld [vmem:[%s433] sm:%s442]
    %v444 = vunpack.c.l.bf16 %v443
    %v445 = vunpack.c.h.bf16 %v443
    %v446 = vlaneseq
    %v447 = vand.u32 %v446, 127
    %vm449 = vcmp.lt.s32.totalorder %v447, 48
    %v450 = vsel %vm449, %v444, %v9
    %s451 = scalar_lea.vmem [#allocation7], 76
    %v452 = vpack.c.bf16 0.0, %v450
    %454 = vst [vmem:[%s451] sm:$0xf] %v452
    %s455 = scalar_lea.vmem %s1, 80
    %s457 = sor.u32 255, 127
    %s458 = sand.u32 %s457, 85
    %s459 = sshrl.u32 %s458, 1
    %s460 = sor.u32 %s458, %s459
    %s461 = sand.u32 51, %s460
    %s462 = sshrl.u32 %s461, 2
    %s463 = sor.u32 %s461, %s462
    %s464 = sand.u32 15, %s463
    %v465 = vld [vmem:[%s455] sm:%s464]
    %v466 = vunpack.c.l.bf16 %v465
    %v467 = vunpack.c.h.bf16 %v465
    %v468 = vlaneseq
    %v469 = vand.u32 %v468, 127
    %vm471 = vcmp.lt.s32.totalorder %v469, 48
    %v472 = vsel %vm471, %v466, %v9
    %s473 = scalar_lea.vmem [#allocation7], 80
    %v474 = vpack.c.bf16 0.0, %v472
    %476 = vst [vmem:[%s473] sm:$0xf] %v474
    %s477 = scalar_lea.vmem %s1, 84
    %s479 = sor.u32 255, 127
    %s480 = sand.u32 %s479, 85
    %s481 = sshrl.u32 %s480, 1
    %s482 = sor.u32 %s480, %s481
    %s483 = sand.u32 51, %s482
    %s484 = sshrl.u32 %s483, 2
    %s485 = sor.u32 %s483, %s484
    %s486 = sand.u32 15, %s485
    %v487 = vld [vmem:[%s477] sm:%s486]
    %v488 = vunpack.c.l.bf16 %v487
    %v489 = vunpack.c.h.bf16 %v487
    %v490 = vlaneseq
    %v491 = vand.u32 %v490, 127
    %vm493 = vcmp.lt.s32.totalorder %v491, 48
    %v494 = vsel %vm493, %v488, %v9
    %s495 = scalar_lea.vmem [#allocation7], 84
    %v496 = vpack.c.bf16 0.0, %v494
    %498 = vst [vmem:[%s495] sm:$0xf] %v496
    %s499 = scalar_lea.vmem %s1, 88
    %s501 = sor.u32 255, 127
    %s502 = sand.u32 %s501, 85
    %s503 = sshrl.u32 %s502, 1
    %s504 = sor.u32 %s502, %s503
    %s505 = sand.u32 51, %s504
    %s506 = sshrl.u32 %s505, 2
    %s507 = sor.u32 %s505, %s506
    %s508 = sand.u32 15, %s507
    %v509 = vld [vmem:[%s499] sm:%s508]
    %v510 = vunpack.c.l.bf16 %v509
    %v511 = vunpack.c.h.bf16 %v509
    %v512 = vlaneseq
    %v513 = vand.u32 %v512, 127
    %vm515 = vcmp.lt.s32.totalorder %v513, 48
    %v516 = vsel %vm515, %v510, %v9
    %s517 = scalar_lea.vmem [#allocation7], 88
    %v518 = vpack.c.bf16 0.0, %v516
    %520 = vst [vmem:[%s517] sm:$0xf] %v518
    %s521 = scalar_lea.vmem %s1, 92
    %s523 = sor.u32 255, 127
    %s524 = sand.u32 %s523, 85
    %s525 = sshrl.u32 %s524, 1
    %s526 = sor.u32 %s524, %s525
    %s527 = sand.u32 51, %s526
    %s528 = sshrl.u32 %s527, 2
    %s529 = sor.u32 %s527, %s528
    %s530 = sand.u32 15, %s529
    %v531 = vld [vmem:[%s521] sm:%s530]
    %v532 = vunpack.c.l.bf16 %v531
    %v533 = vunpack.c.h.bf16 %v531
    %v534 = vlaneseq
    %v535 = vand.u32 %v534, 127
    %vm537 = vcmp.lt.s32.totalorder %v535, 48
    %v538 = vsel %vm537, %v532, %v9
    %s539 = scalar_lea.vmem [#allocation7], 92
    %v540 = vpack.c.bf16 0.0, %v538
    %542 = vst [vmem:[%s539] sm:$0xf] %v540
    %s543 = scalar_lea.vmem %s1, 96
    %s545 = sor.u32 255, 127
    %s546 = sand.u32 %s545, 85
    %s547 = sshrl.u32 %s546, 1
    %s548 = sor.u32 %s546, %s547
    %s549 = sand.u32 51, %s548
    %s550 = sshrl.u32 %s549, 2
    %s551 = sor.u32 %s549, %s550
    %s552 = sand.u32 15, %s551
    %v553 = vld [vmem:[%s543] sm:%s552]
    %v554 = vunpack.c.l.bf16 %v553
    %v555 = vunpack.c.h.bf16 %v553
    %v556 = vlaneseq
    %v557 = vand.u32 %v556, 127
    %vm559 = vcmp.lt.s32.totalorder %v557, 48
    %v560 = vsel %vm559, %v554, %v9
    %s561 = scalar_lea.vmem [#allocation7], 96
    %v562 = vpack.c.bf16 0.0, %v560
    %564 = vst [vmem:[%s561] sm:$0xf] %v562
    %s565 = scalar_lea.vmem %s1, 100
    %s567 = sor.u32 255, 127
    %s568 = sand.u32 %s567, 85
    %s569 = sshrl.u32 %s568, 1
    %s570 = sor.u32 %s568, %s569
    %s571 = sand.u32 51, %s570
    %s572 = sshrl.u32 %s571, 2
    %s573 = sor.u32 %s571, %s572
    %s574 = sand.u32 15, %s573
    %v575 = vld [vmem:[%s565] sm:%s574]
    %v576 = vunpack.c.l.bf16 %v575
    %v577 = vunpack.c.h.bf16 %v575
    %v578 = vlaneseq
    %v579 = vand.u32 %v578, 127
    %vm581 = vcmp.lt.s32.totalorder %v579, 48
    %v582 = vsel %vm581, %v576, %v9
    %s583 = scalar_lea.vmem [#allocation7], 100
    %v584 = vpack.c.bf16 0.0, %v582
    %586 = vst [vmem:[%s583] sm:$0xf] %v584
    %s587 = scalar_lea.vmem %s1, 104
    %s589 = sor.u32 255, 127
    %s590 = sand.u32 %s589, 85
    %s591 = sshrl.u32 %s590, 1
    %s592 = sor.u32 %s590, %s591
    %s593 = sand.u32 51, %s592
    %s594 = sshrl.u32 %s593, 2
    %s595 = sor.u32 %s593, %s594
    %s596 = sand.u32 15, %s595
    %v597 = vld [vmem:[%s587] sm:%s596]
    %v598 = vunpack.c.l.bf16 %v597
    %v599 = vunpack.c.h.bf16 %v597
    %v600 = vlaneseq
    %v601 = vand.u32 %v600, 127
    %vm603 = vcmp.lt.s32.totalorder %v601, 48
    %v604 = vsel %vm603, %v598, %v9
    %s605 = scalar_lea.vmem [#allocation7], 104
    %v606 = vpack.c.bf16 0.0, %v604
    %608 = vst [vmem:[%s605] sm:$0xf] %v606
    %s609 = scalar_lea.vmem %s1, 108
    %s611 = sor.u32 255, 127
    %s612 = sand.u32 %s611, 85
    %s613 = sshrl.u32 %s612, 1
    %s614 = sor.u32 %s612, %s613
    %s615 = sand.u32 51, %s614
    %s616 = sshrl.u32 %s615, 2
    %s617 = sor.u32 %s615, %s616
    %s618 = sand.u32 15, %s617
    %v619 = vld [vmem:[%s609] sm:%s618]
    %v620 = vunpack.c.l.bf16 %v619
    %v621 = vunpack.c.h.bf16 %v619
    %v622 = vlaneseq
    %v623 = vand.u32 %v622, 127
    %vm625 = vcmp.lt.s32.totalorder %v623, 48
    %v626 = vsel %vm625, %v620, %v9
    %s627 = scalar_lea.vmem [#allocation7], 108
    %v628 = vpack.c.bf16 0.0, %v626
    %630 = vst [vmem:[%s627] sm:$0xf] %v628
    %s631 = scalar_lea.vmem %s1, 112
    %s633 = sor.u32 255, 127
    %s634 = sand.u32 %s633, 85
    %s635 = sshrl.u32 %s634, 1
    %s636 = sor.u32 %s634, %s635
    %s637 = sand.u32 51, %s636
    %s638 = sshrl.u32 %s637, 2
    %s639 = sor.u32 %s637, %s638
    %s640 = sand.u32 15, %s639
    %v641 = vld [vmem:[%s631] sm:%s640]
    %v642 = vunpack.c.l.bf16 %v641
    %v643 = vunpack.c.h.bf16 %v641
    %v644 = vlaneseq
    %v645 = vand.u32 %v644, 127
    %vm647 = vcmp.lt.s32.totalorder %v645, 48
    %v648 = vsel %vm647, %v642, %v9
    %s649 = scalar_lea.vmem [#allocation7], 112
    %v650 = vpack.c.bf16 0.0, %v648
    %652 = vst [vmem:[%s649] sm:$0xf] %v650
    %s653 = scalar_lea.vmem %s1, 116
    %s655 = sor.u32 255, 127
    %s656 = sand.u32 %s655, 85
    %s657 = sshrl.u32 %s656, 1
    %s658 = sor.u32 %s656, %s657
    %s659 = sand.u32 51, %s658
    %s660 = sshrl.u32 %s659, 2
    %s661 = sor.u32 %s659, %s660
    %s662 = sand.u32 15, %s661
    %v663 = vld [vmem:[%s653] sm:%s662]
    %v664 = vunpack.c.l.bf16 %v663
    %v665 = vunpack.c.h.bf16 %v663
    %v666 = vlaneseq
    %v667 = vand.u32 %v666, 127
    %vm669 = vcmp.lt.s32.totalorder %v667, 48
    %v670 = vsel %vm669, %v664, %v9
    %s671 = scalar_lea.vmem [#allocation7], 116
    %v672 = vpack.c.bf16 0.0, %v670
    %674 = vst [vmem:[%s671] sm:$0xf] %v672
    %s675 = scalar_lea.vmem %s1, 120
    %s677 = sor.u32 255, 127
    %s678 = sand.u32 %s677, 85
    %s679 = sshrl.u32 %s678, 1
    %s680 = sor.u32 %s678, %s679
    %s681 = sand.u32 51, %s680
    %s682 = sshrl.u32 %s681, 2
    %s683 = sor.u32 %s681, %s682
    %s684 = sand.u32 15, %s683
    %v685 = vld [vmem:[%s675] sm:%s684]
    %v686 = vunpack.c.l.bf16 %v685
    %v687 = vunpack.c.h.bf16 %v685
    %v688 = vlaneseq
    %v689 = vand.u32 %v688, 127
    %vm691 = vcmp.lt.s32.totalorder %v689, 48
    %v692 = vsel %vm691, %v686, %v9
    %s693 = scalar_lea.vmem [#allocation7], 120
    %v694 = vpack.c.bf16 0.0, %v692
    %696 = vst [vmem:[%s693] sm:$0xf] %v694
    %s697 = scalar_lea.vmem %s1, 124
    %s699 = sor.u32 255, 127
    %s700 = sand.u32 %s699, 85
    %s701 = sshrl.u32 %s700, 1
    %s702 = sor.u32 %s700, %s701
    %s703 = sand.u32 51, %s702
    %s704 = sshrl.u32 %s703, 2
    %s705 = sor.u32 %s703, %s704
    %s706 = sand.u32 15, %s705
    %v707 = vld [vmem:[%s697] sm:%s706]
    %v708 = vunpack.c.l.bf16 %v707
    %v709 = vunpack.c.h.bf16 %v707
    %v710 = vlaneseq
    %v711 = vand.u32 %v710, 127
    %vm713 = vcmp.lt.s32.totalorder %v711, 48
    %v714 = vsel %vm713, %v708, %v9
    %s715 = scalar_lea.vmem [#allocation7], 124
    %v716 = vpack.c.bf16 0.0, %v714
    %718 = vst [vmem:[%s715] sm:$0xf] %v716
    %s719 = scalar_lea.vmem %s1, 128
    %s721 = sor.u32 255, 127
    %s722 = sand.u32 %s721, 85
    %s723 = sshrl.u32 %s722, 1
    %s724 = sor.u32 %s722, %s723
    %s725 = sand.u32 51, %s724
    %s726 = sshrl.u32 %s725, 2
    %s727 = sor.u32 %s725, %s726
    %s728 = sand.u32 15, %s727
    %v729 = vld [vmem:[%s719] sm:%s728]
    %v730 = vunpack.c.l.bf16 %v729
    %v731 = vunpack.c.h.bf16 %v729
    %v732 = vlaneseq
    %v733 = vand.u32 %v732, 127
    %vm735 = vcmp.lt.s32.totalorder %v733, 48
    %v736 = vsel %vm735, %v730, %v9
    %s737 = scalar_lea.vmem [#allocation7], 128
    %v738 = vpack.c.bf16 0.0, %v736
    %740 = vst [vmem:[%s737] sm:$0xf] %v738
    %s741 = scalar_lea.vmem %s1, 132
    %s743 = sor.u32 255, 127
    %s744 = sand.u32 %s743, 85
    %s745 = sshrl.u32 %s744, 1
    %s746 = sor.u32 %s744, %s745
    %s747 = sand.u32 51, %s746
    %s748 = sshrl.u32 %s747, 2
    %s749 = sor.u32 %s747, %s748
    %s750 = sand.u32 15, %s749
    %v751 = vld [vmem:[%s741] sm:%s750]
    %v752 = vunpack.c.l.bf16 %v751
    %v753 = vunpack.c.h.bf16 %v751
    %v754 = vlaneseq
    %v755 = vand.u32 %v754, 127
    %vm757 = vcmp.lt.s32.totalorder %v755, 48
    %v758 = vsel %vm757, %v752, %v9
    %s759 = scalar_lea.vmem [#allocation7], 132
    %v760 = vpack.c.bf16 0.0, %v758
    %762 = vst [vmem:[%s759] sm:$0xf] %v760
    %s763 = scalar_lea.vmem %s1, 136
    %s765 = sor.u32 255, 127
    %s766 = sand.u32 %s765, 85
    %s767 = sshrl.u32 %s766, 1
    %s768 = sor.u32 %s766, %s767
    %s769 = sand.u32 51, %s768
    %s770 = sshrl.u32 %s769, 2
    %s771 = sor.u32 %s769, %s770
    %s772 = sand.u32 15, %s771
    %v773 = vld [vmem:[%s763] sm:%s772]
    %v774 = vunpack.c.l.bf16 %v773
    %v775 = vunpack.c.h.bf16 %v773
    %v776 = vlaneseq
    %v777 = vand.u32 %v776, 127
    %vm779 = vcmp.lt.s32.totalorder %v777, 48
    %v780 = vsel %vm779, %v774, %v9
    %s781 = scalar_lea.vmem [#allocation7], 136
    %v782 = vpack.c.bf16 0.0, %v780
    %784 = vst [vmem:[%s781] sm:$0xf] %v782
    %s785 = scalar_lea.vmem %s1, 140
    %s787 = sor.u32 255, 127
    %s788 = sand.u32 %s787, 85
    %s789 = sshrl.u32 %s788, 1
    %s790 = sor.u32 %s788, %s789
    %s791 = sand.u32 51, %s790
    %s792 = sshrl.u32 %s791, 2
    %s793 = sor.u32 %s791, %s792
    %s794 = sand.u32 15, %s793
    %v795 = vld [vmem:[%s785] sm:%s794]
    %v796 = vunpack.c.l.bf16 %v795
    %v797 = vunpack.c.h.bf16 %v795
    %v798 = vlaneseq
    %v799 = vand.u32 %v798, 127
    %vm801 = vcmp.lt.s32.totalorder %v799, 48
    %v802 = vsel %vm801, %v796, %v9
    %s803 = scalar_lea.vmem [#allocation7], 140
    %v804 = vpack.c.bf16 0.0, %v802
    %806 = vst [vmem:[%s803] sm:$0xf] %v804
    %s807 = scalar_lea.vmem %s1, 144
    %s809 = sor.u32 255, 127
    %s810 = sand.u32 %s809, 85
    %s811 = sshrl.u32 %s810, 1
    %s812 = sor.u32 %s810, %s811
    %s813 = sand.u32 51, %s812
    %s814 = sshrl.u32 %s813, 2
    %s815 = sor.u32 %s813, %s814
    %s816 = sand.u32 15, %s815
    %v817 = vld [vmem:[%s807] sm:%s816]
    %v818 = vunpack.c.l.bf16 %v817
    %v819 = vunpack.c.h.bf16 %v817
    %v820 = vlaneseq
    %v821 = vand.u32 %v820, 127
    %vm823 = vcmp.lt.s32.totalorder %v821, 48
    %v824 = vsel %vm823, %v818, %v9
    %s825 = scalar_lea.vmem [#allocation7], 144
    %v826 = vpack.c.bf16 0.0, %v824
    %828 = vst [vmem:[%s825] sm:$0xf] %v826
    %s829 = scalar_lea.vmem %s1, 148
    %s831 = sor.u32 255, 127
    %s832 = sand.u32 %s831, 85
    %s833 = sshrl.u32 %s832, 1
    %s834 = sor.u32 %s832, %s833
    %s835 = sand.u32 51, %s834
    %s836 = sshrl.u32 %s835, 2
    %s837 = sor.u32 %s835, %s836
    %s838 = sand.u32 15, %s837
    %v839 = vld [vmem:[%s829] sm:%s838]
    %v840 = vunpack.c.l.bf16 %v839
    %v841 = vunpack.c.h.bf16 %v839
    %v842 = vlaneseq
    %v843 = vand.u32 %v842, 127
    %vm845 = vcmp.lt.s32.totalorder %v843, 48
    %v846 = vsel %vm845, %v840, %v9
    %s847 = scalar_lea.vmem [#allocation7], 148
    %v848 = vpack.c.bf16 0.0, %v846
    %850 = vst [vmem:[%s847] sm:$0xf] %v848
    %s851 = scalar_lea.vmem %s1, 152
    %s853 = sor.u32 255, 127
    %s854 = sand.u32 %s853, 85
    %s855 = sshrl.u32 %s854, 1
    %s856 = sor.u32 %s854, %s855
    %s857 = sand.u32 51, %s856
    %s858 = sshrl.u32 %s857, 2
    %s859 = sor.u32 %s857, %s858
    %s860 = sand.u32 15, %s859
    %v861 = vld [vmem:[%s851] sm:%s860]
    %v862 = vunpack.c.l.bf16 %v861
    %v863 = vunpack.c.h.bf16 %v861
    %v864 = vlaneseq
    %v865 = vand.u32 %v864, 127
    %vm867 = vcmp.lt.s32.totalorder %v865, 48
    %v868 = vsel %vm867, %v862, %v9
    %s869 = scalar_lea.vmem [#allocation7], 152
    %v870 = vpack.c.bf16 0.0, %v868
    %872 = vst [vmem:[%s869] sm:$0xf] %v870
    %s873 = scalar_lea.vmem %s1, 156
    %s875 = sor.u32 255, 127
    %s876 = sand.u32 %s875, 85
    %s877 = sshrl.u32 %s876, 1
    %s878 = sor.u32 %s876, %s877
    %s879 = sand.u32 51, %s878
    %s880 = sshrl.u32 %s879, 2
    %s881 = sor.u32 %s879, %s880
    %s882 = sand.u32 15, %s881
    %v883 = vld [vmem:[%s873] sm:%s882]
    %v884 = vunpack.c.l.bf16 %v883
    %v885 = vunpack.c.h.bf16 %v883
    %v886 = vlaneseq
    %v887 = vand.u32 %v886, 127
    %vm889 = vcmp.lt.s32.totalorder %v887, 48
    %v890 = vsel %vm889, %v884, %v9
    %s891 = scalar_lea.vmem [#allocation7], 156
    %v892 = vpack.c.bf16 0.0, %v890
    %894 = vst [vmem:[%s891] sm:$0xf] %v892
    %s895 = scalar_lea.vmem %s1, 160
    %s897 = sor.u32 255, 127
    %s898 = sand.u32 %s897, 85
    %s899 = sshrl.u32 %s898, 1
    %s900 = sor.u32 %s898, %s899
    %s901 = sand.u32 51, %s900
    %s902 = sshrl.u32 %s901, 2
    %s903 = sor.u32 %s901, %s902
    %s904 = sand.u32 15, %s903
    %v905 = vld [vmem:[%s895] sm:%s904]
    %v906 = vunpack.c.l.bf16 %v905
    %v907 = vunpack.c.h.bf16 %v905
    %v908 = vlaneseq
    %v909 = vand.u32 %v908, 127
    %vm911 = vcmp.lt.s32.totalorder %v909, 48
    %v912 = vsel %vm911, %v906, %v9
    %s913 = scalar_lea.vmem [#allocation7], 160
    %v914 = vpack.c.bf16 0.0, %v912
    %916 = vst [vmem:[%s913] sm:$0xf] %v914
    %s917 = scalar_lea.vmem %s1, 164
    %s919 = sor.u32 255, 127
    %s920 = sand.u32 %s919, 85
    %s921 = sshrl.u32 %s920, 1
    %s922 = sor.u32 %s920, %s921
    %s923 = sand.u32 51, %s922
    %s924 = sshrl.u32 %s923, 2
    %s925 = sor.u32 %s923, %s924
    %s926 = sand.u32 15, %s925
    %v927 = vld [vmem:[%s917] sm:%s926]
    %v928 = vunpack.c.l.bf16 %v927
    %v929 = vunpack.c.h.bf16 %v927
    %v930 = vlaneseq
    %v931 = vand.u32 %v930, 127
    %vm933 = vcmp.lt.s32.totalorder %v931, 48
    %v934 = vsel %vm933, %v928, %v9
    %s935 = scalar_lea.vmem [#allocation7], 164
    %v936 = vpack.c.bf16 0.0, %v934
    %938 = vst [vmem:[%s935] sm:$0xf] %v936
    %s939 = scalar_lea.vmem %s1, 168
    %s941 = sor.u32 255, 127
    %s942 = sand.u32 %s941, 85
    %s943 = sshrl.u32 %s942, 1
    %s944 = sor.u32 %s942, %s943
    %s945 = sand.u32 51, %s944
    %s946 = sshrl.u32 %s945, 2
    %s947 = sor.u32 %s945, %s946
    %s948 = sand.u32 15, %s947
    %v949 = vld [vmem:[%s939] sm:%s948]
    %v950 = vunpack.c.l.bf16 %v949
    %v951 = vunpack.c.h.bf16 %v949
    %v952 = vlaneseq
    %v953 = vand.u32 %v952, 127
    %vm955 = vcmp.lt.s32.totalorder %v953, 48
    %v956 = vsel %vm955, %v950, %v9
    %s957 = scalar_lea.vmem [#allocation7], 168
    %v958 = vpack.c.bf16 0.0, %v956
    %960 = vst [vmem:[%s957] sm:$0xf] %v958
    %s961 = scalar_lea.vmem %s1, 172
    %s963 = sor.u32 255, 127
    %s964 = sand.u32 %s963, 85
    %s965 = sshrl.u32 %s964, 1
    %s966 = sor.u32 %s964, %s965
    %s967 = sand.u32 51, %s966
    %s968 = sshrl.u32 %s967, 2
    %s969 = sor.u32 %s967, %s968
    %s970 = sand.u32 15, %s969
    %v971 = vld [vmem:[%s961] sm:%s970]
    %v972 = vunpack.c.l.bf16 %v971
    %v973 = vunpack.c.h.bf16 %v971
    %v974 = vlaneseq
    %v975 = vand.u32 %v974, 127
    %vm977 = vcmp.lt.s32.totalorder %v975, 48
    %v978 = vsel %vm977, %v972, %v9
    %s979 = scalar_lea.vmem [#allocation7], 172
    %v980 = vpack.c.bf16 0.0, %v978
    %982 = vst [vmem:[%s979] sm:$0xf] %v980
    %s983 = scalar_lea.vmem %s1, 176
    %s985 = sor.u32 255, 127
    %s986 = sand.u32 %s985, 85
    %s987 = sshrl.u32 %s986, 1
    %s988 = sor.u32 %s986, %s987
    %s989 = sand.u32 51, %s988
    %s990 = sshrl.u32 %s989, 2
    %s991 = sor.u32 %s989, %s990
    %s992 = sand.u32 15, %s991
    %v993 = vld [vmem:[%s983] sm:%s992]
    %v994 = vunpack.c.l.bf16 %v993
    %v995 = vunpack.c.h.bf16 %v993
    %v996 = vlaneseq
    %v997 = vand.u32 %v996, 127
    %vm999 = vcmp.lt.s32.totalorder %v997, 48
    %v1000 = vsel %vm999, %v994, %v9
    %s1001 = scalar_lea.vmem [#allocation7], 176
    %v1002 = vpack.c.bf16 0.0, %v1000
    %1004 = vst [vmem:[%s1001] sm:$0xf] %v1002
    %s1005 = scalar_lea.vmem %s1, 180
    %s1007 = sor.u32 255, 127
    %s1008 = sand.u32 %s1007, 85
    %s1009 = sshrl.u32 %s1008, 1
    %s1010 = sor.u32 %s1008, %s1009
    %s1011 = sand.u32 51, %s1010
    %s1012 = sshrl.u32 %s1011, 2
    %s1013 = sor.u32 %s1011, %s1012
    %s1014 = sand.u32 15, %s1013
    %v1015 = vld [vmem:[%s1005] sm:%s1014]
    %v1016 = vunpack.c.l.bf16 %v1015
    %v1017 = vunpack.c.h.bf16 %v1015
    %v1018 = vlaneseq
    %v1019 = vand.u32 %v1018, 127
    %vm1021 = vcmp.lt.s32.totalorder %v1019, 48
    %v1022 = vsel %vm1021, %v1016, %v9
    %s1023 = scalar_lea.vmem [#allocation7], 180
    %v1024 = vpack.c.bf16 0.0, %v1022
    %1026 = vst [vmem:[%s1023] sm:$0xf] %v1024
    %s1027 = scalar_lea.vmem %s1, 184
    %s1029 = sor.u32 255, 127
    %s1030 = sand.u32 %s1029, 85
    %s1031 = sshrl.u32 %s1030, 1
    %s1032 = sor.u32 %s1030, %s1031
    %s1033 = sand.u32 51, %s1032
    %s1034 = sshrl.u32 %s1033, 2
    %s1035 = sor.u32 %s1033, %s1034
    %s1036 = sand.u32 15, %s1035
    %v1037 = vld [vmem:[%s1027] sm:%s1036]
    %v1038 = vunpack.c.l.bf16 %v1037
    %v1039 = vunpack.c.h.bf16 %v1037
    %v1040 = vlaneseq
    %v1041 = vand.u32 %v1040, 127
    %vm1043 = vcmp.lt.s32.totalorder %v1041, 48
    %v1044 = vsel %vm1043, %v1038, %v9
    %s1045 = scalar_lea.vmem [#allocation7], 184
    %v1046 = vpack.c.bf16 0.0, %v1044
    %1048 = vst [vmem:[%s1045] sm:$0xf] %v1046
    %s1049 = scalar_lea.vmem %s1, 188
    %s1051 = sor.u32 255, 127
    %s1052 = sand.u32 %s1051, 85
    %s1053 = sshrl.u32 %s1052, 1
    %s1054 = sor.u32 %s1052, %s1053
    %s1055 = sand.u32 51, %s1054
    %s1056 = sshrl.u32 %s1055, 2
    %s1057 = sor.u32 %s1055, %s1056
    %s1058 = sand.u32 15, %s1057
    %v1059 = vld [vmem:[%s1049] sm:%s1058]
    %v1060 = vunpack.c.l.bf16 %v1059
    %v1061 = vunpack.c.h.bf16 %v1059
    %v1062 = vlaneseq
    %v1063 = vand.u32 %v1062, 127
    %vm1065 = vcmp.lt.s32.totalorder %v1063, 48
    %v1066 = vsel %vm1065, %v1060, %v9
    %s1067 = scalar_lea.vmem [#allocation7], 188
    %v1068 = vpack.c.bf16 0.0, %v1066
    %1070 = vst [vmem:[%s1067] sm:$0xf] %v1068
    %s1071 = scalar_lea.vmem %s1, 192
    %s1073 = sor.u32 255, 127
    %s1074 = sand.u32 %s1073, 85
    %s1075 = sshrl.u32 %s1074, 1
    %s1076 = sor.u32 %s1074, %s1075
    %s1077 = sand.u32 51, %s1076
    %s1078 = sshrl.u32 %s1077, 2
    %s1079 = sor.u32 %s1077, %s1078
    %s1080 = sand.u32 15, %s1079
    %v1081 = vld [vmem:[%s1071] sm:%s1080]
    %v1082 = vunpack.c.l.bf16 %v1081
    %v1083 = vunpack.c.h.bf16 %v1081
    %v1084 = vlaneseq
    %v1085 = vand.u32 %v1084, 127
    %vm1087 = vcmp.lt.s32.totalorder %v1085, 48
    %v1088 = vsel %vm1087, %v1082, %v9
    %s1089 = scalar_lea.vmem [#allocation7], 192
    %v1090 = vpack.c.bf16 0.0, %v1088
    %1092 = vst [vmem:[%s1089] sm:$0xf] %v1090
    %s1093 = scalar_lea.vmem %s1, 196
    %s1095 = sor.u32 255, 127
    %s1096 = sand.u32 %s1095, 85
    %s1097 = sshrl.u32 %s1096, 1
    %s1098 = sor.u32 %s1096, %s1097
    %s1099 = sand.u32 51, %s1098
    %s1100 = sshrl.u32 %s1099, 2
    %s1101 = sor.u32 %s1099, %s1100
    %s1102 = sand.u32 15, %s1101
    %v1103 = vld [vmem:[%s1093] sm:%s1102]
    %v1104 = vunpack.c.l.bf16 %v1103
    %v1105 = vunpack.c.h.bf16 %v1103
    %v1106 = vlaneseq
    %v1107 = vand.u32 %v1106, 127
    %vm1109 = vcmp.lt.s32.totalorder %v1107, 48
    %v1110 = vsel %vm1109, %v1104, %v9
    %s1111 = scalar_lea.vmem [#allocation7], 196
    %v1112 = vpack.c.bf16 0.0, %v1110
    %1114 = vst [vmem:[%s1111] sm:$0xf] %v1112
    %s1115 = scalar_lea.vmem %s1, 200
    %s1117 = sor.u32 255, 127
    %s1118 = sand.u32 %s1117, 85
    %s1119 = sshrl.u32 %s1118, 1
    %s1120 = sor.u32 %s1118, %s1119
    %s1121 = sand.u32 51, %s1120
    %s1122 = sshrl.u32 %s1121, 2
    %s1123 = sor.u32 %s1121, %s1122
    %s1124 = sand.u32 15, %s1123
    %v1125 = vld [vmem:[%s1115] sm:%s1124]
    %v1126 = vunpack.c.l.bf16 %v1125
    %v1127 = vunpack.c.h.bf16 %v1125
    %v1128 = vlaneseq
    %v1129 = vand.u32 %v1128, 127
    %vm1131 = vcmp.lt.s32.totalorder %v1129, 48
    %v1132 = vsel %vm1131, %v1126, %v9
    %s1133 = scalar_lea.vmem [#allocation7], 200
    %v1134 = vpack.c.bf16 0.0, %v1132
    %1136 = vst [vmem:[%s1133] sm:$0xf] %v1134
    %s1137 = scalar_lea.vmem %s1, 204
    %s1139 = sor.u32 255, 127
    %s1140 = sand.u32 %s1139, 85
    %s1141 = sshrl.u32 %s1140, 1
    %s1142 = sor.u32 %s1140, %s1141
    %s1143 = sand.u32 51, %s1142
    %s1144 = sshrl.u32 %s1143, 2
    %s1145 = sor.u32 %s1143, %s1144
    %s1146 = sand.u32 15, %s1145
    %v1147 = vld [vmem:[%s1137] sm:%s1146]
    %v1148 = vunpack.c.l.bf16 %v1147
    %v1149 = vunpack.c.h.bf16 %v1147
    %v1150 = vlaneseq
    %v1151 = vand.u32 %v1150, 127
    %vm1153 = vcmp.lt.s32.totalorder %v1151, 48
    %v1154 = vsel %vm1153, %v1148, %v9
    %s1155 = scalar_lea.vmem [#allocation7], 204
    %v1156 = vpack.c.bf16 0.0, %v1154
    %1158 = vst [vmem:[%s1155] sm:$0xf] %v1156
    %s1159 = scalar_lea.vmem %s1, 208
    %s1161 = sor.u32 255, 127
    %s1162 = sand.u32 %s1161, 85
    %s1163 = sshrl.u32 %s1162, 1
    %s1164 = sor.u32 %s1162, %s1163
    %s1165 = sand.u32 51, %s1164
    %s1166 = sshrl.u32 %s1165, 2
    %s1167 = sor.u32 %s1165, %s1166
    %s1168 = sand.u32 15, %s1167
    %v1169 = vld [vmem:[%s1159] sm:%s1168]
    %v1170 = vunpack.c.l.bf16 %v1169
    %v1171 = vunpack.c.h.bf16 %v1169
    %v1172 = vlaneseq
    %v1173 = vand.u32 %v1172, 127
    %vm1175 = vcmp.lt.s32.totalorder %v1173, 48
    %v1176 = vsel %vm1175, %v1170, %v9
    %s1177 = scalar_lea.vmem [#allocation7], 208
    %v1178 = vpack.c.bf16 0.0, %v1176
    %1180 = vst [vmem:[%s1177] sm:$0xf] %v1178
    %s1181 = scalar_lea.vmem %s1, 212
    %s1183 = sor.u32 255, 127
    %s1184 = sand.u32 %s1183, 85
    %s1185 = sshrl.u32 %s1184, 1
    %s1186 = sor.u32 %s1184, %s1185
    %s1187 = sand.u32 51, %s1186
    %s1188 = sshrl.u32 %s1187, 2
    %s1189 = sor.u32 %s1187, %s1188
    %s1190 = sand.u32 15, %s1189
    %v1191 = vld [vmem:[%s1181] sm:%s1190]
    %v1192 = vunpack.c.l.bf16 %v1191
    %v1193 = vunpack.c.h.bf16 %v1191
    %v1194 = vlaneseq
    %v1195 = vand.u32 %v1194, 127
    %vm1197 = vcmp.lt.s32.totalorder %v1195, 48
    %v1198 = vsel %vm1197, %v1192, %v9
    %s1199 = scalar_lea.vmem [#allocation7], 212
    %v1200 = vpack.c.bf16 0.0, %v1198
    %1202 = vst [vmem:[%s1199] sm:$0xf] %v1200
    %s1203 = scalar_lea.vmem %s1, 216
    %s1205 = sor.u32 255, 127
    %s1206 = sand.u32 %s1205, 85
    %s1207 = sshrl.u32 %s1206, 1
    %s1208 = sor.u32 %s1206, %s1207
    %s1209 = sand.u32 51, %s1208
    %s1210 = sshrl.u32 %s1209, 2
    %s1211 = sor.u32 %s1209, %s1210
    %s1212 = sand.u32 15, %s1211
    %v1213 = vld [vmem:[%s1203] sm:%s1212]
    %v1214 = vunpack.c.l.bf16 %v1213
    %v1215 = vunpack.c.h.bf16 %v1213
    %v1216 = vlaneseq
    %v1217 = vand.u32 %v1216, 127
    %vm1219 = vcmp.lt.s32.totalorder %v1217, 48
    %v1220 = vsel %vm1219, %v1214, %v9
    %s1221 = scalar_lea.vmem [#allocation7], 216
    %v1222 = vpack.c.bf16 0.0, %v1220
    %1224 = vst [vmem:[%s1221] sm:$0xf] %v1222
    %s1225 = scalar_lea.vmem %s1, 220
    %s1227 = sor.u32 255, 127
    %s1228 = sand.u32 %s1227, 85
    %s1229 = sshrl.u32 %s1228, 1
    %s1230 = sor.u32 %s1228, %s1229
    %s1231 = sand.u32 51, %s1230
    %s1232 = sshrl.u32 %s1231, 2
    %s1233 = sor.u32 %s1231, %s1232
    %s1234 = sand.u32 15, %s1233
    %v1235 = vld [vmem:[%s1225] sm:%s1234]
    %v1236 = vunpack.c.l.bf16 %v1235
    %v1237 = vunpack.c.h.bf16 %v1235
    %v1238 = vlaneseq
    %v1239 = vand.u32 %v1238, 127
    %vm1241 = vcmp.lt.s32.totalorder %v1239, 48
    %v1242 = vsel %vm1241, %v1236, %v9
    %s1243 = scalar_lea.vmem [#allocation7], 220
    %v1244 = vpack.c.bf16 0.0, %v1242
    %1246 = vst [vmem:[%s1243] sm:$0xf] %v1244
    %s1247 = scalar_lea.vmem %s1, 224
    %s1249 = sor.u32 255, 127
    %s1250 = sand.u32 %s1249, 85
    %s1251 = sshrl.u32 %s1250, 1
    %s1252 = sor.u32 %s1250, %s1251
    %s1253 = sand.u32 51, %s1252
    %s1254 = sshrl.u32 %s1253, 2
    %s1255 = sor.u32 %s1253, %s1254
    %s1256 = sand.u32 15, %s1255
    %v1257 = vld [vmem:[%s1247] sm:%s1256]
    %v1258 = vunpack.c.l.bf16 %v1257
    %v1259 = vunpack.c.h.bf16 %v1257
    %v1260 = vlaneseq
    %v1261 = vand.u32 %v1260, 127
    %vm1263 = vcmp.lt.s32.totalorder %v1261, 48
    %v1264 = vsel %vm1263, %v1258, %v9
    %s1265 = scalar_lea.vmem [#allocation7], 224
    %v1266 = vpack.c.bf16 0.0, %v1264
    %1268 = vst [vmem:[%s1265] sm:$0xf] %v1266
    %s1269 = scalar_lea.vmem %s1, 228
    %s1271 = sor.u32 255, 127
    %s1272 = sand.u32 %s1271, 85
    %s1273 = sshrl.u32 %s1272, 1
    %s1274 = sor.u32 %s1272, %s1273
    %s1275 = sand.u32 51, %s1274
    %s1276 = sshrl.u32 %s1275, 2
    %s1277 = sor.u32 %s1275, %s1276
    %s1278 = sand.u32 15, %s1277
    %v1279 = vld [vmem:[%s1269] sm:%s1278]
    %v1280 = vunpack.c.l.bf16 %v1279
    %v1281 = vunpack.c.h.bf16 %v1279
    %v1282 = vlaneseq
    %v1283 = vand.u32 %v1282, 127
    %vm1285 = vcmp.lt.s32.totalorder %v1283, 48
    %v1286 = vsel %vm1285, %v1280, %v9
    %s1287 = scalar_lea.vmem [#allocation7], 228
    %v1288 = vpack.c.bf16 0.0, %v1286
    %1290 = vst [vmem:[%s1287] sm:$0xf] %v1288
    %s1291 = scalar_lea.vmem %s1, 232
    %s1293 = sor.u32 255, 127
    %s1294 = sand.u32 %s1293, 85
    %s1295 = sshrl.u32 %s1294, 1
    %s1296 = sor.u32 %s1294, %s1295
    %s1297 = sand.u32 51, %s1296
    %s1298 = sshrl.u32 %s1297, 2
    %s1299 = sor.u32 %s1297, %s1298
    %s1300 = sand.u32 15, %s1299
    %v1301 = vld [vmem:[%s1291] sm:%s1300]
    %v1302 = vunpack.c.l.bf16 %v1301
    %v1303 = vunpack.c.h.bf16 %v1301
    %v1304 = vlaneseq
    %v1305 = vand.u32 %v1304, 127
    %vm1307 = vcmp.lt.s32.totalorder %v1305, 48
    %v1308 = vsel %vm1307, %v1302, %v9
    %s1309 = scalar_lea.vmem [#allocation7], 232
    %v1310 = vpack.c.bf16 0.0, %v1308
    %1312 = vst [vmem:[%s1309] sm:$0xf] %v1310
    %s1313 = scalar_lea.vmem %s1, 236
    %s1315 = sor.u32 255, 127
    %s1316 = sand.u32 %s1315, 85
    %s1317 = sshrl.u32 %s1316, 1
    %s1318 = sor.u32 %s1316, %s1317
    %s1319 = sand.u32 51, %s1318
    %s1320 = sshrl.u32 %s1319, 2
    %s1321 = sor.u32 %s1319, %s1320
    %s1322 = sand.u32 15, %s1321
    %v1323 = vld [vmem:[%s1313] sm:%s1322]
    %v1324 = vunpack.c.l.bf16 %v1323
    %v1325 = vunpack.c.h.bf16 %v1323
    %v1326 = vlaneseq
    %v1327 = vand.u32 %v1326, 127
    %vm1329 = vcmp.lt.s32.totalorder %v1327, 48
    %v1330 = vsel %vm1329, %v1324, %v9
    %s1331 = scalar_lea.vmem [#allocation7], 236
    %v1332 = vpack.c.bf16 0.0, %v1330
    %1334 = vst [vmem:[%s1331] sm:$0xf] %v1332
    %s1335 = scalar_lea.vmem %s1, 240
    %s1337 = sor.u32 255, 127
    %s1338 = sand.u32 %s1337, 85
    %s1339 = sshrl.u32 %s1338, 1
    %s1340 = sor.u32 %s1338, %s1339
    %s1341 = sand.u32 51, %s1340
    %s1342 = sshrl.u32 %s1341, 2
    %s1343 = sor.u32 %s1341, %s1342
    %s1344 = sand.u32 15, %s1343
    %v1345 = vld [vmem:[%s1335] sm:%s1344]
    %v1346 = vunpack.c.l.bf16 %v1345
    %v1347 = vunpack.c.h.bf16 %v1345
    %v1348 = vlaneseq
    %v1349 = vand.u32 %v1348, 127
    %vm1351 = vcmp.lt.s32.totalorder %v1349, 48
    %v1352 = vsel %vm1351, %v1346, %v9
    %s1353 = scalar_lea.vmem [#allocation7], 240
    %v1354 = vpack.c.bf16 0.0, %v1352
    %1356 = vst [vmem:[%s1353] sm:$0xf] %v1354
    %s1357 = scalar_lea.vmem %s1, 244
    %s1359 = sor.u32 255, 127
    %s1360 = sand.u32 %s1359, 85
    %s1361 = sshrl.u32 %s1360, 1
    %s1362 = sor.u32 %s1360, %s1361
    %s1363 = sand.u32 51, %s1362
    %s1364 = sshrl.u32 %s1363, 2
    %s1365 = sor.u32 %s1363, %s1364
    %s1366 = sand.u32 15, %s1365
    %v1367 = vld [vmem:[%s1357] sm:%s1366]
    %v1368 = vunpack.c.l.bf16 %v1367
    %v1369 = vunpack.c.h.bf16 %v1367
    %v1370 = vlaneseq
    %v1371 = vand.u32 %v1370, 127
    %vm1373 = vcmp.lt.s32.totalorder %v1371, 48
    %v1374 = vsel %vm1373, %v1368, %v9
    %s1375 = scalar_lea.vmem [#allocation7], 244
    %v1376 = vpack.c.bf16 0.0, %v1374
    %1378 = vst [vmem:[%s1375] sm:$0xf] %v1376
    %s1379 = scalar_lea.vmem %s1, 248
    %s1381 = sor.u32 255, 127
    %s1382 = sand.u32 %s1381, 85
    %s1383 = sshrl.u32 %s1382, 1
    %s1384 = sor.u32 %s1382, %s1383
    %s1385 = sand.u32 51, %s1384
    %s1386 = sshrl.u32 %s1385, 2
    %s1387 = sor.u32 %s1385, %s1386
    %s1388 = sand.u32 15, %s1387
    %v1389 = vld [vmem:[%s1379] sm:%s1388]
    %v1390 = vunpack.c.l.bf16 %v1389
    %v1391 = vunpack.c.h.bf16 %v1389
    %v1392 = vlaneseq
    %v1393 = vand.u32 %v1392, 127
    %vm1395 = vcmp.lt.s32.totalorder %v1393, 48
    %v1396 = vsel %vm1395, %v1390, %v9
    %s1397 = scalar_lea.vmem [#allocation7], 248
    %v1398 = vpack.c.bf16 0.0, %v1396
    %1400 = vst [vmem:[%s1397] sm:$0xf] %v1398
    %s1401 = scalar_lea.vmem %s1, 252
    %s1403 = sor.u32 255, 127
    %s1404 = sand.u32 %s1403, 85
    %s1405 = sshrl.u32 %s1404, 1
    %s1406 = sor.u32 %s1404, %s1405
    %s1407 = sand.u32 51, %s1406
    %s1408 = sshrl.u32 %s1407, 2
    %s1409 = sor.u32 %s1407, %s1408
    %s1410 = sand.u32 15, %s1409
    %v1411 = vld [vmem:[%s1401] sm:%s1410]
    %v1412 = vunpack.c.l.bf16 %v1411
    %v1413 = vunpack.c.h.bf16 %v1411
    %v1414 = vlaneseq
    %v1415 = vand.u32 %v1414, 127
    %vm1417 = vcmp.lt.s32.totalorder %v1415, 48
    %v1418 = vsel %vm1417, %v1412, %v9
    %s1419 = scalar_lea.vmem [#allocation7], 252
    %v1420 = vpack.c.bf16 0.0, %v1418
    %1422 = vst [vmem:[%s1419] sm:$0xf] %v1420
    %v1424 = vld [vmem:[#allocation7] sm:$0xf]
    %v1425 = vld [vmem:[#allocation7 + $0x4] sm:$0xf]
    %v1426 = vld [vmem:[#allocation7 + $0x8] sm:$0xf]
    %v1427 = vld [vmem:[#allocation7 + $0xc] sm:$0xf]
    %v1428 = vld [vmem:[#allocation7 + $0x10] sm:$0xf]
    %v1429 = vld [vmem:[#allocation7 + $0x14] sm:$0xf]
    %v1430 = vld [vmem:[#allocation7 + $0x18] sm:$0xf]
    %v1431 = vld [vmem:[#allocation7 + $0x1c] sm:$0xf]
    %v1432 = vld [vmem:[#allocation7 + $0x20] sm:$0xf]
    %v1433 = vld [vmem:[#allocation7 + $0x24] sm:$0xf]
    %v1434 = vld [vmem:[#allocation7 + $0x28] sm:$0xf]
    %v1435 = vld [vmem:[#allocation7 + $0x2c] sm:$0xf]
    %v1436 = vld [vmem:[#allocation7 + $0x30] sm:$0xf]
    %v1437 = vld [vmem:[#allocation7 + $0x34] sm:$0xf]
    %v1438 = vld [vmem:[#allocation7 + $0x38] sm:$0xf]
    %v1439 = vld [vmem:[#allocation7 + $0x3c] sm:$0xf]
    %v1440 = vld [vmem:[#allocation7 + $0x40] sm:$0xf]
    %v1441 = vld [vmem:[#allocation7 + $0x44] sm:$0xf]
    %v1442 = vld [vmem:[#allocation7 + $0x48] sm:$0xf]
    %v1443 = vld [vmem:[#allocation7 + $0x4c] sm:$0xf]
    %v1444 = vld [vmem:[#allocation7 + $0x50] sm:$0xf]
    %v1445 = vld [vmem:[#allocation7 + $0x54] sm:$0xf]
    %v1446 = vld [vmem:[#allocation7 + $0x58] sm:$0xf]
    %v1447 = vld [vmem:[#allocation7 + $0x5c] sm:$0xf]
    %v1448 = vld [vmem:[#allocation7 + $0x60] sm:$0xf]
    %v1449 = vld [vmem:[#allocation7 + $0x64] sm:$0xf]
    %v1450 = vld [vmem:[#allocation7 + $0x68] sm:$0xf]
    %v1451 = vld [vmem:[#allocation7 + $0x6c] sm:$0xf]
    %v1452 = vld [vmem:[#allocation7 + $0x70] sm:$0xf]
    %v1453 = vld [vmem:[#allocation7 + $0x74] sm:$0xf]
    %v1454 = vld [vmem:[#allocation7 + $0x78] sm:$0xf]
    %v1455 = vld [vmem:[#allocation7 + $0x7c] sm:$0xf]
    %v1456 = vld [vmem:[#allocation7 + $0x80] sm:$0xf]
    %v1457 = vld [vmem:[#allocation7 + $0x84] sm:$0xf]
    %v1458 = vld [vmem:[#allocation7 + $0x88] sm:$0xf]
    %v1459 = vld [vmem:[#allocation7 + $0x8c] sm:$0xf]
    %v1460 = vld [vmem:[#allocation7 + $0x90] sm:$0xf]
    %v1461 = vld [vmem:[#allocation7 + $0x94] sm:$0xf]
    %v1462 = vld [vmem:[#allocation7 + $0x98] sm:$0xf]
    %v1463 = vld [vmem:[#allocation7 + $0x9c] sm:$0xf]
    %v1464 = vld [vmem:[#allocation7 + $0xa0] sm:$0xf]
    %v1465 = vld [vmem:[#allocation7 + $0xa4] sm:$0xf]
    %v1466 = vld [vmem:[#allocation7 + $0xa8] sm:$0xf]
    %v1467 = vld [vmem:[#allocation7 + $0xac] sm:$0xf]
    %v1468 = vld [vmem:[#allocation7 + $0xb0] sm:$0xf]
    %v1469 = vld [vmem:[#allocation7 + $0xb4] sm:$0xf]
    %v1470 = vld [vmem:[#allocation7 + $0xb8] sm:$0xf]
    %v1471 = vld [vmem:[#allocation7 + $0xbc] sm:$0xf]
    %v1472 = vld [vmem:[#allocation7 + $0xc0] sm:$0xf]
    %v1473 = vld [vmem:[#allocation7 + $0xc4] sm:$0xf]
    %v1474 = vld [vmem:[#allocation7 + $0xc8] sm:$0xf]
    %v1475 = vld [vmem:[#allocation7 + $0xcc] sm:$0xf]
    %v1476 = vld [vmem:[#allocation7 + $0xd0] sm:$0xf]
    %v1477 = vld [vmem:[#allocation7 + $0xd4] sm:$0xf]
    %v1478 = vld [vmem:[#allocation7 + $0xd8] sm:$0xf]
    %v1479 = vld [vmem:[#allocation7 + $0xdc] sm:$0xf]
    %v1480 = vld [vmem:[#allocation7 + $0xe0] sm:$0xf]
    %v1481 = vld [vmem:[#allocation7 + $0xe4] sm:$0xf]
    %v1482 = vld [vmem:[#allocation7 + $0xe8] sm:$0xf]
    %v1483 = vld [vmem:[#allocation7 + $0xec] sm:$0xf]
    %v1484 = vld [vmem:[#allocation7 + $0xf0] sm:$0xf]
    %v1485 = vld [vmem:[#allocation7 + $0xf4] sm:$0xf]
    %v1486 = vld [vmem:[#allocation7 + $0xf8] sm:$0xf]
    %v1487 = vld [vmem:[#allocation7 + $0xfc] sm:$0xf]
    %v1488 = vld [vmem:[%s0] sm:$0xf]
    %v1489 = vld [vmem:[%s0 + $0x4] sm:$0xf]
    %v1490 = vld [vmem:[%s0 + $0x8] sm:$0xf]
    %v1491 = vld [vmem:[%s0 + $0xc] sm:$0xf]
    %v1492 = vld [vmem:[%s0 + $0x10] sm:$0xf]
    %v1493 = vld [vmem:[%s0 + $0x14] sm:$0xf]
    %v1494 = vld [vmem:[%s0 + $0x18] sm:$0xf]
    %v1495 = vld [vmem:[%s0 + $0x1c] sm:$0xf]
    %v1496 = vld [vmem:[%s0 + $0x20] sm:$0xf]
    %v1497 = vld [vmem:[%s0 + $0x24] sm:$0xf]
    %v1498 = vld [vmem:[%s0 + $0x28] sm:$0xf]
    %v1499 = vld [vmem:[%s0 + $0x2c] sm:$0xf]
    %v1500 = vld [vmem:[%s0 + $0x30] sm:$0xf]
    %v1501 = vld [vmem:[%s0 + $0x34] sm:$0xf]
    %v1502 = vld [vmem:[%s0 + $0x38] sm:$0xf]
    %v1503 = vld [vmem:[%s0 + $0x3c] sm:$0xf]
    %v1568 = vunpack.c.l.b16 %v1424
    %v1569 = vunpack.c.l.b16 %v1425
    %v1570 = vunpack.c.l.b16 %v1426
    %v1571 = vunpack.c.l.b16 %v1427
    %v1572 = vunpack.c.l.b16 %v1428
    %v1573 = vunpack.c.l.b16 %v1429
    %v1574 = vunpack.c.l.b16 %v1430
    %v1575 = vunpack.c.l.b16 %v1431
    %v1576 = vunpack.c.l.b16 %v1432
    %v1577 = vunpack.c.l.b16 %v1433
    %v1578 = vunpack.c.l.b16 %v1434
    %v1579 = vunpack.c.l.b16 %v1435
    %v1580 = vunpack.c.l.b16 %v1436
    %v1581 = vunpack.c.l.b16 %v1437
    %v1582 = vunpack.c.l.b16 %v1438
    %v1583 = vunpack.c.l.b16 %v1439
    %v1584 = vunpack.c.l.b16 %v1440
    %v1585 = vunpack.c.l.b16 %v1441
    %v1586 = vunpack.c.l.b16 %v1442
    %v1587 = vunpack.c.l.b16 %v1443
    %v1588 = vunpack.c.l.b16 %v1444
    %v1589 = vunpack.c.l.b16 %v1445
    %v1590 = vunpack.c.l.b16 %v1446
    %v1591 = vunpack.c.l.b16 %v1447
    %v1592 = vunpack.c.l.b16 %v1448
    %v1593 = vunpack.c.l.b16 %v1449
    %v1594 = vunpack.c.l.b16 %v1450
    %v1595 = vunpack.c.l.b16 %v1451
    %v1596 = vunpack.c.l.b16 %v1452
    %v1597 = vunpack.c.l.b16 %v1453
    %v1598 = vunpack.c.l.b16 %v1454
    %v1599 = vunpack.c.l.b16 %v1455
    %v1600 = vunpack.c.l.b16 %v1456
    %v1601 = vunpack.c.l.b16 %v1457
    %v1602 = vunpack.c.l.b16 %v1458
    %v1603 = vunpack.c.l.b16 %v1459
    %v1604 = vunpack.c.l.b16 %v1460
    %v1605 = vunpack.c.l.b16 %v1461
    %v1606 = vunpack.c.l.b16 %v1462
    %v1607 = vunpack.c.l.b16 %v1463
    %v1608 = vunpack.c.l.b16 %v1464
    %v1609 = vunpack.c.l.b16 %v1465
    %v1610 = vunpack.c.l.b16 %v1466
    %v1611 = vunpack.c.l.b16 %v1467
    %v1612 = vunpack.c.l.b16 %v1468
    %v1613 = vunpack.c.l.b16 %v1469
    %v1614 = vunpack.c.l.b16 %v1470
    %v1615 = vunpack.c.l.b16 %v1471
    %v1616 = vunpack.c.l.b16 %v1472
    %v1617 = vunpack.c.l.b16 %v1473
    %v1618 = vunpack.c.l.b16 %v1474
    %v1619 = vunpack.c.l.b16 %v1475
    %v1620 = vunpack.c.l.b16 %v1476
    %v1621 = vunpack.c.l.b16 %v1477
    %v1622 = vunpack.c.l.b16 %v1478
    %v1623 = vunpack.c.l.b16 %v1479
    %v1624 = vunpack.c.l.b16 %v1480
    %v1625 = vunpack.c.l.b16 %v1481
    %v1626 = vunpack.c.l.b16 %v1482
    %v1627 = vunpack.c.l.b16 %v1483
    %v1628 = vunpack.c.l.b16 %v1484
    %v1629 = vunpack.c.l.b16 %v1485
    %v1630 = vunpack.c.l.b16 %v1486
    %v1631 = vunpack.c.l.b16 %v1487
    %v1632 = vpack.c.b16 %v1569, %v1568
    %v1633 = vpack.c.b16 %v1571, %v1570
    %v1634 = vpack.c.b16 %v1573, %v1572
    %v1635 = vpack.c.b16 %v1575, %v1574
    %v1636 = vpack.c.b16 %v1577, %v1576
    %v1637 = vpack.c.b16 %v1579, %v1578
    %v1638 = vpack.c.b16 %v1581, %v1580
    %v1639 = vpack.c.b16 %v1583, %v1582
    %v1640 = vpack.c.b16 %v1585, %v1584
    %v1641 = vpack.c.b16 %v1587, %v1586
    %v1642 = vpack.c.b16 %v1589, %v1588
    %v1643 = vpack.c.b16 %v1591, %v1590
    %v1644 = vpack.c.b16 %v1593, %v1592
    %v1645 = vpack.c.b16 %v1595, %v1594
    %v1646 = vpack.c.b16 %v1597, %v1596
    %v1647 = vpack.c.b16 %v1599, %v1598
    %v1648 = vpack.c.b16 %v1601, %v1600
    %v1649 = vpack.c.b16 %v1603, %v1602
    %v1650 = vpack.c.b16 %v1605, %v1604
    %v1651 = vpack.c.b16 %v1607, %v1606
    %v1652 = vpack.c.b16 %v1609, %v1608
    %v1653 = vpack.c.b16 %v1611, %v1610
    %v1654 = vpack.c.b16 %v1613, %v1612
    %v1655 = vpack.c.b16 %v1615, %v1614
    %v1656 = vpack.c.b16 %v1617, %v1616
    %v1657 = vpack.c.b16 %v1619, %v1618
    %v1658 = vpack.c.b16 %v1621, %v1620
    %v1659 = vpack.c.b16 %v1623, %v1622
    %v1660 = vpack.c.b16 %v1625, %v1624
    %v1661 = vpack.c.b16 %v1627, %v1626
    %v1662 = vpack.c.b16 %v1629, %v1628
    %v1663 = vpack.c.b16 %v1631, %v1630
    %v1712 = vunpack.c.l.b16 %v1488
    %v1713 = vunpack.c.l.b16 %v1489
    %v1714 = vunpack.c.l.b16 %v1490
    %v1715 = vunpack.c.l.b16 %v1491
    %v1716 = vunpack.c.l.b16 %v1492
    %v1717 = vunpack.c.l.b16 %v1493
    %v1718 = vunpack.c.l.b16 %v1494
    %v1719 = vunpack.c.l.b16 %v1495
    %v1720 = vunpack.c.l.b16 %v1496
    %v1721 = vunpack.c.l.b16 %v1497
    %v1722 = vunpack.c.l.b16 %v1498
    %v1723 = vunpack.c.l.b16 %v1499
    %v1724 = vunpack.c.l.b16 %v1500
    %v1725 = vunpack.c.l.b16 %v1501
    %v1726 = vunpack.c.l.b16 %v1502
    %v1727 = vunpack.c.l.b16 %v1503
    %v1728 = vpack.c.b16 %v1713, %v1712
    %v1729 = vpack.c.b16 %v1715, %v1714
    %v1730 = vpack.c.b16 %v1717, %v1716
    %v1731 = vpack.c.b16 %v1719, %v1718
    %v1732 = vpack.c.b16 %v1721, %v1720
    %v1733 = vpack.c.b16 %v1723, %v1722
    %v1734 = vpack.c.b16 %v1725, %v1724
    %v1735 = vpack.c.b16 %v1727, %v1726
    %1744 = vmatprep.subr.bf16.mxu0 0
    %1745 = vmatpush1.bf16.msra.mxu0 %v1728
    %1746 = vmatprep.subr.bf16.mxu0 0
    %1747 = vmatpush1.bf16.msra.mxu0 %v1729
    %1748 = vmatprep.subr.bf16.mxu0 0
    %1749 = vmatpush1.bf16.msra.mxu0 %v1730
    %1750 = vmatprep.subr.bf16.mxu0 0
    %1751 = vmatpush1.bf16.msra.mxu0 %v1731
    %1752 = vmatprep.subr.bf16.mxu0 0
    %1753 = vmatpush1.bf16.msra.mxu0 %v1732
    %1754 = vmatprep.subr.bf16.mxu0 0
    %1755 = vmatpush1.bf16.msra.mxu0 %v1733
    %1756 = vmatprep.subr.bf16.mxu0 0
    %1757 = vmatpush1.bf16.msra.mxu0 %v1734
    %1758 = vmatprep.subr.bf16.mxu0 0
    %1759 = vmatpush1.bf16.msra.mxu0 %v1735
    %1760 = vmatprep.subr.bf16.mxu0 0
    %1761 = vmatpush1.bf16.msra.mxu0 0
    %1762 = vmatprep.subr.bf16.mxu0 0
    %1763 = vmatpush1.bf16.msra.mxu0 0
    %1764 = vmatprep.subr.bf16.mxu0 0
    %1765 = vmatpush1.bf16.msra.mxu0 0
    %1766 = vmatprep.subr.bf16.mxu0 0
    %1767 = vmatpush1.bf16.msra.mxu0 0
    %1768 = vmatprep.subr.bf16.mxu0 0
    %1769 = vmatpush1.bf16.msra.mxu0 0
    %1770 = vmatprep.subr.bf16.mxu0 0
    %1771 = vmatpush1.bf16.msra.mxu0 0
    %1772 = vmatprep.subr.bf16.mxu0 0
    %1773 = vmatpush1.bf16.msra.mxu0 0
    %1774 = vmatprep.subr.bf16.mxu0 0
    %1775 = vmatpush1.bf16.msra.mxu0 0
    %1776 = vmatprep.mubr.bf16.mxu0 0
    %1777 = vmatmul.mubr.bf16.gmra.mrb[0].mxu0 %v1632
    %v1778 = vpop.f32.mrb[0].mxu0
    %v1779 = vadd.f32 0.0, %v1778
    %v1780 = vpop.f32.mrb[0].mxu0
    %v1781 = vpop.f32.mrb[0].mxu0
    %v1782 = vadd.f32 0.0, %v1781
    %v1783 = vpop.f32.mrb[0].mxu0
    %1784 = vmatprep.mubr.bf16.mxu0 0
    %1785 = vmatmul.mubr.bf16.gmra.mrb[0].mxu0 %v1633
    %v1786 = vpop.f32.mrb[0].mxu0
    %v1787 = vadd.f32 0.0, %v1786
    %v1788 = vpop.f32.mrb[0].mxu0
    %v1789 = vpop.f32.mrb[0].mxu0
    %v1790 = vadd.f32 0.0, %v1789
    %v1791 = vpop.f32.mrb[0].mxu0
    %1792 = vmatprep.mubr.bf16.mxu0 0
    %1793 = vmatmul.mubr.bf16.gmra.mrb[0].mxu0 %v1634
    %v1794 = vpop.f32.mrb[0].mxu0
    %v1795 = vadd.f32 0.0, %v1794
    %v1796 = vpop.f32.mrb[0].mxu0
    %v1797 = vpop.f32.mrb[0].mxu0
    %v1798 = vadd.f32 0.0, %v1797
    %v1799 = vpop.f32.mrb[0].mxu0
    %1800 = vmatprep.mubr.bf16.mxu0 0
    %1801 = vmatmul.mubr.bf16.gmra.mrb[0].mxu0 %v1635
    %v1802 = vpop.f32.mrb[0].mxu0
    %v1803 = vadd.f32 0.0, %v1802
    %v1804 = vpop.f32.mrb[0].mxu0
    %v1805 = vpop.f32.mrb[0].mxu0
    %v1806 = vadd.f32 0.0, %v1805
    %v1807 = vpop.f32.mrb[0].mxu0
    %1808 = vmatprep.mubr.bf16.mxu0 0
    %1809 = vmatmul.mubr.bf16.gmra.mrb[0].mxu0 %v1636
    %v1810 = vpop.f32.mrb[0].mxu0
    %v1811 = vadd.f32 0.0, %v1810
    %v1812 = vpop.f32.mrb[0].mxu0
    %v1813 = vpop.f32.mrb[0].mxu0
    %v1814 = vadd.f32 0.0, %v1813
    %v1815 = vpop.f32.mrb[0].mxu0
    %1816 = vmatprep.mubr.bf16.mxu0 0
    %1817 = vmatmul.mubr.bf16.gmra.mrb[0].mxu0 %v1637
    %v1818 = vpop.f32.mrb[0].mxu0
    %v1819 = vadd.f32 0.0, %v1818
    %v1820 = vpop.f32.mrb[0].mxu0
    %v1821 = vpop.f32.mrb[0].mxu0
    %v1822 = vadd.f32 0.0, %v1821
    %v1823 = vpop.f32.mrb[0].mxu0
    %1824 = vmatprep.mubr.bf16.mxu0 0
    %1825 = vmatmul.mubr.bf16.gmra.mrb[0].mxu0 %v1638
    %v1826 = vpop.f32.mrb[0].mxu0
    %v1827 = vadd.f32 0.0, %v1826
    %v1828 = vpop.f32.mrb[0].mxu0
    %v1829 = vpop.f32.mrb[0].mxu0
    %v1830 = vadd.f32 0.0, %v1829
    %v1831 = vpop.f32.mrb[0].mxu0
    %1832 = vmatprep.mubr.bf16.mxu0 0
    %1833 = vmatmul.mubr.bf16.gmra.mrb[0].mxu0 %v1639
    %v1834 = vpop.f32.mrb[0].mxu0
    %v1835 = vadd.f32 0.0, %v1834
    %v1836 = vpop.f32.mrb[0].mxu0
    %v1837 = vpop.f32.mrb[0].mxu0
    %v1838 = vadd.f32 0.0, %v1837
    %v1839 = vpop.f32.mrb[0].mxu0
    %1840 = vmatprep.mubr.bf16.mxu0 0
    %1841 = vmatmul.mubr.bf16.gmra.mrb[0].mxu0 %v1640
    %v1842 = vpop.f32.mrb[0].mxu0
    %v1843 = vadd.f32 0.0, %v1842
    %v1844 = vpop.f32.mrb[0].mxu0
    %v1845 = vpop.f32.mrb[0].mxu0
    %v1846 = vadd.f32 0.0, %v1845
    %v1847 = vpop.f32.mrb[0].mxu0
    %1848 = vmatprep.mubr.bf16.mxu0 0
    %1849 = vmatmul.mubr.bf16.gmra.mrb[0].mxu0 %v1641
    %v1850 = vpop.f32.mrb[0].mxu0
    %v1851 = vadd.f32 0.0, %v1850
    %v1852 = vpop.f32.mrb[0].mxu0
    %v1853 = vpop.f32.mrb[0].mxu0
    %v1854 = vadd.f32 0.0, %v1853
    %v1855 = vpop.f32.mrb[0].mxu0
    %1856 = vmatprep.mubr.bf16.mxu0 0
    %1857 = vmatmul.mubr.bf16.gmra.mrb[0].mxu0 %v1642
    %v1858 = vpop.f32.mrb[0].mxu0
    %v1859 = vadd.f32 0.0, %v1858
    %v1860 = vpop.f32.mrb[0].mxu0
    %v1861 = vpop.f32.mrb[0].mxu0
    %v1862 = vadd.f32 0.0, %v1861
    %v1863 = vpop.f32.mrb[0].mxu0
    %1864 = vmatprep.mubr.bf16.mxu0 0
    %1865 = vmatmul.mubr.bf16.gmra.mrb[0].mxu0 %v1643
    %v1866 = vpop.f32.mrb[0].mxu0
    %v1867 = vadd.f32 0.0, %v1866
    %v1868 = vpop.f32.mrb[0].mxu0
    %v1869 = vpop.f32.mrb[0].mxu0
    %v1870 = vadd.f32 0.0, %v1869
    %v1871 = vpop.f32.mrb[0].mxu0
    %1872 = vmatprep.mubr.bf16.mxu0 0
    %1873 = vmatmul.mubr.bf16.gmra.mrb[0].mxu0 %v1644
    %v1874 = vpop.f32.mrb[0].mxu0
    %v1875 = vadd.f32 0.0, %v1874
    %v1876 = vpop.f32.mrb[0].mxu0
    %v1877 = vpop.f32.mrb[0].mxu0
    %v1878 = vadd.f32 0.0, %v1877
    %v1879 = vpop.f32.mrb[0].mxu0
    %1880 = vmatprep.mubr.bf16.mxu0 0
    %1881 = vmatmul.mubr.bf16.gmra.mrb[0].mxu0 %v1645
    %v1882 = vpop.f32.mrb[0].mxu0
    %v1883 = vadd.f32 0.0, %v1882
    %v1884 = vpop.f32.mrb[0].mxu0
    %v1885 = vpop.f32.mrb[0].mxu0
    %v1886 = vadd.f32 0.0, %v1885
    %v1887 = vpop.f32.mrb[0].mxu0
    %1888 = vmatprep.mubr.bf16.mxu0 0
    %1889 = vmatmul.mubr.bf16.gmra.mrb[0].mxu0 %v1646
    %v1890 = vpop.f32.mrb[0].mxu0
    %v1891 = vadd.f32 0.0, %v1890
    %v1892 = vpop.f32.mrb[0].mxu0
    %v1893 = vpop.f32.mrb[0].mxu0
    %v1894 = vadd.f32 0.0, %v1893
    %v1895 = vpop.f32.mrb[0].mxu0
    %1896 = vmatprep.mubr.bf16.mxu0 0
    %1897 = vmatmul.mubr.bf16.gmra.mrb[0].mxu0 %v1647
    %v1898 = vpop.f32.mrb[0].mxu0
    %v1899 = vadd.f32 0.0, %v1898
    %v1900 = vpop.f32.mrb[0].mxu0
    %v1901 = vpop.f32.mrb[0].mxu0
    %v1902 = vadd.f32 0.0, %v1901
    %v1903 = vpop.f32.mrb[0].mxu0
    %1904 = vmatprep.mubr.bf16.mxu0 0
    %1905 = vmatmul.mubr.bf16.gmra.mrb[0].mxu0 %v1648
    %v1906 = vpop.f32.mrb[0].mxu0
    %v1907 = vadd.f32 0.0, %v1906
    %v1908 = vpop.f32.mrb[0].mxu0
    %v1909 = vpop.f32.mrb[0].mxu0
    %v1910 = vadd.f32 0.0, %v1909
    %v1911 = vpop.f32.mrb[0].mxu0
    %1912 = vmatprep.mubr.bf16.mxu0 0
    %1913 = vmatmul.mubr.bf16.gmra.mrb[0].mxu0 %v1649
    %v1914 = vpop.f32.mrb[0].mxu0
    %v1915 = vadd.f32 0.0, %v1914
    %v1916 = vpop.f32.mrb[0].mxu0
    %v1917 = vpop.f32.mrb[0].mxu0
    %v1918 = vadd.f32 0.0, %v1917
    %v1919 = vpop.f32.mrb[0].mxu0
    %1920 = vmatprep.mubr.bf16.mxu0 0
    %1921 = vmatmul.mubr.bf16.gmra.mrb[0].mxu0 %v1650
    %v1922 = vpop.f32.mrb[0].mxu0
    %v1923 = vadd.f32 0.0, %v1922
    %v1924 = vpop.f32.mrb[0].mxu0
    %v1925 = vpop.f32.mrb[0].mxu0
    %v1926 = vadd.f32 0.0, %v1925
    %v1927 = vpop.f32.mrb[0].mxu0
    %1928 = vmatprep.mubr.bf16.mxu0 0
    %1929 = vmatmul.mubr.bf16.gmra.mrb[0].mxu0 %v1651
    %v1930 = vpop.f32.mrb[0].mxu0
    %v1931 = vadd.f32 0.0, %v1930
    %v1932 = vpop.f32.mrb[0].mxu0
    %v1933 = vpop.f32.mrb[0].mxu0
    %v1934 = vadd.f32 0.0, %v1933
    %v1935 = vpop.f32.mrb[0].mxu0
    %1936 = vmatprep.mubr.bf16.mxu0 0
    %1937 = vmatmul.mubr.bf16.gmra.mrb[0].mxu0 %v1652
    %v1938 = vpop.f32.mrb[0].mxu0
    %v1939 = vadd.f32 0.0, %v1938
    %v1940 = vpop.f32.mrb[0].mxu0
    %v1941 = vpop.f32.mrb[0].mxu0
    %v1942 = vadd.f32 0.0, %v1941
    %v1943 = vpop.f32.mrb[0].mxu0
    %1944 = vmatprep.mubr.bf16.mxu0 0
    %1945 = vmatmul.mubr.bf16.gmra.mrb[0].mxu0 %v1653
    %v1946 = vpop.f32.mrb[0].mxu0
    %v1947 = vadd.f32 0.0, %v1946
    %v1948 = vpop.f32.mrb[0].mxu0
    %v1949 = vpop.f32.mrb[0].mxu0
    %v1950 = vadd.f32 0.0, %v1949
    %v1951 = vpop.f32.mrb[0].mxu0
    %1952 = vmatprep.mubr.bf16.mxu0 0
    %1953 = vmatmul.mubr.bf16.gmra.mrb[0].mxu0 %v1654
    %v1954 = vpop.f32.mrb[0].mxu0
    %v1955 = vadd.f32 0.0, %v1954
    %v1956 = vpop.f32.mrb[0].mxu0
    %v1957 = vpop.f32.mrb[0].mxu0
    %v1958 = vadd.f32 0.0, %v1957
    %v1959 = vpop.f32.mrb[0].mxu0
    %1960 = vmatprep.mubr.bf16.mxu0 0
    %1961 = vmatmul.mubr.bf16.gmra.mrb[0].mxu0 %v1655
    %v1962 = vpop.f32.mrb[0].mxu0
    %v1963 = vadd.f32 0.0, %v1962
    %v1964 = vpop.f32.mrb[0].mxu0
    %v1965 = vpop.f32.mrb[0].mxu0
    %v1966 = vadd.f32 0.0, %v1965
    %v1967 = vpop.f32.mrb[0].mxu0
    %1968 = vmatprep.mubr.bf16.mxu0 0
    %1969 = vmatmul.mubr.bf16.gmra.mrb[0].mxu0 %v1656
    %v1970 = vpop.f32.mrb[0].mxu0
    %v1971 = vadd.f32 0.0, %v1970
    %v1972 = vpop.f32.mrb[0].mxu0
    %v1973 = vpop.f32.mrb[0].mxu0
    %v1974 = vadd.f32 0.0, %v1973
    %v1975 = vpop.f32.mrb[0].mxu0
    %1976 = vmatprep.mubr.bf16.mxu0 0
    %1977 = vmatmul.mubr.bf16.gmra.mrb[0].mxu0 %v1657
    %v1978 = vpop.f32.mrb[0].mxu0
    %v1979 = vadd.f32 0.0, %v1978
    %v1980 = vpop.f32.mrb[0].mxu0
    %v1981 = vpop.f32.mrb[0].mxu0
    %v1982 = vadd.f32 0.0, %v1981
    %v1983 = vpop.f32.mrb[0].mxu0
    %1984 = vmatprep.mubr.bf16.mxu0 0
    %1985 = vmatmul.mubr.bf16.gmra.mrb[0].mxu0 %v1658
    %v1986 = vpop.f32.mrb[0].mxu0
    %v1987 = vadd.f32 0.0, %v1986
    %v1988 = vpop.f32.mrb[0].mxu0
    %v1989 = vpop.f32.mrb[0].mxu0
    %v1990 = vadd.f32 0.0, %v1989
    %v1991 = vpop.f32.mrb[0].mxu0
    %1992 = vmatprep.mubr.bf16.mxu0 0
    %1993 = vmatmul.mubr.bf16.gmra.mrb[0].mxu0 %v1659
    %v1994 = vpop.f32.mrb[0].mxu0
    %v1995 = vadd.f32 0.0, %v1994
    %v1996 = vpop.f32.mrb[0].mxu0
    %v1997 = vpop.f32.mrb[0].mxu0
    %v1998 = vadd.f32 0.0, %v1997
    %v1999 = vpop.f32.mrb[0].mxu0
    %2000 = vmatprep.mubr.bf16.mxu0 0
    %2001 = vmatmul.mubr.bf16.gmra.mrb[0].mxu0 %v1660
    %v2002 = vpop.f32.mrb[0].mxu0
    %v2003 = vadd.f32 0.0, %v2002
    %v2004 = vpop.f32.mrb[0].mxu0
    %v2005 = vpop.f32.mrb[0].mxu0
    %v2006 = vadd.f32 0.0, %v2005
    %v2007 = vpop.f32.mrb[0].mxu0
    %2008 = vmatprep.mubr.bf16.mxu0 0
    %2009 = vmatmul.mubr.bf16.gmra.mrb[0].mxu0 %v1661
    %v2010 = vpop.f32.mrb[0].mxu0
    %v2011 = vadd.f32 0.0, %v2010
    %v2012 = vpop.f32.mrb[0].mxu0
    %v2013 = vpop.f32.mrb[0].mxu0
    %v2014 = vadd.f32 0.0, %v2013
    %v2015 = vpop.f32.mrb[0].mxu0
    %2016 = vmatprep.mubr.bf16.mxu0 0
    %2017 = vmatmul.mubr.bf16.gmra.mrb[0].mxu0 %v1662
    %v2018 = vpop.f32.mrb[0].mxu0
    %v2019 = vadd.f32 0.0, %v2018
    %v2020 = vpop.f32.mrb[0].mxu0
    %v2021 = vpop.f32.mrb[0].mxu0
    %v2022 = vadd.f32 0.0, %v2021
    %v2023 = vpop.f32.mrb[0].mxu0
    %2024 = vmatprep.mubr.bf16.mxu0 0
    %2025 = vmatmul.mubr.bf16.gmra.mrb[0].mxu0 %v1663
    %v2026 = vpop.f32.mrb[0].mxu0
    %v2027 = vadd.f32 0.0, %v2026
    %v2028 = vpop.f32.mrb[0].mxu0
    %v2029 = vpop.f32.mrb[0].mxu0
    %v2030 = vadd.f32 0.0, %v2029
    %v2031 = vpop.f32.mrb[0].mxu0
    %2032 = vdwg.mxu0
    %vm2033 = vcmp.gt.f32.partialorder %v1779, 0.0
    %vm2034 = vcmp.gt.f32.partialorder %v1782, 0.0
    %vm2035 = vcmp.gt.f32.partialorder %v1787, 0.0
    %vm2036 = vcmp.gt.f32.partialorder %v1790, 0.0
    %vm2037 = vcmp.gt.f32.partialorder %v1795, 0.0
    %vm2038 = vcmp.gt.f32.partialorder %v1798, 0.0
    %vm2039 = vcmp.gt.f32.partialorder %v1803, 0.0
    %vm2040 = vcmp.gt.f32.partialorder %v1806, 0.0
    %vm2041 = vcmp.gt.f32.partialorder %v1811, 0.0
    %vm2042 = vcmp.gt.f32.partialorder %v1814, 0.0
    %vm2043 = vcmp.gt.f32.partialorder %v1819, 0.0
    %vm2044 = vcmp.gt.f32.partialorder %v1822, 0.0
    %vm2045 = vcmp.gt.f32.partialorder %v1827, 0.0
    %vm2046 = vcmp.gt.f32.partialorder %v1830, 0.0
    %vm2047 = vcmp.gt.f32.partialorder %v1835, 0.0
    %vm2048 = vcmp.gt.f32.partialorder %v1838, 0.0
    %vm2049 = vcmp.gt.f32.partialorder %v1843, 0.0
    %vm2050 = vcmp.gt.f32.partialorder %v1846, 0.0
    %vm2051 = vcmp.gt.f32.partialorder %v1851, 0.0
    %vm2052 = vcmp.gt.f32.partialorder %v1854, 0.0
    %vm2053 = vcmp.gt.f32.partialorder %v1859, 0.0
    %vm2054 = vcmp.gt.f32.partialorder %v1862, 0.0
    %vm2055 = vcmp.gt.f32.partialorder %v1867, 0.0
    %vm2056 = vcmp.gt.f32.partialorder %v1870, 0.0
    %vm2057 = vcmp.gt.f32.partialorder %v1875, 0.0
    %vm2058 = vcmp.gt.f32.partialorder %v1878, 0.0
    %vm2059 = vcmp.gt.f32.partialorder %v1883, 0.0
    %vm2060 = vcmp.gt.f32.partialorder %v1886, 0.0
    %vm2061 = vcmp.gt.f32.partialorder %v1891, 0.0
    %vm2062 = vcmp.gt.f32.partialorder %v1894, 0.0
    %vm2063 = vcmp.gt.f32.partialorder %v1899, 0.0
    %vm2064 = vcmp.gt.f32.partialorder %v1902, 0.0
    %vm2065 = vcmp.gt.f32.partialorder %v1907, 0.0
    %vm2066 = vcmp.gt.f32.partialorder %v1910, 0.0
    %vm2067 = vcmp.gt.f32.partialorder %v1915, 0.0
    %vm2068 = vcmp.gt.f32.partialorder %v1918, 0.0
    %vm2069 = vcmp.gt.f32.partialorder %v1923, 0.0
    %vm2070 = vcmp.gt.f32.partialorder %v1926, 0.0
    %vm2071 = vcmp.gt.f32.partialorder %v1931, 0.0
    %vm2072 = vcmp.gt.f32.partialorder %v1934, 0.0
    %vm2073 = vcmp.gt.f32.partialorder %v1939, 0.0
    %vm2074 = vcmp.gt.f32.partialorder %v1942, 0.0
    %vm2075 = vcmp.gt.f32.partialorder %v1947, 0.0
    %vm2076 = vcmp.gt.f32.partialorder %v1950, 0.0
    %vm2077 = vcmp.gt.f32.partialorder %v1955, 0.0
    %vm2078 = vcmp.gt.f32.partialorder %v1958, 0.0
    %vm2079 = vcmp.gt.f32.partialorder %v1963, 0.0
    %vm2080 = vcmp.gt.f32.partialorder %v1966, 0.0
    %vm2081 = vcmp.gt.f32.partialorder %v1971, 0.0
    %vm2082 = vcmp.gt.f32.partialorder %v1974, 0.0
    %vm2083 = vcmp.gt.f32.partialorder %v1979, 0.0
    %vm2084 = vcmp.gt.f32.partialorder %v1982, 0.0
    %vm2085 = vcmp.gt.f32.partialorder %v1987, 0.0
    %vm2086 = vcmp.gt.f32.partialorder %v1990, 0.0
    %vm2087 = vcmp.gt.f32.partialorder %v1995, 0.0
    %vm2088 = vcmp.gt.f32.partialorder %v1998, 0.0
    %vm2089 = vcmp.gt.f32.partialorder %v2003, 0.0
    %vm2090 = vcmp.gt.f32.partialorder %v2006, 0.0
    %vm2091 = vcmp.gt.f32.partialorder %v2011, 0.0
    %vm2092 = vcmp.gt.f32.partialorder %v2014, 0.0
    %vm2093 = vcmp.gt.f32.partialorder %v2019, 0.0
    %vm2094 = vcmp.gt.f32.partialorder %v2022, 0.0
    %vm2095 = vcmp.gt.f32.partialorder %v2027, 0.0
    %vm2096 = vcmp.gt.f32.partialorder %v2030, 0.0
    %v2097 = vmul.f32 %v1779, 0.2
    %v2098 = vmul.f32 %v1782, 0.2
    %v2099 = vmul.f32 %v1787, 0.2
    %v2100 = vmul.f32 %v1790, 0.2
    %v2101 = vmul.f32 %v1795, 0.2
    %v2102 = vmul.f32 %v1798, 0.2
    %v2103 = vmul.f32 %v1803, 0.2
    %v2104 = vmul.f32 %v1806, 0.2
    %v2105 = vmul.f32 %v1811, 0.2
    %v2106 = vmul.f32 %v1814, 0.2
    %v2107 = vmul.f32 %v1819, 0.2
    %v2108 = vmul.f32 %v1822, 0.2
    %v2109 = vmul.f32 %v1827, 0.2
    %v2110 = vmul.f32 %v1830, 0.2
    %v2111 = vmul.f32 %v1835, 0.2
    %v2112 = vmul.f32 %v1838, 0.2
    %v2113 = vmul.f32 %v1843, 0.2
    %v2114 = vmul.f32 %v1846, 0.2
    %v2115 = vmul.f32 %v1851, 0.2
    %v2116 = vmul.f32 %v1854, 0.2
    %v2117 = vmul.f32 %v1859, 0.2
    %v2118 = vmul.f32 %v1862, 0.2
    %v2119 = vmul.f32 %v1867, 0.2
    %v2120 = vmul.f32 %v1870, 0.2
    %v2121 = vmul.f32 %v1875, 0.2
    %v2122 = vmul.f32 %v1878, 0.2
    %v2123 = vmul.f32 %v1883, 0.2
    %v2124 = vmul.f32 %v1886, 0.2
    %v2125 = vmul.f32 %v1891, 0.2
    %v2126 = vmul.f32 %v1894, 0.2
    %v2127 = vmul.f32 %v1899, 0.2
    %v2128 = vmul.f32 %v1902, 0.2
    %v2129 = vmul.f32 %v1907, 0.2
    %v2130 = vmul.f32 %v1910, 0.2
    %v2131 = vmul.f32 %v1915, 0.2
    %v2132 = vmul.f32 %v1918, 0.2
    %v2133 = vmul.f32 %v1923, 0.2
    %v2134 = vmul.f32 %v1926, 0.2
    %v2135 = vmul.f32 %v1931, 0.2
    %v2136 = vmul.f32 %v1934, 0.2
    %v2137 = vmul.f32 %v1939, 0.2
    %v2138 = vmul.f32 %v1942, 0.2
    %v2139 = vmul.f32 %v1947, 0.2
    %v2140 = vmul.f32 %v1950, 0.2
    %v2141 = vmul.f32 %v1955, 0.2
    %v2142 = vmul.f32 %v1958, 0.2
    %v2143 = vmul.f32 %v1963, 0.2
    %v2144 = vmul.f32 %v1966, 0.2
    %v2145 = vmul.f32 %v1971, 0.2
    %v2146 = vmul.f32 %v1974, 0.2
    %v2147 = vmul.f32 %v1979, 0.2
    %v2148 = vmul.f32 %v1982, 0.2
    %v2149 = vmul.f32 %v1987, 0.2
    %v2150 = vmul.f32 %v1990, 0.2
    %v2151 = vmul.f32 %v1995, 0.2
    %v2152 = vmul.f32 %v1998, 0.2
    %v2153 = vmul.f32 %v2003, 0.2
    %v2154 = vmul.f32 %v2006, 0.2
    %v2155 = vmul.f32 %v2011, 0.2
    %v2156 = vmul.f32 %v2014, 0.2
    %v2157 = vmul.f32 %v2019, 0.2
    %v2158 = vmul.f32 %v2022, 0.2
    %v2159 = vmul.f32 %v2027, 0.2
    %v2160 = vmul.f32 %v2030, 0.2
    %v2161 = vsel %vm2033, %v1779, %v2097
    %v2162 = vsel %vm2034, %v1782, %v2098
    %v2163 = vsel %vm2035, %v1787, %v2099
    %v2164 = vsel %vm2036, %v1790, %v2100
    %v2165 = vsel %vm2037, %v1795, %v2101
    %v2166 = vsel %vm2038, %v1798, %v2102
    %v2167 = vsel %vm2039, %v1803, %v2103
    %v2168 = vsel %vm2040, %v1806, %v2104
    %v2169 = vsel %vm2041, %v1811, %v2105
    %v2170 = vsel %vm2042, %v1814, %v2106
    %v2171 = vsel %vm2043, %v1819, %v2107
    %v2172 = vsel %vm2044, %v1822, %v2108
    %v2173 = vsel %vm2045, %v1827, %v2109
    %v2174 = vsel %vm2046, %v1830, %v2110
    %v2175 = vsel %vm2047, %v1835, %v2111
    %v2176 = vsel %vm2048, %v1838, %v2112
    %v2177 = vsel %vm2049, %v1843, %v2113
    %v2178 = vsel %vm2050, %v1846, %v2114
    %v2179 = vsel %vm2051, %v1851, %v2115
    %v2180 = vsel %vm2052, %v1854, %v2116
    %v2181 = vsel %vm2053, %v1859, %v2117
    %v2182 = vsel %vm2054, %v1862, %v2118
    %v2183 = vsel %vm2055, %v1867, %v2119
    %v2184 = vsel %vm2056, %v1870, %v2120
    %v2185 = vsel %vm2057, %v1875, %v2121
    %v2186 = vsel %vm2058, %v1878, %v2122
    %v2187 = vsel %vm2059, %v1883, %v2123
    %v2188 = vsel %vm2060, %v1886, %v2124
    %v2189 = vsel %vm2061, %v1891, %v2125
    %v2190 = vsel %vm2062, %v1894, %v2126
    %v2191 = vsel %vm2063, %v1899, %v2127
    %v2192 = vsel %vm2064, %v1902, %v2128
    %v2193 = vsel %vm2065, %v1907, %v2129
    %v2194 = vsel %vm2066, %v1910, %v2130
    %v2195 = vsel %vm2067, %v1915, %v2131
    %v2196 = vsel %vm2068, %v1918, %v2132
    %v2197 = vsel %vm2069, %v1923, %v2133
    %v2198 = vsel %vm2070, %v1926, %v2134
    %v2199 = vsel %vm2071, %v1931, %v2135
    %v2200 = vsel %vm2072, %v1934, %v2136
    %v2201 = vsel %vm2073, %v1939, %v2137
    %v2202 = vsel %vm2074, %v1942, %v2138
    %v2203 = vsel %vm2075, %v1947, %v2139
    %v2204 = vsel %vm2076, %v1950, %v2140
    %v2205 = vsel %vm2077, %v1955, %v2141
    %v2206 = vsel %vm2078, %v1958, %v2142
    %v2207 = vsel %vm2079, %v1963, %v2143
    %v2208 = vsel %vm2080, %v1966, %v2144
    %v2209 = vsel %vm2081, %v1971, %v2145
    %v2210 = vsel %vm2082, %v1974, %v2146
    %v2211 = vsel %vm2083, %v1979, %v2147
    %v2212 = vsel %vm2084, %v1982, %v2148
    %v2213 = vsel %vm2085, %v1987, %v2149
    %v2214 = vsel %vm2086, %v1990, %v2150
    %v2215 = vsel %vm2087, %v1995, %v2151
    %v2216 = vsel %vm2088, %v1998, %v2152
    %v2217 = vsel %vm2089, %v2003, %v2153
    %v2218 = vsel %vm2090, %v2006, %v2154
    %v2219 = vsel %vm2091, %v2011, %v2155
    %v2220 = vsel %vm2092, %v2014, %v2156
    %v2221 = vsel %vm2093, %v2019, %v2157
    %v2222 = vsel %vm2094, %v2022, %v2158
    %v2223 = vsel %vm2095, %v2027, %v2159
    %v2224 = vsel %vm2096, %v2030, %v2160
    %v2225 = vpack.c.bf16 %v2162, %v2161
    %v2226 = vpack.c.bf16 %v2164, %v2163
    %v2227 = vpack.c.bf16 %v2166, %v2165
    %v2228 = vpack.c.bf16 %v2168, %v2167
    %v2229 = vpack.c.bf16 %v2170, %v2169
    %v2230 = vpack.c.bf16 %v2172, %v2171
    %v2231 = vpack.c.bf16 %v2174, %v2173
    %v2232 = vpack.c.bf16 %v2176, %v2175
    %v2233 = vpack.c.bf16 %v2178, %v2177
    %v2234 = vpack.c.bf16 %v2180, %v2179
    %v2235 = vpack.c.bf16 %v2182, %v2181
    %v2236 = vpack.c.bf16 %v2184, %v2183
    %v2237 = vpack.c.bf16 %v2186, %v2185
    %v2238 = vpack.c.bf16 %v2188, %v2187
    %v2239 = vpack.c.bf16 %v2190, %v2189
    %v2240 = vpack.c.bf16 %v2192, %v2191
    %v2241 = vpack.c.bf16 %v2194, %v2193
    %v2242 = vpack.c.bf16 %v2196, %v2195
    %v2243 = vpack.c.bf16 %v2198, %v2197
    %v2244 = vpack.c.bf16 %v2200, %v2199
    %v2245 = vpack.c.bf16 %v2202, %v2201
    %v2246 = vpack.c.bf16 %v2204, %v2203
    %v2247 = vpack.c.bf16 %v2206, %v2205
    %v2248 = vpack.c.bf16 %v2208, %v2207
    %v2249 = vpack.c.bf16 %v2210, %v2209
    %v2250 = vpack.c.bf16 %v2212, %v2211
    %v2251 = vpack.c.bf16 %v2214, %v2213
    %v2252 = vpack.c.bf16 %v2216, %v2215
    %v2253 = vpack.c.bf16 %v2218, %v2217
    %v2254 = vpack.c.bf16 %v2220, %v2219
    %v2255 = vpack.c.bf16 %v2222, %v2221
    %v2256 = vpack.c.bf16 %v2224, %v2223
    %v2289 = vunpack.c.l.b16 %v2225
    %v2290 = vunpack.c.h.b16 %v2225
    %v2291 = vunpack.c.l.b16 %v2226
    %v2292 = vunpack.c.h.b16 %v2226
    %v2293 = vunpack.c.l.b16 %v2227
    %v2294 = vunpack.c.h.b16 %v2227
    %v2295 = vunpack.c.l.b16 %v2228
    %v2296 = vunpack.c.h.b16 %v2228
    %v2297 = vunpack.c.l.b16 %v2229
    %v2298 = vunpack.c.h.b16 %v2229
    %v2299 = vunpack.c.l.b16 %v2230
    %v2300 = vunpack.c.h.b16 %v2230
    %v2301 = vunpack.c.l.b16 %v2231
    %v2302 = vunpack.c.h.b16 %v2231
    %v2303 = vunpack.c.l.b16 %v2232
    %v2304 = vunpack.c.h.b16 %v2232
    %v2305 = vunpack.c.l.b16 %v2233
    %v2306 = vunpack.c.h.b16 %v2233
    %v2307 = vunpack.c.l.b16 %v2234
    %v2308 = vunpack.c.h.b16 %v2234
    %v2309 = vunpack.c.l.b16 %v2235
    %v2310 = vunpack.c.h.b16 %v2235
    %v2311 = vunpack.c.l.b16 %v2236
    %v2312 = vunpack.c.h.b16 %v2236
    %v2313 = vunpack.c.l.b16 %v2237
    %v2314 = vunpack.c.h.b16 %v2237
    %v2315 = vunpack.c.l.b16 %v2238
    %v2316 = vunpack.c.h.b16 %v2238
    %v2317 = vunpack.c.l.b16 %v2239
    %v2318 = vunpack.c.h.b16 %v2239
    %v2319 = vunpack.c.l.b16 %v2240
    %v2320 = vunpack.c.h.b16 %v2240
    %v2321 = vunpack.c.l.b16 %v2241
    %v2322 = vunpack.c.h.b16 %v2241
    %v2323 = vunpack.c.l.b16 %v2242
    %v2324 = vunpack.c.h.b16 %v2242
    %v2325 = vunpack.c.l.b16 %v2243
    %v2326 = vunpack.c.h.b16 %v2243
    %v2327 = vunpack.c.l.b16 %v2244
    %v2328 = vunpack.c.h.b16 %v2244
    %v2329 = vunpack.c.l.b16 %v2245
    %v2330 = vunpack.c.h.b16 %v2245
    %v2331 = vunpack.c.l.b16 %v2246
    %v2332 = vunpack.c.h.b16 %v2246
    %v2333 = vunpack.c.l.b16 %v2247
    %v2334 = vunpack.c.h.b16 %v2247
    %v2335 = vunpack.c.l.b16 %v2248
    %v2336 = vunpack.c.h.b16 %v2248
    %v2337 = vunpack.c.l.b16 %v2249
    %v2338 = vunpack.c.h.b16 %v2249
    %v2339 = vunpack.c.l.b16 %v2250
    %v2340 = vunpack.c.h.b16 %v2250
    %v2341 = vunpack.c.l.b16 %v2251
    %v2342 = vunpack.c.h.b16 %v2251
    %v2343 = vunpack.c.l.b16 %v2252
    %v2344 = vunpack.c.h.b16 %v2252
    %v2345 = vunpack.c.l.b16 %v2253
    %v2346 = vunpack.c.h.b16 %v2253
    %v2347 = vunpack.c.l.b16 %v2254
    %v2348 = vunpack.c.h.b16 %v2254
    %v2349 = vunpack.c.l.b16 %v2255
    %v2350 = vunpack.c.h.b16 %v2255
    %v2351 = vunpack.c.l.b16 %v2256
    %v2352 = vunpack.c.h.b16 %v2256
    %v2353 = vpack.c.b16 %v2289, %v2289
    %v2354 = vpack.c.b16 %v2290, %v2290
    %v2355 = vpack.c.b16 %v2291, %v2291
    %v2356 = vpack.c.b16 %v2292, %v2292
    %v2357 = vpack.c.b16 %v2293, %v2293
    %v2358 = vpack.c.b16 %v2294, %v2294
    %v2359 = vpack.c.b16 %v2295, %v2295
    %v2360 = vpack.c.b16 %v2296, %v2296
    %v2361 = vpack.c.b16 %v2297, %v2297
    %v2362 = vpack.c.b16 %v2298, %v2298
    %v2363 = vpack.c.b16 %v2299, %v2299
    %v2364 = vpack.c.b16 %v2300, %v2300
    %v2365 = vpack.c.b16 %v2301, %v2301
    %v2366 = vpack.c.b16 %v2302, %v2302
    %v2367 = vpack.c.b16 %v2303, %v2303
    %v2368 = vpack.c.b16 %v2304, %v2304
    %v2369 = vpack.c.b16 %v2305, %v2305
    %v2370 = vpack.c.b16 %v2306, %v2306
    %v2371 = vpack.c.b16 %v2307, %v2307
    %v2372 = vpack.c.b16 %v2308, %v2308
    %v2373 = vpack.c.b16 %v2309, %v2309
    %v2374 = vpack.c.b16 %v2310, %v2310
    %v2375 = vpack.c.b16 %v2311, %v2311
    %v2376 = vpack.c.b16 %v2312, %v2312
    %v2377 = vpack.c.b16 %v2313, %v2313
    %v2378 = vpack.c.b16 %v2314, %v2314
    %v2379 = vpack.c.b16 %v2315, %v2315
    %v2380 = vpack.c.b16 %v2316, %v2316
    %v2381 = vpack.c.b16 %v2317, %v2317
    %v2382 = vpack.c.b16 %v2318, %v2318
    %v2383 = vpack.c.b16 %v2319, %v2319
    %v2384 = vpack.c.b16 %v2320, %v2320
    %v2385 = vpack.c.b16 %v2321, %v2321
    %v2386 = vpack.c.b16 %v2322, %v2322
    %v2387 = vpack.c.b16 %v2323, %v2323
    %v2388 = vpack.c.b16 %v2324, %v2324
    %v2389 = vpack.c.b16 %v2325, %v2325
    %v2390 = vpack.c.b16 %v2326, %v2326
    %v2391 = vpack.c.b16 %v2327, %v2327
    %v2392 = vpack.c.b16 %v2328, %v2328
    %v2393 = vpack.c.b16 %v2329, %v2329
    %v2394 = vpack.c.b16 %v2330, %v2330
    %v2395 = vpack.c.b16 %v2331, %v2331
    %v2396 = vpack.c.b16 %v2332, %v2332
    %v2397 = vpack.c.b16 %v2333, %v2333
    %v2398 = vpack.c.b16 %v2334, %v2334
    %v2399 = vpack.c.b16 %v2335, %v2335
    %v2400 = vpack.c.b16 %v2336, %v2336
    %v2401 = vpack.c.b16 %v2337, %v2337
    %v2402 = vpack.c.b16 %v2338, %v2338
    %v2403 = vpack.c.b16 %v2339, %v2339
    %v2404 = vpack.c.b16 %v2340, %v2340
    %v2405 = vpack.c.b16 %v2341, %v2341
    %v2406 = vpack.c.b16 %v2342, %v2342
    %v2407 = vpack.c.b16 %v2343, %v2343
    %v2408 = vpack.c.b16 %v2344, %v2344
    %v2409 = vpack.c.b16 %v2345, %v2345
    %v2410 = vpack.c.b16 %v2346, %v2346
    %v2411 = vpack.c.b16 %v2347, %v2347
    %v2412 = vpack.c.b16 %v2348, %v2348
    %v2413 = vpack.c.b16 %v2349, %v2349
    %v2414 = vpack.c.b16 %v2350, %v2350
    %v2415 = vpack.c.b16 %v2351, %v2351
    %v2416 = vpack.c.b16 %v2352, %v2352
    %2481 = vst [vmem:[%s3] sm:$0xf] %v2353
    %2482 = vst [vmem:[%s3 + $0x4] sm:$0xf] %v2354
    %2483 = vst [vmem:[%s3 + $0x8] sm:$0xf] %v2355
    %2484 = vst [vmem:[%s3 + $0xc] sm:$0xf] %v2356
    %2485 = vst [vmem:[%s3 + $0x10] sm:$0xf] %v2357
    %2486 = vst [vmem:[%s3 + $0x14] sm:$0xf] %v2358
    %2487 = vst [vmem:[%s3 + $0x18] sm:$0xf] %v2359
    %2488 = vst [vmem:[%s3 + $0x1c] sm:$0xf] %v2360
    %2489 = vst [vmem:[%s3 + $0x20] sm:$0xf] %v2361
    %2490 = vst [vmem:[%s3 + $0x24] sm:$0xf] %v2362
    %2491 = vst [vmem:[%s3 + $0x28] sm:$0xf] %v2363
    %2492 = vst [vmem:[%s3 + $0x2c] sm:$0xf] %v2364
    %2493 = vst [vmem:[%s3 + $0x30] sm:$0xf] %v2365
    %2494 = vst [vmem:[%s3 + $0x34] sm:$0xf] %v2366
    %2495 = vst [vmem:[%s3 + $0x38] sm:$0xf] %v2367
    %2496 = vst [vmem:[%s3 + $0x3c] sm:$0xf] %v2368
    %2497 = vst [vmem:[%s3 + $0x40] sm:$0xf] %v2369
    %2498 = vst [vmem:[%s3 + $0x44] sm:$0xf] %v2370
    %2499 = vst [vmem:[%s3 + $0x48] sm:$0xf] %v2371
    %2500 = vst [vmem:[%s3 + $0x4c] sm:$0xf] %v2372
    %2501 = vst [vmem:[%s3 + $0x50] sm:$0xf] %v2373
    %2502 = vst [vmem:[%s3 + $0x54] sm:$0xf] %v2374
    %2503 = vst [vmem:[%s3 + $0x58] sm:$0xf] %v2375
    %2504 = vst [vmem:[%s3 + $0x5c] sm:$0xf] %v2376
    %2505 = vst [vmem:[%s3 + $0x60] sm:$0xf] %v2377
    %2506 = vst [vmem:[%s3 + $0x64] sm:$0xf] %v2378
    %2507 = vst [vmem:[%s3 + $0x68] sm:$0xf] %v2379
    %2508 = vst [vmem:[%s3 + $0x6c] sm:$0xf] %v2380
    %2509 = vst [vmem:[%s3 + $0x70] sm:$0xf] %v2381
    %2510 = vst [vmem:[%s3 + $0x74] sm:$0xf] %v2382
    %2511 = vst [vmem:[%s3 + $0x78] sm:$0xf] %v2383
    %2512 = vst [vmem:[%s3 + $0x7c] sm:$0xf] %v2384
    %2513 = vst [vmem:[%s3 + $0x80] sm:$0xf] %v2385
    %2514 = vst [vmem:[%s3 + $0x84] sm:$0xf] %v2386
    %2515 = vst [vmem:[%s3 + $0x88] sm:$0xf] %v2387
    %2516 = vst [vmem:[%s3 + $0x8c] sm:$0xf] %v2388
    %2517 = vst [vmem:[%s3 + $0x90] sm:$0xf] %v2389
    %2518 = vst [vmem:[%s3 + $0x94] sm:$0xf] %v2390
    %2519 = vst [vmem:[%s3 + $0x98] sm:$0xf] %v2391
    %2520 = vst [vmem:[%s3 + $0x9c] sm:$0xf] %v2392
    %2521 = vst [vmem:[%s3 + $0xa0] sm:$0xf] %v2393
    %2522 = vst [vmem:[%s3 + $0xa4] sm:$0xf] %v2394
    %2523 = vst [vmem:[%s3 + $0xa8] sm:$0xf] %v2395
    %2524 = vst [vmem:[%s3 + $0xac] sm:$0xf] %v2396
    %2525 = vst [vmem:[%s3 + $0xb0] sm:$0xf] %v2397
    %2526 = vst [vmem:[%s3 + $0xb4] sm:$0xf] %v2398
    %2527 = vst [vmem:[%s3 + $0xb8] sm:$0xf] %v2399
    %2528 = vst [vmem:[%s3 + $0xbc] sm:$0xf] %v2400
    %2529 = vst [vmem:[%s3 + $0xc0] sm:$0xf] %v2401
    %2530 = vst [vmem:[%s3 + $0xc4] sm:$0xf] %v2402
    %2531 = vst [vmem:[%s3 + $0xc8] sm:$0xf] %v2403
    %2532 = vst [vmem:[%s3 + $0xcc] sm:$0xf] %v2404
    %2533 = vst [vmem:[%s3 + $0xd0] sm:$0xf] %v2405
    %2534 = vst [vmem:[%s3 + $0xd4] sm:$0xf] %v2406
    %2535 = vst [vmem:[%s3 + $0xd8] sm:$0xf] %v2407
    %2536 = vst [vmem:[%s3 + $0xdc] sm:$0xf] %v2408
    %2537 = vst [vmem:[%s3 + $0xe0] sm:$0xf] %v2409
    %2538 = vst [vmem:[%s3 + $0xe4] sm:$0xf] %v2410
    %2539 = vst [vmem:[%s3 + $0xe8] sm:$0xf] %v2411
    %2540 = vst [vmem:[%s3 + $0xec] sm:$0xf] %v2412
    %2541 = vst [vmem:[%s3 + $0xf0] sm:$0xf] %v2413
    %2542 = vst [vmem:[%s3 + $0xf4] sm:$0xf] %v2414
    %2543 = vst [vmem:[%s3 + $0xf8] sm:$0xf] %v2415
    %2544 = vst [vmem:[%s3 + $0xfc] sm:$0xf] %v2416
    // Predicated region
    $region10: #{discriminator_forward.14} parent=1 // pred_check
      _
    $region11: #{discriminator_forward.14} parent=1 // pred_check_branch
      %2546 = sbr.rel (0) target = $region13
    $region12: #{discriminator_forward.14} parent=1 // pred_region
      _
    $region13: #{discriminator_forward.14} parent=1 // pred_fallthru
      _
    // Predicated region
    $region14: #{discriminator_forward.14} parent=1 // pred_check
      _
    $region15: #{discriminator_forward.14} parent=1 // pred_check_branch
      %2548 = sbr.rel (0) target = $region17
    $region16: #{discriminator_forward.14} parent=1 // pred_region
      _
    $region17: #{discriminator_forward.14} parent=1 // pred_fallthru
      _

// kernel: discriminator_forward.8
$region0: #{discriminator_forward.8}
  #allocation0 [shape = 'u32[]', space=smem, size = 0x4, offset = 0x4, fixed_abs, tag = 'smem constant byte address 0x4 - core index']
  #allocation1 [shape = 'u32[144,128]{1,0:T(1,128)}', space=vmem, size = 0x12000, scoped, tag = 'internal scratch']
  %s0 = inlined_call_operand.vmem [shape: bf16[128,128], index: 0, kind: input, shape index: {}]
  %s1 = inlined_call_operand.vmem [shape: bf16[128,128], index: 1, kind: input, shape index: {}]
  %s2 = inlined_call_operand.vmem [shape: f32[128,128], index: 2, kind: output, shape index: {0}]
  %s3 = inlined_call_operand.vmem [shape: f32[1,1,128], index: 3, kind: output, shape index: {1}]
  %s4 = inlined_call_operand.vmem [shape: f32[1,1,128], index: 4, kind: output, shape index: {2}]
  %5 = xla_tuple %s2, %s3, %s4
  %s6 = sld [smem:[#allocation0]]
  $region34: #{discriminator_forward.8} parent=0
    _
  %s8 = ssub.s32 1, %s6
  %s9 = scalar_select 0, %s8, %s6
  // Predicated region
  $region2: #{discriminator_forward.8} parent=0 // pred_check
    _
  $region3: #{discriminator_forward.8} parent=0 // pred_check_branch
    %11 = sbr.rel (0) target = $region5
  $region4: #{discriminator_forward.8} parent=0 // pred_region
    _
  $region5: #{discriminator_forward.8} parent=0 // pred_fallthru
    _
  // Predicated region
  $region6: #{discriminator_forward.8} parent=0 // pred_check
    _
  $region7: #{discriminator_forward.8} parent=0 // pred_check_branch
    %13 = sbr.rel (0) target = $region9
  $region8: #{discriminator_forward.8} parent=0 // pred_region
    _
  $region9: #{discriminator_forward.8} parent=0 // pred_fallthru
    _
  %v15 = vld [vmem:[%s0] sm:$0xf]
  %v16 = vld [vmem:[%s0 + $0x4] sm:$0xf]
  %v17 = vld [vmem:[%s0 + $0x8] sm:$0xf]
  %v18 = vld [vmem:[%s0 + $0xc] sm:$0xf]
  %v19 = vld [vmem:[%s0 + $0x10] sm:$0xf]
  %v20 = vld [vmem:[%s0 + $0x14] sm:$0xf]
  %v21 = vld [vmem:[%s0 + $0x18] sm:$0xf]
  %v22 = vld [vmem:[%s0 + $0x1c] sm:$0xf]
  %v23 = vld [vmem:[%s0 + $0x20] sm:$0xf]
  %v24 = vld [vmem:[%s0 + $0x24] sm:$0xf]
  %v25 = vld [vmem:[%s0 + $0x28] sm:$0xf]
  %v26 = vld [vmem:[%s0 + $0x2c] sm:$0xf]
  %v27 = vld [vmem:[%s0 + $0x30] sm:$0xf]
  %v28 = vld [vmem:[%s0 + $0x34] sm:$0xf]
  %v29 = vld [vmem:[%s0 + $0x38] sm:$0xf]
  %v30 = vld [vmem:[%s0 + $0x3c] sm:$0xf]
  %v31 = vld [vmem:[%s1] sm:$0xf]
  %v32 = vld [vmem:[%s1 + $0x4] sm:$0xf]
  %v33 = vld [vmem:[%s1 + $0x8] sm:$0xf]
  %v34 = vld [vmem:[%s1 + $0xc] sm:$0xf]
  %v35 = vld [vmem:[%s1 + $0x10] sm:$0xf]
  %v36 = vld [vmem:[%s1 + $0x14] sm:$0xf]
  %v37 = vld [vmem:[%s1 + $0x18] sm:$0xf]
  %v38 = vld [vmem:[%s1 + $0x1c] sm:$0xf]
  %v39 = vld [vmem:[%s1 + $0x20] sm:$0xf]
  %v40 = vld [vmem:[%s1 + $0x24] sm:$0xf]
  %v41 = vld [vmem:[%s1 + $0x28] sm:$0xf]
  %v42 = vld [vmem:[%s1 + $0x2c] sm:$0xf]
  %v43 = vld [vmem:[%s1 + $0x30] sm:$0xf]
  %v44 = vld [vmem:[%s1 + $0x34] sm:$0xf]
  %v45 = vld [vmem:[%s1 + $0x38] sm:$0xf]
  %v46 = vld [vmem:[%s1 + $0x3c] sm:$0xf]
  %v63 = vunpack.c.l.b16 %v15
  %v64 = vunpack.c.l.b16 %v16
  %v65 = vunpack.c.l.b16 %v17
  %v66 = vunpack.c.l.b16 %v18
  %v67 = vunpack.c.l.b16 %v19
  %v68 = vunpack.c.l.b16 %v20
  %v69 = vunpack.c.l.b16 %v21
  %v70 = vunpack.c.l.b16 %v22
  %v71 = vunpack.c.l.b16 %v23
  %v72 = vunpack.c.l.b16 %v24
  %v73 = vunpack.c.l.b16 %v25
  %v74 = vunpack.c.l.b16 %v26
  %v75 = vunpack.c.l.b16 %v27
  %v76 = vunpack.c.l.b16 %v28
  %v77 = vunpack.c.l.b16 %v29
  %v78 = vunpack.c.l.b16 %v30
  %v79 = vpack.c.b16 %v64, %v63
  %v80 = vpack.c.b16 %v66, %v65
  %v81 = vpack.c.b16 %v68, %v67
  %v82 = vpack.c.b16 %v70, %v69
  %v83 = vpack.c.b16 %v72, %v71
  %v84 = vpack.c.b16 %v74, %v73
  %v85 = vpack.c.b16 %v76, %v75
  %v86 = vpack.c.b16 %v78, %v77
  %v111 = vunpack.c.l.b16 %v31
  %v112 = vunpack.c.l.b16 %v32
  %v113 = vunpack.c.l.b16 %v33
  %v114 = vunpack.c.l.b16 %v34
  %v115 = vunpack.c.l.b16 %v35
  %v116 = vunpack.c.l.b16 %v36
  %v117 = vunpack.c.l.b16 %v37
  %v118 = vunpack.c.l.b16 %v38
  %v119 = vunpack.c.l.b16 %v39
  %v120 = vunpack.c.l.b16 %v40
  %v121 = vunpack.c.l.b16 %v41
  %v122 = vunpack.c.l.b16 %v42
  %v123 = vunpack.c.l.b16 %v43
  %v124 = vunpack.c.l.b16 %v44
  %v125 = vunpack.c.l.b16 %v45
  %v126 = vunpack.c.l.b16 %v46
  %v127 = vpack.c.b16 %v112, %v111
  %v128 = vpack.c.b16 %v114, %v113
  %v129 = vpack.c.b16 %v116, %v115
  %v130 = vpack.c.b16 %v118, %v117
  %v131 = vpack.c.b16 %v120, %v119
  %v132 = vpack.c.b16 %v122, %v121
  %v133 = vpack.c.b16 %v124, %v123
  %v134 = vpack.c.b16 %v126, %v125
  %143 = vmatprep.subr.bf16.mxu0 0
  %144 = vmatpush1.bf16.msra.mxu0 %v127
  %145 = vmatprep.subr.bf16.mxu0 0
  %146 = vmatpush1.bf16.msra.mxu0 %v128
  %147 = vmatprep.subr.bf16.mxu0 0
  %148 = vmatpush1.bf16.msra.mxu0 %v129
  %149 = vmatprep.subr.bf16.mxu0 0
  %150 = vmatpush1.bf16.msra.mxu0 %v130
  %151 = vmatprep.subr.bf16.mxu0 0
  %152 = vmatpush1.bf16.msra.mxu0 %v131
  %153 = vmatprep.subr.bf16.mxu0 0
  %154 = vmatpush1.bf16.msra.mxu0 %v132
  %155 = vmatprep.subr.bf16.mxu0 0
  %156 = vmatpush1.bf16.msra.mxu0 %v133
  %157 = vmatprep.subr.bf16.mxu0 0
  %158 = vmatpush1.bf16.msra.mxu0 %v134
  %159 = vmatprep.subr.bf16.mxu0 0
  %160 = vmatpush1.bf16.msra.mxu0 0
  %161 = vmatprep.subr.bf16.mxu0 0
  %162 = vmatpush1.bf16.msra.mxu0 0
  %163 = vmatprep.subr.bf16.mxu0 0
  %164 = vmatpush1.bf16.msra.mxu0 0
  %165 = vmatprep.subr.bf16.mxu0 0
  %166 = vmatpush1.bf16.msra.mxu0 0
  %167 = vmatprep.subr.bf16.mxu0 0
  %168 = vmatpush1.bf16.msra.mxu0 0
  %169 = vmatprep.subr.bf16.mxu0 0
  %170 = vmatpush1.bf16.msra.mxu0 0
  %171 = vmatprep.subr.bf16.mxu0 0
  %172 = vmatpush1.bf16.msra.mxu0 0
  %173 = vmatprep.subr.bf16.mxu0 0
  %174 = vmatpush1.bf16.msra.mxu0 0
  %175 = vmatprep.mubr.bf16.mxu0 0
  %176 = vmatmul.mubr.bf16.gmra.mrb[0].mxu0 %v79
  %v177 = vpop.f32.mrb[0].mxu0
  %v178 = vadd.f32 0.0, %v177
  %v179 = vpop.f32.mrb[0].mxu0
  %v180 = vpop.f32.mrb[0].mxu0
  %v181 = vadd.f32 0.0, %v180
  %v182 = vpop.f32.mrb[0].mxu0
  %183 = vmatprep.mubr.bf16.mxu0 0
  %184 = vmatmul.mubr.bf16.gmra.mrb[0].mxu0 %v80
  %v185 = vpop.f32.mrb[0].mxu0
  %v186 = vadd.f32 0.0, %v185
  %v187 = vpop.f32.mrb[0].mxu0
  %v188 = vpop.f32.mrb[0].mxu0
  %v189 = vadd.f32 0.0, %v188
  %v190 = vpop.f32.mrb[0].mxu0
  %191 = vmatprep.mubr.bf16.mxu0 0
  %192 = vmatmul.mubr.bf16.gmra.mrb[0].mxu0 %v81
  %v193 = vpop.f32.mrb[0].mxu0
  %v194 = vadd.f32 0.0, %v193
  %v195 = vpop.f32.mrb[0].mxu0
  %v196 = vpop.f32.mrb[0].mxu0
  %v197 = vadd.f32 0.0, %v196
  %v198 = vpop.f32.mrb[0].mxu0
  %199 = vmatprep.mubr.bf16.mxu0 0
  %200 = vmatmul.mubr.bf16.gmra.mrb[0].mxu0 %v82
  %v201 = vpop.f32.mrb[0].mxu0
  %v202 = vadd.f32 0.0, %v201
  %v203 = vpop.f32.mrb[0].mxu0
  %v204 = vpop.f32.mrb[0].mxu0
  %v205 = vadd.f32 0.0, %v204
  %v206 = vpop.f32.mrb[0].mxu0
  %207 = vmatprep.mubr.bf16.mxu0 0
  %208 = vmatmul.mubr.bf16.gmra.mrb[0].mxu0 %v83
  %v209 = vpop.f32.mrb[0].mxu0
  %v210 = vadd.f32 0.0, %v209
  %v211 = vpop.f32.mrb[0].mxu0
  %v212 = vpop.f32.mrb[0].mxu0
  %v213 = vadd.f32 0.0, %v212
  %v214 = vpop.f32.mrb[0].mxu0
  %215 = vmatprep.mubr.bf16.mxu0 0
  %216 = vmatmul.mubr.bf16.gmra.mrb[0].mxu0 %v84
  %v217 = vpop.f32.mrb[0].mxu0
  %v218 = vadd.f32 0.0, %v217
  %v219 = vpop.f32.mrb[0].mxu0
  %v220 = vpop.f32.mrb[0].mxu0
  %v221 = vadd.f32 0.0, %v220
  %v222 = vpop.f32.mrb[0].mxu0
  %223 = vmatprep.mubr.bf16.mxu0 0
  %224 = vmatmul.mubr.bf16.gmra.mrb[0].mxu0 %v85
  %v225 = vpop.f32.mrb[0].mxu0
  %v226 = vadd.f32 0.0, %v225
  %v227 = vpop.f32.mrb[0].mxu0
  %v228 = vpop.f32.mrb[0].mxu0
  %v229 = vadd.f32 0.0, %v228
  %v230 = vpop.f32.mrb[0].mxu0
  %231 = vmatprep.mubr.bf16.mxu0 0
  %232 = vmatmul.mubr.bf16.gmra.mrb[0].mxu0 %v86
  %v233 = vpop.f32.mrb[0].mxu0
  %v234 = vadd.f32 0.0, %v233
  %v235 = vpop.f32.mrb[0].mxu0
  %v236 = vpop.f32.mrb[0].mxu0
  %v237 = vadd.f32 0.0, %v236
  %v238 = vpop.f32.mrb[0].mxu0
  %239 = vdwg.mxu0
  %240 = vst [vmem:[%s2] sm:$0xff] %v178
  %241 = vst [vmem:[%s2 + $0x8] sm:$0xff] %v181
  %242 = vst [vmem:[%s2 + $0x10] sm:$0xff] %v186
  %243 = vst [vmem:[%s2 + $0x18] sm:$0xff] %v189
  %244 = vst [vmem:[%s2 + $0x20] sm:$0xff] %v194
  %245 = vst [vmem:[%s2 + $0x28] sm:$0xff] %v197
  %246 = vst [vmem:[%s2 + $0x30] sm:$0xff] %v202
  %247 = vst [vmem:[%s2 + $0x38] sm:$0xff] %v205
  %248 = vst [vmem:[%s2 + $0x40] sm:$0xff] %v210
  %249 = vst [vmem:[%s2 + $0x48] sm:$0xff] %v213
  %250 = vst [vmem:[%s2 + $0x50] sm:$0xff] %v218
  %251 = vst [vmem:[%s2 + $0x58] sm:$0xff] %v221
  %252 = vst [vmem:[%s2 + $0x60] sm:$0xff] %v226
  %253 = vst [vmem:[%s2 + $0x68] sm:$0xff] %v229
  %254 = vst [vmem:[%s2 + $0x70] sm:$0xff] %v234
  %255 = vst [vmem:[%s2 + $0x78] sm:$0xff] %v237
  %v256 = vadd.f32 %v178, %v181
  %v257 = vadd.f32 %v256, %v186
  %v258 = vadd.f32 %v257, %v189
  %v259 = vadd.f32 %v258, %v194
  %v260 = vadd.f32 %v259, %v197
  %v261 = vadd.f32 %v260, %v202
  %v262 = vadd.f32 %v261, %v205
  %v263 = vadd.f32 %v262, %v210
  %v264 = vadd.f32 %v263, %v213
  %v265 = vadd.f32 %v264, %v218
  %v266 = vadd.f32 %v265, %v221
  %v267 = vadd.f32 %v266, %v226
  %v268 = vadd.f32 %v267, %v229
  %v269 = vadd.f32 %v268, %v234
  %v270 = vadd.f32 %v269, %v237
  %v271 = vrot.slane %v270, 4
  %v272 = vadd.f32 %v270, %v271
  %v273 = vrot.slane %v272, 2
  %v274 = vadd.f32 %v272, %v273
  %v275 = vrot.slane %v274, 1
  %v276 = vadd.f32 %v274, %v275
  %277 = vst [vmem:[%s3] sm:$0x1] %v276
  %v278 = vmul.f32 %v178, %v178
  %v279 = vmul.f32 %v181, %v181
  %v280 = vmul.f32 %v186, %v186
  %v281 = vmul.f32 %v189, %v189
  %v282 = vmul.f32 %v194, %v194
  %v283 = vmul.f32 %v197, %v197
  %v284 = vmul.f32 %v202, %v202
  %v285 = vmul.f32 %v205, %v205
  %v286 = vmul.f32 %v210, %v210
  %v287 = vmul.f32 %v213, %v213
  %v288 = vmul.f32 %v218, %v218
  %v289 = vmul.f32 %v221, %v221
  %v290 = vmul.f32 %v226, %v226
  %v291 = vmul.f32 %v229, %v229
  %v292 = vmul.f32 %v234, %v234
  %v293 = vmul.f32 %v237, %v237
  %v294 = vadd.f32 %v278, %v279
  %v295 = vadd.f32 %v294, %v280
  %v296 = vadd.f32 %v295, %v281
  %v297 = vadd.f32 %v296, %v282
  %v298 = vadd.f32 %v297, %v283
  %v299 = vadd.f32 %v298, %v284
  %v300 = vadd.f32 %v299, %v285
  %v301 = vadd.f32 %v300, %v286
  %v302 = vadd.f32 %v301, %v287
  %v303 = vadd.f32 %v302, %v288
  %v304 = vadd.f32 %v303, %v289
  %v305 = vadd.f32 %v304, %v290
  %v306 = vadd.f32 %v305, %v291
  %v307 = vadd.f32 %v306, %v292
  %v308 = vadd.f32 %v307, %v293
  %v309 = vrot.slane %v308, 4
  %v310 = vadd.f32 %v308, %v309
  %v311 = vrot.slane %v310, 2
  %v312 = vadd.f32 %v310, %v311
  %v313 = vrot.slane %v312, 1
  %v314 = vadd.f32 %v312, %v313
  %315 = vst [vmem:[%s4] sm:$0x1] %v314
  // Predicated region
  $region10: #{discriminator_forward.8} parent=0 // pred_check
    _
  $region11: #{discriminator_forward.8} parent=0 // pred_check_branch
    %317 = sbr.rel (0) target = $region13
  $region12: #{discriminator_forward.8} parent=0 // pred_region
    _
  $region13: #{discriminator_forward.8} parent=0 // pred_fallthru
    _
  // Predicated region
  $region14: #{discriminator_forward.8} parent=0 // pred_check
    _
  $region15: #{discriminator_forward.8} parent=0 // pred_check_branch
    %319 = sbr.rel (0) target = $region17
  $region16: #{discriminator_forward.8} parent=0 // pred_region
    _
  $region17: #{discriminator_forward.8} parent=0 // pred_fallthru
    _
  // Predicated region
  $region18: #{discriminator_forward.8} parent=0 // pred_check
    _
  $region19: #{discriminator_forward.8} parent=0 // pred_check_branch
    %321 = sbr.rel (0) target = $region21
  $region20: #{discriminator_forward.8} parent=0 // pred_region
    _
  $region21: #{discriminator_forward.8} parent=0 // pred_fallthru
    _
  // Predicated region
  $region22: #{discriminator_forward.8} parent=0 // pred_check
    _
  $region23: #{discriminator_forward.8} parent=0 // pred_check_branch
    %323 = sbr.rel (0) target = $region25
  $region24: #{discriminator_forward.8} parent=0 // pred_region
    _
  $region25: #{discriminator_forward.8} parent=0 // pred_fallthru
    _
  // Predicated region
  $region26: #{discriminator_forward.8} parent=0 // pred_check
    _
  $region27: #{discriminator_forward.8} parent=0 // pred_check_branch
    %325 = sbr.rel (0) target = $region29
  $region28: #{discriminator_forward.8} parent=0 // pred_region
    _
  $region29: #{discriminator_forward.8} parent=0 // pred_fallthru
    _
  // Predicated region
  $region30: #{discriminator_forward.8} parent=0 // pred_check
    _
  $region31: #{discriminator_forward.8} parent=0 // pred_check_branch
    %327 = sbr.rel (0) target = $region33
  $region32: #{discriminator_forward.8} parent=0 // pred_region
    _
  $region33: #{discriminator_forward.8} parent=0 // pred_fallthru
    _

// kernel: discriminator_forward.9
$region0: #{discriminator_forward.9}
  #allocation0 [shape = 'u32[]', space=smem, size = 0x4, offset = 0x4, fixed_abs, tag = 'smem constant byte address 0x4 - core index']
  #allocation1 [shape = 'u32[144,128]{1,0:T(1,128)}', space=vmem, size = 0x12000, scoped, tag = 'internal scratch']
  %s0 = inlined_call_operand.vmem [shape: f32[128,128], index: 0, kind: input, shape index: {}]
  %s1 = inlined_call_operand.vmem [shape: f32[1,128], index: 1, kind: input, shape index: {}]
  %s2 = inlined_call_operand.vmem [shape: f32[1,128], index: 2, kind: input, shape index: {}]
  %s3 = inlined_call_operand.vmem [shape: bf16[128,128], index: 3, kind: output, shape index: {}]
  %s4 = sld [smem:[#allocation0]]
  $region22: #{discriminator_forward.9} parent=0
    _
  %s6 = ssub.s32 1, %s4
  %s7 = scalar_select 0, %s6, %s4
  // Predicated region
  $region2: #{discriminator_forward.9} parent=0 // pred_check
    _
  $region3: #{discriminator_forward.9} parent=0 // pred_check_branch
    %9 = sbr.rel (0) target = $region5
  $region4: #{discriminator_forward.9} parent=0 // pred_region
    _
  $region5: #{discriminator_forward.9} parent=0 // pred_fallthru
    _
  // Predicated region
  $region6: #{discriminator_forward.9} parent=0 // pred_check
    _
  $region7: #{discriminator_forward.9} parent=0 // pred_check_branch
    %11 = sbr.rel (0) target = $region9
  $region8: #{discriminator_forward.9} parent=0 // pred_region
    _
  $region9: #{discriminator_forward.9} parent=0 // pred_fallthru
    _
  // Predicated region
  $region10: #{discriminator_forward.9} parent=0 // pred_check
    _
  $region11: #{discriminator_forward.9} parent=0 // pred_check_branch
    %13 = sbr.rel (0) target = $region13
  $region12: #{discriminator_forward.9} parent=0 // pred_region
    _
  $region13: #{discriminator_forward.9} parent=0 // pred_fallthru
    _
  %v14 = vld [vmem:[%s0] sm:$0xff]
  %v15 = vld [vmem:[%s0 + $0x8] sm:$0xff]
  %v16 = vld [vmem:[%s0 + $0x10] sm:$0xff]
  %v17 = vld [vmem:[%s0 + $0x18] sm:$0xff]
  %v18 = vld [vmem:[%s0 + $0x20] sm:$0xff]
  %v19 = vld [vmem:[%s0 + $0x28] sm:$0xff]
  %v20 = vld [vmem:[%s0 + $0x30] sm:$0xff]
  %v21 = vld [vmem:[%s0 + $0x38] sm:$0xff]
  %v22 = vld [vmem:[%s0 + $0x40] sm:$0xff]
  %v23 = vld [vmem:[%s0 + $0x48] sm:$0xff]
  %v24 = vld [vmem:[%s0 + $0x50] sm:$0xff]
  %v25 = vld [vmem:[%s0 + $0x58] sm:$0xff]
  %v26 = vld [vmem:[%s0 + $0x60] sm:$0xff]
  %v27 = vld [vmem:[%s0 + $0x68] sm:$0xff]
  %v28 = vld [vmem:[%s0 + $0x70] sm:$0xff]
  %v29 = vld [vmem:[%s0 + $0x78] sm:$0xff]
  %v30 = vld [vmem:[%s1] sm:$0x1]
  %v32 = vlaneseq
  %v33 = vshrl.u32 %v32, 7
  %v34 = vsub.s32 0, %v33
  %v35 = vrot.slane %v30, %v34
  %v37 = vmul.f32 %v14, %v35
  %v38 = vmul.f32 %v15, %v35
  %v39 = vmul.f32 %v16, %v35
  %v40 = vmul.f32 %v17, %v35
  %v41 = vmul.f32 %v18, %v35
  %v42 = vmul.f32 %v19, %v35
  %v43 = vmul.f32 %v20, %v35
  %v44 = vmul.f32 %v21, %v35
  %v45 = vmul.f32 %v22, %v35
  %v46 = vmul.f32 %v23, %v35
  %v47 = vmul.f32 %v24, %v35
  %v48 = vmul.f32 %v25, %v35
  %v49 = vmul.f32 %v26, %v35
  %v50 = vmul.f32 %v27, %v35
  %v51 = vmul.f32 %v28, %v35
  %v52 = vmul.f32 %v29, %v35
  %v53 = vld [vmem:[%s2] sm:$0x1]
  %v55 = vlaneseq
  %v56 = vshrl.u32 %v55, 7
  %v57 = vsub.s32 0, %v56
  %v58 = vrot.slane %v53, %v57
  %v60 = vadd.f32 %v37, %v58
  %v61 = vadd.f32 %v38, %v58
  %v62 = vadd.f32 %v39, %v58
  %v63 = vadd.f32 %v40, %v58
  %v64 = vadd.f32 %v41, %v58
  %v65 = vadd.f32 %v42, %v58
  %v66 = vadd.f32 %v43, %v58
  %v67 = vadd.f32 %v44, %v58
  %v68 = vadd.f32 %v45, %v58
  %v69 = vadd.f32 %v46, %v58
  %v70 = vadd.f32 %v47, %v58
  %v71 = vadd.f32 %v48, %v58
  %v72 = vadd.f32 %v49, %v58
  %v73 = vadd.f32 %v50, %v58
  %v74 = vadd.f32 %v51, %v58
  %v75 = vadd.f32 %v52, %v58
  %vm76 = vcmp.gt.f32.partialorder %v60, 0.0
  %vm77 = vcmp.gt.f32.partialorder %v61, 0.0
  %vm78 = vcmp.gt.f32.partialorder %v62, 0.0
  %vm79 = vcmp.gt.f32.partialorder %v63, 0.0
  %vm80 = vcmp.gt.f32.partialorder %v64, 0.0
  %vm81 = vcmp.gt.f32.partialorder %v65, 0.0
  %vm82 = vcmp.gt.f32.partialorder %v66, 0.0
  %vm83 = vcmp.gt.f32.partialorder %v67, 0.0
  %vm84 = vcmp.gt.f32.partialorder %v68, 0.0
  %vm85 = vcmp.gt.f32.partialorder %v69, 0.0
  %vm86 = vcmp.gt.f32.partialorder %v70, 0.0
  %vm87 = vcmp.gt.f32.partialorder %v71, 0.0
  %vm88 = vcmp.gt.f32.partialorder %v72, 0.0
  %vm89 = vcmp.gt.f32.partialorder %v73, 0.0
  %vm90 = vcmp.gt.f32.partialorder %v74, 0.0
  %vm91 = vcmp.gt.f32.partialorder %v75, 0.0
  %v92 = vmul.f32 %v60, 0.2
  %v93 = vmul.f32 %v61, 0.2
  %v94 = vmul.f32 %v62, 0.2
  %v95 = vmul.f32 %v63, 0.2
  %v96 = vmul.f32 %v64, 0.2
  %v97 = vmul.f32 %v65, 0.2
  %v98 = vmul.f32 %v66, 0.2
  %v99 = vmul.f32 %v67, 0.2
  %v100 = vmul.f32 %v68, 0.2
  %v101 = vmul.f32 %v69, 0.2
  %v102 = vmul.f32 %v70, 0.2
  %v103 = vmul.f32 %v71, 0.2
  %v104 = vmul.f32 %v72, 0.2
  %v105 = vmul.f32 %v73, 0.2
  %v106 = vmul.f32 %v74, 0.2
  %v107 = vmul.f32 %v75, 0.2
  %v108 = vsel %vm76, %v60, %v92
  %v109 = vsel %vm77, %v61, %v93
  %v110 = vsel %vm78, %v62, %v94
  %v111 = vsel %vm79, %v63, %v95
  %v112 = vsel %vm80, %v64, %v96
  %v113 = vsel %vm81, %v65, %v97
  %v114 = vsel %vm82, %v66, %v98
  %v115 = vsel %vm83, %v67, %v99
  %v116 = vsel %vm84, %v68, %v100
  %v117 = vsel %vm85, %v69, %v101
  %v118 = vsel %vm86, %v70, %v102
  %v119 = vsel %vm87, %v71, %v103
  %v120 = vsel %vm88, %v72, %v104
  %v121 = vsel %vm89, %v73, %v105
  %v122 = vsel %vm90, %v74, %v106
  %v123 = vsel %vm91, %v75, %v107
  %v124 = vpack.c.bf16 %v109, %v108
  %v125 = vpack.c.bf16 %v111, %v110
  %v126 = vpack.c.bf16 %v113, %v112
  %v127 = vpack.c.bf16 %v115, %v114
  %v128 = vpack.c.bf16 %v117, %v116
  %v129 = vpack.c.bf16 %v119, %v118
  %v130 = vpack.c.bf16 %v121, %v120
  %v131 = vpack.c.bf16 %v123, %v122
  %v140 = vunpack.c.l.b16 %v124
  %v141 = vunpack.c.h.b16 %v124
  %v142 = vunpack.c.l.b16 %v125
  %v143 = vunpack.c.h.b16 %v125
  %v144 = vunpack.c.l.b16 %v126
  %v145 = vunpack.c.h.b16 %v126
  %v146 = vunpack.c.l.b16 %v127
  %v147 = vunpack.c.h.b16 %v127
  %v148 = vunpack.c.l.b16 %v128
  %v149 = vunpack.c.h.b16 %v128
  %v150 = vunpack.c.l.b16 %v129
  %v151 = vunpack.c.h.b16 %v129
  %v152 = vunpack.c.l.b16 %v130
  %v153 = vunpack.c.h.b16 %v130
  %v154 = vunpack.c.l.b16 %v131
  %v155 = vunpack.c.h.b16 %v131
  %v156 = vpack.c.b16 %v140, %v140
  %v157 = vpack.c.b16 %v141, %v141
  %v158 = vpack.c.b16 %v142, %v142
  %v159 = vpack.c.b16 %v143, %v143
  %v160 = vpack.c.b16 %v144, %v144
  %v161 = vpack.c.b16 %v145, %v145
  %v162 = vpack.c.b16 %v146, %v146
  %v163 = vpack.c.b16 %v147, %v147
  %v164 = vpack.c.b16 %v148, %v148
  %v165 = vpack.c.b16 %v149, %v149
  %v166 = vpack.c.b16 %v150, %v150
  %v167 = vpack.c.b16 %v151, %v151
  %v168 = vpack.c.b16 %v152, %v152
  %v169 = vpack.c.b16 %v153, %v153
  %v170 = vpack.c.b16 %v154, %v154
  %v171 = vpack.c.b16 %v155, %v155
  %188 = vst [vmem:[%s3] sm:$0xf] %v156
  %189 = vst [vmem:[%s3 + $0x4] sm:$0xf] %v157
  %190 = vst [vmem:[%s3 + $0x8] sm:$0xf] %v158
  %191 = vst [vmem:[%s3 + $0xc] sm:$0xf] %v159
  %192 = vst [vmem:[%s3 + $0x10] sm:$0xf] %v160
  %193 = vst [vmem:[%s3 + $0x14] sm:$0xf] %v161
  %194 = vst [vmem:[%s3 + $0x18] sm:$0xf] %v162
  %195 = vst [vmem:[%s3 + $0x1c] sm:$0xf] %v163
  %196 = vst [vmem:[%s3 + $0x20] sm:$0xf] %v164
  %197 = vst [vmem:[%s3 + $0x24] sm:$0xf] %v165
  %198 = vst [vmem:[%s3 + $0x28] sm:$0xf] %v166
  %199 = vst [vmem:[%s3 + $0x2c] sm:$0xf] %v167
  %200 = vst [vmem:[%s3 + $0x30] sm:$0xf] %v168
  %201 = vst [vmem:[%s3 + $0x34] sm:$0xf] %v169
  %202 = vst [vmem:[%s3 + $0x38] sm:$0xf] %v170
  %203 = vst [vmem:[%s3 + $0x3c] sm:$0xf] %v171
  // Predicated region
  $region14: #{discriminator_forward.9} parent=0 // pred_check
    _
  $region15: #{discriminator_forward.9} parent=0 // pred_check_branch
    %205 = sbr.rel (0) target = $region17
  $region16: #{discriminator_forward.9} parent=0 // pred_region
    _
  $region17: #{discriminator_forward.9} parent=0 // pred_fallthru
    _
  // Predicated region
  $region18: #{discriminator_forward.9} parent=0 // pred_check
    _
  $region19: #{discriminator_forward.9} parent=0 // pred_check_branch
    %207 = sbr.rel (0) target = $region21
  $region20: #{discriminator_forward.9} parent=0 // pred_region
    _
  $region21: #{discriminator_forward.9} parent=0 // pred_fallthru
    _

// kernel: discriminator_forward.10
$region0: #{discriminator_forward.10}
  #allocation0 [shape = 'u32[]', space=smem, size = 0x4, offset = 0x4, fixed_abs, tag = 'smem constant byte address 0x4 - core index']
  #allocation1 [shape = 'u32[144,128]{1,0:T(1,128)}', space=vmem, size = 0x12000, scoped, tag = 'internal scratch']
  %s0 = inlined_call_operand.vmem [shape: bf16[32,256], index: 0, kind: input, shape index: {}]
  %s1 = inlined_call_operand.vmem [shape: bf16[256,128], index: 1, kind: input, shape index: {}]
  %s2 = inlined_call_operand.vmem [shape: f32[32,128], index: 2, kind: output, shape index: {0}]
  %s3 = inlined_call_operand.vmem [shape: f32[1,1,128], index: 3, kind: output, shape index: {1}]
  %s4 = inlined_call_operand.vmem [shape: f32[1,1,128], index: 4, kind: output, shape index: {2}]
  %5 = xla_tuple %s2, %s3, %s4
  %s6 = sld [smem:[#allocation0]]
  $region34: #{discriminator_forward.10} parent=0
    _
  %s8 = ssub.s32 1, %s6
  %s9 = scalar_select 0, %s8, %s6
  // Predicated region
  $region2: #{discriminator_forward.10} parent=0 // pred_check
    _
  $region3: #{discriminator_forward.10} parent=0 // pred_check_branch
    %11 = sbr.rel (0) target = $region5
  $region4: #{discriminator_forward.10} parent=0 // pred_region
    _
  $region5: #{discriminator_forward.10} parent=0 // pred_fallthru
    _
  // Predicated region
  $region6: #{discriminator_forward.10} parent=0 // pred_check
    _
  $region7: #{discriminator_forward.10} parent=0 // pred_check_branch
    %13 = sbr.rel (0) target = $region9
  $region8: #{discriminator_forward.10} parent=0 // pred_region
    _
  $region9: #{discriminator_forward.10} parent=0 // pred_fallthru
    _
  %v15 = vld [vmem:[%s0] sm:$0xff]
  %v16 = vld [vmem:[%s0 + $0x8] sm:$0xff]
  %v17 = vld [vmem:[%s0 + $0x10] sm:$0xff]
  %v18 = vld [vmem:[%s0 + $0x18] sm:$0xff]
  %v19 = vld [vmem:[%s1] sm:$0xf]
  %v20 = vld [vmem:[%s1 + $0x4] sm:$0xf]
  %v21 = vld [vmem:[%s1 + $0x8] sm:$0xf]
  %v22 = vld [vmem:[%s1 + $0xc] sm:$0xf]
  %v23 = vld [vmem:[%s1 + $0x10] sm:$0xf]
  %v24 = vld [vmem:[%s1 + $0x14] sm:$0xf]
  %v25 = vld [vmem:[%s1 + $0x18] sm:$0xf]
  %v26 = vld [vmem:[%s1 + $0x1c] sm:$0xf]
  %v27 = vld [vmem:[%s1 + $0x20] sm:$0xf]
  %v28 = vld [vmem:[%s1 + $0x24] sm:$0xf]
  %v29 = vld [vmem:[%s1 + $0x28] sm:$0xf]
  %v30 = vld [vmem:[%s1 + $0x2c] sm:$0xf]
  %v31 = vld [vmem:[%s1 + $0x30] sm:$0xf]
  %v32 = vld [vmem:[%s1 + $0x34] sm:$0xf]
  %v33 = vld [vmem:[%s1 + $0x38] sm:$0xf]
  %v34 = vld [vmem:[%s1 + $0x3c] sm:$0xf]
  %v35 = vld [vmem:[%s1 + $0x40] sm:$0xf]
  %v36 = vld [vmem:[%s1 + $0x44] sm:$0xf]
  %v37 = vld [vmem:[%s1 + $0x48] sm:$0xf]
  %v38 = vld [vmem:[%s1 + $0x4c] sm:$0xf]
  %v39 = vld [vmem:[%s1 + $0x50] sm:$0xf]
  %v40 = vld [vmem:[%s1 + $0x54] sm:$0xf]
  %v41 = vld [vmem:[%s1 + $0x58] sm:$0xf]
  %v42 = vld [vmem:[%s1 + $0x5c] sm:$0xf]
  %v43 = vld [vmem:[%s1 + $0x60] sm:$0xf]
  %v44 = vld [vmem:[%s1 + $0x64] sm:$0xf]
  %v45 = vld [vmem:[%s1 + $0x68] sm:$0xf]
  %v46 = vld [vmem:[%s1 + $0x6c] sm:$0xf]
  %v47 = vld [vmem:[%s1 + $0x70] sm:$0xf]
  %v48 = vld [vmem:[%s1 + $0x74] sm:$0xf]
  %v49 = vld [vmem:[%s1 + $0x78] sm:$0xf]
  %v50 = vld [vmem:[%s1 + $0x7c] sm:$0xf]
  %v55 = vunpack.c.l.b16 %v15
  %v56 = vunpack.c.h.b16 %v15
  %v57 = vunpack.c.l.b16 %v16
  %v58 = vunpack.c.h.b16 %v16
  %v59 = vunpack.c.l.b16 %v17
  %v60 = vunpack.c.h.b16 %v17
  %v61 = vunpack.c.l.b16 %v18
  %v62 = vunpack.c.h.b16 %v18
  %v63 = vpack.c.b16 %v57, %v55
  %v64 = vpack.c.b16 %v58, %v56
  %v65 = vpack.c.b16 %v61, %v59
  %v66 = vpack.c.b16 %v62, %v60
  %v103 = vunpack.c.l.b16 %v19
  %v104 = vunpack.c.l.b16 %v20
  %v105 = vunpack.c.l.b16 %v21
  %v106 = vunpack.c.l.b16 %v22
  %v107 = vunpack.c.l.b16 %v23
  %v108 = vunpack.c.l.b16 %v24
  %v109 = vunpack.c.l.b16 %v25
  %v110 = vunpack.c.l.b16 %v26
  %v111 = vunpack.c.l.b16 %v27
  %v112 = vunpack.c.l.b16 %v28
  %v113 = vunpack.c.l.b16 %v29
  %v114 = vunpack.c.l.b16 %v30
  %v115 = vunpack.c.l.b16 %v31
  %v116 = vunpack.c.l.b16 %v32
  %v117 = vunpack.c.l.b16 %v33
  %v118 = vunpack.c.l.b16 %v34
  %v119 = vunpack.c.l.b16 %v35
  %v120 = vunpack.c.l.b16 %v36
  %v121 = vunpack.c.l.b16 %v37
  %v122 = vunpack.c.l.b16 %v38
  %v123 = vunpack.c.l.b16 %v39
  %v124 = vunpack.c.l.b16 %v40
  %v125 = vunpack.c.l.b16 %v41
  %v126 = vunpack.c.l.b16 %v42
  %v127 = vunpack.c.l.b16 %v43
  %v128 = vunpack.c.l.b16 %v44
  %v129 = vunpack.c.l.b16 %v45
  %v130 = vunpack.c.l.b16 %v46
  %v131 = vunpack.c.l.b16 %v47
  %v132 = vunpack.c.l.b16 %v48
  %v133 = vunpack.c.l.b16 %v49
  %v134 = vunpack.c.l.b16 %v50
  %v135 = vpack.c.b16 %v104, %v103
  %v136 = vpack.c.b16 %v106, %v105
  %v137 = vpack.c.b16 %v108, %v107
  %v138 = vpack.c.b16 %v110, %v109
  %v139 = vpack.c.b16 %v112, %v111
  %v140 = vpack.c.b16 %v114, %v113
  %v141 = vpack.c.b16 %v116, %v115
  %v142 = vpack.c.b16 %v118, %v117
  %v143 = vpack.c.b16 %v120, %v119
  %v144 = vpack.c.b16 %v122, %v121
  %v145 = vpack.c.b16 %v124, %v123
  %v146 = vpack.c.b16 %v126, %v125
  %v147 = vpack.c.b16 %v128, %v127
  %v148 = vpack.c.b16 %v130, %v129
  %v149 = vpack.c.b16 %v132, %v131
  %v150 = vpack.c.b16 %v134, %v133
  %167 = vmatprep.subr.bf16.mxu0 0
  %168 = vmatpush1.bf16.msra.mxu0 %v135
  %169 = vmatprep.subr.bf16.mxu0 0
  %170 = vmatpush1.bf16.msra.mxu0 %v136
  %171 = vmatprep.subr.bf16.mxu0 0
  %172 = vmatpush1.bf16.msra.mxu0 %v137
  %173 = vmatprep.subr.bf16.mxu0 0
  %174 = vmatpush1.bf16.msra.mxu0 %v138
  %175 = vmatprep.subr.bf16.mxu0 0
  %176 = vmatpush1.bf16.msra.mxu0 %v139
  %177 = vmatprep.subr.bf16.mxu0 0
  %178 = vmatpush1.bf16.msra.mxu0 %v140
  %179 = vmatprep.subr.bf16.mxu0 0
  %180 = vmatpush1.bf16.msra.mxu0 %v141
  %181 = vmatprep.subr.bf16.mxu0 0
  %182 = vmatpush1.bf16.msra.mxu0 %v142
  %183 = vmatprep.subr.bf16.mxu0 0
  %184 = vmatpush1.bf16.msra.mxu0 %v143
  %185 = vmatprep.subr.bf16.mxu0 0
  %186 = vmatpush1.bf16.msra.mxu0 %v144
  %187 = vmatprep.subr.bf16.mxu0 0
  %188 = vmatpush1.bf16.msra.mxu0 %v145
  %189 = vmatprep.subr.bf16.mxu0 0
  %190 = vmatpush1.bf16.msra.mxu0 %v146
  %191 = vmatprep.subr.bf16.mxu0 0
  %192 = vmatpush1.bf16.msra.mxu0 %v147
  %193 = vmatprep.subr.bf16.mxu0 0
  %194 = vmatpush1.bf16.msra.mxu0 %v148
  %195 = vmatprep.subr.bf16.mxu0 0
  %196 = vmatpush1.bf16.msra.mxu0 %v149
  %197 = vmatprep.subr.bf16.mxu0 0
  %198 = vmatpush1.bf16.msra.mxu0 %v150
  %199 = vmatprep.mubr.bf16.mxu0 %v64
  %200 = vmatmul.mubr.bf16.gmra.mrb[0].mxu0 %v63
  %v201 = vpop.f32.mrb[0].mxu0
  %v202 = vadd.f32 0.0, %v201
  %v203 = vpop.f32.mrb[0].mxu0
  %v204 = vpop.f32.mrb[0].mxu0
  %v205 = vadd.f32 0.0, %v204
  %v206 = vpop.f32.mrb[0].mxu0
  %207 = vmatprep.mubr.bf16.mxu0 %v66
  %208 = vmatmul.mubr.bf16.gmra.mrb[0].mxu0 %v65
  %v209 = vpop.f32.mrb[0].mxu0
  %v210 = vadd.f32 0.0, %v209
  %v211 = vpop.f32.mrb[0].mxu0
  %v212 = vpop.f32.mrb[0].mxu0
  %v213 = vadd.f32 0.0, %v212
  %v214 = vpop.f32.mrb[0].mxu0
  %215 = vdwg.mxu0
  %216 = vst [vmem:[%s2] sm:$0xff] %v202
  %217 = vst [vmem:[%s2 + $0x8] sm:$0xff] %v205
  %218 = vst [vmem:[%s2 + $0x10] sm:$0xff] %v210
  %219 = vst [vmem:[%s2 + $0x18] sm:$0xff] %v213
  %v220 = vadd.f32 %v202, %v205
  %v221 = vadd.f32 %v220, %v210
  %v222 = vadd.f32 %v221, %v213
  %v223 = vrot.slane %v222, 4
  %v224 = vadd.f32 %v222, %v223
  %v225 = vrot.slane %v224, 2
  %v226 = vadd.f32 %v224, %v225
  %v227 = vrot.slane %v226, 1
  %v228 = vadd.f32 %v226, %v227
  %229 = vst [vmem:[%s3] sm:$0x1] %v228
  %v230 = vmul.f32 %v202, %v202
  %v231 = vmul.f32 %v205, %v205
  %v232 = vmul.f32 %v210, %v210
  %v233 = vmul.f32 %v213, %v213
  %v234 = vadd.f32 %v230, %v231
  %v235 = vadd.f32 %v234, %v232
  %v236 = vadd.f32 %v235, %v233
  %v237 = vrot.slane %v236, 4
  %v238 = vadd.f32 %v236, %v237
  %v239 = vrot.slane %v238, 2
  %v240 = vadd.f32 %v238, %v239
  %v241 = vrot.slane %v240, 1
  %v242 = vadd.f32 %v240, %v241
  %243 = vst [vmem:[%s4] sm:$0x1] %v242
  // Predicated region
  $region10: #{discriminator_forward.10} parent=0 // pred_check
    _
  $region11: #{discriminator_forward.10} parent=0 // pred_check_branch
    %245 = sbr.rel (0) target = $region13
  $region12: #{discriminator_forward.10} parent=0 // pred_region
    _
  $region13: #{discriminator_forward.10} parent=0 // pred_fallthru
    _
  // Predicated region
  $region14: #{discriminator_forward.10} parent=0 // pred_check
    _
  $region15: #{discriminator_forward.10} parent=0 // pred_check_branch
    %247 = sbr.rel (0) target = $region17
  $region16: #{discriminator_forward.10} parent=0 // pred_region
    _
  $region17: #{discriminator_forward.10} parent=0 // pred_fallthru
    _
  // Predicated region
  $region18: #{discriminator_forward.10} parent=0 // pred_check
    _
  $region19: #{discriminator_forward.10} parent=0 // pred_check_branch
    %249 = sbr.rel (0) target = $region21
  $region20: #{discriminator_forward.10} parent=0 // pred_region
    _
  $region21: #{discriminator_forward.10} parent=0 // pred_fallthru
    _
  // Predicated region
  $region22: #{discriminator_forward.10} parent=0 // pred_check
    _
  $region23: #{discriminator_forward.10} parent=0 // pred_check_branch
    %251 = sbr.rel (0) target = $region25
  $region24: #{discriminator_forward.10} parent=0 // pred_region
    _
  $region25: #{discriminator_forward.10} parent=0 // pred_fallthru
    _
  // Predicated region
  $region26: #{discriminator_forward.10} parent=0 // pred_check
    _
  $region27: #{discriminator_forward.10} parent=0 // pred_check_branch
    %253 = sbr.rel (0) target = $region29
  $region28: #{discriminator_forward.10} parent=0 // pred_region
    _
  $region29: #{discriminator_forward.10} parent=0 // pred_fallthru
    _
  // Predicated region
  $region30: #{discriminator_forward.10} parent=0 // pred_check
    _
  $region31: #{discriminator_forward.10} parent=0 // pred_check_branch
    %255 = sbr.rel (0) target = $region33
  $region32: #{discriminator_forward.10} parent=0 // pred_region
    _
  $region33: #{discriminator_forward.10} parent=0 // pred_fallthru
    _

// kernel: discriminator_forward.11
$region0: #{discriminator_forward.11}
  #allocation0 [shape = 'u32[]', space=smem, size = 0x4, offset = 0x4, fixed_abs, tag = 'smem constant byte address 0x4 - core index']
  #allocation1 [shape = 'u32[144,128]{1,0:T(1,128)}', space=vmem, size = 0x12000, scoped, tag = 'internal scratch']
  %s0 = inlined_call_operand.vmem [shape: f32[32,128], index: 0, kind: input, shape index: {}]
  %s1 = inlined_call_operand.vmem [shape: f32[1,128], index: 1, kind: input, shape index: {}]
  %s2 = inlined_call_operand.vmem [shape: f32[1,128], index: 2, kind: input, shape index: {}]
  %s3 = inlined_call_operand.vmem [shape: bf16[32,128], index: 3, kind: output, shape index: {}]
  %s4 = sld [smem:[#allocation0]]
  $region22: #{discriminator_forward.11} parent=0
    _
  %s6 = ssub.s32 1, %s4
  %s7 = scalar_select 0, %s6, %s4
  // Predicated region
  $region2: #{discriminator_forward.11} parent=0 // pred_check
    _
  $region3: #{discriminator_forward.11} parent=0 // pred_check_branch
    %9 = sbr.rel (0) target = $region5
  $region4: #{discriminator_forward.11} parent=0 // pred_region
    _
  $region5: #{discriminator_forward.11} parent=0 // pred_fallthru
    _
  // Predicated region
  $region6: #{discriminator_forward.11} parent=0 // pred_check
    _
  $region7: #{discriminator_forward.11} parent=0 // pred_check_branch
    %11 = sbr.rel (0) target = $region9
  $region8: #{discriminator_forward.11} parent=0 // pred_region
    _
  $region9: #{discriminator_forward.11} parent=0 // pred_fallthru
    _
  // Predicated region
  $region10: #{discriminator_forward.11} parent=0 // pred_check
    _
  $region11: #{discriminator_forward.11} parent=0 // pred_check_branch
    %13 = sbr.rel (0) target = $region13
  $region12: #{discriminator_forward.11} parent=0 // pred_region
    _
  $region13: #{discriminator_forward.11} parent=0 // pred_fallthru
    _
  %v14 = vld [vmem:[%s0] sm:$0xff]
  %v15 = vld [vmem:[%s0 + $0x8] sm:$0xff]
  %v16 = vld [vmem:[%s0 + $0x10] sm:$0xff]
  %v17 = vld [vmem:[%s0 + $0x18] sm:$0xff]
  %v18 = vld [vmem:[%s1] sm:$0x1]
  %v20 = vlaneseq
  %v21 = vshrl.u32 %v20, 7
  %v22 = vsub.s32 0, %v21
  %v23 = vrot.slane %v18, %v22
  %v25 = vmul.f32 %v14, %v23
  %v26 = vmul.f32 %v15, %v23
  %v27 = vmul.f32 %v16, %v23
  %v28 = vmul.f32 %v17, %v23
  %v29 = vld [vmem:[%s2] sm:$0x1]
  %v31 = vlaneseq
  %v32 = vshrl.u32 %v31, 7
  %v33 = vsub.s32 0, %v32
  %v34 = vrot.slane %v29, %v33
  %v36 = vadd.f32 %v25, %v34
  %v37 = vadd.f32 %v26, %v34
  %v38 = vadd.f32 %v27, %v34
  %v39 = vadd.f32 %v28, %v34
  %vm40 = vcmp.gt.f32.partialorder %v36, 0.0
  %vm41 = vcmp.gt.f32.partialorder %v37, 0.0
  %vm42 = vcmp.gt.f32.partialorder %v38, 0.0
  %vm43 = vcmp.gt.f32.partialorder %v39, 0.0
  %v44 = vmul.f32 %v36, 0.2
  %v45 = vmul.f32 %v37, 0.2
  %v46 = vmul.f32 %v38, 0.2
  %v47 = vmul.f32 %v39, 0.2
  %v48 = vsel %vm40, %v36, %v44
  %v49 = vsel %vm41, %v37, %v45
  %v50 = vsel %vm42, %v38, %v46
  %v51 = vsel %vm43, %v39, %v47
  %v52 = vpack.c.bf16 %v49, %v48
  %v53 = vpack.c.bf16 %v51, %v50
  %v56 = vunpack.c.l.b16 %v52
  %v57 = vunpack.c.h.b16 %v52
  %v58 = vunpack.c.l.b16 %v53
  %v59 = vunpack.c.h.b16 %v53
  %v60 = vpack.c.b16 %v56, %v56
  %v61 = vpack.c.b16 %v57, %v57
  %v62 = vpack.c.b16 %v58, %v58
  %v63 = vpack.c.b16 %v59, %v59
  %68 = vst [vmem:[%s3] sm:$0xf] %v60
  %69 = vst [vmem:[%s3 + $0x4] sm:$0xf] %v61
  %70 = vst [vmem:[%s3 + $0x8] sm:$0xf] %v62
  %71 = vst [vmem:[%s3 + $0xc] sm:$0xf] %v63
  // Predicated region
  $region14: #{discriminator_forward.11} parent=0 // pred_check
    _
  $region15: #{discriminator_forward.11} parent=0 // pred_check_branch
    %73 = sbr.rel (0) target = $region17
  $region16: #{discriminator_forward.11} parent=0 // pred_region
    _
  $region17: #{discriminator_forward.11} parent=0 // pred_fallthru
    _
  // Predicated region
  $region18: #{discriminator_forward.11} parent=0 // pred_check
    _
  $region19: #{discriminator_forward.11} parent=0 // pred_check_branch
    %75 = sbr.rel (0) target = $region21
  $region20: #{discriminator_forward.11} parent=0 // pred_region
    _
  $region21: #{discriminator_forward.11} parent=0 // pred_fallthru
    _

// kernel: discriminator_forward.12
$region0: #{discriminator_forward.12}
  #allocation0 [shape = 'u32[]', space=smem, size = 0x4, offset = 0x4, fixed_abs, tag = 'smem constant byte address 0x4 - core index']
  #allocation1 [shape = 'u32[144,128]{1,0:T(1,128)}', space=vmem, size = 0x12000, scoped, tag = 'internal scratch']
  %s0 = inlined_call_operand.vmem [shape: bf16[8,512], index: 0, kind: input, shape index: {}]
  %s1 = inlined_call_operand.vmem [shape: bf16[512,128], index: 1, kind: input, shape index: {}]
  %s2 = inlined_call_operand.vmem [shape: f32[8,128], index: 2, kind: output, shape index: {0}]
  %s3 = inlined_call_operand.vmem [shape: f32[1,1,128], index: 3, kind: output, shape index: {1}]
  %s4 = inlined_call_operand.vmem [shape: f32[1,1,128], index: 4, kind: output, shape index: {2}]
  %5 = xla_tuple %s2, %s3, %s4
  %s6 = sld [smem:[#allocation0]]
  $region34: #{discriminator_forward.12} parent=0
    _
  %s8 = ssub.s32 1, %s6
  %s9 = scalar_select 0, %s8, %s6
  // Predicated region
  $region2: #{discriminator_forward.12} parent=0 // pred_check
    _
  $region3: #{discriminator_forward.12} parent=0 // pred_check_branch
    %11 = sbr.rel (0) target = $region5
  $region4: #{discriminator_forward.12} parent=0 // pred_region
    _
  $region5: #{discriminator_forward.12} parent=0 // pred_fallthru
    _
  // Predicated region
  $region6: #{discriminator_forward.12} parent=0 // pred_check
    _
  $region7: #{discriminator_forward.12} parent=0 // pred_check_branch
    %13 = sbr.rel (0) target = $region9
  $region8: #{discriminator_forward.12} parent=0 // pred_region
    _
  $region9: #{discriminator_forward.12} parent=0 // pred_fallthru
    _
  %v15 = vld [vmem:[%s0] sm:$0xff]
  %v16 = vld [vmem:[%s0 + $0x8] sm:$0xff]
  %v17 = vld [vmem:[%s1] sm:$0xf]
  %v18 = vld [vmem:[%s1 + $0x4] sm:$0xf]
  %v19 = vld [vmem:[%s1 + $0x8] sm:$0xf]
  %v20 = vld [vmem:[%s1 + $0xc] sm:$0xf]
  %v21 = vld [vmem:[%s1 + $0x10] sm:$0xf]
  %v22 = vld [vmem:[%s1 + $0x14] sm:$0xf]
  %v23 = vld [vmem:[%s1 + $0x18] sm:$0xf]
  %v24 = vld [vmem:[%s1 + $0x1c] sm:$0xf]
  %v25 = vld [vmem:[%s1 + $0x20] sm:$0xf]
  %v26 = vld [vmem:[%s1 + $0x24] sm:$0xf]
  %v27 = vld [vmem:[%s1 + $0x28] sm:$0xf]
  %v28 = vld [vmem:[%s1 + $0x2c] sm:$0xf]
  %v29 = vld [vmem:[%s1 + $0x30] sm:$0xf]
  %v30 = vld [vmem:[%s1 + $0x34] sm:$0xf]
  %v31 = vld [vmem:[%s1 + $0x38] sm:$0xf]
  %v32 = vld [vmem:[%s1 + $0x3c] sm:$0xf]
  %v33 = vld [vmem:[%s1 + $0x40] sm:$0xf]
  %v34 = vld [vmem:[%s1 + $0x44] sm:$0xf]
  %v35 = vld [vmem:[%s1 + $0x48] sm:$0xf]
  %v36 = vld [vmem:[%s1 + $0x4c] sm:$0xf]
  %v37 = vld [vmem:[%s1 + $0x50] sm:$0xf]
  %v38 = vld [vmem:[%s1 + $0x54] sm:$0xf]
  %v39 = vld [vmem:[%s1 + $0x58] sm:$0xf]
  %v40 = vld [vmem:[%s1 + $0x5c] sm:$0xf]
  %v41 = vld [vmem:[%s1 + $0x60] sm:$0xf]
  %v42 = vld [vmem:[%s1 + $0x64] sm:$0xf]
  %v43 = vld [vmem:[%s1 + $0x68] sm:$0xf]
  %v44 = vld [vmem:[%s1 + $0x6c] sm:$0xf]
  %v45 = vld [vmem:[%s1 + $0x70] sm:$0xf]
  %v46 = vld [vmem:[%s1 + $0x74] sm:$0xf]
  %v47 = vld [vmem:[%s1 + $0x78] sm:$0xf]
  %v48 = vld [vmem:[%s1 + $0x7c] sm:$0xf]
  %v49 = vld [vmem:[%s1 + $0x80] sm:$0xf]
  %v50 = vld [vmem:[%s1 + $0x84] sm:$0xf]
  %v51 = vld [vmem:[%s1 + $0x88] sm:$0xf]
  %v52 = vld [vmem:[%s1 + $0x8c] sm:$0xf]
  %v53 = vld [vmem:[%s1 + $0x90] sm:$0xf]
  %v54 = vld [vmem:[%s1 + $0x94] sm:$0xf]
  %v55 = vld [vmem:[%s1 + $0x98] sm:$0xf]
  %v56 = vld [vmem:[%s1 + $0x9c] sm:$0xf]
  %v57 = vld [vmem:[%s1 + $0xa0] sm:$0xf]
  %v58 = vld [vmem:[%s1 + $0xa4] sm:$0xf]
  %v59 = vld [vmem:[%s1 + $0xa8] sm:$0xf]
  %v60 = vld [vmem:[%s1 + $0xac] sm:$0xf]
  %v61 = vld [vmem:[%s1 + $0xb0] sm:$0xf]
  %v62 = vld [vmem:[%s1 + $0xb4] sm:$0xf]
  %v63 = vld [vmem:[%s1 + $0xb8] sm:$0xf]
  %v64 = vld [vmem:[%s1 + $0xbc] sm:$0xf]
  %v65 = vld [vmem:[%s1 + $0xc0] sm:$0xf]
  %v66 = vld [vmem:[%s1 + $0xc4] sm:$0xf]
  %v67 = vld [vmem:[%s1 + $0xc8] sm:$0xf]
  %v68 = vld [vmem:[%s1 + $0xcc] sm:$0xf]
  %v69 = vld [vmem:[%s1 + $0xd0] sm:$0xf]
  %v70 = vld [vmem:[%s1 + $0xd4] sm:$0xf]
  %v71 = vld [vmem:[%s1 + $0xd8] sm:$0xf]
  %v72 = vld [vmem:[%s1 + $0xdc] sm:$0xf]
  %v73 = vld [vmem:[%s1 + $0xe0] sm:$0xf]
  %v74 = vld [vmem:[%s1 + $0xe4] sm:$0xf]
  %v75 = vld [vmem:[%s1 + $0xe8] sm:$0xf]
  %v76 = vld [vmem:[%s1 + $0xec] sm:$0xf]
  %v77 = vld [vmem:[%s1 + $0xf0] sm:$0xf]
  %v78 = vld [vmem:[%s1 + $0xf4] sm:$0xf]
  %v79 = vld [vmem:[%s1 + $0xf8] sm:$0xf]
  %v80 = vld [vmem:[%s1 + $0xfc] sm:$0xf]
  %v83 = vunpack.c.l.b16 %v15
  %v84 = vunpack.c.h.b16 %v15
  %v85 = vunpack.c.l.b16 %v16
  %v86 = vunpack.c.h.b16 %v16
  %v87 = vpack.c.b16 %v83, %v83
  %v88 = vpack.c.b16 %v84, %v84
  %v89 = vpack.c.b16 %v85, %v85
  %v90 = vpack.c.b16 %v86, %v86
  %v159 = vunpack.c.l.b16 %v17
  %v160 = vunpack.c.l.b16 %v18
  %v161 = vunpack.c.l.b16 %v19
  %v162 = vunpack.c.l.b16 %v20
  %v163 = vunpack.c.l.b16 %v21
  %v164 = vunpack.c.l.b16 %v22
  %v165 = vunpack.c.l.b16 %v23
  %v166 = vunpack.c.l.b16 %v24
  %v167 = vunpack.c.l.b16 %v25
  %v168 = vunpack.c.l.b16 %v26
  %v169 = vunpack.c.l.b16 %v27
  %v170 = vunpack.c.l.b16 %v28
  %v171 = vunpack.c.l.b16 %v29
  %v172 = vunpack.c.l.b16 %v30
  %v173 = vunpack.c.l.b16 %v31
  %v174 = vunpack.c.l.b16 %v32
  %v175 = vunpack.c.l.b16 %v33
  %v176 = vunpack.c.l.b16 %v34
  %v177 = vunpack.c.l.b16 %v35
  %v178 = vunpack.c.l.b16 %v36
  %v179 = vunpack.c.l.b16 %v37
  %v180 = vunpack.c.l.b16 %v38
  %v181 = vunpack.c.l.b16 %v39
  %v182 = vunpack.c.l.b16 %v40
  %v183 = vunpack.c.l.b16 %v41
  %v184 = vunpack.c.l.b16 %v42
  %v185 = vunpack.c.l.b16 %v43
  %v186 = vunpack.c.l.b16 %v44
  %v187 = vunpack.c.l.b16 %v45
  %v188 = vunpack.c.l.b16 %v46
  %v189 = vunpack.c.l.b16 %v47
  %v190 = vunpack.c.l.b16 %v48
  %v191 = vunpack.c.l.b16 %v49
  %v192 = vunpack.c.l.b16 %v50
  %v193 = vunpack.c.l.b16 %v51
  %v194 = vunpack.c.l.b16 %v52
  %v195 = vunpack.c.l.b16 %v53
  %v196 = vunpack.c.l.b16 %v54
  %v197 = vunpack.c.l.b16 %v55
  %v198 = vunpack.c.l.b16 %v56
  %v199 = vunpack.c.l.b16 %v57
  %v200 = vunpack.c.l.b16 %v58
  %v201 = vunpack.c.l.b16 %v59
  %v202 = vunpack.c.l.b16 %v60
  %v203 = vunpack.c.l.b16 %v61
  %v204 = vunpack.c.l.b16 %v62
  %v205 = vunpack.c.l.b16 %v63
  %v206 = vunpack.c.l.b16 %v64
  %v207 = vunpack.c.l.b16 %v65
  %v208 = vunpack.c.l.b16 %v66
  %v209 = vunpack.c.l.b16 %v67
  %v210 = vunpack.c.l.b16 %v68
  %v211 = vunpack.c.l.b16 %v69
  %v212 = vunpack.c.l.b16 %v70
  %v213 = vunpack.c.l.b16 %v71
  %v214 = vunpack.c.l.b16 %v72
  %v215 = vunpack.c.l.b16 %v73
  %v216 = vunpack.c.l.b16 %v74
  %v217 = vunpack.c.l.b16 %v75
  %v218 = vunpack.c.l.b16 %v76
  %v219 = vunpack.c.l.b16 %v77
  %v220 = vunpack.c.l.b16 %v78
  %v221 = vunpack.c.l.b16 %v79
  %v222 = vunpack.c.l.b16 %v80
  %v223 = vpack.c.b16 %v160, %v159
  %v224 = vpack.c.b16 %v162, %v161
  %v225 = vpack.c.b16 %v164, %v163
  %v226 = vpack.c.b16 %v166, %v165
  %v227 = vpack.c.b16 %v168, %v167
  %v228 = vpack.c.b16 %v170, %v169
  %v229 = vpack.c.b16 %v172, %v171
  %v230 = vpack.c.b16 %v174, %v173
  %v231 = vpack.c.b16 %v176, %v175
  %v232 = vpack.c.b16 %v178, %v177
  %v233 = vpack.c.b16 %v180, %v179
  %v234 = vpack.c.b16 %v182, %v181
  %v235 = vpack.c.b16 %v184, %v183
  %v236 = vpack.c.b16 %v186, %v185
  %v237 = vpack.c.b16 %v188, %v187
  %v238 = vpack.c.b16 %v190, %v189
  %v239 = vpack.c.b16 %v192, %v191
  %v240 = vpack.c.b16 %v194, %v193
  %v241 = vpack.c.b16 %v196, %v195
  %v242 = vpack.c.b16 %v198, %v197
  %v243 = vpack.c.b16 %v200, %v199
  %v244 = vpack.c.b16 %v202, %v201
  %v245 = vpack.c.b16 %v204, %v203
  %v246 = vpack.c.b16 %v206, %v205
  %v247 = vpack.c.b16 %v208, %v207
  %v248 = vpack.c.b16 %v210, %v209
  %v249 = vpack.c.b16 %v212, %v211
  %v250 = vpack.c.b16 %v214, %v213
  %v251 = vpack.c.b16 %v216, %v215
  %v252 = vpack.c.b16 %v218, %v217
  %v253 = vpack.c.b16 %v220, %v219
  %v254 = vpack.c.b16 %v222, %v221
  %287 = vmatprep.subr.bf16.mxu0 0
  %288 = vmatpush1.bf16.msra.mxu0 %v223
  %289 = vmatprep.subr.bf16.mxu0 0
  %290 = vmatpush1.bf16.msra.mxu0 %v224
  %291 = vmatprep.subr.bf16.mxu0 0
  %292 = vmatpush1.bf16.msra.mxu0 %v225
  %293 = vmatprep.subr.bf16.mxu0 0
  %294 = vmatpush1.bf16.msra.mxu0 %v226
  %295 = vmatprep.subr.bf16.mxu0 0
  %296 = vmatpush1.bf16.msra.mxu0 %v227
  %297 = vmatprep.subr.bf16.mxu0 0
  %298 = vmatpush1.bf16.msra.mxu0 %v228
  %299 = vmatprep.subr.bf16.mxu0 0
  %300 = vmatpush1.bf16.msra.mxu0 %v229
  %301 = vmatprep.subr.bf16.mxu0 0
  %302 = vmatpush1.bf16.msra.mxu0 %v230
  %303 = vmatprep.subr.bf16.mxu0 0
  %304 = vmatpush1.bf16.msra.mxu0 %v231
  %305 = vmatprep.subr.bf16.mxu0 0
  %306 = vmatpush1.bf16.msra.mxu0 %v232
  %307 = vmatprep.subr.bf16.mxu0 0
  %308 = vmatpush1.bf16.msra.mxu0 %v233
  %309 = vmatprep.subr.bf16.mxu0 0
  %310 = vmatpush1.bf16.msra.mxu0 %v234
  %311 = vmatprep.subr.bf16.mxu0 0
  %312 = vmatpush1.bf16.msra.mxu0 %v235
  %313 = vmatprep.subr.bf16.mxu0 0
  %314 = vmatpush1.bf16.msra.mxu0 %v236
  %315 = vmatprep.subr.bf16.mxu0 0
  %316 = vmatpush1.bf16.msra.mxu0 %v237
  %317 = vmatprep.subr.bf16.mxu0 0
  %318 = vmatpush1.bf16.msra.mxu0 %v238
  %319 = vmatprep.mubr.bf16.mxu0 %v88
  %320 = vmatmul.mubr.bf16.gmra.mrb[0].mxu0 %v87
  %v321 = vpop.f32.mrb[0].mxu0
  %v322 = vadd.f32 0.0, %v321
  %v323 = vpop.f32.mrb[0].mxu0
  %v324 = vpop.f32.mrb[0].mxu0
  %v325 = vpop.f32.mrb[0].mxu0
  %326 = vdwg.mxu0
  %327 = vmatprep.subr.bf16.mxu0 0
  %328 = vmatpush1.bf16.msra.mxu0 %v239
  %329 = vmatprep.subr.bf16.mxu0 0
  %330 = vmatpush1.bf16.msra.mxu0 %v240
  %331 = vmatprep.subr.bf16.mxu0 0
  %332 = vmatpush1.bf16.msra.mxu0 %v241
  %333 = vmatprep.subr.bf16.mxu0 0
  %334 = vmatpush1.bf16.msra.mxu0 %v242
  %335 = vmatprep.subr.bf16.mxu0 0
  %336 = vmatpush1.bf16.msra.mxu0 %v243
  %337 = vmatprep.subr.bf16.mxu0 0
  %338 = vmatpush1.bf16.msra.mxu0 %v244
  %339 = vmatprep.subr.bf16.mxu0 0
  %340 = vmatpush1.bf16.msra.mxu0 %v245
  %341 = vmatprep.subr.bf16.mxu0 0
  %342 = vmatpush1.bf16.msra.mxu0 %v246
  %343 = vmatprep.subr.bf16.mxu0 0
  %344 = vmatpush1.bf16.msra.mxu0 %v247
  %345 = vmatprep.subr.bf16.mxu0 0
  %346 = vmatpush1.bf16.msra.mxu0 %v248
  %347 = vmatprep.subr.bf16.mxu0 0
  %348 = vmatpush1.bf16.msra.mxu0 %v249
  %349 = vmatprep.subr.bf16.mxu0 0
  %350 = vmatpush1.bf16.msra.mxu0 %v250
  %351 = vmatprep.subr.bf16.mxu0 0
  %352 = vmatpush1.bf16.msra.mxu0 %v251
  %353 = vmatprep.subr.bf16.mxu0 0
  %354 = vmatpush1.bf16.msra.mxu0 %v252
  %355 = vmatprep.subr.bf16.mxu0 0
  %356 = vmatpush1.bf16.msra.mxu0 %v253
  %357 = vmatprep.subr.bf16.mxu0 0
  %358 = vmatpush1.bf16.msra.mxu0 %v254
  %359 = vmatprep.mubr.bf16.mxu0 %v90
  %360 = vmatmul.mubr.bf16.gmra.mrb[0].mxu0 %v89
  %v361 = vpop.f32.mrb[0].mxu0
  %v362 = vadd.f32 %v322, %v361
  %v363 = vpop.f32.mrb[0].mxu0
  %v364 = vpop.f32.mrb[0].mxu0
  %v365 = vpop.f32.mrb[0].mxu0
  %366 = vdwg.mxu0
  %367 = vst [vmem:[%s2] sm:$0xff] %v362
  %v368 = vrot.slane %v362, 4
  %v369 = vadd.f32 %v362, %v368
  %v370 = vrot.slane %v369, 2
  %v371 = vadd.f32 %v369, %v370
  %v372 = vrot.slane %v371, 1
  %v373 = vadd.f32 %v371, %v372
  %374 = vst [vmem:[%s3] sm:$0x1] %v373
  %v375 = vmul.f32 %v362, %v362
  %v376 = vrot.slane %v375, 4
  %v377 = vadd.f32 %v375, %v376
  %v378 = vrot.slane %v377, 2
  %v379 = vadd.f32 %v377, %v378
  %v380 = vrot.slane %v379, 1
  %v381 = vadd.f32 %v379, %v380
  %382 = vst [vmem:[%s4] sm:$0x1] %v381
  // Predicated region
  $region10: #{discriminator_forward.12} parent=0 // pred_check
    _
  $region11: #{discriminator_forward.12} parent=0 // pred_check_branch
    %384 = sbr.rel (0) target = $region13
  $region12: #{discriminator_forward.12} parent=0 // pred_region
    _
  $region13: #{discriminator_forward.12} parent=0 // pred_fallthru
    _
  // Predicated region
  $region14: #{discriminator_forward.12} parent=0 // pred_check
    _
  $region15: #{discriminator_forward.12} parent=0 // pred_check_branch
    %386 = sbr.rel (0) target = $region17
  $region16: #{discriminator_forward.12} parent=0 // pred_region
    _
  $region17: #{discriminator_forward.12} parent=0 // pred_fallthru
    _
  // Predicated region
  $region18: #{discriminator_forward.12} parent=0 // pred_check
    _
  $region19: #{discriminator_forward.12} parent=0 // pred_check_branch
    %388 = sbr.rel (0) target = $region21
  $region20: #{discriminator_forward.12} parent=0 // pred_region
    _
  $region21: #{discriminator_forward.12} parent=0 // pred_fallthru
    _
  // Predicated region
  $region22: #{discriminator_forward.12} parent=0 // pred_check
    _
  $region23: #{discriminator_forward.12} parent=0 // pred_check_branch
    %390 = sbr.rel (0) target = $region25
  $region24: #{discriminator_forward.12} parent=0 // pred_region
    _
  $region25: #{discriminator_forward.12} parent=0 // pred_fallthru
    _
  // Predicated region
  $region26: #{discriminator_forward.12} parent=0 // pred_check
    _
  $region27: #{discriminator_forward.12} parent=0 // pred_check_branch
    %392 = sbr.rel (0) target = $region29
  $region28: #{discriminator_forward.12} parent=0 // pred_region
    _
  $region29: #{discriminator_forward.12} parent=0 // pred_fallthru
    _
  // Predicated region
  $region30: #{discriminator_forward.12} parent=0 // pred_check
    _
  $region31: #{discriminator_forward.12} parent=0 // pred_check_branch
    %394 = sbr.rel (0) target = $region33
  $region32: #{discriminator_forward.12} parent=0 // pred_region
    _
  $region33: #{discriminator_forward.12} parent=0 // pred_fallthru
    _

// kernel: discriminator_forward.13
$region0: #{discriminator_forward.13}
  #allocation0 [shape = 'u32[]', space=smem, size = 0x4, offset = 0x4, fixed_abs, tag = 'smem constant byte address 0x4 - core index']
  #allocation1 [shape = 'u32[144,128]{1,0:T(1,128)}', space=vmem, size = 0x12000, scoped, tag = 'internal scratch']
  %s0 = inlined_call_operand.vmem [shape: f32[8,128], index: 0, kind: input, shape index: {}]
  %s1 = inlined_call_operand.vmem [shape: f32[1,128], index: 1, kind: input, shape index: {}]
  %s2 = inlined_call_operand.vmem [shape: f32[1,128], index: 2, kind: input, shape index: {}]
  %s3 = inlined_call_operand.vmem [shape: bf16[128,128], index: 3, kind: input, shape index: {}]
  %s4 = inlined_call_operand.vmem [shape: f32[8,128], index: 4, kind: output, shape index: {}]
  %s5 = sld [smem:[#allocation0]]
  $region26: #{discriminator_forward.13} parent=0
    _
  %s7 = ssub.s32 1, %s5
  %s8 = scalar_select 0, %s7, %s5
  // Predicated region
  $region2: #{discriminator_forward.13} parent=0 // pred_check
    _
  $region3: #{discriminator_forward.13} parent=0 // pred_check_branch
    %10 = sbr.rel (0) target = $region5
  $region4: #{discriminator_forward.13} parent=0 // pred_region
    _
  $region5: #{discriminator_forward.13} parent=0 // pred_fallthru
    _
  // Predicated region
  $region6: #{discriminator_forward.13} parent=0 // pred_check
    _
  $region7: #{discriminator_forward.13} parent=0 // pred_check_branch
    %12 = sbr.rel (0) target = $region9
  $region8: #{discriminator_forward.13} parent=0 // pred_region
    _
  $region9: #{discriminator_forward.13} parent=0 // pred_fallthru
    _
  // Predicated region
  $region10: #{discriminator_forward.13} parent=0 // pred_check
    _
  $region11: #{discriminator_forward.13} parent=0 // pred_check_branch
    %14 = sbr.rel (0) target = $region13
  $region12: #{discriminator_forward.13} parent=0 // pred_region
    _
  $region13: #{discriminator_forward.13} parent=0 // pred_fallthru
    _
  // Predicated region
  $region14: #{discriminator_forward.13} parent=0 // pred_check
    _
  $region15: #{discriminator_forward.13} parent=0 // pred_check_branch
    %16 = sbr.rel (0) target = $region17
  $region16: #{discriminator_forward.13} parent=0 // pred_region
    _
  $region17: #{discriminator_forward.13} parent=0 // pred_fallthru
    _
  %v18 = vld [vmem:[%s0] sm:$0xff]
  %v19 = vld [vmem:[%s1] sm:$0x1]
  %v21 = vlaneseq
  %v22 = vshrl.u32 %v21, 7
  %v23 = vsub.s32 0, %v22
  %v24 = vrot.slane %v19, %v23
  %v26 = vmul.f32 %v18, %v24
  %v27 = vld [vmem:[%s2] sm:$0x1]
  %v29 = vlaneseq
  %v30 = vshrl.u32 %v29, 7
  %v31 = vsub.s32 0, %v30
  %v32 = vrot.slane %v27, %v31
  %v34 = vadd.f32 %v26, %v32
  %vm35 = vcmp.gt.f32.partialorder %v34, 0.0
  %v36 = vmul.f32 %v34, 0.2
  %v37 = vsel %vm35, %v34, %v36
  %v38 = vpack.c.bf16 %v37, %v37
  %v39 = vld [vmem:[%s3] sm:$0xf]
  %v40 = vld [vmem:[%s3 + $0x4] sm:$0xf]
  %v41 = vld [vmem:[%s3 + $0x8] sm:$0xf]
  %v42 = vld [vmem:[%s3 + $0xc] sm:$0xf]
  %v43 = vld [vmem:[%s3 + $0x10] sm:$0xf]
  %v44 = vld [vmem:[%s3 + $0x14] sm:$0xf]
  %v45 = vld [vmem:[%s3 + $0x18] sm:$0xf]
  %v46 = vld [vmem:[%s3 + $0x1c] sm:$0xf]
  %v47 = vld [vmem:[%s3 + $0x20] sm:$0xf]
  %v48 = vld [vmem:[%s3 + $0x24] sm:$0xf]
  %v49 = vld [vmem:[%s3 + $0x28] sm:$0xf]
  %v50 = vld [vmem:[%s3 + $0x2c] sm:$0xf]
  %v51 = vld [vmem:[%s3 + $0x30] sm:$0xf]
  %v52 = vld [vmem:[%s3 + $0x34] sm:$0xf]
  %v53 = vld [vmem:[%s3 + $0x38] sm:$0xf]
  %v54 = vld [vmem:[%s3 + $0x3c] sm:$0xf]
  %v71 = vunpack.c.l.b16 %v39
  %v72 = vunpack.c.l.b16 %v40
  %v73 = vunpack.c.l.b16 %v41
  %v74 = vunpack.c.l.b16 %v42
  %v75 = vunpack.c.l.b16 %v43
  %v76 = vunpack.c.l.b16 %v44
  %v77 = vunpack.c.l.b16 %v45
  %v78 = vunpack.c.l.b16 %v46
  %v79 = vunpack.c.l.b16 %v47
  %v80 = vunpack.c.l.b16 %v48
  %v81 = vunpack.c.l.b16 %v49
  %v82 = vunpack.c.l.b16 %v50
  %v83 = vunpack.c.l.b16 %v51
  %v84 = vunpack.c.l.b16 %v52
  %v85 = vunpack.c.l.b16 %v53
  %v86 = vunpack.c.l.b16 %v54
  %v87 = vpack.c.b16 %v72, %v71
  %v88 = vpack.c.b16 %v74, %v73
  %v89 = vpack.c.b16 %v76, %v75
  %v90 = vpack.c.b16 %v78, %v77
  %v91 = vpack.c.b16 %v80, %v79
  %v92 = vpack.c.b16 %v82, %v81
  %v93 = vpack.c.b16 %v84, %v83
  %v94 = vpack.c.b16 %v86, %v85
  %103 = vmatprep.subr.bf16.mxu0 0
  %104 = vmatpush1.bf16.msra.mxu0 %v87
  %105 = vmatprep.subr.bf16.mxu0 0
  %106 = vmatpush1.bf16.msra.mxu0 %v88
  %107 = vmatprep.subr.bf16.mxu0 0
  %108 = vmatpush1.bf16.msra.mxu0 %v89
  %109 = vmatprep.subr.bf16.mxu0 0
  %110 = vmatpush1.bf16.msra.mxu0 %v90
  %111 = vmatprep.subr.bf16.mxu0 0
  %112 = vmatpush1.bf16.msra.mxu0 %v91
  %113 = vmatprep.subr.bf16.mxu0 0
  %114 = vmatpush1.bf16.msra.mxu0 %v92
  %115 = vmatprep.subr.bf16.mxu0 0
  %116 = vmatpush1.bf16.msra.mxu0 %v93
  %117 = vmatprep.subr.bf16.mxu0 0
  %118 = vmatpush1.bf16.msra.mxu0 %v94
  %119 = vmatprep.subr.bf16.mxu0 0
  %120 = vmatpush1.bf16.msra.mxu0 0
  %121 = vmatprep.subr.bf16.mxu0 0
  %122 = vmatpush1.bf16.msra.mxu0 0
  %123 = vmatprep.subr.bf16.mxu0 0
  %124 = vmatpush1.bf16.msra.mxu0 0
  %125 = vmatprep.subr.bf16.mxu0 0
  %126 = vmatpush1.bf16.msra.mxu0 0
  %127 = vmatprep.subr.bf16.mxu0 0
  %128 = vmatpush1.bf16.msra.mxu0 0
  %129 = vmatprep.subr.bf16.mxu0 0
  %130 = vmatpush1.bf16.msra.mxu0 0
  %131 = vmatprep.subr.bf16.mxu0 0
  %132 = vmatpush1.bf16.msra.mxu0 0
  %133 = vmatprep.subr.bf16.mxu0 0
  %134 = vmatpush1.bf16.msra.mxu0 0
  %135 = vmatprep.mubr.bf16.mxu0 0
  %136 = vmatmul.mubr.bf16.gmra.mrb[0].mxu0 %v38
  %v137 = vpop.f32.mrb[0].mxu0
  %v138 = vadd.f32 0.0, %v137
  %v139 = vpop.f32.mrb[0].mxu0
  %v140 = vpop.f32.mrb[0].mxu0
  %v141 = vpop.f32.mrb[0].mxu0
  %142 = vdwg.mxu0
  %v143 = vand.u32 2147483647, %v138
  %v144 = vsub.f32 0.0, %v143
  %v145 = vmul.f32 %v144, 1.442695
  %v146 = vpow.pop %v145
  %vm147 = vcmp.ge.f32.partialorder %v138, 0.0
  %v148 = vadd.f32 %v146, 1.0
  %v149 = vrcp.pop %v148
  %v150 = vmul.f32 1.0, %v149
  %v151 = vmul.f32 %v146, %v149
  %v152 = vsel %vm147, %v150, %v151
  %153 = vst [vmem:[%s4] sm:$0xff] %v152
  // Predicated region
  $region18: #{discriminator_forward.13} parent=0 // pred_check
    _
  $region19: #{discriminator_forward.13} parent=0 // pred_check_branch
    %155 = sbr.rel (0) target = $region21
  $region20: #{discriminator_forward.13} parent=0 // pred_region
    _
  $region21: #{discriminator_forward.13} parent=0 // pred_fallthru
    _
  // Predicated region
  $region22: #{discriminator_forward.13} parent=0 // pred_check
    _
  $region23: #{discriminator_forward.13} parent=0 // pred_check_branch
    %157 = sbr.rel (0) target = $region25
  $region24: #{discriminator_forward.13} parent=0 // pred_region
    _
  $region25: #{discriminator_forward.13} parent=0 // pred_fallthru
    _

// kernel: discriminator_forward.7
$region0: #{discriminator_forward.7}
  #allocation0 [shape = 'u32[]', space=smem, size = 0x4, offset = 0x4, fixed_abs, tag = 'smem constant byte address 0x4 - core index']
  #allocation1 [shape = 'u32[144,128]{1,0:T(1,128)}', space=vmem, size = 0x12000, scoped, tag = 'internal scratch']
  %s0 = inlined_call_operand.vmem [shape: bf16[512,128], index: 0, kind: input, shape index: {}]
  %s1 = inlined_call_operand.vmem [shape: bf16[128,128], index: 1, kind: input, shape index: {}]
  %s2 = inlined_call_operand.vmem [shape: bf16[512,128], index: 2, kind: output, shape index: {}]
  %s3 = sld [smem:[#allocation0]]
  $region18: #{discriminator_forward.7} parent=0
    _
  %s5 = ssub.s32 1, %s3
  %s6 = scalar_select 0, %s5, %s3
  // Predicated region
  $region2: #{discriminator_forward.7} parent=0 // pred_check
    _
  $region3: #{discriminator_forward.7} parent=0 // pred_check_branch
    %8 = sbr.rel (0) target = $region5
  $region4: #{discriminator_forward.7} parent=0 // pred_region
    _
  $region5: #{discriminator_forward.7} parent=0 // pred_fallthru
    _
  // Predicated region
  $region6: #{discriminator_forward.7} parent=0 // pred_check
    _
  $region7: #{discriminator_forward.7} parent=0 // pred_check_branch
    %10 = sbr.rel (0) target = $region9
  $region8: #{discriminator_forward.7} parent=0 // pred_region
    _
  $region9: #{discriminator_forward.7} parent=0 // pred_fallthru
    _
  %v12 = vld [vmem:[%s0] sm:$0xf]
  %v13 = vld [vmem:[%s0 + $0x4] sm:$0xf]
  %v14 = vld [vmem:[%s0 + $0x8] sm:$0xf]
  %v15 = vld [vmem:[%s0 + $0xc] sm:$0xf]
  %v16 = vld [vmem:[%s0 + $0x10] sm:$0xf]
  %v17 = vld [vmem:[%s0 + $0x14] sm:$0xf]
  %v18 = vld [vmem:[%s0 + $0x18] sm:$0xf]
  %v19 = vld [vmem:[%s0 + $0x1c] sm:$0xf]
  %v20 = vld [vmem:[%s0 + $0x20] sm:$0xf]
  %v21 = vld [vmem:[%s0 + $0x24] sm:$0xf]
  %v22 = vld [vmem:[%s0 + $0x28] sm:$0xf]
  %v23 = vld [vmem:[%s0 + $0x2c] sm:$0xf]
  %v24 = vld [vmem:[%s0 + $0x30] sm:$0xf]
  %v25 = vld [vmem:[%s0 + $0x34] sm:$0xf]
  %v26 = vld [vmem:[%s0 + $0x38] sm:$0xf]
  %v27 = vld [vmem:[%s0 + $0x3c] sm:$0xf]
  %v28 = vld [vmem:[%s0 + $0x40] sm:$0xf]
  %v29 = vld [vmem:[%s0 + $0x44] sm:$0xf]
  %v30 = vld [vmem:[%s0 + $0x48] sm:$0xf]
  %v31 = vld [vmem:[%s0 + $0x4c] sm:$0xf]
  %v32 = vld [vmem:[%s0 + $0x50] sm:$0xf]
  %v33 = vld [vmem:[%s0 + $0x54] sm:$0xf]
  %v34 = vld [vmem:[%s0 + $0x58] sm:$0xf]
  %v35 = vld [vmem:[%s0 + $0x5c] sm:$0xf]
  %v36 = vld [vmem:[%s0 + $0x60] sm:$0xf]
  %v37 = vld [vmem:[%s0 + $0x64] sm:$0xf]
  %v38 = vld [vmem:[%s0 + $0x68] sm:$0xf]
  %v39 = vld [vmem:[%s0 + $0x6c] sm:$0xf]
  %v40 = vld [vmem:[%s0 + $0x70] sm:$0xf]
  %v41 = vld [vmem:[%s0 + $0x74] sm:$0xf]
  %v42 = vld [vmem:[%s0 + $0x78] sm:$0xf]
  %v43 = vld [vmem:[%s0 + $0x7c] sm:$0xf]
  %v44 = vld [vmem:[%s0 + $0x80] sm:$0xf]
  %v45 = vld [vmem:[%s0 + $0x84] sm:$0xf]
  %v46 = vld [vmem:[%s0 + $0x88] sm:$0xf]
  %v47 = vld [vmem:[%s0 + $0x8c] sm:$0xf]
  %v48 = vld [vmem:[%s0 + $0x90] sm:$0xf]
  %v49 = vld [vmem:[%s0 + $0x94] sm:$0xf]
  %v50 = vld [vmem:[%s0 + $0x98] sm:$0xf]
  %v51 = vld [vmem:[%s0 + $0x9c] sm:$0xf]
  %v52 = vld [vmem:[%s0 + $0xa0] sm:$0xf]
  %v53 = vld [vmem:[%s0 + $0xa4] sm:$0xf]
  %v54 = vld [vmem:[%s0 + $0xa8] sm:$0xf]
  %v55 = vld [vmem:[%s0 + $0xac] sm:$0xf]
  %v56 = vld [vmem:[%s0 + $0xb0] sm:$0xf]
  %v57 = vld [vmem:[%s0 + $0xb4] sm:$0xf]
  %v58 = vld [vmem:[%s0 + $0xb8] sm:$0xf]
  %v59 = vld [vmem:[%s0 + $0xbc] sm:$0xf]
  %v60 = vld [vmem:[%s0 + $0xc0] sm:$0xf]
  %v61 = vld [vmem:[%s0 + $0xc4] sm:$0xf]
  %v62 = vld [vmem:[%s0 + $0xc8] sm:$0xf]
  %v63 = vld [vmem:[%s0 + $0xcc] sm:$0xf]
  %v64 = vld [vmem:[%s0 + $0xd0] sm:$0xf]
  %v65 = vld [vmem:[%s0 + $0xd4] sm:$0xf]
  %v66 = vld [vmem:[%s0 + $0xd8] sm:$0xf]
  %v67 = vld [vmem:[%s0 + $0xdc] sm:$0xf]
  %v68 = vld [vmem:[%s0 + $0xe0] sm:$0xf]
  %v69 = vld [vmem:[%s0 + $0xe4] sm:$0xf]
  %v70 = vld [vmem:[%s0 + $0xe8] sm:$0xf]
  %v71 = vld [vmem:[%s0 + $0xec] sm:$0xf]
  %v72 = vld [vmem:[%s0 + $0xf0] sm:$0xf]
  %v73 = vld [vmem:[%s0 + $0xf4] sm:$0xf]
  %v74 = vld [vmem:[%s0 + $0xf8] sm:$0xf]
  %v75 = vld [vmem:[%s0 + $0xfc] sm:$0xf]
  %v76 = vld [vmem:[%s1] sm:$0xf]
  %v77 = vld [vmem:[%s1 + $0x4] sm:$0xf]
  %v78 = vld [vmem:[%s1 + $0x8] sm:$0xf]
  %v79 = vld [vmem:[%s1 + $0xc] sm:$0xf]
  %v80 = vld [vmem:[%s1 + $0x10] sm:$0xf]
  %v81 = vld [vmem:[%s1 + $0x14] sm:$0xf]
  %v82 = vld [vmem:[%s1 + $0x18] sm:$0xf]
  %v83 = vld [vmem:[%s1 + $0x1c] sm:$0xf]
  %v84 = vld [vmem:[%s1 + $0x20] sm:$0xf]
  %v85 = vld [vmem:[%s1 + $0x24] sm:$0xf]
  %v86 = vld [vmem:[%s1 + $0x28] sm:$0xf]
  %v87 = vld [vmem:[%s1 + $0x2c] sm:$0xf]
  %v88 = vld [vmem:[%s1 + $0x30] sm:$0xf]
  %v89 = vld [vmem:[%s1 + $0x34] sm:$0xf]
  %v90 = vld [vmem:[%s1 + $0x38] sm:$0xf]
  %v91 = vld [vmem:[%s1 + $0x3c] sm:$0xf]
  %v156 = vunpack.c.l.b16 %v12
  %v157 = vunpack.c.l.b16 %v13
  %v158 = vunpack.c.l.b16 %v14
  %v159 = vunpack.c.l.b16 %v15
  %v160 = vunpack.c.l.b16 %v16
  %v161 = vunpack.c.l.b16 %v17
  %v162 = vunpack.c.l.b16 %v18
  %v163 = vunpack.c.l.b16 %v19
  %v164 = vunpack.c.l.b16 %v20
  %v165 = vunpack.c.l.b16 %v21
  %v166 = vunpack.c.l.b16 %v22
  %v167 = vunpack.c.l.b16 %v23
  %v168 = vunpack.c.l.b16 %v24
  %v169 = vunpack.c.l.b16 %v25
  %v170 = vunpack.c.l.b16 %v26
  %v171 = vunpack.c.l.b16 %v27
  %v172 = vunpack.c.l.b16 %v28
  %v173 = vunpack.c.l.b16 %v29
  %v174 = vunpack.c.l.b16 %v30
  %v175 = vunpack.c.l.b16 %v31
  %v176 = vunpack.c.l.b16 %v32
  %v177 = vunpack.c.l.b16 %v33
  %v178 = vunpack.c.l.b16 %v34
  %v179 = vunpack.c.l.b16 %v35
  %v180 = vunpack.c.l.b16 %v36
  %v181 = vunpack.c.l.b16 %v37
  %v182 = vunpack.c.l.b16 %v38
  %v183 = vunpack.c.l.b16 %v39
  %v184 = vunpack.c.l.b16 %v40
  %v185 = vunpack.c.l.b16 %v41
  %v186 = vunpack.c.l.b16 %v42
  %v187 = vunpack.c.l.b16 %v43
  %v188 = vunpack.c.l.b16 %v44
  %v189 = vunpack.c.l.b16 %v45
  %v190 = vunpack.c.l.b16 %v46
  %v191 = vunpack.c.l.b16 %v47
  %v192 = vunpack.c.l.b16 %v48
  %v193 = vunpack.c.l.b16 %v49
  %v194 = vunpack.c.l.b16 %v50
  %v195 = vunpack.c.l.b16 %v51
  %v196 = vunpack.c.l.b16 %v52
  %v197 = vunpack.c.l.b16 %v53
  %v198 = vunpack.c.l.b16 %v54
  %v199 = vunpack.c.l.b16 %v55
  %v200 = vunpack.c.l.b16 %v56
  %v201 = vunpack.c.l.b16 %v57
  %v202 = vunpack.c.l.b16 %v58
  %v203 = vunpack.c.l.b16 %v59
  %v204 = vunpack.c.l.b16 %v60
  %v205 = vunpack.c.l.b16 %v61
  %v206 = vunpack.c.l.b16 %v62
  %v207 = vunpack.c.l.b16 %v63
  %v208 = vunpack.c.l.b16 %v64
  %v209 = vunpack.c.l.b16 %v65
  %v210 = vunpack.c.l.b16 %v66
  %v211 = vunpack.c.l.b16 %v67
  %v212 = vunpack.c.l.b16 %v68
  %v213 = vunpack.c.l.b16 %v69
  %v214 = vunpack.c.l.b16 %v70
  %v215 = vunpack.c.l.b16 %v71
  %v216 = vunpack.c.l.b16 %v72
  %v217 = vunpack.c.l.b16 %v73
  %v218 = vunpack.c.l.b16 %v74
  %v219 = vunpack.c.l.b16 %v75
  %v220 = vpack.c.b16 %v157, %v156
  %v221 = vpack.c.b16 %v159, %v158
  %v222 = vpack.c.b16 %v161, %v160
  %v223 = vpack.c.b16 %v163, %v162
  %v224 = vpack.c.b16 %v165, %v164
  %v225 = vpack.c.b16 %v167, %v166
  %v226 = vpack.c.b16 %v169, %v168
  %v227 = vpack.c.b16 %v171, %v170
  %v228 = vpack.c.b16 %v173, %v172
  %v229 = vpack.c.b16 %v175, %v174
  %v230 = vpack.c.b16 %v177, %v176
  %v231 = vpack.c.b16 %v179, %v178
  %v232 = vpack.c.b16 %v181, %v180
  %v233 = vpack.c.b16 %v183, %v182
  %v234 = vpack.c.b16 %v185, %v184
  %v235 = vpack.c.b16 %v187, %v186
  %v236 = vpack.c.b16 %v189, %v188
  %v237 = vpack.c.b16 %v191, %v190
  %v238 = vpack.c.b16 %v193, %v192
  %v239 = vpack.c.b16 %v195, %v194
  %v240 = vpack.c.b16 %v197, %v196
  %v241 = vpack.c.b16 %v199, %v198
  %v242 = vpack.c.b16 %v201, %v200
  %v243 = vpack.c.b16 %v203, %v202
  %v244 = vpack.c.b16 %v205, %v204
  %v245 = vpack.c.b16 %v207, %v206
  %v246 = vpack.c.b16 %v209, %v208
  %v247 = vpack.c.b16 %v211, %v210
  %v248 = vpack.c.b16 %v213, %v212
  %v249 = vpack.c.b16 %v215, %v214
  %v250 = vpack.c.b16 %v217, %v216
  %v251 = vpack.c.b16 %v219, %v218
  %v300 = vunpack.c.l.b16 %v76
  %v301 = vunpack.c.l.b16 %v77
  %v302 = vunpack.c.l.b16 %v78
  %v303 = vunpack.c.l.b16 %v79
  %v304 = vunpack.c.l.b16 %v80
  %v305 = vunpack.c.l.b16 %v81
  %v306 = vunpack.c.l.b16 %v82
  %v307 = vunpack.c.l.b16 %v83
  %v308 = vunpack.c.l.b16 %v84
  %v309 = vunpack.c.l.b16 %v85
  %v310 = vunpack.c.l.b16 %v86
  %v311 = vunpack.c.l.b16 %v87
  %v312 = vunpack.c.l.b16 %v88
  %v313 = vunpack.c.l.b16 %v89
  %v314 = vunpack.c.l.b16 %v90
  %v315 = vunpack.c.l.b16 %v91
  %v316 = vpack.c.b16 %v301, %v300
  %v317 = vpack.c.b16 %v303, %v302
  %v318 = vpack.c.b16 %v305, %v304
  %v319 = vpack.c.b16 %v307, %v306
  %v320 = vpack.c.b16 %v309, %v308
  %v321 = vpack.c.b16 %v311, %v310
  %v322 = vpack.c.b16 %v313, %v312
  %v323 = vpack.c.b16 %v315, %v314
  %332 = vmatprep.subr.bf16.mxu0 0
  %333 = vmatpush1.bf16.msra.mxu0 %v316
  %334 = vmatprep.subr.bf16.mxu0 0
  %335 = vmatpush1.bf16.msra.mxu0 %v317
  %336 = vmatprep.subr.bf16.mxu0 0
  %337 = vmatpush1.bf16.msra.mxu0 %v318
  %338 = vmatprep.subr.bf16.mxu0 0
  %339 = vmatpush1.bf16.msra.mxu0 %v319
  %340 = vmatprep.subr.bf16.mxu0 0
  %341 = vmatpush1.bf16.msra.mxu0 %v320
  %342 = vmatprep.subr.bf16.mxu0 0
  %343 = vmatpush1.bf16.msra.mxu0 %v321
  %344 = vmatprep.subr.bf16.mxu0 0
  %345 = vmatpush1.bf16.msra.mxu0 %v322
  %346 = vmatprep.subr.bf16.mxu0 0
  %347 = vmatpush1.bf16.msra.mxu0 %v323
  %348 = vmatprep.subr.bf16.mxu0 0
  %349 = vmatpush1.bf16.msra.mxu0 0
  %350 = vmatprep.subr.bf16.mxu0 0
  %351 = vmatpush1.bf16.msra.mxu0 0
  %352 = vmatprep.subr.bf16.mxu0 0
  %353 = vmatpush1.bf16.msra.mxu0 0
  %354 = vmatprep.subr.bf16.mxu0 0
  %355 = vmatpush1.bf16.msra.mxu0 0
  %356 = vmatprep.subr.bf16.mxu0 0
  %357 = vmatpush1.bf16.msra.mxu0 0
  %358 = vmatprep.subr.bf16.mxu0 0
  %359 = vmatpush1.bf16.msra.mxu0 0
  %360 = vmatprep.subr.bf16.mxu0 0
  %361 = vmatpush1.bf16.msra.mxu0 0
  %362 = vmatprep.subr.bf16.mxu0 0
  %363 = vmatpush1.bf16.msra.mxu0 0
  %364 = vmatprep.mubr.bf16.mxu0 0
  %365 = vmatmul.mubr.bf16.gmra.mrb[0].mxu0 %v220
  %v366 = vpop.f32.mrb[0].mxu0
  %v367 = vadd.f32 0.0, %v366
  %v368 = vpop.f32.mrb[0].mxu0
  %v369 = vpop.f32.mrb[0].mxu0
  %v370 = vadd.f32 0.0, %v369
  %v371 = vpop.f32.mrb[0].mxu0
  %372 = vmatprep.mubr.bf16.mxu0 0
  %373 = vmatmul.mubr.bf16.gmra.mrb[0].mxu0 %v221
  %v374 = vpop.f32.mrb[0].mxu0
  %v375 = vadd.f32 0.0, %v374
  %v376 = vpop.f32.mrb[0].mxu0
  %v377 = vpop.f32.mrb[0].mxu0
  %v378 = vadd.f32 0.0, %v377
  %v379 = vpop.f32.mrb[0].mxu0
  %380 = vmatprep.mubr.bf16.mxu0 0
  %381 = vmatmul.mubr.bf16.gmra.mrb[0].mxu0 %v222
  %v382 = vpop.f32.mrb[0].mxu0
  %v383 = vadd.f32 0.0, %v382
  %v384 = vpop.f32.mrb[0].mxu0
  %v385 = vpop.f32.mrb[0].mxu0
  %v386 = vadd.f32 0.0, %v385
  %v387 = vpop.f32.mrb[0].mxu0
  %388 = vmatprep.mubr.bf16.mxu0 0
  %389 = vmatmul.mubr.bf16.gmra.mrb[0].mxu0 %v223
  %v390 = vpop.f32.mrb[0].mxu0
  %v391 = vadd.f32 0.0, %v390
  %v392 = vpop.f32.mrb[0].mxu0
  %v393 = vpop.f32.mrb[0].mxu0
  %v394 = vadd.f32 0.0, %v393
  %v395 = vpop.f32.mrb[0].mxu0
  %396 = vmatprep.mubr.bf16.mxu0 0
  %397 = vmatmul.mubr.bf16.gmra.mrb[0].mxu0 %v224
  %v398 = vpop.f32.mrb[0].mxu0
  %v399 = vadd.f32 0.0, %v398
  %v400 = vpop.f32.mrb[0].mxu0
  %v401 = vpop.f32.mrb[0].mxu0
  %v402 = vadd.f32 0.0, %v401
  %v403 = vpop.f32.mrb[0].mxu0
  %404 = vmatprep.mubr.bf16.mxu0 0
  %405 = vmatmul.mubr.bf16.gmra.mrb[0].mxu0 %v225
  %v406 = vpop.f32.mrb[0].mxu0
  %v407 = vadd.f32 0.0, %v406
  %v408 = vpop.f32.mrb[0].mxu0
  %v409 = vpop.f32.mrb[0].mxu0
  %v410 = vadd.f32 0.0, %v409
  %v411 = vpop.f32.mrb[0].mxu0
  %412 = vmatprep.mubr.bf16.mxu0 0
  %413 = vmatmul.mubr.bf16.gmra.mrb[0].mxu0 %v226
  %v414 = vpop.f32.mrb[0].mxu0
  %v415 = vadd.f32 0.0, %v414
  %v416 = vpop.f32.mrb[0].mxu0
  %v417 = vpop.f32.mrb[0].mxu0
  %v418 = vadd.f32 0.0, %v417
  %v419 = vpop.f32.mrb[0].mxu0
  %420 = vmatprep.mubr.bf16.mxu0 0
  %421 = vmatmul.mubr.bf16.gmra.mrb[0].mxu0 %v227
  %v422 = vpop.f32.mrb[0].mxu0
  %v423 = vadd.f32 0.0, %v422
  %v424 = vpop.f32.mrb[0].mxu0
  %v425 = vpop.f32.mrb[0].mxu0
  %v426 = vadd.f32 0.0, %v425
  %v427 = vpop.f32.mrb[0].mxu0
  %428 = vmatprep.mubr.bf16.mxu0 0
  %429 = vmatmul.mubr.bf16.gmra.mrb[0].mxu0 %v228
  %v430 = vpop.f32.mrb[0].mxu0
  %v431 = vadd.f32 0.0, %v430
  %v432 = vpop.f32.mrb[0].mxu0
  %v433 = vpop.f32.mrb[0].mxu0
  %v434 = vadd.f32 0.0, %v433
  %v435 = vpop.f32.mrb[0].mxu0
  %436 = vmatprep.mubr.bf16.mxu0 0
  %437 = vmatmul.mubr.bf16.gmra.mrb[0].mxu0 %v229
  %v438 = vpop.f32.mrb[0].mxu0
  %v439 = vadd.f32 0.0, %v438
  %v440 = vpop.f32.mrb[0].mxu0
  %v441 = vpop.f32.mrb[0].mxu0
  %v442 = vadd.f32 0.0, %v441
  %v443 = vpop.f32.mrb[0].mxu0
  %444 = vmatprep.mubr.bf16.mxu0 0
  %445 = vmatmul.mubr.bf16.gmra.mrb[0].mxu0 %v230
  %v446 = vpop.f32.mrb[0].mxu0
  %v447 = vadd.f32 0.0, %v446
  %v448 = vpop.f32.mrb[0].mxu0
  %v449 = vpop.f32.mrb[0].mxu0
  %v450 = vadd.f32 0.0, %v449
  %v451 = vpop.f32.mrb[0].mxu0
  %452 = vmatprep.mubr.bf16.mxu0 0
  %453 = vmatmul.mubr.bf16.gmra.mrb[0].mxu0 %v231
  %v454 = vpop.f32.mrb[0].mxu0
  %v455 = vadd.f32 0.0, %v454
  %v456 = vpop.f32.mrb[0].mxu0
  %v457 = vpop.f32.mrb[0].mxu0
  %v458 = vadd.f32 0.0, %v457
  %v459 = vpop.f32.mrb[0].mxu0
  %460 = vmatprep.mubr.bf16.mxu0 0
  %461 = vmatmul.mubr.bf16.gmra.mrb[0].mxu0 %v232
  %v462 = vpop.f32.mrb[0].mxu0
  %v463 = vadd.f32 0.0, %v462
  %v464 = vpop.f32.mrb[0].mxu0
  %v465 = vpop.f32.mrb[0].mxu0
  %v466 = vadd.f32 0.0, %v465
  %v467 = vpop.f32.mrb[0].mxu0
  %468 = vmatprep.mubr.bf16.mxu0 0
  %469 = vmatmul.mubr.bf16.gmra.mrb[0].mxu0 %v233
  %v470 = vpop.f32.mrb[0].mxu0
  %v471 = vadd.f32 0.0, %v470
  %v472 = vpop.f32.mrb[0].mxu0
  %v473 = vpop.f32.mrb[0].mxu0
  %v474 = vadd.f32 0.0, %v473
  %v475 = vpop.f32.mrb[0].mxu0
  %476 = vmatprep.mubr.bf16.mxu0 0
  %477 = vmatmul.mubr.bf16.gmra.mrb[0].mxu0 %v234
  %v478 = vpop.f32.mrb[0].mxu0
  %v479 = vadd.f32 0.0, %v478
  %v480 = vpop.f32.mrb[0].mxu0
  %v481 = vpop.f32.mrb[0].mxu0
  %v482 = vadd.f32 0.0, %v481
  %v483 = vpop.f32.mrb[0].mxu0
  %484 = vmatprep.mubr.bf16.mxu0 0
  %485 = vmatmul.mubr.bf16.gmra.mrb[0].mxu0 %v235
  %v486 = vpop.f32.mrb[0].mxu0
  %v487 = vadd.f32 0.0, %v486
  %v488 = vpop.f32.mrb[0].mxu0
  %v489 = vpop.f32.mrb[0].mxu0
  %v490 = vadd.f32 0.0, %v489
  %v491 = vpop.f32.mrb[0].mxu0
  %492 = vmatprep.mubr.bf16.mxu0 0
  %493 = vmatmul.mubr.bf16.gmra.mrb[0].mxu0 %v236
  %v494 = vpop.f32.mrb[0].mxu0
  %v495 = vadd.f32 0.0, %v494
  %v496 = vpop.f32.mrb[0].mxu0
  %v497 = vpop.f32.mrb[0].mxu0
  %v498 = vadd.f32 0.0, %v497
  %v499 = vpop.f32.mrb[0].mxu0
  %500 = vmatprep.mubr.bf16.mxu0 0
  %501 = vmatmul.mubr.bf16.gmra.mrb[0].mxu0 %v237
  %v502 = vpop.f32.mrb[0].mxu0
  %v503 = vadd.f32 0.0, %v502
  %v504 = vpop.f32.mrb[0].mxu0
  %v505 = vpop.f32.mrb[0].mxu0
  %v506 = vadd.f32 0.0, %v505
  %v507 = vpop.f32.mrb[0].mxu0
  %508 = vmatprep.mubr.bf16.mxu0 0
  %509 = vmatmul.mubr.bf16.gmra.mrb[0].mxu0 %v238
  %v510 = vpop.f32.mrb[0].mxu0
  %v511 = vadd.f32 0.0, %v510
  %v512 = vpop.f32.mrb[0].mxu0
  %v513 = vpop.f32.mrb[0].mxu0
  %v514 = vadd.f32 0.0, %v513
  %v515 = vpop.f32.mrb[0].mxu0
  %516 = vmatprep.mubr.bf16.mxu0 0
  %517 = vmatmul.mubr.bf16.gmra.mrb[0].mxu0 %v239
  %v518 = vpop.f32.mrb[0].mxu0
  %v519 = vadd.f32 0.0, %v518
  %v520 = vpop.f32.mrb[0].mxu0
  %v521 = vpop.f32.mrb[0].mxu0
  %v522 = vadd.f32 0.0, %v521
  %v523 = vpop.f32.mrb[0].mxu0
  %524 = vmatprep.mubr.bf16.mxu0 0
  %525 = vmatmul.mubr.bf16.gmra.mrb[0].mxu0 %v240
  %v526 = vpop.f32.mrb[0].mxu0
  %v527 = vadd.f32 0.0, %v526
  %v528 = vpop.f32.mrb[0].mxu0
  %v529 = vpop.f32.mrb[0].mxu0
  %v530 = vadd.f32 0.0, %v529
  %v531 = vpop.f32.mrb[0].mxu0
  %532 = vmatprep.mubr.bf16.mxu0 0
  %533 = vmatmul.mubr.bf16.gmra.mrb[0].mxu0 %v241
  %v534 = vpop.f32.mrb[0].mxu0
  %v535 = vadd.f32 0.0, %v534
  %v536 = vpop.f32.mrb[0].mxu0
  %v537 = vpop.f32.mrb[0].mxu0
  %v538 = vadd.f32 0.0, %v537
  %v539 = vpop.f32.mrb[0].mxu0
  %540 = vmatprep.mubr.bf16.mxu0 0
  %541 = vmatmul.mubr.bf16.gmra.mrb[0].mxu0 %v242
  %v542 = vpop.f32.mrb[0].mxu0
  %v543 = vadd.f32 0.0, %v542
  %v544 = vpop.f32.mrb[0].mxu0
  %v545 = vpop.f32.mrb[0].mxu0
  %v546 = vadd.f32 0.0, %v545
  %v547 = vpop.f32.mrb[0].mxu0
  %548 = vmatprep.mubr.bf16.mxu0 0
  %549 = vmatmul.mubr.bf16.gmra.mrb[0].mxu0 %v243
  %v550 = vpop.f32.mrb[0].mxu0
  %v551 = vadd.f32 0.0, %v550
  %v552 = vpop.f32.mrb[0].mxu0
  %v553 = vpop.f32.mrb[0].mxu0
  %v554 = vadd.f32 0.0, %v553
  %v555 = vpop.f32.mrb[0].mxu0
  %556 = vmatprep.mubr.bf16.mxu0 0
  %557 = vmatmul.mubr.bf16.gmra.mrb[0].mxu0 %v244
  %v558 = vpop.f32.mrb[0].mxu0
  %v559 = vadd.f32 0.0, %v558
  %v560 = vpop.f32.mrb[0].mxu0
  %v561 = vpop.f32.mrb[0].mxu0
  %v562 = vadd.f32 0.0, %v561
  %v563 = vpop.f32.mrb[0].mxu0
  %564 = vmatprep.mubr.bf16.mxu0 0
  %565 = vmatmul.mubr.bf16.gmra.mrb[0].mxu0 %v245
  %v566 = vpop.f32.mrb[0].mxu0
  %v567 = vadd.f32 0.0, %v566
  %v568 = vpop.f32.mrb[0].mxu0
  %v569 = vpop.f32.mrb[0].mxu0
  %v570 = vadd.f32 0.0, %v569
  %v571 = vpop.f32.mrb[0].mxu0
  %572 = vmatprep.mubr.bf16.mxu0 0
  %573 = vmatmul.mubr.bf16.gmra.mrb[0].mxu0 %v246
  %v574 = vpop.f32.mrb[0].mxu0
  %v575 = vadd.f32 0.0, %v574
  %v576 = vpop.f32.mrb[0].mxu0
  %v577 = vpop.f32.mrb[0].mxu0
  %v578 = vadd.f32 0.0, %v577
  %v579 = vpop.f32.mrb[0].mxu0
  %580 = vmatprep.mubr.bf16.mxu0 0
  %581 = vmatmul.mubr.bf16.gmra.mrb[0].mxu0 %v247
  %v582 = vpop.f32.mrb[0].mxu0
  %v583 = vadd.f32 0.0, %v582
  %v584 = vpop.f32.mrb[0].mxu0
  %v585 = vpop.f32.mrb[0].mxu0
  %v586 = vadd.f32 0.0, %v585
  %v587 = vpop.f32.mrb[0].mxu0
  %588 = vmatprep.mubr.bf16.mxu0 0
  %589 = vmatmul.mubr.bf16.gmra.mrb[0].mxu0 %v248
  %v590 = vpop.f32.mrb[0].mxu0
  %v591 = vadd.f32 0.0, %v590
  %v592 = vpop.f32.mrb[0].mxu0
  %v593 = vpop.f32.mrb[0].mxu0
  %v594 = vadd.f32 0.0, %v593
  %v595 = vpop.f32.mrb[0].mxu0
  %596 = vmatprep.mubr.bf16.mxu0 0
  %597 = vmatmul.mubr.bf16.gmra.mrb[0].mxu0 %v249
  %v598 = vpop.f32.mrb[0].mxu0
  %v599 = vadd.f32 0.0, %v598
  %v600 = vpop.f32.mrb[0].mxu0
  %v601 = vpop.f32.mrb[0].mxu0
  %v602 = vadd.f32 0.0, %v601
  %v603 = vpop.f32.mrb[0].mxu0
  %604 = vmatprep.mubr.bf16.mxu0 0
  %605 = vmatmul.mubr.bf16.gmra.mrb[0].mxu0 %v250
  %v606 = vpop.f32.mrb[0].mxu0
  %v607 = vadd.f32 0.0, %v606
  %v608 = vpop.f32.mrb[0].mxu0
  %v609 = vpop.f32.mrb[0].mxu0
  %v610 = vadd.f32 0.0, %v609
  %v611 = vpop.f32.mrb[0].mxu0
  %612 = vmatprep.mubr.bf16.mxu0 0
  %613 = vmatmul.mubr.bf16.gmra.mrb[0].mxu0 %v251
  %v614 = vpop.f32.mrb[0].mxu0
  %v615 = vadd.f32 0.0, %v614
  %v616 = vpop.f32.mrb[0].mxu0
  %v617 = vpop.f32.mrb[0].mxu0
  %v618 = vadd.f32 0.0, %v617
  %v619 = vpop.f32.mrb[0].mxu0
  %620 = vdwg.mxu0
  %vm621 = vcmp.gt.f32.partialorder %v367, 0.0
  %vm622 = vcmp.gt.f32.partialorder %v370, 0.0
  %vm623 = vcmp.gt.f32.partialorder %v375, 0.0
  %vm624 = vcmp.gt.f32.partialorder %v378, 0.0
  %vm625 = vcmp.gt.f32.partialorder %v383, 0.0
  %vm626 = vcmp.gt.f32.partialorder %v386, 0.0
  %vm627 = vcmp.gt.f32.partialorder %v391, 0.0
  %vm628 = vcmp.gt.f32.partialorder %v394, 0.0
  %vm629 = vcmp.gt.f32.partialorder %v399, 0.0
  %vm630 = vcmp.gt.f32.partialorder %v402, 0.0
  %vm631 = vcmp.gt.f32.partialorder %v407, 0.0
  %vm632 = vcmp.gt.f32.partialorder %v410, 0.0
  %vm633 = vcmp.gt.f32.partialorder %v415, 0.0
  %vm634 = vcmp.gt.f32.partialorder %v418, 0.0
  %vm635 = vcmp.gt.f32.partialorder %v423, 0.0
  %vm636 = vcmp.gt.f32.partialorder %v426, 0.0
  %vm637 = vcmp.gt.f32.partialorder %v431, 0.0
  %vm638 = vcmp.gt.f32.partialorder %v434, 0.0
  %vm639 = vcmp.gt.f32.partialorder %v439, 0.0
  %vm640 = vcmp.gt.f32.partialorder %v442, 0.0
  %vm641 = vcmp.gt.f32.partialorder %v447, 0.0
  %vm642 = vcmp.gt.f32.partialorder %v450, 0.0
  %vm643 = vcmp.gt.f32.partialorder %v455, 0.0
  %vm644 = vcmp.gt.f32.partialorder %v458, 0.0
  %vm645 = vcmp.gt.f32.partialorder %v463, 0.0
  %vm646 = vcmp.gt.f32.partialorder %v466, 0.0
  %vm647 = vcmp.gt.f32.partialorder %v471, 0.0
  %vm648 = vcmp.gt.f32.partialorder %v474, 0.0
  %vm649 = vcmp.gt.f32.partialorder %v479, 0.0
  %vm650 = vcmp.gt.f32.partialorder %v482, 0.0
  %vm651 = vcmp.gt.f32.partialorder %v487, 0.0
  %vm652 = vcmp.gt.f32.partialorder %v490, 0.0
  %vm653 = vcmp.gt.f32.partialorder %v495, 0.0
  %vm654 = vcmp.gt.f32.partialorder %v498, 0.0
  %vm655 = vcmp.gt.f32.partialorder %v503, 0.0
  %vm656 = vcmp.gt.f32.partialorder %v506, 0.0
  %vm657 = vcmp.gt.f32.partialorder %v511, 0.0
  %vm658 = vcmp.gt.f32.partialorder %v514, 0.0
  %vm659 = vcmp.gt.f32.partialorder %v519, 0.0
  %vm660 = vcmp.gt.f32.partialorder %v522, 0.0
  %vm661 = vcmp.gt.f32.partialorder %v527, 0.0
  %vm662 = vcmp.gt.f32.partialorder %v530, 0.0
  %vm663 = vcmp.gt.f32.partialorder %v535, 0.0
  %vm664 = vcmp.gt.f32.partialorder %v538, 0.0
  %vm665 = vcmp.gt.f32.partialorder %v543, 0.0
  %vm666 = vcmp.gt.f32.partialorder %v546, 0.0
  %vm667 = vcmp.gt.f32.partialorder %v551, 0.0
  %vm668 = vcmp.gt.f32.partialorder %v554, 0.0
  %vm669 = vcmp.gt.f32.partialorder %v559, 0.0
  %vm670 = vcmp.gt.f32.partialorder %v562, 0.0
  %vm671 = vcmp.gt.f32.partialorder %v567, 0.0
  %vm672 = vcmp.gt.f32.partialorder %v570, 0.0
  %vm673 = vcmp.gt.f32.partialorder %v575, 0.0
  %vm674 = vcmp.gt.f32.partialorder %v578, 0.0
  %vm675 = vcmp.gt.f32.partialorder %v583, 0.0
  %vm676 = vcmp.gt.f32.partialorder %v586, 0.0
  %vm677 = vcmp.gt.f32.partialorder %v591, 0.0
  %vm678 = vcmp.gt.f32.partialorder %v594, 0.0
  %vm679 = vcmp.gt.f32.partialorder %v599, 0.0
  %vm680 = vcmp.gt.f32.partialorder %v602, 0.0
  %vm681 = vcmp.gt.f32.partialorder %v607, 0.0
  %vm682 = vcmp.gt.f32.partialorder %v610, 0.0
  %vm683 = vcmp.gt.f32.partialorder %v615, 0.0
  %vm684 = vcmp.gt.f32.partialorder %v618, 0.0
  %v685 = vmul.f32 %v367, 0.2
  %v686 = vmul.f32 %v370, 0.2
  %v687 = vmul.f32 %v375, 0.2
  %v688 = vmul.f32 %v378, 0.2
  %v689 = vmul.f32 %v383, 0.2
  %v690 = vmul.f32 %v386, 0.2
  %v691 = vmul.f32 %v391, 0.2
  %v692 = vmul.f32 %v394, 0.2
  %v693 = vmul.f32 %v399, 0.2
  %v694 = vmul.f32 %v402, 0.2
  %v695 = vmul.f32 %v407, 0.2
  %v696 = vmul.f32 %v410, 0.2
  %v697 = vmul.f32 %v415, 0.2
  %v698 = vmul.f32 %v418, 0.2
  %v699 = vmul.f32 %v423, 0.2
  %v700 = vmul.f32 %v426, 0.2
  %v701 = vmul.f32 %v431, 0.2
  %v702 = vmul.f32 %v434, 0.2
  %v703 = vmul.f32 %v439, 0.2
  %v704 = vmul.f32 %v442, 0.2
  %v705 = vmul.f32 %v447, 0.2
  %v706 = vmul.f32 %v450, 0.2
  %v707 = vmul.f32 %v455, 0.2
  %v708 = vmul.f32 %v458, 0.2
  %v709 = vmul.f32 %v463, 0.2
  %v710 = vmul.f32 %v466, 0.2
  %v711 = vmul.f32 %v471, 0.2
  %v712 = vmul.f32 %v474, 0.2
  %v713 = vmul.f32 %v479, 0.2
  %v714 = vmul.f32 %v482, 0.2
  %v715 = vmul.f32 %v487, 0.2
  %v716 = vmul.f32 %v490, 0.2
  %v717 = vmul.f32 %v495, 0.2
  %v718 = vmul.f32 %v498, 0.2
  %v719 = vmul.f32 %v503, 0.2
  %v720 = vmul.f32 %v506, 0.2
  %v721 = vmul.f32 %v511, 0.2
  %v722 = vmul.f32 %v514, 0.2
  %v723 = vmul.f32 %v519, 0.2
  %v724 = vmul.f32 %v522, 0.2
  %v725 = vmul.f32 %v527, 0.2
  %v726 = vmul.f32 %v530, 0.2
  %v727 = vmul.f32 %v535, 0.2
  %v728 = vmul.f32 %v538, 0.2
  %v729 = vmul.f32 %v543, 0.2
  %v730 = vmul.f32 %v546, 0.2
  %v731 = vmul.f32 %v551, 0.2
  %v732 = vmul.f32 %v554, 0.2
  %v733 = vmul.f32 %v559, 0.2
  %v734 = vmul.f32 %v562, 0.2
  %v735 = vmul.f32 %v567, 0.2
  %v736 = vmul.f32 %v570, 0.2
  %v737 = vmul.f32 %v575, 0.2
  %v738 = vmul.f32 %v578, 0.2
  %v739 = vmul.f32 %v583, 0.2
  %v740 = vmul.f32 %v586, 0.2
  %v741 = vmul.f32 %v591, 0.2
  %v742 = vmul.f32 %v594, 0.2
  %v743 = vmul.f32 %v599, 0.2
  %v744 = vmul.f32 %v602, 0.2
  %v745 = vmul.f32 %v607, 0.2
  %v746 = vmul.f32 %v610, 0.2
  %v747 = vmul.f32 %v615, 0.2
  %v748 = vmul.f32 %v618, 0.2
  %v749 = vsel %vm621, %v367, %v685
  %v750 = vsel %vm622, %v370, %v686
  %v751 = vsel %vm623, %v375, %v687
  %v752 = vsel %vm624, %v378, %v688
  %v753 = vsel %vm625, %v383, %v689
  %v754 = vsel %vm626, %v386, %v690
  %v755 = vsel %vm627, %v391, %v691
  %v756 = vsel %vm628, %v394, %v692
  %v757 = vsel %vm629, %v399, %v693
  %v758 = vsel %vm630, %v402, %v694
  %v759 = vsel %vm631, %v407, %v695
  %v760 = vsel %vm632, %v410, %v696
  %v761 = vsel %vm633, %v415, %v697
  %v762 = vsel %vm634, %v418, %v698
  %v763 = vsel %vm635, %v423, %v699
  %v764 = vsel %vm636, %v426, %v700
  %v765 = vsel %vm637, %v431, %v701
  %v766 = vsel %vm638, %v434, %v702
  %v767 = vsel %vm639, %v439, %v703
  %v768 = vsel %vm640, %v442, %v704
  %v769 = vsel %vm641, %v447, %v705
  %v770 = vsel %vm642, %v450, %v706
  %v771 = vsel %vm643, %v455, %v707
  %v772 = vsel %vm644, %v458, %v708
  %v773 = vsel %vm645, %v463, %v709
  %v774 = vsel %vm646, %v466, %v710
  %v775 = vsel %vm647, %v471, %v711
  %v776 = vsel %vm648, %v474, %v712
  %v777 = vsel %vm649, %v479, %v713
  %v778 = vsel %vm650, %v482, %v714
  %v779 = vsel %vm651, %v487, %v715
  %v780 = vsel %vm652, %v490, %v716
  %v781 = vsel %vm653, %v495, %v717
  %v782 = vsel %vm654, %v498, %v718
  %v783 = vsel %vm655, %v503, %v719
  %v784 = vsel %vm656, %v506, %v720
  %v785 = vsel %vm657, %v511, %v721
  %v786 = vsel %vm658, %v514, %v722
  %v787 = vsel %vm659, %v519, %v723
  %v788 = vsel %vm660, %v522, %v724
  %v789 = vsel %vm661, %v527, %v725
  %v790 = vsel %vm662, %v530, %v726
  %v791 = vsel %vm663, %v535, %v727
  %v792 = vsel %vm664, %v538, %v728
  %v793 = vsel %vm665, %v543, %v729
  %v794 = vsel %vm666, %v546, %v730
  %v795 = vsel %vm667, %v551, %v731
  %v796 = vsel %vm668, %v554, %v732
  %v797 = vsel %vm669, %v559, %v733
  %v798 = vsel %vm670, %v562, %v734
  %v799 = vsel %vm671, %v567, %v735
  %v800 = vsel %vm672, %v570, %v736
  %v801 = vsel %vm673, %v575, %v737
  %v802 = vsel %vm674, %v578, %v738
  %v803 = vsel %vm675, %v583, %v739
  %v804 = vsel %vm676, %v586, %v740
  %v805 = vsel %vm677, %v591, %v741
  %v806 = vsel %vm678, %v594, %v742
  %v807 = vsel %vm679, %v599, %v743
  %v808 = vsel %vm680, %v602, %v744
  %v809 = vsel %vm681, %v607, %v745
  %v810 = vsel %vm682, %v610, %v746
  %v811 = vsel %vm683, %v615, %v747
  %v812 = vsel %vm684, %v618, %v748
  %v813 = vpack.c.bf16 %v750, %v749
  %v814 = vpack.c.bf16 %v752, %v751
  %v815 = vpack.c.bf16 %v754, %v753
  %v816 = vpack.c.bf16 %v756, %v755
  %v817 = vpack.c.bf16 %v758, %v757
  %v818 = vpack.c.bf16 %v760, %v759
  %v819 = vpack.c.bf16 %v762, %v761
  %v820 = vpack.c.bf16 %v764, %v763
  %v821 = vpack.c.bf16 %v766, %v765
  %v822 = vpack.c.bf16 %v768, %v767
  %v823 = vpack.c.bf16 %v770, %v769
  %v824 = vpack.c.bf16 %v772, %v771
  %v825 = vpack.c.bf16 %v774, %v773
  %v826 = vpack.c.bf16 %v776, %v775
  %v827 = vpack.c.bf16 %v778, %v777
  %v828 = vpack.c.bf16 %v780, %v779
  %v829 = vpack.c.bf16 %v782, %v781
  %v830 = vpack.c.bf16 %v784, %v783
  %v831 = vpack.c.bf16 %v786, %v785
  %v832 = vpack.c.bf16 %v788, %v787
  %v833 = vpack.c.bf16 %v790, %v789
  %v834 = vpack.c.bf16 %v792, %v791
  %v835 = vpack.c.bf16 %v794, %v793
  %v836 = vpack.c.bf16 %v796, %v795
  %v837 = vpack.c.bf16 %v798, %v797
  %v838 = vpack.c.bf16 %v800, %v799
  %v839 = vpack.c.bf16 %v802, %v801
  %v840 = vpack.c.bf16 %v804, %v803
  %v841 = vpack.c.bf16 %v806, %v805
  %v842 = vpack.c.bf16 %v808, %v807
  %v843 = vpack.c.bf16 %v810, %v809
  %v844 = vpack.c.bf16 %v812, %v811
  %v877 = vunpack.c.l.b16 %v813
  %v878 = vunpack.c.h.b16 %v813
  %v879 = vunpack.c.l.b16 %v814
  %v880 = vunpack.c.h.b16 %v814
  %v881 = vunpack.c.l.b16 %v815
  %v882 = vunpack.c.h.b16 %v815
  %v883 = vunpack.c.l.b16 %v816
  %v884 = vunpack.c.h.b16 %v816
  %v885 = vunpack.c.l.b16 %v817
  %v886 = vunpack.c.h.b16 %v817
  %v887 = vunpack.c.l.b16 %v818
  %v888 = vunpack.c.h.b16 %v818
  %v889 = vunpack.c.l.b16 %v819
  %v890 = vunpack.c.h.b16 %v819
  %v891 = vunpack.c.l.b16 %v820
  %v892 = vunpack.c.h.b16 %v820
  %v893 = vunpack.c.l.b16 %v821
  %v894 = vunpack.c.h.b16 %v821
  %v895 = vunpack.c.l.b16 %v822
  %v896 = vunpack.c.h.b16 %v822
  %v897 = vunpack.c.l.b16 %v823
  %v898 = vunpack.c.h.b16 %v823
  %v899 = vunpack.c.l.b16 %v824
  %v900 = vunpack.c.h.b16 %v824
  %v901 = vunpack.c.l.b16 %v825
  %v902 = vunpack.c.h.b16 %v825
  %v903 = vunpack.c.l.b16 %v826
  %v904 = vunpack.c.h.b16 %v826
  %v905 = vunpack.c.l.b16 %v827
  %v906 = vunpack.c.h.b16 %v827
  %v907 = vunpack.c.l.b16 %v828
  %v908 = vunpack.c.h.b16 %v828
  %v909 = vunpack.c.l.b16 %v829
  %v910 = vunpack.c.h.b16 %v829
  %v911 = vunpack.c.l.b16 %v830
  %v912 = vunpack.c.h.b16 %v830
  %v913 = vunpack.c.l.b16 %v831
  %v914 = vunpack.c.h.b16 %v831
  %v915 = vunpack.c.l.b16 %v832
  %v916 = vunpack.c.h.b16 %v832
  %v917 = vunpack.c.l.b16 %v833
  %v918 = vunpack.c.h.b16 %v833
  %v919 = vunpack.c.l.b16 %v834
  %v920 = vunpack.c.h.b16 %v834
  %v921 = vunpack.c.l.b16 %v835
  %v922 = vunpack.c.h.b16 %v835
  %v923 = vunpack.c.l.b16 %v836
  %v924 = vunpack.c.h.b16 %v836
  %v925 = vunpack.c.l.b16 %v837
  %v926 = vunpack.c.h.b16 %v837
  %v927 = vunpack.c.l.b16 %v838
  %v928 = vunpack.c.h.b16 %v838
  %v929 = vunpack.c.l.b16 %v839
  %v930 = vunpack.c.h.b16 %v839
  %v931 = vunpack.c.l.b16 %v840
  %v932 = vunpack.c.h.b16 %v840
  %v933 = vunpack.c.l.b16 %v841
  %v934 = vunpack.c.h.b16 %v841
  %v935 = vunpack.c.l.b16 %v842
  %v936 = vunpack.c.h.b16 %v842
  %v937 = vunpack.c.l.b16 %v843
  %v938 = vunpack.c.h.b16 %v843
  %v939 = vunpack.c.l.b16 %v844
  %v940 = vunpack.c.h.b16 %v844
  %v941 = vpack.c.b16 %v877, %v877
  %v942 = vpack.c.b16 %v878, %v878
  %v943 = vpack.c.b16 %v879, %v879
  %v944 = vpack.c.b16 %v880, %v880
  %v945 = vpack.c.b16 %v881, %v881
  %v946 = vpack.c.b16 %v882, %v882
  %v947 = vpack.c.b16 %v883, %v883
  %v948 = vpack.c.b16 %v884, %v884
  %v949 = vpack.c.b16 %v885, %v885
  %v950 = vpack.c.b16 %v886, %v886
  %v951 = vpack.c.b16 %v887, %v887
  %v952 = vpack.c.b16 %v888, %v888
  %v953 = vpack.c.b16 %v889, %v889
  %v954 = vpack.c.b16 %v890, %v890
  %v955 = vpack.c.b16 %v891, %v891
  %v956 = vpack.c.b16 %v892, %v892
  %v957 = vpack.c.b16 %v893, %v893
  %v958 = vpack.c.b16 %v894, %v894
  %v959 = vpack.c.b16 %v895, %v895
  %v960 = vpack.c.b16 %v896, %v896
  %v961 = vpack.c.b16 %v897, %v897
  %v962 = vpack.c.b16 %v898, %v898
  %v963 = vpack.c.b16 %v899, %v899
  %v964 = vpack.c.b16 %v900, %v900
  %v965 = vpack.c.b16 %v901, %v901
  %v966 = vpack.c.b16 %v902, %v902
  %v967 = vpack.c.b16 %v903, %v903
  %v968 = vpack.c.b16 %v904, %v904
  %v969 = vpack.c.b16 %v905, %v905
  %v970 = vpack.c.b16 %v906, %v906
  %v971 = vpack.c.b16 %v907, %v907
  %v972 = vpack.c.b16 %v908, %v908
  %v973 = vpack.c.b16 %v909, %v909
  %v974 = vpack.c.b16 %v910, %v910
  %v975 = vpack.c.b16 %v911, %v911
  %v976 = vpack.c.b16 %v912, %v912
  %v977 = vpack.c.b16 %v913, %v913
  %v978 = vpack.c.b16 %v914, %v914
  %v979 = vpack.c.b16 %v915, %v915
  %v980 = vpack.c.b16 %v916, %v916
  %v981 = vpack.c.b16 %v917, %v917
  %v982 = vpack.c.b16 %v918, %v918
  %v983 = vpack.c.b16 %v919, %v919
  %v984 = vpack.c.b16 %v920, %v920
  %v985 = vpack.c.b16 %v921, %v921
  %v986 = vpack.c.b16 %v922, %v922
  %v987 = vpack.c.b16 %v923, %v923
  %v988 = vpack.c.b16 %v924, %v924
  %v989 = vpack.c.b16 %v925, %v925
  %v990 = vpack.c.b16 %v926, %v926
  %v991 = vpack.c.b16 %v927, %v927
  %v992 = vpack.c.b16 %v928, %v928
  %v993 = vpack.c.b16 %v929, %v929
  %v994 = vpack.c.b16 %v930, %v930
  %v995 = vpack.c.b16 %v931, %v931
  %v996 = vpack.c.b16 %v932, %v932
  %v997 = vpack.c.b16 %v933, %v933
  %v998 = vpack.c.b16 %v934, %v934
  %v999 = vpack.c.b16 %v935, %v935
  %v1000 = vpack.c.b16 %v936, %v936
  %v1001 = vpack.c.b16 %v937, %v937
  %v1002 = vpack.c.b16 %v938, %v938
  %v1003 = vpack.c.b16 %v939, %v939
  %v1004 = vpack.c.b16 %v940, %v940
  %1069 = vst [vmem:[%s2] sm:$0xf] %v941
  %1070 = vst [vmem:[%s2 + $0x4] sm:$0xf] %v942
  %1071 = vst [vmem:[%s2 + $0x8] sm:$0xf] %v943
  %1072 = vst [vmem:[%s2 + $0xc] sm:$0xf] %v944
  %1073 = vst [vmem:[%s2 + $0x10] sm:$0xf] %v945
  %1074 = vst [vmem:[%s2 + $0x14] sm:$0xf] %v946
  %1075 = vst [vmem:[%s2 + $0x18] sm:$0xf] %v947
  %1076 = vst [vmem:[%s2 + $0x1c] sm:$0xf] %v948
  %1077 = vst [vmem:[%s2 + $0x20] sm:$0xf] %v949
  %1078 = vst [vmem:[%s2 + $0x24] sm:$0xf] %v950
  %1079 = vst [vmem:[%s2 + $0x28] sm:$0xf] %v951
  %1080 = vst [vmem:[%s2 + $0x2c] sm:$0xf] %v952
  %1081 = vst [vmem:[%s2 + $0x30] sm:$0xf] %v953
  %1082 = vst [vmem:[%s2 + $0x34] sm:$0xf] %v954
  %1083 = vst [vmem:[%s2 + $0x38] sm:$0xf] %v955
  %1084 = vst [vmem:[%s2 + $0x3c] sm:$0xf] %v956
  %1085 = vst [vmem:[%s2 + $0x40] sm:$0xf] %v957
  %1086 = vst [vmem:[%s2 + $0x44] sm:$0xf] %v958
  %1087 = vst [vmem:[%s2 + $0x48] sm:$0xf] %v959
  %1088 = vst [vmem:[%s2 + $0x4c] sm:$0xf] %v960
  %1089 = vst [vmem:[%s2 + $0x50] sm:$0xf] %v961
  %1090 = vst [vmem:[%s2 + $0x54] sm:$0xf] %v962
  %1091 = vst [vmem:[%s2 + $0x58] sm:$0xf] %v963
  %1092 = vst [vmem:[%s2 + $0x5c] sm:$0xf] %v964
  %1093 = vst [vmem:[%s2 + $0x60] sm:$0xf] %v965
  %1094 = vst [vmem:[%s2 + $0x64] sm:$0xf] %v966
  %1095 = vst [vmem:[%s2 + $0x68] sm:$0xf] %v967
  %1096 = vst [vmem:[%s2 + $0x6c] sm:$0xf] %v968
  %1097 = vst [vmem:[%s2 + $0x70] sm:$0xf] %v969
  %1098 = vst [vmem:[%s2 + $0x74] sm:$0xf] %v970
  %1099 = vst [vmem:[%s2 + $0x78] sm:$0xf] %v971
  %1100 = vst [vmem:[%s2 + $0x7c] sm:$0xf] %v972
  %1101 = vst [vmem:[%s2 + $0x80] sm:$0xf] %v973
  %1102 = vst [vmem:[%s2 + $0x84] sm:$0xf] %v974
  %1103 = vst [vmem:[%s2 + $0x88] sm:$0xf] %v975
  %1104 = vst [vmem:[%s2 + $0x8c] sm:$0xf] %v976
  %1105 = vst [vmem:[%s2 + $0x90] sm:$0xf] %v977
  %1106 = vst [vmem:[%s2 + $0x94] sm:$0xf] %v978
  %1107 = vst [vmem:[%s2 + $0x98] sm:$0xf] %v979
  %1108 = vst [vmem:[%s2 + $0x9c] sm:$0xf] %v980
  %1109 = vst [vmem:[%s2 + $0xa0] sm:$0xf] %v981
  %1110 = vst [vmem:[%s2 + $0xa4] sm:$0xf] %v982
  %1111 = vst [vmem:[%s2 + $0xa8] sm:$0xf] %v983
  %1112 = vst [vmem:[%s2 + $0xac] sm:$0xf] %v984
  %1113 = vst [vmem:[%s2 + $0xb0] sm:$0xf] %v985
  %1114 = vst [vmem:[%s2 + $0xb4] sm:$0xf] %v986
  %1115 = vst [vmem:[%s2 + $0xb8] sm:$0xf] %v987
  %1116 = vst [vmem:[%s2 + $0xbc] sm:$0xf] %v988
  %1117 = vst [vmem:[%s2 + $0xc0] sm:$0xf] %v989
  %1118 = vst [vmem:[%s2 + $0xc4] sm:$0xf] %v990
  %1119 = vst [vmem:[%s2 + $0xc8] sm:$0xf] %v991
  %1120 = vst [vmem:[%s2 + $0xcc] sm:$0xf] %v992
  %1121 = vst [vmem:[%s2 + $0xd0] sm:$0xf] %v993
  %1122 = vst [vmem:[%s2 + $0xd4] sm:$0xf] %v994
  %1123 = vst [vmem:[%s2 + $0xd8] sm:$0xf] %v995
  %1124 = vst [vmem:[%s2 + $0xdc] sm:$0xf] %v996
  %1125 = vst [vmem:[%s2 + $0xe0] sm:$0xf] %v997
  %1126 = vst [vmem:[%s2 + $0xe4] sm:$0xf] %v998
  %1127 = vst [vmem:[%s2 + $0xe8] sm:$0xf] %v999
  %1128 = vst [vmem:[%s2 + $0xec] sm:$0xf] %v1000
  %1129 = vst [vmem:[%s2 + $0xf0] sm:$0xf] %v1001
  %1130 = vst [vmem:[%s2 + $0xf4] sm:$0xf] %v1002
  %1131 = vst [vmem:[%s2 + $0xf8] sm:$0xf] %v1003
  %1132 = vst [vmem:[%s2 + $0xfc] sm:$0xf] %v1004
  // Predicated region
  $region10: #{discriminator_forward.7} parent=0 // pred_check
    _
  $region11: #{discriminator_forward.7} parent=0 // pred_check_branch
    %1134 = sbr.rel (0) target = $region13
  $region12: #{discriminator_forward.7} parent=0 // pred_region
    _
  $region13: #{discriminator_forward.7} parent=0 // pred_fallthru
    _
  // Predicated region
  $region14: #{discriminator_forward.7} parent=0 // pred_check
    _
  $region15: #{discriminator_forward.7} parent=0 // pred_check_branch
    %1136 = sbr.rel (0) target = $region17
  $region16: #{discriminator_forward.7} parent=0 // pred_region
    _
  $region17: #{discriminator_forward.7} parent=0 // pred_fallthru
    _

// kernel: discriminator_forward.8
$region0: #{discriminator_forward.8}
  #allocation0 [shape = 'u32[]', space=smem, size = 0x4, offset = 0x4, fixed_abs, tag = 'smem constant byte address 0x4 - core index']
  #allocation1 [shape = 'u32[144,128]{1,0:T(1,128)}', space=vmem, size = 0x12000, scoped, tag = 'internal scratch']
  %s0 = inlined_call_operand.vmem [shape: bf16[128,128], index: 0, kind: input, shape index: {}]
  %s1 = inlined_call_operand.vmem [shape: bf16[128,128], index: 1, kind: input, shape index: {}]
  %s2 = inlined_call_operand.vmem [shape: f32[128,128], index: 2, kind: output, shape index: {0}]
  %s3 = inlined_call_operand.vmem [shape: f32[1,1,128], index: 3, kind: output, shape index: {1}]
  %s4 = inlined_call_operand.vmem [shape: f32[1,1,128], index: 4, kind: output, shape index: {2}]
  %5 = xla_tuple %s2, %s3, %s4
  %s6 = sld [smem:[#allocation0]]
  $region34: #{discriminator_forward.8} parent=0
    _
  %s8 = ssub.s32 1, %s6
  %s9 = scalar_select 0, %s8, %s6
  // Predicated region
  $region2: #{discriminator_forward.8} parent=0 // pred_check
    _
  $region3: #{discriminator_forward.8} parent=0 // pred_check_branch
    %11 = sbr.rel (0) target = $region5
  $region4: #{discriminator_forward.8} parent=0 // pred_region
    _
  $region5: #{discriminator_forward.8} parent=0 // pred_fallthru
    _
  // Predicated region
  $region6: #{discriminator_forward.8} parent=0 // pred_check
    _
  $region7: #{discriminator_forward.8} parent=0 // pred_check_branch
    %13 = sbr.rel (0) target = $region9
  $region8: #{discriminator_forward.8} parent=0 // pred_region
    _
  $region9: #{discriminator_forward.8} parent=0 // pred_fallthru
    _
  %v15 = vld [vmem:[%s0] sm:$0xf]
  %v16 = vld [vmem:[%s0 + $0x4] sm:$0xf]
  %v17 = vld [vmem:[%s0 + $0x8] sm:$0xf]
  %v18 = vld [vmem:[%s0 + $0xc] sm:$0xf]
  %v19 = vld [vmem:[%s0 + $0x10] sm:$0xf]
  %v20 = vld [vmem:[%s0 + $0x14] sm:$0xf]
  %v21 = vld [vmem:[%s0 + $0x18] sm:$0xf]
  %v22 = vld [vmem:[%s0 + $0x1c] sm:$0xf]
  %v23 = vld [vmem:[%s0 + $0x20] sm:$0xf]
  %v24 = vld [vmem:[%s0 + $0x24] sm:$0xf]
  %v25 = vld [vmem:[%s0 + $0x28] sm:$0xf]
  %v26 = vld [vmem:[%s0 + $0x2c] sm:$0xf]
  %v27 = vld [vmem:[%s0 + $0x30] sm:$0xf]
  %v28 = vld [vmem:[%s0 + $0x34] sm:$0xf]
  %v29 = vld [vmem:[%s0 + $0x38] sm:$0xf]
  %v30 = vld [vmem:[%s0 + $0x3c] sm:$0xf]
  %v31 = vld [vmem:[%s1] sm:$0xf]
  %v32 = vld [vmem:[%s1 + $0x4] sm:$0xf]
  %v33 = vld [vmem:[%s1 + $0x8] sm:$0xf]
  %v34 = vld [vmem:[%s1 + $0xc] sm:$0xf]
  %v35 = vld [vmem:[%s1 + $0x10] sm:$0xf]
  %v36 = vld [vmem:[%s1 + $0x14] sm:$0xf]
  %v37 = vld [vmem:[%s1 + $0x18] sm:$0xf]
  %v38 = vld [vmem:[%s1 + $0x1c] sm:$0xf]
  %v39 = vld [vmem:[%s1 + $0x20] sm:$0xf]
  %v40 = vld [vmem:[%s1 + $0x24] sm:$0xf]
  %v41 = vld [vmem:[%s1 + $0x28] sm:$0xf]
  %v42 = vld [vmem:[%s1 + $0x2c] sm:$0xf]
  %v43 = vld [vmem:[%s1 + $0x30] sm:$0xf]
  %v44 = vld [vmem:[%s1 + $0x34] sm:$0xf]
  %v45 = vld [vmem:[%s1 + $0x38] sm:$0xf]
  %v46 = vld [vmem:[%s1 + $0x3c] sm:$0xf]
  %v63 = vunpack.c.l.b16 %v15
  %v64 = vunpack.c.l.b16 %v16
  %v65 = vunpack.c.l.b16 %v17
  %v66 = vunpack.c.l.b16 %v18
  %v67 = vunpack.c.l.b16 %v19
  %v68 = vunpack.c.l.b16 %v20
  %v69 = vunpack.c.l.b16 %v21
  %v70 = vunpack.c.l.b16 %v22
  %v71 = vunpack.c.l.b16 %v23
  %v72 = vunpack.c.l.b16 %v24
  %v73 = vunpack.c.l.b16 %v25
  %v74 = vunpack.c.l.b16 %v26
  %v75 = vunpack.c.l.b16 %v27
  %v76 = vunpack.c.l.b16 %v28
  %v77 = vunpack.c.l.b16 %v29
  %v78 = vunpack.c.l.b16 %v30
  %v79 = vpack.c.b16 %v64, %v63
  %v80 = vpack.c.b16 %v66, %v65
  %v81 = vpack.c.b16 %v68, %v67
  %v82 = vpack.c.b16 %v70, %v69
  %v83 = vpack.c.b16 %v72, %v71
  %v84 = vpack.c.b16 %v74, %v73
  %v85 = vpack.c.b16 %v76, %v75
  %v86 = vpack.c.b16 %v78, %v77
  %v111 = vunpack.c.l.b16 %v31
  %v112 = vunpack.c.l.b16 %v32
  %v113 = vunpack.c.l.b16 %v33
  %v114 = vunpack.c.l.b16 %v34
  %v115 = vunpack.c.l.b16 %v35
  %v116 = vunpack.c.l.b16 %v36
  %v117 = vunpack.c.l.b16 %v37
  %v118 = vunpack.c.l.b16 %v38
  %v119 = vunpack.c.l.b16 %v39
  %v120 = vunpack.c.l.b16 %v40
  %v121 = vunpack.c.l.b16 %v41
  %v122 = vunpack.c.l.b16 %v42
  %v123 = vunpack.c.l.b16 %v43
  %v124 = vunpack.c.l.b16 %v44
  %v125 = vunpack.c.l.b16 %v45
  %v126 = vunpack.c.l.b16 %v46
  %v127 = vpack.c.b16 %v112, %v111
  %v128 = vpack.c.b16 %v114, %v113
  %v129 = vpack.c.b16 %v116, %v115
  %v130 = vpack.c.b16 %v118, %v117
  %v131 = vpack.c.b16 %v120, %v119
  %v132 = vpack.c.b16 %v122, %v121
  %v133 = vpack.c.b16 %v124, %v123
  %v134 = vpack.c.b16 %v126, %v125
  %143 = vmatprep.subr.bf16.mxu0 0
  %144 = vmatpush1.bf16.msra.mxu0 %v127
  %145 = vmatprep.subr.bf16.mxu0 0
  %146 = vmatpush1.bf16.msra.mxu0 %v128
  %147 = vmatprep.subr.bf16.mxu0 0
  %148 = vmatpush1.bf16.msra.mxu0 %v129
  %149 = vmatprep.subr.bf16.mxu0 0
  %150 = vmatpush1.bf16.msra.mxu0 %v130
  %151 = vmatprep.subr.bf16.mxu0 0
  %152 = vmatpush1.bf16.msra.mxu0 %v131
  %153 = vmatprep.subr.bf16.mxu0 0
  %154 = vmatpush1.bf16.msra.mxu0 %v132
  %155 = vmatprep.subr.bf16.mxu0 0
  %156 = vmatpush1.bf16.msra.mxu0 %v133
  %157 = vmatprep.subr.bf16.mxu0 0
  %158 = vmatpush1.bf16.msra.mxu0 %v134
  %159 = vmatprep.subr.bf16.mxu0 0
  %160 = vmatpush1.bf16.msra.mxu0 0
  %161 = vmatprep.subr.bf16.mxu0 0
  %162 = vmatpush1.bf16.msra.mxu0 0
  %163 = vmatprep.subr.bf16.mxu0 0
  %164 = vmatpush1.bf16.msra.mxu0 0
  %165 = vmatprep.subr.bf16.mxu0 0
  %166 = vmatpush1.bf16.msra.mxu0 0
  %167 = vmatprep.subr.bf16.mxu0 0
  %168 = vmatpush1.bf16.msra.mxu0 0
  %169 = vmatprep.subr.bf16.mxu0 0
  %170 = vmatpush1.bf16.msra.mxu0 0
  %171 = vmatprep.subr.bf16.mxu0 0
  %172 = vmatpush1.bf16.msra.mxu0 0
  %173 = vmatprep.subr.bf16.mxu0 0
  %174 = vmatpush1.bf16.msra.mxu0 0
  %175 = vmatprep.mubr.bf16.mxu0 0
  %176 = vmatmul.mubr.bf16.gmra.mrb[0].mxu0 %v79
  %v177 = vpop.f32.mrb[0].mxu0
  %v178 = vadd.f32 0.0, %v177
  %v179 = vpop.f32.mrb[0].mxu0
  %v180 = vpop.f32.mrb[0].mxu0
  %v181 = vadd.f32 0.0, %v180
  %v182 = vpop.f32.mrb[0].mxu0
  %183 = vmatprep.mubr.bf16.mxu0 0
  %184 = vmatmul.mubr.bf16.gmra.mrb[0].mxu0 %v80
  %v185 = vpop.f32.mrb[0].mxu0
  %v186 = vadd.f32 0.0, %v185
  %v187 = vpop.f32.mrb[0].mxu0
  %v188 = vpop.f32.mrb[0].mxu0
  %v189 = vadd.f32 0.0, %v188
  %v190 = vpop.f32.mrb[0].mxu0
  %191 = vmatprep.mubr.bf16.mxu0 0
  %192 = vmatmul.mubr.bf16.gmra.mrb[0].mxu0 %v81
  %v193 = vpop.f32.mrb[0].mxu0
  %v194 = vadd.f32 0.0, %v193
  %v195 = vpop.f32.mrb[0].mxu0
  %v196 = vpop.f32.mrb[0].mxu0
  %v197 = vadd.f32 0.0, %v196
  %v198 = vpop.f32.mrb[0].mxu0
  %199 = vmatprep.mubr.bf16.mxu0 0
  %200 = vmatmul.mubr.bf16.gmra.mrb[0].mxu0 %v82
  %v201 = vpop.f32.mrb[0].mxu0
  %v202 = vadd.f32 0.0, %v201
  %v203 = vpop.f32.mrb[0].mxu0
  %v204 = vpop.f32.mrb[0].mxu0
  %v205 = vadd.f32 0.0, %v204
  %v206 = vpop.f32.mrb[0].mxu0
  %207 = vmatprep.mubr.bf16.mxu0 0
  %208 = vmatmul.mubr.bf16.gmra.mrb[0].mxu0 %v83
  %v209 = vpop.f32.mrb[0].mxu0
  %v210 = vadd.f32 0.0, %v209
  %v211 = vpop.f32.mrb[0].mxu0
  %v212 = vpop.f32.mrb[0].mxu0
  %v213 = vadd.f32 0.0, %v212
  %v214 = vpop.f32.mrb[0].mxu0
  %215 = vmatprep.mubr.bf16.mxu0 0
  %216 = vmatmul.mubr.bf16.gmra.mrb[0].mxu0 %v84
  %v217 = vpop.f32.mrb[0].mxu0
  %v218 = vadd.f32 0.0, %v217
  %v219 = vpop.f32.mrb[0].mxu0
  %v220 = vpop.f32.mrb[0].mxu0
  %v221 = vadd.f32 0.0, %v220
  %v222 = vpop.f32.mrb[0].mxu0
  %223 = vmatprep.mubr.bf16.mxu0 0
  %224 = vmatmul.mubr.bf16.gmra.mrb[0].mxu0 %v85
  %v225 = vpop.f32.mrb[0].mxu0
  %v226 = vadd.f32 0.0, %v225
  %v227 = vpop.f32.mrb[0].mxu0
  %v228 = vpop.f32.mrb[0].mxu0
  %v229 = vadd.f32 0.0, %v228
  %v230 = vpop.f32.mrb[0].mxu0
  %231 = vmatprep.mubr.bf16.mxu0 0
  %232 = vmatmul.mubr.bf16.gmra.mrb[0].mxu0 %v86
  %v233 = vpop.f32.mrb[0].mxu0
  %v234 = vadd.f32 0.0, %v233
  %v235 = vpop.f32.mrb[0].mxu0
  %v236 = vpop.f32.mrb[0].mxu0
  %v237 = vadd.f32 0.0, %v236
  %v238 = vpop.f32.mrb[0].mxu0
  %239 = vdwg.mxu0
  %240 = vst [vmem:[%s2] sm:$0xff] %v178
  %241 = vst [vmem:[%s2 + $0x8] sm:$0xff] %v181
  %242 = vst [vmem:[%s2 + $0x10] sm:$0xff] %v186
  %243 = vst [vmem:[%s2 + $0x18] sm:$0xff] %v189
  %244 = vst [vmem:[%s2 + $0x20] sm:$0xff] %v194
  %245 = vst [vmem:[%s2 + $0x28] sm:$0xff] %v197
  %246 = vst [vmem:[%s2 + $0x30] sm:$0xff] %v202
  %247 = vst [vmem:[%s2 + $0x38] sm:$0xff] %v205
  %248 = vst [vmem:[%s2 + $0x40] sm:$0xff] %v210
  %249 = vst [vmem:[%s2 + $0x48] sm:$0xff] %v213
  %250 = vst [vmem:[%s2 + $0x50] sm:$0xff] %v218
  %251 = vst [vmem:[%s2 + $0x58] sm:$0xff] %v221
  %252 = vst [vmem:[%s2 + $0x60] sm:$0xff] %v226
  %253 = vst [vmem:[%s2 + $0x68] sm:$0xff] %v229
  %254 = vst [vmem:[%s2 + $0x70] sm:$0xff] %v234
  %255 = vst [vmem:[%s2 + $0x78] sm:$0xff] %v237
  %v256 = vadd.f32 %v178, %v181
  %v257 = vadd.f32 %v256, %v186
  %v258 = vadd.f32 %v257, %v189
  %v259 = vadd.f32 %v258, %v194
  %v260 = vadd.f32 %v259, %v197
  %v261 = vadd.f32 %v260, %v202
  %v262 = vadd.f32 %v261, %v205
  %v263 = vadd.f32 %v262, %v210
  %v264 = vadd.f32 %v263, %v213
  %v265 = vadd.f32 %v264, %v218
  %v266 = vadd.f32 %v265, %v221
  %v267 = vadd.f32 %v266, %v226
  %v268 = vadd.f32 %v267, %v229
  %v269 = vadd.f32 %v268, %v234
  %v270 = vadd.f32 %v269, %v237
  %v271 = vrot.slane %v270, 4
  %v272 = vadd.f32 %v270, %v271
  %v273 = vrot.slane %v272, 2
  %v274 = vadd.f32 %v272, %v273
  %v275 = vrot.slane %v274, 1
  %v276 = vadd.f32 %v274, %v275
  %277 = vst [vmem:[%s3] sm:$0x1] %v276
  %v278 = vmul.f32 %v178, %v178
  %v279 = vmul.f32 %v181, %v181
  %v280 = vmul.f32 %v186, %v186
  %v281 = vmul.f32 %v189, %v189
  %v282 = vmul.f32 %v194, %v194
  %v283 = vmul.f32 %v197, %v197
  %v284 = vmul.f32 %v202, %v202
  %v285 = vmul.f32 %v205, %v205
  %v286 = vmul.f32 %v210, %v210
  %v287 = vmul.f32 %v213, %v213
  %v288 = vmul.f32 %v218, %v218
  %v289 = vmul.f32 %v221, %v221
  %v290 = vmul.f32 %v226, %v226
  %v291 = vmul.f32 %v229, %v229
  %v292 = vmul.f32 %v234, %v234
  %v293 = vmul.f32 %v237, %v237
  %v294 = vadd.f32 %v278, %v279
  %v295 = vadd.f32 %v294, %v280
  %v296 = vadd.f32 %v295, %v281
  %v297 = vadd.f32 %v296, %v282
  %v298 = vadd.f32 %v297, %v283
  %v299 = vadd.f32 %v298, %v284
  %v300 = vadd.f32 %v299, %v285
  %v301 = vadd.f32 %v300, %v286
  %v302 = vadd.f32 %v301, %v287
  %v303 = vadd.f32 %v302, %v288
  %v304 = vadd.f32 %v303, %v289
  %v305 = vadd.f32 %v304, %v290
  %v306 = vadd.f32 %v305, %v291
  %v307 = vadd.f32 %v306, %v292
  %v308 = vadd.f32 %v307, %v293
  %v309 = vrot.slane %v308, 4
  %v310 = vadd.f32 %v308, %v309
  %v311 = vrot.slane %v310, 2
  %v312 = vadd.f32 %v310, %v311
  %v313 = vrot.slane %v312, 1
  %v314 = vadd.f32 %v312, %v313
  %315 = vst [vmem:[%s4] sm:$0x1] %v314
  // Predicated region
  $region10: #{discriminator_forward.8} parent=0 // pred_check
    _
  $region11: #{discriminator_forward.8} parent=0 // pred_check_branch
    %317 = sbr.rel (0) target = $region13
  $region12: #{discriminator_forward.8} parent=0 // pred_region
    _
  $region13: #{discriminator_forward.8} parent=0 // pred_fallthru
    _
  // Predicated region
  $region14: #{discriminator_forward.8} parent=0 // pred_check
    _
  $region15: #{discriminator_forward.8} parent=0 // pred_check_branch
    %319 = sbr.rel (0) target = $region17
  $region16: #{discriminator_forward.8} parent=0 // pred_region
    _
  $region17: #{discriminator_forward.8} parent=0 // pred_fallthru
    _
  // Predicated region
  $region18: #{discriminator_forward.8} parent=0 // pred_check
    _
  $region19: #{discriminator_forward.8} parent=0 // pred_check_branch
    %321 = sbr.rel (0) target = $region21
  $region20: #{discriminator_forward.8} parent=0 // pred_region
    _
  $region21: #{discriminator_forward.8} parent=0 // pred_fallthru
    _
  // Predicated region
  $region22: #{discriminator_forward.8} parent=0 // pred_check
    _
  $region23: #{discriminator_forward.8} parent=0 // pred_check_branch
    %323 = sbr.rel (0) target = $region25
  $region24: #{discriminator_forward.8} parent=0 // pred_region
    _
  $region25: #{discriminator_forward.8} parent=0 // pred_fallthru
    _
  // Predicated region
  $region26: #{discriminator_forward.8} parent=0 // pred_check
    _
  $region27: #{discriminator_forward.8} parent=0 // pred_check_branch
    %325 = sbr.rel (0) target = $region29
  $region28: #{discriminator_forward.8} parent=0 // pred_region
    _
  $region29: #{discriminator_forward.8} parent=0 // pred_fallthru
    _
  // Predicated region
  $region30: #{discriminator_forward.8} parent=0 // pred_check
    _
  $region31: #{discriminator_forward.8} parent=0 // pred_check_branch
    %327 = sbr.rel (0) target = $region33
  $region32: #{discriminator_forward.8} parent=0 // pred_region
    _
  $region33: #{discriminator_forward.8} parent=0 // pred_fallthru
    _

// kernel: discriminator_forward.9
$region0: #{discriminator_forward.9}
  #allocation0 [shape = 'u32[]', space=smem, size = 0x4, offset = 0x4, fixed_abs, tag = 'smem constant byte address 0x4 - core index']
  #allocation1 [shape = 'u32[144,128]{1,0:T(1,128)}', space=vmem, size = 0x12000, scoped, tag = 'internal scratch']
  %s0 = inlined_call_operand.vmem [shape: f32[128,128], index: 0, kind: input, shape index: {}]
  %s1 = inlined_call_operand.vmem [shape: f32[1,128], index: 1, kind: input, shape index: {}]
  %s2 = inlined_call_operand.vmem [shape: f32[1,128], index: 2, kind: input, shape index: {}]
  %s3 = inlined_call_operand.vmem [shape: bf16[128,128], index: 3, kind: output, shape index: {}]
  %s4 = sld [smem:[#allocation0]]
  $region22: #{discriminator_forward.9} parent=0
    _
  %s6 = ssub.s32 1, %s4
  %s7 = scalar_select 0, %s6, %s4
  // Predicated region
  $region2: #{discriminator_forward.9} parent=0 // pred_check
    _
  $region3: #{discriminator_forward.9} parent=0 // pred_check_branch
    %9 = sbr.rel (0) target = $region5
  $region4: #{discriminator_forward.9} parent=0 // pred_region
    _
  $region5: #{discriminator_forward.9} parent=0 // pred_fallthru
    _
  // Predicated region
  $region6: #{discriminator_forward.9} parent=0 // pred_check
    _
  $region7: #{discriminator_forward.9} parent=0 // pred_check_branch
    %11 = sbr.rel (0) target = $region9
  $region8: #{discriminator_forward.9} parent=0 // pred_region
    _
  $region9: #{discriminator_forward.9} parent=0 // pred_fallthru
    _
  // Predicated region
  $region10: #{discriminator_forward.9} parent=0 // pred_check
    _
  $region11: #{discriminator_forward.9} parent=0 // pred_check_branch
    %13 = sbr.rel (0) target = $region13
  $region12: #{discriminator_forward.9} parent=0 // pred_region
    _
  $region13: #{discriminator_forward.9} parent=0 // pred_fallthru
    _
  %v14 = vld [vmem:[%s0] sm:$0xff]
  %v15 = vld [vmem:[%s0 + $0x8] sm:$0xff]
  %v16 = vld [vmem:[%s0 + $0x10] sm:$0xff]
  %v17 = vld [vmem:[%s0 + $0x18] sm:$0xff]
  %v18 = vld [vmem:[%s0 + $0x20] sm:$0xff]
  %v19 = vld [vmem:[%s0 + $0x28] sm:$0xff]
  %v20 = vld [vmem:[%s0 + $0x30] sm:$0xff]
  %v21 = vld [vmem:[%s0 + $0x38] sm:$0xff]
  %v22 = vld [vmem:[%s0 + $0x40] sm:$0xff]
  %v23 = vld [vmem:[%s0 + $0x48] sm:$0xff]
  %v24 = vld [vmem:[%s0 + $0x50] sm:$0xff]
  %v25 = vld [vmem:[%s0 + $0x58] sm:$0xff]
  %v26 = vld [vmem:[%s0 + $0x60] sm:$0xff]
  %v27 = vld [vmem:[%s0 + $0x68] sm:$0xff]
  %v28 = vld [vmem:[%s0 + $0x70] sm:$0xff]
  %v29 = vld [vmem:[%s0 + $0x78] sm:$0xff]
  %v30 = vld [vmem:[%s1] sm:$0x1]
  %v32 = vlaneseq
  %v33 = vshrl.u32 %v32, 7
  %v34 = vsub.s32 0, %v33
  %v35 = vrot.slane %v30, %v34
  %v37 = vmul.f32 %v14, %v35
  %v38 = vmul.f32 %v15, %v35
  %v39 = vmul.f32 %v16, %v35
  %v40 = vmul.f32 %v17, %v35
  %v41 = vmul.f32 %v18, %v35
  %v42 = vmul.f32 %v19, %v35
  %v43 = vmul.f32 %v20, %v35
  %v44 = vmul.f32 %v21, %v35
  %v45 = vmul.f32 %v22, %v35
  %v46 = vmul.f32 %v23, %v35
  %v47 = vmul.f32 %v24, %v35
  %v48 = vmul.f32 %v25, %v35
  %v49 = vmul.f32 %v26, %v35
  %v50 = vmul.f32 %v27, %v35
  %v51 = vmul.f32 %v28, %v35
  %v52 = vmul.f32 %v29, %v35
  %v53 = vld [vmem:[%s2] sm:$0x1]
  %v55 = vlaneseq
  %v56 = vshrl.u32 %v55, 7
  %v57 = vsub.s32 0, %v56
  %v58 = vrot.slane %v53, %v57
  %v60 = vadd.f32 %v37, %v58
  %v61 = vadd.f32 %v38, %v58
  %v62 = vadd.f32 %v39, %v58
  %v63 = vadd.f32 %v40, %v58
  %v64 = vadd.f32 %v41, %v58
  %v65 = vadd.f32 %v42, %v58
  %v66 = vadd.f32 %v43, %v58
  %v67 = vadd.f32 %v44, %v58
  %v68 = vadd.f32 %v45, %v58
  %v69 = vadd.f32 %v46, %v58
  %v70 = vadd.f32 %v47, %v58
  %v71 = vadd.f32 %v48, %v58
  %v72 = vadd.f32 %v49, %v58
  %v73 = vadd.f32 %v50, %v58
  %v74 = vadd.f32 %v51, %v58
  %v75 = vadd.f32 %v52, %v58
  %vm76 = vcmp.gt.f32.partialorder %v60, 0.0
  %vm77 = vcmp.gt.f32.partialorder %v61, 0.0
  %vm78 = vcmp.gt.f32.partialorder %v62, 0.0
  %vm79 = vcmp.gt.f32.partialorder %v63, 0.0
  %vm80 = vcmp.gt.f32.partialorder %v64, 0.0
  %vm81 = vcmp.gt.f32.partialorder %v65, 0.0
  %vm82 = vcmp.gt.f32.partialorder %v66, 0.0
  %vm83 = vcmp.gt.f32.partialorder %v67, 0.0
  %vm84 = vcmp.gt.f32.partialorder %v68, 0.0
  %vm85 = vcmp.gt.f32.partialorder %v69, 0.0
  %vm86 = vcmp.gt.f32.partialorder %v70, 0.0
  %vm87 = vcmp.gt.f32.partialorder %v71, 0.0
  %vm88 = vcmp.gt.f32.partialorder %v72, 0.0
  %vm89 = vcmp.gt.f32.partialorder %v73, 0.0
  %vm90 = vcmp.gt.f32.partialorder %v74, 0.0
  %vm91 = vcmp.gt.f32.partialorder %v75, 0.0
  %v92 = vmul.f32 %v60, 0.2
  %v93 = vmul.f32 %v61, 0.2
  %v94 = vmul.f32 %v62, 0.2
  %v95 = vmul.f32 %v63, 0.2
  %v96 = vmul.f32 %v64, 0.2
  %v97 = vmul.f32 %v65, 0.2
  %v98 = vmul.f32 %v66, 0.2
  %v99 = vmul.f32 %v67, 0.2
  %v100 = vmul.f32 %v68, 0.2
  %v101 = vmul.f32 %v69, 0.2
  %v102 = vmul.f32 %v70, 0.2
  %v103 = vmul.f32 %v71, 0.2
  %v104 = vmul.f32 %v72, 0.2
  %v105 = vmul.f32 %v73, 0.2
  %v106 = vmul.f32 %v74, 0.2
  %v107 = vmul.f32 %v75, 0.2
  %v108 = vsel %vm76, %v60, %v92
  %v109 = vsel %vm77, %v61, %v93
  %v110 = vsel %vm78, %v62, %v94
  %v111 = vsel %vm79, %v63, %v95
  %v112 = vsel %vm80, %v64, %v96
  %v113 = vsel %vm81, %v65, %v97
  %v114 = vsel %vm82, %v66, %v98
  %v115 = vsel %vm83, %v67, %v99
  %v116 = vsel %vm84, %v68, %v100
  %v117 = vsel %vm85, %v69, %v101
  %v118 = vsel %vm86, %v70, %v102
  %v119 = vsel %vm87, %v71, %v103
  %v120 = vsel %vm88, %v72, %v104
  %v121 = vsel %vm89, %v73, %v105
  %v122 = vsel %vm90, %v74, %v106
  %v123 = vsel %vm91, %v75, %v107
  %v124 = vpack.c.bf16 %v109, %v108
  %v125 = vpack.c.bf16 %v111, %v110
  %v126 = vpack.c.bf16 %v113, %v112
  %v127 = vpack.c.bf16 %v115, %v114
  %v128 = vpack.c.bf16 %v117, %v116
  %v129 = vpack.c.bf16 %v119, %v118
  %v130 = vpack.c.bf16 %v121, %v120
  %v131 = vpack.c.bf16 %v123, %v122
  %v140 = vunpack.c.l.b16 %v124
  %v141 = vunpack.c.h.b16 %v124
  %v142 = vunpack.c.l.b16 %v125
  %v143 = vunpack.c.h.b16 %v125
  %v144 = vunpack.c.l.b16 %v126
  %v145 = vunpack.c.h.b16 %v126
  %v146 = vunpack.c.l.b16 %v127
  %v147 = vunpack.c.h.b16 %v127
  %v148 = vunpack.c.l.b16 %v128
  %v149 = vunpack.c.h.b16 %v128
  %v150 = vunpack.c.l.b16 %v129
  %v151 = vunpack.c.h.b16 %v129
  %v152 = vunpack.c.l.b16 %v130
  %v153 = vunpack.c.h.b16 %v130
  %v154 = vunpack.c.l.b16 %v131
  %v155 = vunpack.c.h.b16 %v131
  %v156 = vpack.c.b16 %v140, %v140
  %v157 = vpack.c.b16 %v141, %v141
  %v158 = vpack.c.b16 %v142, %v142
  %v159 = vpack.c.b16 %v143, %v143
  %v160 = vpack.c.b16 %v144, %v144
  %v161 = vpack.c.b16 %v145, %v145
  %v162 = vpack.c.b16 %v146, %v146
  %v163 = vpack.c.b16 %v147, %v147
  %v164 = vpack.c.b16 %v148, %v148
  %v165 = vpack.c.b16 %v149, %v149
  %v166 = vpack.c.b16 %v150, %v150
  %v167 = vpack.c.b16 %v151, %v151
  %v168 = vpack.c.b16 %v152, %v152
  %v169 = vpack.c.b16 %v153, %v153
  %v170 = vpack.c.b16 %v154, %v154
  %v171 = vpack.c.b16 %v155, %v155
  %188 = vst [vmem:[%s3] sm:$0xf] %v156
  %189 = vst [vmem:[%s3 + $0x4] sm:$0xf] %v157
  %190 = vst [vmem:[%s3 + $0x8] sm:$0xf] %v158
  %191 = vst [vmem:[%s3 + $0xc] sm:$0xf] %v159
  %192 = vst [vmem:[%s3 + $0x10] sm:$0xf] %v160
  %193 = vst [vmem:[%s3 + $0x14] sm:$0xf] %v161
  %194 = vst [vmem:[%s3 + $0x18] sm:$0xf] %v162
  %195 = vst [vmem:[%s3 + $0x1c] sm:$0xf] %v163
  %196 = vst [vmem:[%s3 + $0x20] sm:$0xf] %v164
  %197 = vst [vmem:[%s3 + $0x24] sm:$0xf] %v165
  %198 = vst [vmem:[%s3 + $0x28] sm:$0xf] %v166
  %199 = vst [vmem:[%s3 + $0x2c] sm:$0xf] %v167
  %200 = vst [vmem:[%s3 + $0x30] sm:$0xf] %v168
  %201 = vst [vmem:[%s3 + $0x34] sm:$0xf] %v169
  %202 = vst [vmem:[%s3 + $0x38] sm:$0xf] %v170
  %203 = vst [vmem:[%s3 + $0x3c] sm:$0xf] %v171
  // Predicated region
  $region14: #{discriminator_forward.9} parent=0 // pred_check
    _
  $region15: #{discriminator_forward.9} parent=0 // pred_check_branch
    %205 = sbr.rel (0) target = $region17
  $region16: #{discriminator_forward.9} parent=0 // pred_region
    _
  $region17: #{discriminator_forward.9} parent=0 // pred_fallthru
    _
  // Predicated region
  $region18: #{discriminator_forward.9} parent=0 // pred_check
    _
  $region19: #{discriminator_forward.9} parent=0 // pred_check_branch
    %207 = sbr.rel (0) target = $region21
  $region20: #{discriminator_forward.9} parent=0 // pred_region
    _
  $region21: #{discriminator_forward.9} parent=0 // pred_fallthru
    _

// kernel: discriminator_forward.11
$region0: #{discriminator_forward.11}
  #allocation0 [shape = 'u32[]', space=smem, size = 0x4, offset = 0x4, fixed_abs, tag = 'smem constant byte address 0x4 - core index']
  #allocation1 [shape = 'u32[144,128]{1,0:T(1,128)}', space=vmem, size = 0x12000, scoped, tag = 'internal scratch']
  %s0 = inlined_call_operand.vmem [shape: f32[32,128], index: 0, kind: input, shape index: {}]
  %s1 = inlined_call_operand.vmem [shape: f32[1,128], index: 1, kind: input, shape index: {}]
  %s2 = inlined_call_operand.vmem [shape: f32[1,128], index: 2, kind: input, shape index: {}]
  %s3 = inlined_call_operand.vmem [shape: bf16[32,128], index: 3, kind: output, shape index: {}]
  %s4 = sld [smem:[#allocation0]]
  $region22: #{discriminator_forward.11} parent=0
    _
  %s6 = ssub.s32 1, %s4
  %s7 = scalar_select 0, %s6, %s4
  // Predicated region
  $region2: #{discriminator_forward.11} parent=0 // pred_check
    _
  $region3: #{discriminator_forward.11} parent=0 // pred_check_branch
    %9 = sbr.rel (0) target = $region5
  $region4: #{discriminator_forward.11} parent=0 // pred_region
    _
  $region5: #{discriminator_forward.11} parent=0 // pred_fallthru
    _
  // Predicated region
  $region6: #{discriminator_forward.11} parent=0 // pred_check
    _
  $region7: #{discriminator_forward.11} parent=0 // pred_check_branch
    %11 = sbr.rel (0) target = $region9
  $region8: #{discriminator_forward.11} parent=0 // pred_region
    _
  $region9: #{discriminator_forward.11} parent=0 // pred_fallthru
    _
  // Predicated region
  $region10: #{discriminator_forward.11} parent=0 // pred_check
    _
  $region11: #{discriminator_forward.11} parent=0 // pred_check_branch
    %13 = sbr.rel (0) target = $region13
  $region12: #{discriminator_forward.11} parent=0 // pred_region
    _
  $region13: #{discriminator_forward.11} parent=0 // pred_fallthru
    _
  %v14 = vld [vmem:[%s0] sm:$0xff]
  %v15 = vld [vmem:[%s0 + $0x8] sm:$0xff]
  %v16 = vld [vmem:[%s0 + $0x10] sm:$0xff]
  %v17 = vld [vmem:[%s0 + $0x18] sm:$0xff]
  %v18 = vld [vmem:[%s1] sm:$0x1]
  %v20 = vlaneseq
  %v21 = vshrl.u32 %v20, 7
  %v22 = vsub.s32 0, %v21
  %v23 = vrot.slane %v18, %v22
  %v25 = vmul.f32 %v14, %v23
  %v26 = vmul.f32 %v15, %v23
  %v27 = vmul.f32 %v16, %v23
  %v28 = vmul.f32 %v17, %v23
  %v29 = vld [vmem:[%s2] sm:$0x1]
  %v31 = vlaneseq
  %v32 = vshrl.u32 %v31, 7
  %v33 = vsub.s32 0, %v32
  %v34 = vrot.slane %v29, %v33
  %v36 = vadd.f32 %v25, %v34
  %v37 = vadd.f32 %v26, %v34
  %v38 = vadd.f32 %v27, %v34
  %v39 = vadd.f32 %v28, %v34
  %vm40 = vcmp.gt.f32.partialorder %v36, 0.0
  %vm41 = vcmp.gt.f32.partialorder %v37, 0.0
  %vm42 = vcmp.gt.f32.partialorder %v38, 0.0
  %vm43 = vcmp.gt.f32.partialorder %v39, 0.0
  %v44 = vmul.f32 %v36, 0.2
  %v45 = vmul.f32 %v37, 0.2
  %v46 = vmul.f32 %v38, 0.2
  %v47 = vmul.f32 %v39, 0.2
  %v48 = vsel %vm40, %v36, %v44
  %v49 = vsel %vm41, %v37, %v45
  %v50 = vsel %vm42, %v38, %v46
  %v51 = vsel %vm43, %v39, %v47
  %v52 = vpack.c.bf16 %v49, %v48
  %v53 = vpack.c.bf16 %v51, %v50
  %v56 = vunpack.c.l.b16 %v52
  %v57 = vunpack.c.h.b16 %v52
  %v58 = vunpack.c.l.b16 %v53
  %v59 = vunpack.c.h.b16 %v53
  %v60 = vpack.c.b16 %v56, %v56
  %v61 = vpack.c.b16 %v57, %v57
  %v62 = vpack.c.b16 %v58, %v58
  %v63 = vpack.c.b16 %v59, %v59
  %68 = vst [vmem:[%s3] sm:$0xf] %v60
  %69 = vst [vmem:[%s3 + $0x4] sm:$0xf] %v61
  %70 = vst [vmem:[%s3 + $0x8] sm:$0xf] %v62
  %71 = vst [vmem:[%s3 + $0xc] sm:$0xf] %v63
  // Predicated region
  $region14: #{discriminator_forward.11} parent=0 // pred_check
    _
  $region15: #{discriminator_forward.11} parent=0 // pred_check_branch
    %73 = sbr.rel (0) target = $region17
  $region16: #{discriminator_forward.11} parent=0 // pred_region
    _
  $region17: #{discriminator_forward.11} parent=0 // pred_fallthru
    _
  // Predicated region
  $region18: #{discriminator_forward.11} parent=0 // pred_check
    _
  $region19: #{discriminator_forward.11} parent=0 // pred_check_branch
    %75 = sbr.rel (0) target = $region21
  $region20: #{discriminator_forward.11} parent=0 // pred_region
    _
  $region21: #{discriminator_forward.11} parent=0 // pred_fallthru
    _

// kernel: discriminator_forward.10
$region0: #{discriminator_forward.10}
  #allocation0 [shape = 'u32[]', space=smem, size = 0x4, offset = 0x4, fixed_abs, tag = 'smem constant byte address 0x4 - core index']
  #allocation1 [shape = 'u32[144,128]{1,0:T(1,128)}', space=vmem, size = 0x12000, scoped, tag = 'internal scratch']
  %s0 = inlined_call_operand.vmem [shape: bf16[32,256], index: 0, kind: input, shape index: {}]
  %s1 = inlined_call_operand.vmem [shape: bf16[256,128], index: 1, kind: input, shape index: {}]
  %s2 = inlined_call_operand.vmem [shape: f32[32,128], index: 2, kind: output, shape index: {0}]
  %s3 = inlined_call_operand.vmem [shape: f32[1,1,128], index: 3, kind: output, shape index: {1}]
  %s4 = inlined_call_operand.vmem [shape: f32[1,1,128], index: 4, kind: output, shape index: {2}]
  %5 = xla_tuple %s2, %s3, %s4
  %s6 = sld [smem:[#allocation0]]
  $region34: #{discriminator_forward.10} parent=0
    _
  %s8 = ssub.s32 1, %s6
  %s9 = scalar_select 0, %s8, %s6
  // Predicated region
  $region2: #{discriminator_forward.10} parent=0 // pred_check
    _
  $region3: #{discriminator_forward.10} parent=0 // pred_check_branch
    %11 = sbr.rel (0) target = $region5
  $region4: #{discriminator_forward.10} parent=0 // pred_region
    _
  $region5: #{discriminator_forward.10} parent=0 // pred_fallthru
    _
  // Predicated region
  $region6: #{discriminator_forward.10} parent=0 // pred_check
    _
  $region7: #{discriminator_forward.10} parent=0 // pred_check_branch
    %13 = sbr.rel (0) target = $region9
  $region8: #{discriminator_forward.10} parent=0 // pred_region
    _
  $region9: #{discriminator_forward.10} parent=0 // pred_fallthru
    _
  %v15 = vld [vmem:[%s0] sm:$0xff]
  %v16 = vld [vmem:[%s0 + $0x8] sm:$0xff]
  %v17 = vld [vmem:[%s0 + $0x10] sm:$0xff]
  %v18 = vld [vmem:[%s0 + $0x18] sm:$0xff]
  %v19 = vld [vmem:[%s1] sm:$0xf]
  %v20 = vld [vmem:[%s1 + $0x4] sm:$0xf]
  %v21 = vld [vmem:[%s1 + $0x8] sm:$0xf]
  %v22 = vld [vmem:[%s1 + $0xc] sm:$0xf]
  %v23 = vld [vmem:[%s1 + $0x10] sm:$0xf]
  %v24 = vld [vmem:[%s1 + $0x14] sm:$0xf]
  %v25 = vld [vmem:[%s1 + $0x18] sm:$0xf]
  %v26 = vld [vmem:[%s1 + $0x1c] sm:$0xf]
  %v27 = vld [vmem:[%s1 + $0x20] sm:$0xf]
  %v28 = vld [vmem:[%s1 + $0x24] sm:$0xf]
  %v29 = vld [vmem:[%s1 + $0x28] sm:$0xf]
  %v30 = vld [vmem:[%s1 + $0x2c] sm:$0xf]
  %v31 = vld [vmem:[%s1 + $0x30] sm:$0xf]
  %v32 = vld [vmem:[%s1 + $0x34] sm:$0xf]
  %v33 = vld [vmem:[%s1 + $0x38] sm:$0xf]
  %v34 = vld [vmem:[%s1 + $0x3c] sm:$0xf]
  %v35 = vld [vmem:[%s1 + $0x40] sm:$0xf]
  %v36 = vld [vmem:[%s1 + $0x44] sm:$0xf]
  %v37 = vld [vmem:[%s1 + $0x48] sm:$0xf]
  %v38 = vld [vmem:[%s1 + $0x4c] sm:$0xf]
  %v39 = vld [vmem:[%s1 + $0x50] sm:$0xf]
  %v40 = vld [vmem:[%s1 + $0x54] sm:$0xf]
  %v41 = vld [vmem:[%s1 + $0x58] sm:$0xf]
  %v42 = vld [vmem:[%s1 + $0x5c] sm:$0xf]
  %v43 = vld [vmem:[%s1 + $0x60] sm:$0xf]
  %v44 = vld [vmem:[%s1 + $0x64] sm:$0xf]
  %v45 = vld [vmem:[%s1 + $0x68] sm:$0xf]
  %v46 = vld [vmem:[%s1 + $0x6c] sm:$0xf]
  %v47 = vld [vmem:[%s1 + $0x70] sm:$0xf]
  %v48 = vld [vmem:[%s1 + $0x74] sm:$0xf]
  %v49 = vld [vmem:[%s1 + $0x78] sm:$0xf]
  %v50 = vld [vmem:[%s1 + $0x7c] sm:$0xf]
  %v55 = vunpack.c.l.b16 %v15
  %v56 = vunpack.c.h.b16 %v15
  %v57 = vunpack.c.l.b16 %v16
  %v58 = vunpack.c.h.b16 %v16
  %v59 = vunpack.c.l.b16 %v17
  %v60 = vunpack.c.h.b16 %v17
  %v61 = vunpack.c.l.b16 %v18
  %v62 = vunpack.c.h.b16 %v18
  %v63 = vpack.c.b16 %v57, %v55
  %v64 = vpack.c.b16 %v58, %v56
  %v65 = vpack.c.b16 %v61, %v59
  %v66 = vpack.c.b16 %v62, %v60
  %v103 = vunpack.c.l.b16 %v19
  %v104 = vunpack.c.l.b16 %v20
  %v105 = vunpack.c.l.b16 %v21
  %v106 = vunpack.c.l.b16 %v22
  %v107 = vunpack.c.l.b16 %v23
  %v108 = vunpack.c.l.b16 %v24
  %v109 = vunpack.c.l.b16 %v25
  %v110 = vunpack.c.l.b16 %v26
  %v111 = vunpack.c.l.b16 %v27
  %v112 = vunpack.c.l.b16 %v28
  %v113 = vunpack.c.l.b16 %v29
  %v114 = vunpack.c.l.b16 %v30
  %v115 = vunpack.c.l.b16 %v31
  %v116 = vunpack.c.l.b16 %v32
  %v117 = vunpack.c.l.b16 %v33
  %v118 = vunpack.c.l.b16 %v34
  %v119 = vunpack.c.l.b16 %v35
  %v120 = vunpack.c.l.b16 %v36
  %v121 = vunpack.c.l.b16 %v37
  %v122 = vunpack.c.l.b16 %v38
  %v123 = vunpack.c.l.b16 %v39
  %v124 = vunpack.c.l.b16 %v40
  %v125 = vunpack.c.l.b16 %v41
  %v126 = vunpack.c.l.b16 %v42
  %v127 = vunpack.c.l.b16 %v43
  %v128 = vunpack.c.l.b16 %v44
  %v129 = vunpack.c.l.b16 %v45
  %v130 = vunpack.c.l.b16 %v46
  %v131 = vunpack.c.l.b16 %v47
  %v132 = vunpack.c.l.b16 %v48
  %v133 = vunpack.c.l.b16 %v49
  %v134 = vunpack.c.l.b16 %v50
  %v135 = vpack.c.b16 %v104, %v103
  %v136 = vpack.c.b16 %v106, %v105
  %v137 = vpack.c.b16 %v108, %v107
  %v138 = vpack.c.b16 %v110, %v109
  %v139 = vpack.c.b16 %v112, %v111
  %v140 = vpack.c.b16 %v114, %v113
  %v141 = vpack.c.b16 %v116, %v115
  %v142 = vpack.c.b16 %v118, %v117
  %v143 = vpack.c.b16 %v120, %v119
  %v144 = vpack.c.b16 %v122, %v121
  %v145 = vpack.c.b16 %v124, %v123
  %v146 = vpack.c.b16 %v126, %v125
  %v147 = vpack.c.b16 %v128, %v127
  %v148 = vpack.c.b16 %v130, %v129
  %v149 = vpack.c.b16 %v132, %v131
  %v150 = vpack.c.b16 %v134, %v133
  %167 = vmatprep.subr.bf16.mxu0 0
  %168 = vmatpush1.bf16.msra.mxu0 %v135
  %169 = vmatprep.subr.bf16.mxu0 0
  %170 = vmatpush1.bf16.msra.mxu0 %v136
  %171 = vmatprep.subr.bf16.mxu0 0
  %172 = vmatpush1.bf16.msra.mxu0 %v137
  %173 = vmatprep.subr.bf16.mxu0 0
  %174 = vmatpush1.bf16.msra.mxu0 %v138
  %175 = vmatprep.subr.bf16.mxu0 0
  %176 = vmatpush1.bf16.msra.mxu0 %v139
  %177 = vmatprep.subr.bf16.mxu0 0
  %178 = vmatpush1.bf16.msra.mxu0 %v140
  %179 = vmatprep.subr.bf16.mxu0 0
  %180 = vmatpush1.bf16.msra.mxu0 %v141
  %181 = vmatprep.subr.bf16.mxu0 0
  %182 = vmatpush1.bf16.msra.mxu0 %v142
  %183 = vmatprep.subr.bf16.mxu0 0
  %184 = vmatpush1.bf16.msra.mxu0 %v143
  %185 = vmatprep.subr.bf16.mxu0 0
  %186 = vmatpush1.bf16.msra.mxu0 %v144
  %187 = vmatprep.subr.bf16.mxu0 0
  %188 = vmatpush1.bf16.msra.mxu0 %v145
  %189 = vmatprep.subr.bf16.mxu0 0
  %190 = vmatpush1.bf16.msra.mxu0 %v146
  %191 = vmatprep.subr.bf16.mxu0 0
  %192 = vmatpush1.bf16.msra.mxu0 %v147
  %193 = vmatprep.subr.bf16.mxu0 0
  %194 = vmatpush1.bf16.msra.mxu0 %v148
  %195 = vmatprep.subr.bf16.mxu0 0
  %196 = vmatpush1.bf16.msra.mxu0 %v149
  %197 = vmatprep.subr.bf16.mxu0 0
  %198 = vmatpush1.bf16.msra.mxu0 %v150
  %199 = vmatprep.mubr.bf16.mxu0 %v64
  %200 = vmatmul.mubr.bf16.gmra.mrb[0].mxu0 %v63
  %v201 = vpop.f32.mrb[0].mxu0
  %v202 = vadd.f32 0.0, %v201
  %v203 = vpop.f32.mrb[0].mxu0
  %v204 = vpop.f32.mrb[0].mxu0
  %v205 = vadd.f32 0.0, %v204
  %v206 = vpop.f32.mrb[0].mxu0
  %207 = vmatprep.mubr.bf16.mxu0 %v66
  %208 = vmatmul.mubr.bf16.gmra.mrb[0].mxu0 %v65
  %v209 = vpop.f32.mrb[0].mxu0
  %v210 = vadd.f32 0.0, %v209
  %v211 = vpop.f32.mrb[0].mxu0
  %v212 = vpop.f32.mrb[0].mxu0
  %v213 = vadd.f32 0.0, %v212
  %v214 = vpop.f32.mrb[0].mxu0
  %215 = vdwg.mxu0
  %216 = vst [vmem:[%s2] sm:$0xff] %v202
  %217 = vst [vmem:[%s2 + $0x8] sm:$0xff] %v205
  %218 = vst [vmem:[%s2 + $0x10] sm:$0xff] %v210
  %219 = vst [vmem:[%s2 + $0x18] sm:$0xff] %v213
  %v220 = vadd.f32 %v202, %v205
  %v221 = vadd.f32 %v220, %v210
  %v222 = vadd.f32 %v221, %v213
  %v223 = vrot.slane %v222, 4
  %v224 = vadd.f32 %v222, %v223
  %v225 = vrot.slane %v224, 2
  %v226 = vadd.f32 %v224, %v225
  %v227 = vrot.slane %v226, 1
  %v228 = vadd.f32 %v226, %v227
  %229 = vst [vmem:[%s3] sm:$0x1] %v228
  %v230 = vmul.f32 %v202, %v202
  %v231 = vmul.f32 %v205, %v205
  %v232 = vmul.f32 %v210, %v210
  %v233 = vmul.f32 %v213, %v213
  %v234 = vadd.f32 %v230, %v231
  %v235 = vadd.f32 %v234, %v232
  %v236 = vadd.f32 %v235, %v233
  %v237 = vrot.slane %v236, 4
  %v238 = vadd.f32 %v236, %v237
  %v239 = vrot.slane %v238, 2
  %v240 = vadd.f32 %v238, %v239
  %v241 = vrot.slane %v240, 1
  %v242 = vadd.f32 %v240, %v241
  %243 = vst [vmem:[%s4] sm:$0x1] %v242
  // Predicated region
  $region10: #{discriminator_forward.10} parent=0 // pred_check
    _
  $region11: #{discriminator_forward.10} parent=0 // pred_check_branch
    %245 = sbr.rel (0) target = $region13
  $region12: #{discriminator_forward.10} parent=0 // pred_region
    _
  $region13: #{discriminator_forward.10} parent=0 // pred_fallthru
    _
  // Predicated region
  $region14: #{discriminator_forward.10} parent=0 // pred_check
    _
  $region15: #{discriminator_forward.10} parent=0 // pred_check_branch
    %247 = sbr.rel (0) target = $region17
  $region16: #{discriminator_forward.10} parent=0 // pred_region
    _
  $region17: #{discriminator_forward.10} parent=0 // pred_fallthru
    _
  // Predicated region
  $region18: #{discriminator_forward.10} parent=0 // pred_check
    _
  $region19: #{discriminator_forward.10} parent=0 // pred_check_branch
    %249 = sbr.rel (0) target = $region21
  $region20: #{discriminator_forward.10} parent=0 // pred_region
    _
  $region21: #{discriminator_forward.10} parent=0 // pred_fallthru
    _
  // Predicated region
  $region22: #{discriminator_forward.10} parent=0 // pred_check
    _
  $region23: #{discriminator_forward.10} parent=0 // pred_check_branch
    %251 = sbr.rel (0) target = $region25
  $region24: #{discriminator_forward.10} parent=0 // pred_region
    _
  $region25: #{discriminator_forward.10} parent=0 // pred_fallthru
    _
  // Predicated region
  $region26: #{discriminator_forward.10} parent=0 // pred_check
    _
  $region27: #{discriminator_forward.10} parent=0 // pred_check_branch
    %253 = sbr.rel (0) target = $region29
  $region28: #{discriminator_forward.10} parent=0 // pred_region
    _
  $region29: #{discriminator_forward.10} parent=0 // pred_fallthru
    _
  // Predicated region
  $region30: #{discriminator_forward.10} parent=0 // pred_check
    _
  $region31: #{discriminator_forward.10} parent=0 // pred_check_branch
    %255 = sbr.rel (0) target = $region33
  $region32: #{discriminator_forward.10} parent=0 // pred_region
    _
  $region33: #{discriminator_forward.10} parent=0 // pred_fallthru
    _

// kernel: discriminator_forward.12
$region0: #{discriminator_forward.12}
  #allocation0 [shape = 'u32[]', space=smem, size = 0x4, offset = 0x4, fixed_abs, tag = 'smem constant byte address 0x4 - core index']
  #allocation1 [shape = 'u32[144,128]{1,0:T(1,128)}', space=vmem, size = 0x12000, scoped, tag = 'internal scratch']
  %s0 = inlined_call_operand.vmem [shape: bf16[8,512], index: 0, kind: input, shape index: {}]
  %s1 = inlined_call_operand.vmem [shape: bf16[512,128], index: 1, kind: input, shape index: {}]
  %s2 = inlined_call_operand.vmem [shape: f32[8,128], index: 2, kind: output, shape index: {0}]
  %s3 = inlined_call_operand.vmem [shape: f32[1,1,128], index: 3, kind: output, shape index: {1}]
  %s4 = inlined_call_operand.vmem [shape: f32[1,1,128], index: 4, kind: output, shape index: {2}]
  %5 = xla_tuple %s2, %s3, %s4
  %s6 = sld [smem:[#allocation0]]
  $region34: #{discriminator_forward.12} parent=0
    _
  %s8 = ssub.s32 1, %s6
  %s9 = scalar_select 0, %s8, %s6
  // Predicated region
  $region2: #{discriminator_forward.12} parent=0 // pred_check
    _
  $region3: #{discriminator_forward.12} parent=0 // pred_check_branch
    %11 = sbr.rel (0) target = $region5
  $region4: #{discriminator_forward.12} parent=0 // pred_region
    _
  $region5: #{discriminator_forward.12} parent=0 // pred_fallthru
    _
  // Predicated region
  $region6: #{discriminator_forward.12} parent=0 // pred_check
    _
  $region7: #{discriminator_forward.12} parent=0 // pred_check_branch
    %13 = sbr.rel (0) target = $region9
  $region8: #{discriminator_forward.12} parent=0 // pred_region
    _
  $region9: #{discriminator_forward.12} parent=0 // pred_fallthru
    _
  %v15 = vld [vmem:[%s0] sm:$0xff]
  %v16 = vld [vmem:[%s0 + $0x8] sm:$0xff]
  %v17 = vld [vmem:[%s1] sm:$0xf]
  %v18 = vld [vmem:[%s1 + $0x4] sm:$0xf]
  %v19 = vld [vmem:[%s1 + $0x8] sm:$0xf]
  %v20 = vld [vmem:[%s1 + $0xc] sm:$0xf]
  %v21 = vld [vmem:[%s1 + $0x10] sm:$0xf]
  %v22 = vld [vmem:[%s1 + $0x14] sm:$0xf]
  %v23 = vld [vmem:[%s1 + $0x18] sm:$0xf]
  %v24 = vld [vmem:[%s1 + $0x1c] sm:$0xf]
  %v25 = vld [vmem:[%s1 + $0x20] sm:$0xf]
  %v26 = vld [vmem:[%s1 + $0x24] sm:$0xf]
  %v27 = vld [vmem:[%s1 + $0x28] sm:$0xf]
  %v28 = vld [vmem:[%s1 + $0x2c] sm:$0xf]
  %v29 = vld [vmem:[%s1 + $0x30] sm:$0xf]
  %v30 = vld [vmem:[%s1 + $0x34] sm:$0xf]
  %v31 = vld [vmem:[%s1 + $0x38] sm:$0xf]
  %v32 = vld [vmem:[%s1 + $0x3c] sm:$0xf]
  %v33 = vld [vmem:[%s1 + $0x40] sm:$0xf]
  %v34 = vld [vmem:[%s1 + $0x44] sm:$0xf]
  %v35 = vld [vmem:[%s1 + $0x48] sm:$0xf]
  %v36 = vld [vmem:[%s1 + $0x4c] sm:$0xf]
  %v37 = vld [vmem:[%s1 + $0x50] sm:$0xf]
  %v38 = vld [vmem:[%s1 + $0x54] sm:$0xf]
  %v39 = vld [vmem:[%s1 + $0x58] sm:$0xf]
  %v40 = vld [vmem:[%s1 + $0x5c] sm:$0xf]
  %v41 = vld [vmem:[%s1 + $0x60] sm:$0xf]
  %v42 = vld [vmem:[%s1 + $0x64] sm:$0xf]
  %v43 = vld [vmem:[%s1 + $0x68] sm:$0xf]
  %v44 = vld [vmem:[%s1 + $0x6c] sm:$0xf]
  %v45 = vld [vmem:[%s1 + $0x70] sm:$0xf]
  %v46 = vld [vmem:[%s1 + $0x74] sm:$0xf]
  %v47 = vld [vmem:[%s1 + $0x78] sm:$0xf]
  %v48 = vld [vmem:[%s1 + $0x7c] sm:$0xf]
  %v49 = vld [vmem:[%s1 + $0x80] sm:$0xf]
  %v50 = vld [vmem:[%s1 + $0x84] sm:$0xf]
  %v51 = vld [vmem:[%s1 + $0x88] sm:$0xf]
  %v52 = vld [vmem:[%s1 + $0x8c] sm:$0xf]
  %v53 = vld [vmem:[%s1 + $0x90] sm:$0xf]
  %v54 = vld [vmem:[%s1 + $0x94] sm:$0xf]
  %v55 = vld [vmem:[%s1 + $0x98] sm:$0xf]
  %v56 = vld [vmem:[%s1 + $0x9c] sm:$0xf]
  %v57 = vld [vmem:[%s1 + $0xa0] sm:$0xf]
  %v58 = vld [vmem:[%s1 + $0xa4] sm:$0xf]
  %v59 = vld [vmem:[%s1 + $0xa8] sm:$0xf]
  %v60 = vld [vmem:[%s1 + $0xac] sm:$0xf]
  %v61 = vld [vmem:[%s1 + $0xb0] sm:$0xf]
  %v62 = vld [vmem:[%s1 + $0xb4] sm:$0xf]
  %v63 = vld [vmem:[%s1 + $0xb8] sm:$0xf]
  %v64 = vld [vmem:[%s1 + $0xbc] sm:$0xf]
  %v65 = vld [vmem:[%s1 + $0xc0] sm:$0xf]
  %v66 = vld [vmem:[%s1 + $0xc4] sm:$0xf]
  %v67 = vld [vmem:[%s1 + $0xc8] sm:$0xf]
  %v68 = vld [vmem:[%s1 + $0xcc] sm:$0xf]
  %v69 = vld [vmem:[%s1 + $0xd0] sm:$0xf]
  %v70 = vld [vmem:[%s1 + $0xd4] sm:$0xf]
  %v71 = vld [vmem:[%s1 + $0xd8] sm:$0xf]
  %v72 = vld [vmem:[%s1 + $0xdc] sm:$0xf]
  %v73 = vld [vmem:[%s1 + $0xe0] sm:$0xf]
  %v74 = vld [vmem:[%s1 + $0xe4] sm:$0xf]
  %v75 = vld [vmem:[%s1 + $0xe8] sm:$0xf]
  %v76 = vld [vmem:[%s1 + $0xec] sm:$0xf]
  %v77 = vld [vmem:[%s1 + $0xf0] sm:$0xf]
  %v78 = vld [vmem:[%s1 + $0xf4] sm:$0xf]
  %v79 = vld [vmem:[%s1 + $0xf8] sm:$0xf]
  %v80 = vld [vmem:[%s1 + $0xfc] sm:$0xf]
  %v83 = vunpack.c.l.b16 %v15
  %v84 = vunpack.c.h.b16 %v15
  %v85 = vunpack.c.l.b16 %v16
  %v86 = vunpack.c.h.b16 %v16
  %v87 = vpack.c.b16 %v83, %v83
  %v88 = vpack.c.b16 %v84, %v84
  %v89 = vpack.c.b16 %v85, %v85
  %v90 = vpack.c.b16 %v86, %v86
  %v159 = vunpack.c.l.b16 %v17
  %v160 = vunpack.c.l.b16 %v18
  %v161 = vunpack.c.l.b16 %v19
  %v162 = vunpack.c.l.b16 %v20
  %v163 = vunpack.c.l.b16 %v21
  %v164 = vunpack.c.l.b16 %v22
  %v165 = vunpack.c.l.b16 %v23
  %v166 = vunpack.c.l.b16 %v24
  %v167 = vunpack.c.l.b16 %v25
  %v168 = vunpack.c.l.b16 %v26
  %v169 = vunpack.c.l.b16 %v27
  %v170 = vunpack.c.l.b16 %v28
  %v171 = vunpack.c.l.b16 %v29
  %v172 = vunpack.c.l.b16 %v30
  %v173 = vunpack.c.l.b16 %v31
  %v174 = vunpack.c.l.b16 %v32
  %v175 = vunpack.c.l.b16 %v33
  %v176 = vunpack.c.l.b16 %v34
  %v177 = vunpack.c.l.b16 %v35
  %v178 = vunpack.c.l.b16 %v36
  %v179 = vunpack.c.l.b16 %v37
  %v180 = vunpack.c.l.b16 %v38
  %v181 = vunpack.c.l.b16 %v39
  %v182 = vunpack.c.l.b16 %v40
  %v183 = vunpack.c.l.b16 %v41
  %v184 = vunpack.c.l.b16 %v42
  %v185 = vunpack.c.l.b16 %v43
  %v186 = vunpack.c.l.b16 %v44
  %v187 = vunpack.c.l.b16 %v45
  %v188 = vunpack.c.l.b16 %v46
  %v189 = vunpack.c.l.b16 %v47
  %v190 = vunpack.c.l.b16 %v48
  %v191 = vunpack.c.l.b16 %v49
  %v192 = vunpack.c.l.b16 %v50
  %v193 = vunpack.c.l.b16 %v51
  %v194 = vunpack.c.l.b16 %v52
  %v195 = vunpack.c.l.b16 %v53
  %v196 = vunpack.c.l.b16 %v54
  %v197 = vunpack.c.l.b16 %v55
  %v198 = vunpack.c.l.b16 %v56
  %v199 = vunpack.c.l.b16 %v57
  %v200 = vunpack.c.l.b16 %v58
  %v201 = vunpack.c.l.b16 %v59
  %v202 = vunpack.c.l.b16 %v60
  %v203 = vunpack.c.l.b16 %v61
  %v204 = vunpack.c.l.b16 %v62
  %v205 = vunpack.c.l.b16 %v63
  %v206 = vunpack.c.l.b16 %v64
  %v207 = vunpack.c.l.b16 %v65
  %v208 = vunpack.c.l.b16 %v66
  %v209 = vunpack.c.l.b16 %v67
  %v210 = vunpack.c.l.b16 %v68
  %v211 = vunpack.c.l.b16 %v69
  %v212 = vunpack.c.l.b16 %v70
  %v213 = vunpack.c.l.b16 %v71
  %v214 = vunpack.c.l.b16 %v72
  %v215 = vunpack.c.l.b16 %v73
  %v216 = vunpack.c.l.b16 %v74
  %v217 = vunpack.c.l.b16 %v75
  %v218 = vunpack.c.l.b16 %v76
  %v219 = vunpack.c.l.b16 %v77
  %v220 = vunpack.c.l.b16 %v78
  %v221 = vunpack.c.l.b16 %v79
  %v222 = vunpack.c.l.b16 %v80
  %v223 = vpack.c.b16 %v160, %v159
  %v224 = vpack.c.b16 %v162, %v161
  %v225 = vpack.c.b16 %v164, %v163
  %v226 = vpack.c.b16 %v166, %v165
  %v227 = vpack.c.b16 %v168, %v167
  %v228 = vpack.c.b16 %v170, %v169
  %v229 = vpack.c.b16 %v172, %v171
  %v230 = vpack.c.b16 %v174, %v173
  %v231 = vpack.c.b16 %v176, %v175
  %v232 = vpack.c.b16 %v178, %v177
  %v233 = vpack.c.b16 %v180, %v179
  %v234 = vpack.c.b16 %v182, %v181
  %v235 = vpack.c.b16 %v184, %v183
  %v236 = vpack.c.b16 %v186, %v185
  %v237 = vpack.c.b16 %v188, %v187
  %v238 = vpack.c.b16 %v190, %v189
  %v239 = vpack.c.b16 %v192, %v191
  %v240 = vpack.c.b16 %v194, %v193
  %v241 = vpack.c.b16 %v196, %v195
  %v242 = vpack.c.b16 %v198, %v197
  %v243 = vpack.c.b16 %v200, %v199
  %v244 = vpack.c.b16 %v202, %v201
  %v245 = vpack.c.b16 %v204, %v203
  %v246 = vpack.c.b16 %v206, %v205
  %v247 = vpack.c.b16 %v208, %v207
  %v248 = vpack.c.b16 %v210, %v209
  %v249 = vpack.c.b16 %v212, %v211
  %v250 = vpack.c.b16 %v214, %v213
  %v251 = vpack.c.b16 %v216, %v215
  %v252 = vpack.c.b16 %v218, %v217
  %v253 = vpack.c.b16 %v220, %v219
  %v254 = vpack.c.b16 %v222, %v221
  %287 = vmatprep.subr.bf16.mxu0 0
  %288 = vmatpush1.bf16.msra.mxu0 %v223
  %289 = vmatprep.subr.bf16.mxu0 0
  %290 = vmatpush1.bf16.msra.mxu0 %v224
  %291 = vmatprep.subr.bf16.mxu0 0
  %292 = vmatpush1.bf16.msra.mxu0 %v225
  %293 = vmatprep.subr.bf16.mxu0 0
  %294 = vmatpush1.bf16.msra.mxu0 %v226
  %295 = vmatprep.subr.bf16.mxu0 0
  %296 = vmatpush1.bf16.msra.mxu0 %v227
  %297 = vmatprep.subr.bf16.mxu0 0
  %298 = vmatpush1.bf16.msra.mxu0 %v228
  %299 = vmatprep.subr.bf16.mxu0 0
  %300 = vmatpush1.bf16.msra.mxu0 %v229
  %301 = vmatprep.subr.bf16.mxu0 0
  %302 = vmatpush1.bf16.msra.mxu0 %v230
  %303 = vmatprep.subr.bf16.mxu0 0
  %304 = vmatpush1.bf16.msra.mxu0 %v231
  %305 = vmatprep.subr.bf16.mxu0 0
  %306 = vmatpush1.bf16.msra.mxu0 %v232
  %307 = vmatprep.subr.bf16.mxu0 0
  %308 = vmatpush1.bf16.msra.mxu0 %v233
  %309 = vmatprep.subr.bf16.mxu0 0
  %310 = vmatpush1.bf16.msra.mxu0 %v234
  %311 = vmatprep.subr.bf16.mxu0 0
  %312 = vmatpush1.bf16.msra.mxu0 %v235
  %313 = vmatprep.subr.bf16.mxu0 0
  %314 = vmatpush1.bf16.msra.mxu0 %v236
  %315 = vmatprep.subr.bf16.mxu0 0
  %316 = vmatpush1.bf16.msra.mxu0 %v237
  %317 = vmatprep.subr.bf16.mxu0 0
  %318 = vmatpush1.bf16.msra.mxu0 %v238
  %319 = vmatprep.mubr.bf16.mxu0 %v88
  %320 = vmatmul.mubr.bf16.gmra.mrb[0].mxu0 %v87
  %v321 = vpop.f32.mrb[0].mxu0
  %v322 = vadd.f32 0.0, %v321
  %v323 = vpop.f32.mrb[0].mxu0
  %v324 = vpop.f32.mrb[0].mxu0
  %v325 = vpop.f32.mrb[0].mxu0
  %326 = vdwg.mxu0
  %327 = vmatprep.subr.bf16.mxu0 0
  %328 = vmatpush1.bf16.msra.mxu0 %v239
  %329 = vmatprep.subr.bf16.mxu0 0
  %330 = vmatpush1.bf16.msra.mxu0 %v240
  %331 = vmatprep.subr.bf16.mxu0 0
  %332 = vmatpush1.bf16.msra.mxu0 %v241
  %333 = vmatprep.subr.bf16.mxu0 0
  %334 = vmatpush1.bf16.msra.mxu0 %v242
  %335 = vmatprep.subr.bf16.mxu0 0
  %336 = vmatpush1.bf16.msra.mxu0 %v243
  %337 = vmatprep.subr.bf16.mxu0 0
  %338 = vmatpush1.bf16.msra.mxu0 %v244
  %339 = vmatprep.subr.bf16.mxu0 0
  %340 = vmatpush1.bf16.msra.mxu0 %v245
  %341 = vmatprep.subr.bf16.mxu0 0
  %342 = vmatpush1.bf16.msra.mxu0 %v246
  %343 = vmatprep.subr.bf16.mxu0 0
  %344 = vmatpush1.bf16.msra.mxu0 %v247
  %345 = vmatprep.subr.bf16.mxu0 0
  %346 = vmatpush1.bf16.msra.mxu0 %v248
  %347 = vmatprep.subr.bf16.mxu0 0
  %348 = vmatpush1.bf16.msra.mxu0 %v249
  %349 = vmatprep.subr.bf16.mxu0 0
  %350 = vmatpush1.bf16.msra.mxu0 %v250
  %351 = vmatprep.subr.bf16.mxu0 0
  %352 = vmatpush1.bf16.msra.mxu0 %v251
  %353 = vmatprep.subr.bf16.mxu0 0
  %354 = vmatpush1.bf16.msra.mxu0 %v252
  %355 = vmatprep.subr.bf16.mxu0 0
  %356 = vmatpush1.bf16.msra.mxu0 %v253
  %357 = vmatprep.subr.bf16.mxu0 0
  %358 = vmatpush1.bf16.msra.mxu0 %v254
  %359 = vmatprep.mubr.bf16.mxu0 %v90
  %360 = vmatmul.mubr.bf16.gmra.mrb[0].mxu0 %v89
  %v361 = vpop.f32.mrb[0].mxu0
  %v362 = vadd.f32 %v322, %v361
  %v363 = vpop.f32.mrb[0].mxu0
  %v364 = vpop.f32.mrb[0].mxu0
  %v365 = vpop.f32.mrb[0].mxu0
  %366 = vdwg.mxu0
  %367 = vst [vmem:[%s2] sm:$0xff] %v362
  %v368 = vrot.slane %v362, 4
  %v369 = vadd.f32 %v362, %v368
  %v370 = vrot.slane %v369, 2
  %v371 = vadd.f32 %v369, %v370
  %v372 = vrot.slane %v371, 1
  %v373 = vadd.f32 %v371, %v372
  %374 = vst [vmem:[%s3] sm:$0x1] %v373
  %v375 = vmul.f32 %v362, %v362
  %v376 = vrot.slane %v375, 4
  %v377 = vadd.f32 %v375, %v376
  %v378 = vrot.slane %v377, 2
  %v379 = vadd.f32 %v377, %v378
  %v380 = vrot.slane %v379, 1
  %v381 = vadd.f32 %v379, %v380
  %382 = vst [vmem:[%s4] sm:$0x1] %v381
  // Predicated region
  $region10: #{discriminator_forward.12} parent=0 // pred_check
    _
  $region11: #{discriminator_forward.12} parent=0 // pred_check_branch
    %384 = sbr.rel (0) target = $region13
  $region12: #{discriminator_forward.12} parent=0 // pred_region
    _
  $region13: #{discriminator_forward.12} parent=0 // pred_fallthru
    _
  // Predicated region
  $region14: #{discriminator_forward.12} parent=0 // pred_check
    _
  $region15: #{discriminator_forward.12} parent=0 // pred_check_branch
    %386 = sbr.rel (0) target = $region17
  $region16: #{discriminator_forward.12} parent=0 // pred_region
    _
  $region17: #{discriminator_forward.12} parent=0 // pred_fallthru
    _
  // Predicated region
  $region18: #{discriminator_forward.12} parent=0 // pred_check
    _
  $region19: #{discriminator_forward.12} parent=0 // pred_check_branch
    %388 = sbr.rel (0) target = $region21
  $region20: #{discriminator_forward.12} parent=0 // pred_region
    _
  $region21: #{discriminator_forward.12} parent=0 // pred_fallthru
    _
  // Predicated region
  $region22: #{discriminator_forward.12} parent=0 // pred_check
    _
  $region23: #{discriminator_forward.12} parent=0 // pred_check_branch
    %390 = sbr.rel (0) target = $region25
  $region24: #{discriminator_forward.12} parent=0 // pred_region
    _
  $region25: #{discriminator_forward.12} parent=0 // pred_fallthru
    _
  // Predicated region
  $region26: #{discriminator_forward.12} parent=0 // pred_check
    _
  $region27: #{discriminator_forward.12} parent=0 // pred_check_branch
    %392 = sbr.rel (0) target = $region29
  $region28: #{discriminator_forward.12} parent=0 // pred_region
    _
  $region29: #{discriminator_forward.12} parent=0 // pred_fallthru
    _
  // Predicated region
  $region30: #{discriminator_forward.12} parent=0 // pred_check
    _
  $region31: #{discriminator_forward.12} parent=0 // pred_check_branch
    %394 = sbr.rel (0) target = $region33
  $region32: #{discriminator_forward.12} parent=0 // pred_region
    _
  $region33: #{discriminator_forward.12} parent=0 // pred_fallthru
    _

// kernel: discriminator_forward.13
$region0: #{discriminator_forward.13}
  #allocation0 [shape = 'u32[]', space=smem, size = 0x4, offset = 0x4, fixed_abs, tag = 'smem constant byte address 0x4 - core index']
  #allocation1 [shape = 'u32[144,128]{1,0:T(1,128)}', space=vmem, size = 0x12000, scoped, tag = 'internal scratch']
  %s0 = inlined_call_operand.vmem [shape: f32[8,128], index: 0, kind: input, shape index: {}]
  %s1 = inlined_call_operand.vmem [shape: f32[1,128], index: 1, kind: input, shape index: {}]
  %s2 = inlined_call_operand.vmem [shape: f32[1,128], index: 2, kind: input, shape index: {}]
  %s3 = inlined_call_operand.vmem [shape: bf16[128,128], index: 3, kind: input, shape index: {}]
  %s4 = inlined_call_operand.vmem [shape: f32[8,128], index: 4, kind: output, shape index: {}]
  %s5 = sld [smem:[#allocation0]]
  $region26: #{discriminator_forward.13} parent=0
    _
  %s7 = ssub.s32 1, %s5
  %s8 = scalar_select 0, %s7, %s5
  // Predicated region
  $region2: #{discriminator_forward.13} parent=0 // pred_check
    _
  $region3: #{discriminator_forward.13} parent=0 // pred_check_branch
    %10 = sbr.rel (0) target = $region5
  $region4: #{discriminator_forward.13} parent=0 // pred_region
    _
  $region5: #{discriminator_forward.13} parent=0 // pred_fallthru
    _
  // Predicated region
  $region6: #{discriminator_forward.13} parent=0 // pred_check
    _
  $region7: #{discriminator_forward.13} parent=0 // pred_check_branch
    %12 = sbr.rel (0) target = $region9
  $region8: #{discriminator_forward.13} parent=0 // pred_region
    _
  $region9: #{discriminator_forward.13} parent=0 // pred_fallthru
    _
  // Predicated region
  $region10: #{discriminator_forward.13} parent=0 // pred_check
    _
  $region11: #{discriminator_forward.13} parent=0 // pred_check_branch
    %14 = sbr.rel (0) target = $region13
  $region12: #{discriminator_forward.13} parent=0 // pred_region
    _
  $region13: #{discriminator_forward.13} parent=0 // pred_fallthru
    _
  // Predicated region
  $region14: #{discriminator_forward.13} parent=0 // pred_check
    _
  $region15: #{discriminator_forward.13} parent=0 // pred_check_branch
    %16 = sbr.rel (0) target = $region17
  $region16: #{discriminator_forward.13} parent=0 // pred_region
    _
  $region17: #{discriminator_forward.13} parent=0 // pred_fallthru
    _
  %v18 = vld [vmem:[%s0] sm:$0xff]
  %v19 = vld [vmem:[%s1] sm:$0x1]
  %v21 = vlaneseq
  %v22 = vshrl.u32 %v21, 7
  %v23 = vsub.s32 0, %v22
  %v24 = vrot.slane %v19, %v23
  %v26 = vmul.f32 %v18, %v24
  %v27 = vld [vmem:[%s2] sm:$0x1]
  %v29 = vlaneseq
  %v30 = vshrl.u32 %v29, 7
  %v31 = vsub.s32 0, %v30
  %v32 = vrot.slane %v27, %v31
  %v34 = vadd.f32 %v26, %v32
  %vm35 = vcmp.gt.f32.partialorder %v34, 0.0
  %v36 = vmul.f32 %v34, 0.2
  %v37 = vsel %vm35, %v34, %v36
  %v38 = vpack.c.bf16 %v37, %v37
  %v39 = vld [vmem:[%s3] sm:$0xf]
  %v40 = vld [vmem:[%s3 + $0x4] sm:$0xf]
  %v41 = vld [vmem:[%s3 + $0x8] sm:$0xf]
  %v42 = vld [vmem:[%s3 + $0xc] sm:$0xf]
  %v43 = vld [vmem:[%s3 + $0x10] sm:$0xf]
  %v44 = vld [vmem:[%s3 + $0x14] sm:$0xf]
  %v45 = vld [vmem:[%s3 + $0x18] sm:$0xf]
  %v46 = vld [vmem:[%s3 + $0x1c] sm:$0xf]
  %v47 = vld [vmem:[%s3 + $0x20] sm:$0xf]
  %v48 = vld [vmem:[%s3 + $0x24] sm:$0xf]
  %v49 = vld [vmem:[%s3 + $0x28] sm:$0xf]
  %v50 = vld [vmem:[%s3 + $0x2c] sm:$0xf]
  %v51 = vld [vmem:[%s3 + $0x30] sm:$0xf]
  %v52 = vld [vmem:[%s3 + $0x34] sm:$0xf]
  %v53 = vld [vmem:[%s3 + $0x38] sm:$0xf]
  %v54 = vld [vmem:[%s3 + $0x3c] sm:$0xf]
  %v71 = vunpack.c.l.b16 %v39
  %v72 = vunpack.c.l.b16 %v40
  %v73 = vunpack.c.l.b16 %v41
  %v74 = vunpack.c.l.b16 %v42
  %v75 = vunpack.c.l.b16 %v43
  %v76 = vunpack.c.l.b16 %v44
  %v77 = vunpack.c.l.b16 %v45
  %v78 = vunpack.c.l.b16 %v46
  %v79 = vunpack.c.l.b16 %v47
  %v80 = vunpack.c.l.b16 %v48
  %v81 = vunpack.c.l.b16 %v49
  %v82 = vunpack.c.l.b16 %v50
  %v83 = vunpack.c.l.b16 %v51
  %v84 = vunpack.c.l.b16 %v52
  %v85 = vunpack.c.l.b16 %v53
  %v86 = vunpack.c.l.b16 %v54
  %v87 = vpack.c.b16 %v72, %v71
  %v88 = vpack.c.b16 %v74, %v73
  %v89 = vpack.c.b16 %v76, %v75
  %v90 = vpack.c.b16 %v78, %v77
  %v91 = vpack.c.b16 %v80, %v79
  %v92 = vpack.c.b16 %v82, %v81
  %v93 = vpack.c.b16 %v84, %v83
  %v94 = vpack.c.b16 %v86, %v85
  %103 = vmatprep.subr.bf16.mxu0 0
  %104 = vmatpush1.bf16.msra.mxu0 %v87
  %105 = vmatprep.subr.bf16.mxu0 0
  %106 = vmatpush1.bf16.msra.mxu0 %v88
  %107 = vmatprep.subr.bf16.mxu0 0
  %108 = vmatpush1.bf16.msra.mxu0 %v89
  %109 = vmatprep.subr.bf16.mxu0 0
  %110 = vmatpush1.bf16.msra.mxu0 %v90
  %111 = vmatprep.subr.bf16.mxu0 0
  %112 = vmatpush1.bf16.msra.mxu0 %v91
  %113 = vmatprep.subr.bf16.mxu0 0
  %114 = vmatpush1.bf16.msra.mxu0 %v92
  %115 = vmatprep.subr.bf16.mxu0 0
  %116 = vmatpush1.bf16.msra.mxu0 %v93
  %117 = vmatprep.subr.bf16.mxu0 0
  %118 = vmatpush1.bf16.msra.mxu0 %v94
  %119 = vmatprep.subr.bf16.mxu0 0
  %120 = vmatpush1.bf16.msra.mxu0 0
  %121 = vmatprep.subr.bf16.mxu0 0
  %122 = vmatpush1.bf16.msra.mxu0 0
  %123 = vmatprep.subr.bf16.mxu0 0
  %124 = vmatpush1.bf16.msra.mxu0 0
  %125 = vmatprep.subr.bf16.mxu0 0
  %126 = vmatpush1.bf16.msra.mxu0 0
  %127 = vmatprep.subr.bf16.mxu0 0
  %128 = vmatpush1.bf16.msra.mxu0 0
  %129 = vmatprep.subr.bf16.mxu0 0
  %130 = vmatpush1.bf16.msra.mxu0 0
  %131 = vmatprep.subr.bf16.mxu0 0
  %132 = vmatpush1.bf16.msra.mxu0 0
  %133 = vmatprep.subr.bf16.mxu0 0
  %134 = vmatpush1.bf16.msra.mxu0 0
  %135 = vmatprep.mubr.bf16.mxu0 0
  %136 = vmatmul.mubr.bf16.gmra.mrb[0].mxu0 %v38
  %v137 = vpop.f32.mrb[0].mxu0
  %v138 = vadd.f32 0.0, %v137
  %v139 = vpop.f32.mrb[0].mxu0
  %v140 = vpop.f32.mrb[0].mxu0
  %v141 = vpop.f32.mrb[0].mxu0
  %142 = vdwg.mxu0
  %v143 = vand.u32 2147483647, %v138
  %v144 = vsub.f32 0.0, %v143
  %v145 = vmul.f32 %v144, 1.442695
  %v146 = vpow.pop %v145
  %vm147 = vcmp.ge.f32.partialorder %v138, 0.0
  %v148 = vadd.f32 %v146, 1.0
  %v149 = vrcp.pop %v148
  %v150 = vmul.f32 1.0, %v149
  %v151 = vmul.f32 %v146, %v149
  %v152 = vsel %vm147, %v150, %v151
  %153 = vst [vmem:[%s4] sm:$0xff] %v152
  // Predicated region
  $region18: #{discriminator_forward.13} parent=0 // pred_check
    _
  $region19: #{discriminator_forward.13} parent=0 // pred_check_branch
    %155 = sbr.rel (0) target = $region21
  $region20: #{discriminator_forward.13} parent=0 // pred_region
    _
  $region21: #{discriminator_forward.13} parent=0 // pred_fallthru
    _
  // Predicated region
  $region22: #{discriminator_forward.13} parent=0 // pred_check
    _
  $region23: #{discriminator_forward.13} parent=0 // pred_check_branch
    %157 = sbr.rel (0) target = $region25
  $region24: #{discriminator_forward.13} parent=0 // pred_region
    _
  $region25: #{discriminator_forward.13} parent=0 // pred_fallthru
    _

</llo_original>
